<compile_context>
chip_gen: v7x
topology: tpu7x:2x2x1
jax: 0.10.0
libtpu: 0.0.40
codegen_flags: <defaults>
</compile_context>

<pallas_src>
import jax
import jax.numpy as jnp
from jax.experimental import pallas as pl
from jax.experimental.pallas import tpu as pltpu  # noqa: F401  (kept for parity / future tuning)

EMBED_DIM = 512     # embed_dim in the PyTorch module
NUM_HEADS = 8       # numerically irrelevant: seq-len-1 softmax == 1 (see note below)
NUM_LAYERS = 4      # num_cross_attn_layers
FEAT_DIM = 1536     # EfficientNet-B3 feature width
STEM_OUT = 40       # EfficientNet-B3 stem output channels
STEM_PAD = 128      # stem channels padded to a full lane width
K_PAD = 256         # padded im2col feature dim (face 3*3*15=135, audio 3*3*1=9)
OUT_PAD = 128       # fc2 output padded to a full lane width


# ----------------------------------------------------------------------------
# Single fused kernel (no grid -- whole problem fits VMEM comfortably).
#   per modality:  stem = SiLU(patches @ Wc + bc)   (conv + folded BN + SiLU)
#                  pooled = mean over positions     (VPU reshape + mean)
#                  emb = pooled @ Wt + bt           (synthetic trunk, see TODO)
#   post path:     hidden = ReLU(femb @ AffF + aemb @ AffA + aff_b)
#                  out = hidden @ W2 + b2           (lane-padded head)
#
# Cross-attention note: each sample is a length-1 sequence, so the softmax over
# a single key position is exactly 1 and nn.MultiheadAttention output equals
# out_proj(value_proj(kv)); the Q/K projections cancel.  Hence the whole
# proj -> 4x cross-attn -> fc1 stack is affine and pre-folded into AffF/AffA/aff_b
# (exact eval-time algebra, done in fp32 in init_params).
# Note the PyTorch reference computes `combined = face_to_audio + audio_to_face`
# from the LAST layer's attention outputs (not the residual states); the fold
# reproduces exactly that.
# ----------------------------------------------------------------------------
def _fused_kernel(fpatch_ref, apatch_ref,
                  fcw_ref, fcb_ref, acw_ref, acb_ref,
                  ftw_ref, ftb_ref, atw_ref, atb_ref,
                  aff_f_ref, aff_a_ref, aff_b_ref,
                  fc2w_ref, fc2b_ref,
                  femb_ref, aemb_ref, out_ref):
    B = femb_ref.shape[0]
    BP = fpatch_ref.shape[0]
    npos = BP // B

    def encode(patch_ref, cw_ref, cb_ref, tw_ref, tb_ref):
        stem = jnp.dot(patch_ref[...], cw_ref[...],
                       preferred_element_type=jnp.float32) + cb_ref[...]
        stem = stem * jax.nn.sigmoid(stem)                     # SiLU in f32
        pooled = jnp.mean(stem.reshape(B, npos, STEM_PAD), axis=1)   # (B, STEM_PAD)
        emb = jnp.dot(pooled.astype(jnp.bfloat16), tw_ref[...],
                      preferred_element_type=jnp.float32) + tb_ref[...]
        return emb                                             # (B, FEAT_DIM) f32

    femb = encode(fpatch_ref, fcw_ref, fcb_ref, ftw_ref, ftb_ref)
    aemb = encode(apatch_ref, acw_ref, acb_ref, atw_ref, atb_ref)
    femb_ref[...] = femb
    aemb_ref[...] = aemb

    # Folded post path: projections + 4 cross-attn layers + fc1 (pre-ReLU).
    hidden = (jnp.dot(femb.astype(jnp.bfloat16), aff_f_ref[...],
                      preferred_element_type=jnp.float32)
              + jnp.dot(aemb.astype(jnp.bfloat16), aff_a_ref[...],
                        preferred_element_type=jnp.float32)
              + aff_b_ref[...])
    hidden = jnp.maximum(hidden, 0.0)            # ReLU; dropout identity at eval
    out = jnp.dot(hidden.astype(jnp.bfloat16), fc2w_ref[...],
                  preferred_element_type=jnp.float32) + fc2b_ref[...]
    out_ref[...] = out


def pallas_forward(face_patches, audio_patches, p, batch):
    femb, aemb, out_pad = pl.pallas_call(
        _fused_kernel,
        out_shape=(
            jax.ShapeDtypeStruct((batch, FEAT_DIM), jnp.float32),   # face embedding
            jax.ShapeDtypeStruct((batch, FEAT_DIM), jnp.float32),   # audio embedding
            jax.ShapeDtypeStruct((batch, OUT_PAD), jnp.float32),    # padded logits
        ),
    )(face_patches, audio_patches,
      p["conv_w_f"], p["conv_b_f"], p["conv_w_a"], p["conv_b_a"],
      p["trunk_w_f"], p["trunk_b_f"], p["trunk_w_a"], p["trunk_b_a"],
      p["aff_f"], p["aff_a"], p["aff_b"],
      p["fc2_w_pad"], p["fc2_b_pad"])
    return femb, aemb, out_pad


# ----------------------------------------------------------------------------
# Glue: im2col for the 3x3 stride-2 pad-1 EfficientNet stem conv (NHWC).
# ----------------------------------------------------------------------------
def _im2col_3x3_s2_p1(x_nhwc):
    B, H, W, C = x_nhwc.shape
    xp = jnp.pad(x_nhwc, ((0, 0), (1, 1), (1, 1), (0, 0)))
    OH = (H + 2 - 3) // 2 + 1
    OW = (W + 2 - 3) // 2 + 1
    cols = []
    for i in range(3):
        for j in range(3):
            cols.append(xp[:, i:i + 2 * OH:2, j:j + 2 * OW:2, :])  # (B, OH, OW, C)
    patches = jnp.concatenate(cols, axis=-1)                       # order (kh, kw, Cin)
    return patches.reshape(B * OH * OW, 9 * C), OH * OW


# ----------------------------------------------------------------------------
# Parameter initialization (deterministic, synthetic) + eval-time algebra folds.
# Matmul weights stored bf16; all folds computed in fp32, cast once at the end.
# ----------------------------------------------------------------------------
def init_params(key):
    ks = iter(jax.random.split(key, 64))

    def nrm(shape, scale=0.02):
        return scale * jax.random.normal(next(ks), shape, dtype=jnp.float32)

    E, F = EMBED_DIM, FEAT_DIM
    params = {}

    # modify_efficientnet_conv1 semantics: base 3-channel stem weight; face uses
    # base for ch 0..2 and the channel-mean for ch 3..14; audio uses base[:, :1].
    base_w = nrm((STEM_OUT, 3, 3, 3))
    mean_w = jnp.mean(base_w, axis=1, keepdims=True)
    face_conv_w = jnp.concatenate([base_w] + [mean_w] * (15 - 3), axis=1)   # (40,15,3,3)
    audio_conv_w = base_w[:, :1]                                            # (40,1,3,3)

    def fold_bn_and_pack(w):
        # Eval-time BatchNorm fold into the conv weight/bias.
        gamma = 1.0 + nrm((STEM_OUT,), 0.01)
        beta = nrm((STEM_OUT,), 0.01)
        mean = nrm((STEM_OUT,), 0.01)
        var = 1.0 + jnp.abs(nrm((STEM_OUT,), 0.01))
        scale = gamma / jnp.sqrt(var + 1e-5)
        w_f = w * scale[:, None, None, None]
        b_f = beta - mean * scale
        cin = w.shape[1]
        w_mat = jnp.transpose(w_f, (2, 3, 1, 0)).reshape(9 * cin, STEM_OUT)
        w_mat = jnp.pad(w_mat, ((0, K_PAD - 9 * cin), (0, STEM_PAD - STEM_OUT)))
        b_row = jnp.pad(b_f, (0, STEM_PAD - STEM_OUT)).reshape(1, STEM_PAD)
        return w_mat.astype(jnp.bfloat16), b_row

    params["conv_w_f"], params["conv_b_f"] = fold_bn_and_pack(face_conv_w)
    params["conv_w_a"], params["conv_b_a"] = fold_bn_and_pack(audio_conv_w)

    # TODO(synk): the full EfficientNet-B3 MBConv trunk is not translated; it is
    # replaced by global-average-pool + a deterministic linear (stem -> 1536),
    # preserving the (B, 1536) embedding shape fed to the rest of the forward.
    def trunk():
        w = jnp.pad(nrm((STEM_OUT, F)), ((0, STEM_PAD - STEM_OUT), (0, 0)))
        return w.astype(jnp.bfloat16), nrm((1, F))

    params["trunk_w_f"], params["trunk_b_f"] = trunk()
    params["trunk_w_a"], params["trunk_b_a"] = trunk()

    # nn.Linear weights stored transposed to (in, out) for x @ W layout.
    Wfp, bfp = nrm((F, E)), nrm((1, E))        # face_proj
    Wap, bap = nrm((F, E)), nrm((1, E))        # audio_proj

    # TODO(synk): CrossAttention is not defined in the source snippet; taken as
    # nn.MultiheadAttention(embed_dim, num_heads, dropout) applied to the (B, E)
    # tensors as length-1 sequences (dropout identity at eval); with seq len 1
    # the Q/K projections cancel exactly.
    def xattn_layer():
        in_proj_w = nrm((3 * E, E))            # MultiheadAttention in_proj_weight
        in_proj_b = nrm((3 * E,))
        out_w = nrm((E, E))                    # out_proj.weight
        out_b = nrm((E,))
        wv = in_proj_w[2 * E:].T               # value slice, (E, E), x @ W layout
        bv = in_proj_b[2 * E:].reshape(1, E)
        return wv, bv, out_w.T, out_b.reshape(1, E)

    layers_fa = [xattn_layer() for _ in range(NUM_LAYERS)]
    layers_af = [xattn_layer() for _ in range(NUM_LAYERS)]

    W1, b1 = nrm((E, 512)), nrm((1, 512))      # fc1
    fc2_w, fc2_b = nrm((512, 2)), nrm((2,))    # fc2

    # ---- Exact eval-time affine fold (fp32) ---------------------------------
    # Track face_proj = femb@Ff + aemb@Fa + fc,  audio_proj = femb@Af + aemb@Aa + ac.
    Ff, Fa, fcv = Wfp, jnp.zeros((F, E), jnp.float32), bfp
    Af, Aa, acv = jnp.zeros((F, E), jnp.float32), Wap, bap
    f2a_F = f2a_A = f2a_c = a2f_F = a2f_A = a2f_c = None
    for (wv_fa, bv_fa, wo_fa, bo_fa), (wv_af, bv_af, wo_af, bo_af) in zip(layers_fa, layers_af):
        W_fa, b_fa = wv_fa @ wo_fa, bv_fa @ wo_fa + bo_fa      # Wv·Wo fold (exact)
        W_af, b_af = wv_af @ wo_af, bv_af @ wo_af + bo_af
        # attention outputs computed from the PRE-update states of this layer
        f2a_F, f2a_A, f2a_c = Af @ W_fa, Aa @ W_fa, acv @ W_fa + b_fa
        a2f_F, a2f_A, a2f_c = Ff @ W_af, Fa @ W_af, fcv @ W_af + b_af
        # residual updates
        Ff, Fa, fcv = Ff + f2a_F, Fa + f2a_A, fcv + f2a_c
        Af, Aa, acv = Af + a2f_F, Aa + a2f_A, acv + a2f_c
    # combined = last layer's face_to_audio + audio_to_face (matches PyTorch source)
    Cf, Ca, cc = f2a_F + a2f_F, f2a_A + a2f_A, f2a_c + a2f_c
    # fold through fc1 (linear part; ReLU stays in the kernel)
    params["aff_f"] = (Cf @ W1).astype(jnp.bfloat16)           # (1536, 512)
    params["aff_a"] = (Ca @ W1).astype(jnp.bfloat16)           # (1536, 512)
    params["aff_b"] = cc @ W1 + b1                             # (1, 512) f32

    # Pad the 2-wide head to a full 128-lane output slab (wrapper slices [:, :2]).
    params["fc2_w_pad"] = jnp.pad(fc2_w, ((0, 0), (0, OUT_PAD - 2))).astype(jnp.bfloat16)
    params["fc2_b_pad"] = jnp.pad(fc2_b, (0, OUT_PAD - 2)).reshape(1, OUT_PAD)
    return params


# ----------------------------------------------------------------------------
# Full forward pass (mirrors TransformerEfficientNetB3Syncnet.forward).
# ----------------------------------------------------------------------------
def forward(face, audio, params):
    B = face.shape[0]
    # NCHW -> NHWC, im2col the 3x3 stride-2 pad-1 stem, pad K to 256, bf16.
    fp, _ = _im2col_3x3_s2_p1(jnp.transpose(face, (0, 2, 3, 1)))
    ap, _ = _im2col_3x3_s2_p1(jnp.transpose(audio, (0, 2, 3, 1)))
    fp = jnp.pad(fp, ((0, 0), (0, K_PAD - fp.shape[1]))).astype(jnp.bfloat16)
    ap = jnp.pad(ap, ((0, 0), (0, K_PAD - ap.shape[1]))).astype(jnp.bfloat16)

    face_embedding, audio_embedding, out_pad = pallas_forward(fp, ap, params, B)
    out = out_pad[:, :2]
    return out, audio_embedding, face_embedding


if __name__ == "__main__":
    key = jax.random.PRNGKey(0)
    pkey, fkey, akey = jax.random.split(key, 3)
    params = init_params(pkey)

    # SyncNet-style inputs: face = 5 RGB frames stacked (15 ch), audio = 1-ch spectrogram.
    face = jax.random.normal(fkey, (2, 15, 16, 16), dtype=jnp.float32)
    audio = jax.random.normal(akey, (2, 1, 16, 16), dtype=jnp.float32)

    fwd = jax.jit(lambda f, a: forward(f, a, params))
    out, audio_emb, face_emb = fwd(face, audio)
    jax.block_until_ready((out, audio_emb, face_emb))

    assert out.shape == (2, 2)
    assert audio_emb.shape == (2, FEAT_DIM)
    assert face_emb.shape == (2, FEAT_DIM)
    print("KERNEL_OK")
</pallas_src>

<mosaic_0001>
module attributes {stable_mosaic.version = 11 : i64} {
  func.func @_fused_kernel(%arg0: memref<128x256xbf16, #tpu.memory_space<vmem>>, %arg1: memref<128x256xbf16, #tpu.memory_space<vmem>>, %arg2: memref<256x128xbf16, #tpu.memory_space<vmem>>, %arg3: memref<1x128xf32, #tpu.memory_space<vmem>>, %arg4: memref<256x128xbf16, #tpu.memory_space<vmem>>, %arg5: memref<1x128xf32, #tpu.memory_space<vmem>>, %arg6: memref<128x1536xbf16, #tpu.memory_space<vmem>>, %arg7: memref<1x1536xf32, #tpu.memory_space<vmem>>, %arg8: memref<128x1536xbf16, #tpu.memory_space<vmem>>, %arg9: memref<1x1536xf32, #tpu.memory_space<vmem>>, %arg10: memref<1536x512xbf16, #tpu.memory_space<vmem>>, %arg11: memref<1536x512xbf16, #tpu.memory_space<vmem>>, %arg12: memref<1x512xf32, #tpu.memory_space<vmem>>, %arg13: memref<512x128xbf16, #tpu.memory_space<vmem>>, %arg14: memref<1x128xf32, #tpu.memory_space<vmem>>, %arg15: memref<2x1536xf32, #tpu.memory_space<vmem>>, %arg16: memref<2x1536xf32, #tpu.memory_space<vmem>>, %arg17: memref<2x128xf32, #tpu.memory_space<vmem>>) attributes {dimension_semantics = [], scalar_prefetch = 0 : i64, scratch_operands = 0 : i64, tpu.core_type = #tpu.core_type<tc>} {
    %c0 = arith.constant 0 : index
    %c0_0 = arith.constant 0 : index
    %0 = vector.load %arg0[%c0, %c0_0] : memref<128x256xbf16, #tpu.memory_space<vmem>>, vector<128x256xbf16>
    %c0_1 = arith.constant 0 : index
    %c0_2 = arith.constant 0 : index
    %1 = vector.load %arg2[%c0_1, %c0_2] : memref<256x128xbf16, #tpu.memory_space<vmem>>, vector<256x128xbf16>
    %cst = arith.constant dense<0.000000e+00> : vector<128x128xf32>
    %2 = tpu.matmul %0, %1, %cst {dimension_numbers = #tpu.dot_dimension_numbers<[1], [0], [0], [1], [0, 0, 1, 1], [], []>} : vector<128x256xbf16>, vector<256x128xbf16>, vector<128x128xf32> -> vector<128x128xf32>
    %c0_3 = arith.constant 0 : index
    %c0_4 = arith.constant 0 : index
    %3 = vector.load %arg3[%c0_3, %c0_4] : memref<1x128xf32, #tpu.memory_space<vmem>>, vector<1x128xf32>
    %4 = vector.broadcast %3 : vector<1x128xf32> to vector<128x128xf32>
    %5 = arith.addf %2, %4 : vector<128x128xf32>
    %6 = arith.negf %5 : vector<128x128xf32>
    %7 = math.exp %6 : vector<128x128xf32>
    %cst_5 = arith.constant 1.000000e+00 : f32
    %8 = vector.broadcast %cst_5 : f32 to vector<128x128xf32>
    %9 = arith.addf %8, %7 : vector<128x128xf32>
    %10 = arith.divf %8, %9 : vector<128x128xf32>
    %11 = arith.mulf %5, %10 : vector<128x128xf32>
    %12 = vector.shape_cast %11 : vector<128x128xf32> to vector<2x64x128xf32>
    %cst_6 = arith.constant dense<0.000000e+00> : vector<2x128xf32>
    %13 = vector.multi_reduction <add>, %12, %cst_6 [1] : vector<2x64x128xf32> to vector<2x128xf32>
    %cst_7 = arith.constant 6.400000e+01 : f32
    %14 = vector.broadcast %cst_7 : f32 to vector<2x128xf32>
    %15 = arith.divf %13, %14 : vector<2x128xf32>
    %16 = arith.truncf %15 : vector<2x128xf32> to vector<2x128xbf16>
    %c0_8 = arith.constant 0 : index
    %c0_9 = arith.constant 0 : index
    %17 = vector.load %arg6[%c0_8, %c0_9] : memref<128x1536xbf16, #tpu.memory_space<vmem>>, vector<128x1536xbf16>
    %cst_10 = arith.constant dense<0.000000e+00> : vector<2x1536xf32>
    %18 = tpu.matmul %16, %17, %cst_10 {dimension_numbers = #tpu.dot_dimension_numbers<[1], [0], [0], [1], [0, 0, 1, 1], [], []>} : vector<2x128xbf16>, vector<128x1536xbf16>, vector<2x1536xf32> -> vector<2x1536xf32>
    %c0_11 = arith.constant 0 : index
    %c0_12 = arith.constant 0 : index
    %19 = vector.load %arg7[%c0_11, %c0_12] : memref<1x1536xf32, #tpu.memory_space<vmem>>, vector<1x1536xf32>
    %20 = vector.broadcast %19 : vector<1x1536xf32> to vector<2x1536xf32>
    %21 = arith.addf %18, %20 : vector<2x1536xf32>
    %c0_13 = arith.constant 0 : index
    %c0_14 = arith.constant 0 : index
    %22 = vector.load %arg1[%c0_13, %c0_14] : memref<128x256xbf16, #tpu.memory_space<vmem>>, vector<128x256xbf16>
    %c0_15 = arith.constant 0 : index
    %c0_16 = arith.constant 0 : index
    %23 = vector.load %arg4[%c0_15, %c0_16] : memref<256x128xbf16, #tpu.memory_space<vmem>>, vector<256x128xbf16>
    %cst_17 = arith.constant dense<0.000000e+00> : vector<128x128xf32>
    %24 = tpu.matmul %22, %23, %cst_17 {dimension_numbers = #tpu.dot_dimension_numbers<[1], [0], [0], [1], [0, 0, 1, 1], [], []>} : vector<128x256xbf16>, vector<256x128xbf16>, vector<128x128xf32> -> vector<128x128xf32>
    %c0_18 = arith.constant 0 : index
    %c0_19 = arith.constant 0 : index
    %25 = vector.load %arg5[%c0_18, %c0_19] : memref<1x128xf32, #tpu.memory_space<vmem>>, vector<1x128xf32>
    %26 = vector.broadcast %25 : vector<1x128xf32> to vector<128x128xf32>
    %27 = arith.addf %24, %26 : vector<128x128xf32>
    %28 = arith.negf %27 : vector<128x128xf32>
    %29 = math.exp %28 : vector<128x128xf32>
    %cst_20 = arith.constant 1.000000e+00 : f32
    %30 = vector.broadcast %cst_20 : f32 to vector<128x128xf32>
    %31 = arith.addf %30, %29 : vector<128x128xf32>
    %32 = arith.divf %30, %31 : vector<128x128xf32>
    %33 = arith.mulf %27, %32 : vector<128x128xf32>
    %34 = vector.shape_cast %33 : vector<128x128xf32> to vector<2x64x128xf32>
    %cst_21 = arith.constant dense<0.000000e+00> : vector<2x128xf32>
    %35 = vector.multi_reduction <add>, %34, %cst_21 [1] : vector<2x64x128xf32> to vector<2x128xf32>
    %cst_22 = arith.constant 6.400000e+01 : f32
    %36 = vector.broadcast %cst_22 : f32 to vector<2x128xf32>
    %37 = arith.divf %35, %36 : vector<2x128xf32>
    %38 = arith.truncf %37 : vector<2x128xf32> to vector<2x128xbf16>
    %c0_23 = arith.constant 0 : index
    %c0_24 = arith.constant 0 : index
    %39 = vector.load %arg8[%c0_23, %c0_24] : memref<128x1536xbf16, #tpu.memory_space<vmem>>, vector<128x1536xbf16>
    %cst_25 = arith.constant dense<0.000000e+00> : vector<2x1536xf32>
    %40 = tpu.matmul %38, %39, %cst_25 {dimension_numbers = #tpu.dot_dimension_numbers<[1], [0], [0], [1], [0, 0, 1, 1], [], []>} : vector<2x128xbf16>, vector<128x1536xbf16>, vector<2x1536xf32> -> vector<2x1536xf32>
    %c0_26 = arith.constant 0 : index
    %c0_27 = arith.constant 0 : index
    %41 = vector.load %arg9[%c0_26, %c0_27] : memref<1x1536xf32, #tpu.memory_space<vmem>>, vector<1x1536xf32>
    %42 = vector.broadcast %41 : vector<1x1536xf32> to vector<2x1536xf32>
    %43 = arith.addf %40, %42 : vector<2x1536xf32>
    %c0_28 = arith.constant 0 : index
    %c0_29 = arith.constant 0 : index
    %44 = vector.load %arg15[%c0_28, %c0_29] : memref<2x1536xf32, #tpu.memory_space<vmem>>, vector<2x1536xf32>
    tpu.vector_store %arg15[%c0_28, %c0_29], %21 {strides = array<i32>} : memref<2x1536xf32, #tpu.memory_space<vmem>>, vector<2x1536xf32>,
    %c0_30 = arith.constant 0 : index
    %c0_31 = arith.constant 0 : index
    %45 = vector.load %arg16[%c0_30, %c0_31] : memref<2x1536xf32, #tpu.memory_space<vmem>>, vector<2x1536xf32>
    tpu.vector_store %arg16[%c0_30, %c0_31], %43 {strides = array<i32>} : memref<2x1536xf32, #tpu.memory_space<vmem>>, vector<2x1536xf32>,
    %46 = arith.truncf %21 : vector<2x1536xf32> to vector<2x1536xbf16>
    %c0_32 = arith.constant 0 : index
    %c0_33 = arith.constant 0 : index
    %47 = vector.load %arg10[%c0_32, %c0_33] : memref<1536x512xbf16, #tpu.memory_space<vmem>>, vector<1536x512xbf16>
    %cst_34 = arith.constant dense<0.000000e+00> : vector<2x512xf32>
    %48 = tpu.matmul %46, %47, %cst_34 {dimension_numbers = #tpu.dot_dimension_numbers<[1], [0], [0], [1], [0, 0, 1, 1], [], []>} : vector<2x1536xbf16>, vector<1536x512xbf16>, vector<2x512xf32> -> vector<2x512xf32>
    %49 = arith.truncf %43 : vector<2x1536xf32> to vector<2x1536xbf16>
    %c0_35 = arith.constant 0 : index
    %c0_36 = arith.constant 0 : index
    %50 = vector.load %arg11[%c0_35, %c0_36] : memref<1536x512xbf16, #tpu.memory_space<vmem>>, vector<1536x512xbf16>
    %cst_37 = arith.constant dense<0.000000e+00> : vector<2x512xf32>
    %51 = tpu.matmul %49, %50, %cst_37 {dimension_numbers = #tpu.dot_dimension_numbers<[1], [0], [0], [1], [0, 0, 1, 1], [], []>} : vector<2x1536xbf16>, vector<1536x512xbf16>, vector<2x512xf32> -> vector<2x512xf32>
    %52 = arith.addf %48, %51 : vector<2x512xf32>
    %c0_38 = arith.constant 0 : index
    %c0_39 = arith.constant 0 : index
    %53 = vector.load %arg12[%c0_38, %c0_39] : memref<1x512xf32, #tpu.memory_space<vmem>>, vector<1x512xf32>
    %54 = vector.broadcast %53 : vector<1x512xf32> to vector<2x512xf32>
    %55 = arith.addf %52, %54 : vector<2x512xf32>
    %cst_40 = arith.constant 0.000000e+00 : f32
    %56 = vector.broadcast %cst_40 : f32 to vector<2x512xf32>
    %57 = arith.maximumf %55, %56 : vector<2x512xf32>
    %58 = arith.truncf %57 : vector<2x512xf32> to vector<2x512xbf16>
    %c0_41 = arith.constant 0 : index
    %c0_42 = arith.constant 0 : index
    %59 = vector.load %arg13[%c0_41, %c0_42] : memref<512x128xbf16, #tpu.memory_space<vmem>>, vector<512x128xbf16>
    %cst_43 = arith.constant dense<0.000000e+00> : vector<2x128xf32>
    %60 = tpu.matmul %58, %59, %cst_43 {dimension_numbers = #tpu.dot_dimension_numbers<[1], [0], [0], [1], [0, 0, 1, 1], [], []>} : vector<2x512xbf16>, vector<512x128xbf16>, vector<2x128xf32> -> vector<2x128xf32>
    %c0_44 = arith.constant 0 : index
    %c0_45 = arith.constant 0 : index
    %61 = vector.load %arg14[%c0_44, %c0_45] : memref<1x128xf32, #tpu.memory_space<vmem>>, vector<1x128xf32>
    %62 = vector.broadcast %61 : vector<1x128xf32> to vector<2x128xf32>
    %63 = arith.addf %60, %62 : vector<2x128xf32>
    %c0_46 = arith.constant 0 : index
    %c0_47 = arith.constant 0 : index
    %64 = vector.load %arg17[%c0_46, %c0_47] : memref<2x128xf32, #tpu.memory_space<vmem>>, vector<2x128xf32>
    tpu.vector_store %arg17[%c0_46, %c0_47], %63 {strides = array<i32>} : memref<2x128xf32, #tpu.memory_space<vmem>>, vector<2x128xf32>,
    return
  }
}

</mosaic_0001>

<llo_original>
// kernel: _lambda_.1
$region0: #{_lambda_.1}
  #allocation0 [shape = 'u32[]', space=smem, size = 0x4, offset = 0x4, fixed_abs, tag = 'smem constant byte address 0x4 - core index']
  #allocation1 [shape = 'u32[144,128]{1,0:T(1,128)}', space=vmem, size = 0x12000, scoped, tag = 'internal scratch']
  %s0 = inlined_call_operand.vmem [shape: bf16[128,256], index: 0, kind: input, shape index: {}]
  %s1 = inlined_call_operand.vmem [shape: bf16[128,256], index: 1, kind: input, shape index: {}]
  %s2 = inlined_call_operand.vmem [shape: bf16[256,128], index: 2, kind: input, shape index: {}]
  %s3 = inlined_call_operand.vmem [shape: f32[1,128], index: 3, kind: input, shape index: {}]
  %s4 = inlined_call_operand.vmem [shape: bf16[256,128], index: 4, kind: input, shape index: {}]
  %s5 = inlined_call_operand.vmem [shape: f32[1,128], index: 5, kind: input, shape index: {}]
  %s6 = inlined_call_operand.vmem [shape: bf16[128,1536], index: 6, kind: input, shape index: {}]
  %s7 = inlined_call_operand.vmem [shape: f32[1,1536], index: 7, kind: input, shape index: {}]
  %s8 = inlined_call_operand.vmem [shape: bf16[128,1536], index: 8, kind: input, shape index: {}]
  %s9 = inlined_call_operand.vmem [shape: f32[1,1536], index: 9, kind: input, shape index: {}]
  %s10 = inlined_call_operand.vmem [shape: bf16[1536,512], index: 10, kind: input, shape index: {}]
  %s11 = inlined_call_operand.vmem [shape: bf16[1536,512], index: 11, kind: input, shape index: {}]
  %s12 = inlined_call_operand.vmem [shape: f32[1,512], index: 12, kind: input, shape index: {}]
  %s13 = inlined_call_operand.vmem [shape: bf16[512,128], index: 13, kind: input, shape index: {}]
  %s14 = inlined_call_operand.vmem [shape: f32[1,128], index: 14, kind: input, shape index: {}]
  %s15 = inlined_call_operand.hbm [shape: f32[2,1536], index: 15, kind: output, shape index: {0}]
  %s16 = inlined_call_operand.hbm [shape: f32[2,1536], index: 16, kind: output, shape index: {1}]
  %s17 = inlined_call_operand.hbm [shape: f32[2,128], index: 17, kind: output, shape index: {2}]
  %18 = xla_tuple %s15, %s16, %s17
  %s19 = sld [smem:[#allocation0]]
  $region86: #{_lambda_.1} parent=0
    _
  %s21 = ssub.s32 1, %s19
  %s22 = scalar_select 0, %s21, %s19
  $region1: #{_lambda_.1} parent=0
    #allocation2 [shape = 'u8[12288]{0}', space=vmem, size = 0x3000, scoped, tag = 'output window, operand 0, single buffered']
    #allocation3 [shape = 's32[1]{0}', space=sflag, size = 0x4, scoped, tag = 'scoped memory for _lambda_.1']
    #allocation4 [shape = 'u8[12288]{0}', space=vmem, size = 0x3000, scoped, tag = 'output window, operand 1, single buffered']
    #allocation5 [shape = 's32[1]{0}', space=sflag, size = 0x4, scoped, tag = 'scoped memory for _lambda_.1']
    #allocation6 [shape = 'u8[1024]{0}', space=vmem, size = 0x400, scoped, tag = 'output window, operand 2, single buffered']
    %23 = vsyncpa [#allocation3], 0
    %24 = vsyncpa [#allocation5], 0
    // Predicated region
    $region2: #{_lambda_.1} parent=1 // pred_check
      _
    $region3: #{_lambda_.1} parent=1 // pred_check_branch
      %26 = sbr.rel (0) target = $region5
    $region4: #{_lambda_.1} parent=1 // pred_region
      _
    $region5: #{_lambda_.1} parent=1 // pred_fallthru
      _
    // Predicated region
    $region6: #{_lambda_.1} parent=1 // pred_check
      _
    $region7: #{_lambda_.1} parent=1 // pred_check_branch
      %28 = sbr.rel (0) target = $region9
    $region8: #{_lambda_.1} parent=1 // pred_region
      _
    $region9: #{_lambda_.1} parent=1 // pred_fallthru
      _
    // Predicated region
    $region10: #{_lambda_.1} parent=1 // pred_check
      _
    $region11: #{_lambda_.1} parent=1 // pred_check_branch
      %30 = sbr.rel (0) target = $region13
    $region12: #{_lambda_.1} parent=1 // pred_region
      _
    $region13: #{_lambda_.1} parent=1 // pred_fallthru
      _
    // Predicated region
    $region14: #{_lambda_.1} parent=1 // pred_check
      _
    $region15: #{_lambda_.1} parent=1 // pred_check_branch
      %32 = sbr.rel (0) target = $region17
    $region16: #{_lambda_.1} parent=1 // pred_region
      _
    $region17: #{_lambda_.1} parent=1 // pred_fallthru
      _
    // Predicated region
    $region18: #{_lambda_.1} parent=1 // pred_check
      _
    $region19: #{_lambda_.1} parent=1 // pred_check_branch
      %34 = sbr.rel (0) target = $region21
    $region20: #{_lambda_.1} parent=1 // pred_region
      _
    $region21: #{_lambda_.1} parent=1 // pred_fallthru
      _
    // Predicated region
    $region22: #{_lambda_.1} parent=1 // pred_check
      _
    $region23: #{_lambda_.1} parent=1 // pred_check_branch
      %36 = sbr.rel (0) target = $region25
    $region24: #{_lambda_.1} parent=1 // pred_region
      _
    $region25: #{_lambda_.1} parent=1 // pred_fallthru
      _
    // Predicated region
    $region26: #{_lambda_.1} parent=1 // pred_check
      _
    $region27: #{_lambda_.1} parent=1 // pred_check_branch
      %38 = sbr.rel (0) target = $region29
    $region28: #{_lambda_.1} parent=1 // pred_region
      _
    $region29: #{_lambda_.1} parent=1 // pred_fallthru
      _
    // Predicated region
    $region30: #{_lambda_.1} parent=1 // pred_check
      _
    $region31: #{_lambda_.1} parent=1 // pred_check_branch
      %40 = sbr.rel (0) target = $region33
    $region32: #{_lambda_.1} parent=1 // pred_region
      _
    $region33: #{_lambda_.1} parent=1 // pred_fallthru
      _
    // Predicated region
    $region34: #{_lambda_.1} parent=1 // pred_check
      _
    $region35: #{_lambda_.1} parent=1 // pred_check_branch
      %42 = sbr.rel (0) target = $region37
    $region36: #{_lambda_.1} parent=1 // pred_region
      _
    $region37: #{_lambda_.1} parent=1 // pred_fallthru
      _
    // Predicated region
    $region38: #{_lambda_.1} parent=1 // pred_check
      _
    $region39: #{_lambda_.1} parent=1 // pred_check_branch
      %44 = sbr.rel (0) target = $region41
    $region40: #{_lambda_.1} parent=1 // pred_region
      _
    $region41: #{_lambda_.1} parent=1 // pred_fallthru
      _
    // Predicated region
    $region42: #{_lambda_.1} parent=1 // pred_check
      _
    $region43: #{_lambda_.1} parent=1 // pred_check_branch
      %46 = sbr.rel (0) target = $region45
    $region44: #{_lambda_.1} parent=1 // pred_region
      _
    $region45: #{_lambda_.1} parent=1 // pred_fallthru
      _
    // Predicated region
    $region46: #{_lambda_.1} parent=1 // pred_check
      _
    $region47: #{_lambda_.1} parent=1 // pred_check_branch
      %48 = sbr.rel (0) target = $region49
    $region48: #{_lambda_.1} parent=1 // pred_region
      _
    $region49: #{_lambda_.1} parent=1 // pred_fallthru
      _
    // Predicated region
    $region50: #{_lambda_.1} parent=1 // pred_check
      _
    $region51: #{_lambda_.1} parent=1 // pred_check_branch
      %50 = sbr.rel (0) target = $region53
    $region52: #{_lambda_.1} parent=1 // pred_region
      _
    $region53: #{_lambda_.1} parent=1 // pred_fallthru
      _
    // Predicated region
    $region54: #{_lambda_.1} parent=1 // pred_check
      _
    $region55: #{_lambda_.1} parent=1 // pred_check_branch
      %52 = sbr.rel (0) target = $region57
    $region56: #{_lambda_.1} parent=1 // pred_region
      _
    $region57: #{_lambda_.1} parent=1 // pred_fallthru
      _
    // Predicated region
    $region58: #{_lambda_.1} parent=1 // pred_check
      _
    $region59: #{_lambda_.1} parent=1 // pred_check_branch
      %54 = sbr.rel (0) target = $region61
    $region60: #{_lambda_.1} parent=1 // pred_region
      _
    $region61: #{_lambda_.1} parent=1 // pred_fallthru
      _
    %v56 = vld [vmem:[%s0] sm:$0xff]
    %v57 = vld [vmem:[%s0 + $0x8] sm:$0xff]
    %v58 = vld [vmem:[%s0 + $0x10] sm:$0xff]
    %v59 = vld [vmem:[%s0 + $0x18] sm:$0xff]
    %v60 = vld [vmem:[%s0 + $0x20] sm:$0xff]
    %v61 = vld [vmem:[%s0 + $0x28] sm:$0xff]
    %v62 = vld [vmem:[%s0 + $0x30] sm:$0xff]
    %v63 = vld [vmem:[%s0 + $0x38] sm:$0xff]
    %v64 = vld [vmem:[%s0 + $0x40] sm:$0xff]
    %v65 = vld [vmem:[%s0 + $0x48] sm:$0xff]
    %v66 = vld [vmem:[%s0 + $0x50] sm:$0xff]
    %v67 = vld [vmem:[%s0 + $0x58] sm:$0xff]
    %v68 = vld [vmem:[%s0 + $0x60] sm:$0xff]
    %v69 = vld [vmem:[%s0 + $0x68] sm:$0xff]
    %v70 = vld [vmem:[%s0 + $0x70] sm:$0xff]
    %v71 = vld [vmem:[%s0 + $0x78] sm:$0xff]
    %v72 = vld [vmem:[%s2] sm:$0xf]
    %v73 = vld [vmem:[%s2 + $0x4] sm:$0xf]
    %v74 = vld [vmem:[%s2 + $0x8] sm:$0xf]
    %v75 = vld [vmem:[%s2 + $0xc] sm:$0xf]
    %v76 = vld [vmem:[%s2 + $0x10] sm:$0xf]
    %v77 = vld [vmem:[%s2 + $0x14] sm:$0xf]
    %v78 = vld [vmem:[%s2 + $0x18] sm:$0xf]
    %v79 = vld [vmem:[%s2 + $0x1c] sm:$0xf]
    %v80 = vld [vmem:[%s2 + $0x20] sm:$0xf]
    %v81 = vld [vmem:[%s2 + $0x24] sm:$0xf]
    %v82 = vld [vmem:[%s2 + $0x28] sm:$0xf]
    %v83 = vld [vmem:[%s2 + $0x2c] sm:$0xf]
    %v84 = vld [vmem:[%s2 + $0x30] sm:$0xf]
    %v85 = vld [vmem:[%s2 + $0x34] sm:$0xf]
    %v86 = vld [vmem:[%s2 + $0x38] sm:$0xf]
    %v87 = vld [vmem:[%s2 + $0x3c] sm:$0xf]
    %v88 = vld [vmem:[%s2 + $0x40] sm:$0xf]
    %v89 = vld [vmem:[%s2 + $0x44] sm:$0xf]
    %v90 = vld [vmem:[%s2 + $0x48] sm:$0xf]
    %v91 = vld [vmem:[%s2 + $0x4c] sm:$0xf]
    %v92 = vld [vmem:[%s2 + $0x50] sm:$0xf]
    %v93 = vld [vmem:[%s2 + $0x54] sm:$0xf]
    %v94 = vld [vmem:[%s2 + $0x58] sm:$0xf]
    %v95 = vld [vmem:[%s2 + $0x5c] sm:$0xf]
    %v96 = vld [vmem:[%s2 + $0x60] sm:$0xf]
    %v97 = vld [vmem:[%s2 + $0x64] sm:$0xf]
    %v98 = vld [vmem:[%s2 + $0x68] sm:$0xf]
    %v99 = vld [vmem:[%s2 + $0x6c] sm:$0xf]
    %v100 = vld [vmem:[%s2 + $0x70] sm:$0xf]
    %v101 = vld [vmem:[%s2 + $0x74] sm:$0xf]
    %v102 = vld [vmem:[%s2 + $0x78] sm:$0xf]
    %v103 = vld [vmem:[%s2 + $0x7c] sm:$0xf]
    %v104 = vld [vmem:[%s3] sm:$0x1]
    %v106 = vlaneseq
    %v107 = vshrl.u32 %v106, 7
    %v108 = vsub.s32 0, %v107
    %v109 = vrot.slane %v104, %v108
    %v127 = vunpack.c.l.b16 %v56
    %v128 = vunpack.c.h.b16 %v56
    %v129 = vunpack.c.l.b16 %v57
    %v130 = vunpack.c.h.b16 %v57
    %v131 = vunpack.c.l.b16 %v58
    %v132 = vunpack.c.h.b16 %v58
    %v133 = vunpack.c.l.b16 %v59
    %v134 = vunpack.c.h.b16 %v59
    %v135 = vunpack.c.l.b16 %v60
    %v136 = vunpack.c.h.b16 %v60
    %v137 = vunpack.c.l.b16 %v61
    %v138 = vunpack.c.h.b16 %v61
    %v139 = vunpack.c.l.b16 %v62
    %v140 = vunpack.c.h.b16 %v62
    %v141 = vunpack.c.l.b16 %v63
    %v142 = vunpack.c.h.b16 %v63
    %v143 = vunpack.c.l.b16 %v64
    %v144 = vunpack.c.h.b16 %v64
    %v145 = vunpack.c.l.b16 %v65
    %v146 = vunpack.c.h.b16 %v65
    %v147 = vunpack.c.l.b16 %v66
    %v148 = vunpack.c.h.b16 %v66
    %v149 = vunpack.c.l.b16 %v67
    %v150 = vunpack.c.h.b16 %v67
    %v151 = vunpack.c.l.b16 %v68
    %v152 = vunpack.c.h.b16 %v68
    %v153 = vunpack.c.l.b16 %v69
    %v154 = vunpack.c.h.b16 %v69
    %v155 = vunpack.c.l.b16 %v70
    %v156 = vunpack.c.h.b16 %v70
    %v157 = vunpack.c.l.b16 %v71
    %v158 = vunpack.c.h.b16 %v71
    %v159 = vpack.c.b16 %v129, %v127
    %v160 = vpack.c.b16 %v130, %v128
    %v161 = vpack.c.b16 %v133, %v131
    %v162 = vpack.c.b16 %v134, %v132
    %v163 = vpack.c.b16 %v137, %v135
    %v164 = vpack.c.b16 %v138, %v136
    %v165 = vpack.c.b16 %v141, %v139
    %v166 = vpack.c.b16 %v142, %v140
    %v167 = vpack.c.b16 %v145, %v143
    %v168 = vpack.c.b16 %v146, %v144
    %v169 = vpack.c.b16 %v149, %v147
    %v170 = vpack.c.b16 %v150, %v148
    %v171 = vpack.c.b16 %v153, %v151
    %v172 = vpack.c.b16 %v154, %v152
    %v173 = vpack.c.b16 %v157, %v155
    %v174 = vpack.c.b16 %v158, %v156
    %v223 = vunpack.c.l.b16 %v72
    %v224 = vunpack.c.l.b16 %v73
    %v225 = vunpack.c.l.b16 %v74
    %v226 = vunpack.c.l.b16 %v75
    %v227 = vunpack.c.l.b16 %v76
    %v228 = vunpack.c.l.b16 %v77
    %v229 = vunpack.c.l.b16 %v78
    %v230 = vunpack.c.l.b16 %v79
    %v231 = vunpack.c.l.b16 %v80
    %v232 = vunpack.c.l.b16 %v81
    %v233 = vunpack.c.l.b16 %v82
    %v234 = vunpack.c.l.b16 %v83
    %v235 = vunpack.c.l.b16 %v84
    %v236 = vunpack.c.l.b16 %v85
    %v237 = vunpack.c.l.b16 %v86
    %v238 = vunpack.c.l.b16 %v87
    %v239 = vunpack.c.l.b16 %v88
    %v240 = vunpack.c.l.b16 %v89
    %v241 = vunpack.c.l.b16 %v90
    %v242 = vunpack.c.l.b16 %v91
    %v243 = vunpack.c.l.b16 %v92
    %v244 = vunpack.c.l.b16 %v93
    %v245 = vunpack.c.l.b16 %v94
    %v246 = vunpack.c.l.b16 %v95
    %v247 = vunpack.c.l.b16 %v96
    %v248 = vunpack.c.l.b16 %v97
    %v249 = vunpack.c.l.b16 %v98
    %v250 = vunpack.c.l.b16 %v99
    %v251 = vunpack.c.l.b16 %v100
    %v252 = vunpack.c.l.b16 %v101
    %v253 = vunpack.c.l.b16 %v102
    %v254 = vunpack.c.l.b16 %v103
    %v255 = vpack.c.b16 %v224, %v223
    %v256 = vpack.c.b16 %v226, %v225
    %v257 = vpack.c.b16 %v228, %v227
    %v258 = vpack.c.b16 %v230, %v229
    %v259 = vpack.c.b16 %v232, %v231
    %v260 = vpack.c.b16 %v234, %v233
    %v261 = vpack.c.b16 %v236, %v235
    %v262 = vpack.c.b16 %v238, %v237
    %v263 = vpack.c.b16 %v240, %v239
    %v264 = vpack.c.b16 %v242, %v241
    %v265 = vpack.c.b16 %v244, %v243
    %v266 = vpack.c.b16 %v246, %v245
    %v267 = vpack.c.b16 %v248, %v247
    %v268 = vpack.c.b16 %v250, %v249
    %v269 = vpack.c.b16 %v252, %v251
    %v270 = vpack.c.b16 %v254, %v253
    %287 = vmatprep.subr.bf16.mxu0 0
    %288 = vmatpush1.bf16.msra.mxu0 %v255
    %289 = vmatprep.subr.bf16.mxu0 0
    %290 = vmatpush1.bf16.msra.mxu0 %v256
    %291 = vmatprep.subr.bf16.mxu0 0
    %292 = vmatpush1.bf16.msra.mxu0 %v257
    %293 = vmatprep.subr.bf16.mxu0 0
    %294 = vmatpush1.bf16.msra.mxu0 %v258
    %295 = vmatprep.subr.bf16.mxu0 0
    %296 = vmatpush1.bf16.msra.mxu0 %v259
    %297 = vmatprep.subr.bf16.mxu0 0
    %298 = vmatpush1.bf16.msra.mxu0 %v260
    %299 = vmatprep.subr.bf16.mxu0 0
    %300 = vmatpush1.bf16.msra.mxu0 %v261
    %301 = vmatprep.subr.bf16.mxu0 0
    %302 = vmatpush1.bf16.msra.mxu0 %v262
    %303 = vmatprep.subr.bf16.mxu0 0
    %304 = vmatpush1.bf16.msra.mxu0 %v263
    %305 = vmatprep.subr.bf16.mxu0 0
    %306 = vmatpush1.bf16.msra.mxu0 %v264
    %307 = vmatprep.subr.bf16.mxu0 0
    %308 = vmatpush1.bf16.msra.mxu0 %v265
    %309 = vmatprep.subr.bf16.mxu0 0
    %310 = vmatpush1.bf16.msra.mxu0 %v266
    %311 = vmatprep.subr.bf16.mxu0 0
    %312 = vmatpush1.bf16.msra.mxu0 %v267
    %313 = vmatprep.subr.bf16.mxu0 0
    %314 = vmatpush1.bf16.msra.mxu0 %v268
    %315 = vmatprep.subr.bf16.mxu0 0
    %316 = vmatpush1.bf16.msra.mxu0 %v269
    %317 = vmatprep.subr.bf16.mxu0 0
    %318 = vmatpush1.bf16.msra.mxu0 %v270
    %319 = vmatprep.mubr.bf16.mxu0 %v160
    %320 = vmatmul.mubr.bf16.gmra.mrb[0].mxu0 %v159
    %v321 = vpop.f32.mrb[0].mxu0
    %v322 = vadd.f32 %v109, %v321
    %v323 = vpop.f32.mrb[0].mxu0
    %v324 = vpop.f32.mrb[0].mxu0
    %v325 = vadd.f32 %v109, %v324
    %v326 = vpop.f32.mrb[0].mxu0
    %327 = vmatprep.mubr.bf16.mxu0 %v162
    %328 = vmatmul.mubr.bf16.gmra.mrb[0].mxu0 %v161
    %v329 = vpop.f32.mrb[0].mxu0
    %v330 = vadd.f32 %v109, %v329
    %v331 = vpop.f32.mrb[0].mxu0
    %v332 = vpop.f32.mrb[0].mxu0
    %v333 = vadd.f32 %v109, %v332
    %v334 = vpop.f32.mrb[0].mxu0
    %335 = vmatprep.mubr.bf16.mxu0 %v164
    %336 = vmatmul.mubr.bf16.gmra.mrb[0].mxu0 %v163
    %v337 = vpop.f32.mrb[0].mxu0
    %v338 = vadd.f32 %v109, %v337
    %v339 = vpop.f32.mrb[0].mxu0
    %v340 = vpop.f32.mrb[0].mxu0
    %v341 = vadd.f32 %v109, %v340
    %v342 = vpop.f32.mrb[0].mxu0
    %343 = vmatprep.mubr.bf16.mxu0 %v166
    %344 = vmatmul.mubr.bf16.gmra.mrb[0].mxu0 %v165
    %v345 = vpop.f32.mrb[0].mxu0
    %v346 = vadd.f32 %v109, %v345
    %v347 = vpop.f32.mrb[0].mxu0
    %v348 = vpop.f32.mrb[0].mxu0
    %v349 = vadd.f32 %v109, %v348
    %v350 = vpop.f32.mrb[0].mxu0
    %351 = vmatprep.mubr.bf16.mxu0 %v168
    %352 = vmatmul.mubr.bf16.gmra.mrb[0].mxu0 %v167
    %v353 = vpop.f32.mrb[0].mxu0
    %v354 = vadd.f32 %v109, %v353
    %v355 = vpop.f32.mrb[0].mxu0
    %v356 = vpop.f32.mrb[0].mxu0
    %v357 = vadd.f32 %v109, %v356
    %v358 = vpop.f32.mrb[0].mxu0
    %359 = vmatprep.mubr.bf16.mxu0 %v170
    %360 = vmatmul.mubr.bf16.gmra.mrb[0].mxu0 %v169
    %v361 = vpop.f32.mrb[0].mxu0
    %v362 = vadd.f32 %v109, %v361
    %v363 = vpop.f32.mrb[0].mxu0
    %v364 = vpop.f32.mrb[0].mxu0
    %v365 = vadd.f32 %v109, %v364
    %v366 = vpop.f32.mrb[0].mxu0
    %367 = vmatprep.mubr.bf16.mxu0 %v172
    %368 = vmatmul.mubr.bf16.gmra.mrb[0].mxu0 %v171
    %v369 = vpop.f32.mrb[0].mxu0
    %v370 = vadd.f32 %v109, %v369
    %v371 = vpop.f32.mrb[0].mxu0
    %v372 = vpop.f32.mrb[0].mxu0
    %v373 = vadd.f32 %v109, %v372
    %v374 = vpop.f32.mrb[0].mxu0
    %375 = vmatprep.mubr.bf16.mxu0 %v174
    %376 = vmatmul.mubr.bf16.gmra.mrb[0].mxu0 %v173
    %v377 = vpop.f32.mrb[0].mxu0
    %v378 = vadd.f32 %v109, %v377
    %v379 = vpop.f32.mrb[0].mxu0
    %v380 = vpop.f32.mrb[0].mxu0
    %v381 = vadd.f32 %v109, %v380
    %v382 = vpop.f32.mrb[0].mxu0
    %383 = vdwg.mxu0
    %v384 = vxor.u32 %v322, 2147483648
    %v385 = vxor.u32 %v325, 2147483648
    %v386 = vxor.u32 %v330, 2147483648
    %v387 = vxor.u32 %v333, 2147483648
    %v388 = vxor.u32 %v338, 2147483648
    %v389 = vxor.u32 %v341, 2147483648
    %v390 = vxor.u32 %v346, 2147483648
    %v391 = vxor.u32 %v349, 2147483648
    %v392 = vxor.u32 %v354, 2147483648
    %v393 = vxor.u32 %v357, 2147483648
    %v394 = vxor.u32 %v362, 2147483648
    %v395 = vxor.u32 %v365, 2147483648
    %v396 = vxor.u32 %v370, 2147483648
    %v397 = vxor.u32 %v373, 2147483648
    %v398 = vxor.u32 %v378, 2147483648
    %v399 = vxor.u32 %v381, 2147483648
    %v400 = vmul.f32 %v384, 1.442695
    %v401 = vpow.pop %v400
    %v402 = vmul.f32 %v385, 1.442695
    %v403 = vpow.pop %v402
    %v404 = vmul.f32 %v386, 1.442695
    %v405 = vpow.pop %v404
    %v406 = vmul.f32 %v387, 1.442695
    %v407 = vpow.pop %v406
    %v408 = vmul.f32 %v388, 1.442695
    %v409 = vpow.pop %v408
    %v410 = vmul.f32 %v389, 1.442695
    %v411 = vpow.pop %v410
    %v412 = vmul.f32 %v390, 1.442695
    %v413 = vpow.pop %v412
    %v414 = vmul.f32 %v391, 1.442695
    %v415 = vpow.pop %v414
    %v416 = vmul.f32 %v392, 1.442695
    %v417 = vpow.pop %v416
    %v418 = vmul.f32 %v393, 1.442695
    %v419 = vpow.pop %v418
    %v420 = vmul.f32 %v394, 1.442695
    %v421 = vpow.pop %v420
    %v422 = vmul.f32 %v395, 1.442695
    %v423 = vpow.pop %v422
    %v424 = vmul.f32 %v396, 1.442695
    %v425 = vpow.pop %v424
    %v426 = vmul.f32 %v397, 1.442695
    %v427 = vpow.pop %v426
    %v428 = vmul.f32 %v398, 1.442695
    %v429 = vpow.pop %v428
    %v430 = vmul.f32 %v399, 1.442695
    %v431 = vpow.pop %v430
    %v432 = vadd.f32 %v401, 1.0
    %v433 = vadd.f32 %v403, 1.0
    %v434 = vadd.f32 %v405, 1.0
    %v435 = vadd.f32 %v407, 1.0
    %v436 = vadd.f32 %v409, 1.0
    %v437 = vadd.f32 %v411, 1.0
    %v438 = vadd.f32 %v413, 1.0
    %v439 = vadd.f32 %v415, 1.0
    %v440 = vadd.f32 %v417, 1.0
    %v441 = vadd.f32 %v419, 1.0
    %v442 = vadd.f32 %v421, 1.0
    %v443 = vadd.f32 %v423, 1.0
    %v444 = vadd.f32 %v425, 1.0
    %v445 = vadd.f32 %v427, 1.0
    %v446 = vadd.f32 %v429, 1.0
    %v447 = vadd.f32 %v431, 1.0
    %v448 = vrcp.pop %v432
    %v449 = vmul.f32 1.0, %v448
    %v450 = vrcp.pop %v433
    %v451 = vmul.f32 1.0, %v450
    %v452 = vrcp.pop %v434
    %v453 = vmul.f32 1.0, %v452
    %v454 = vrcp.pop %v435
    %v455 = vmul.f32 1.0, %v454
    %v456 = vrcp.pop %v436
    %v457 = vmul.f32 1.0, %v456
    %v458 = vrcp.pop %v437
    %v459 = vmul.f32 1.0, %v458
    %v460 = vrcp.pop %v438
    %v461 = vmul.f32 1.0, %v460
    %v462 = vrcp.pop %v439
    %v463 = vmul.f32 1.0, %v462
    %v464 = vrcp.pop %v440
    %v465 = vmul.f32 1.0, %v464
    %v466 = vrcp.pop %v441
    %v467 = vmul.f32 1.0, %v466
    %v468 = vrcp.pop %v442
    %v469 = vmul.f32 1.0, %v468
    %v470 = vrcp.pop %v443
    %v471 = vmul.f32 1.0, %v470
    %v472 = vrcp.pop %v444
    %v473 = vmul.f32 1.0, %v472
    %v474 = vrcp.pop %v445
    %v475 = vmul.f32 1.0, %v474
    %v476 = vrcp.pop %v446
    %v477 = vmul.f32 1.0, %v476
    %v478 = vrcp.pop %v447
    %v479 = vmul.f32 1.0, %v478
    %v480 = vmul.f32 %v322, %v449
    %v481 = vmul.f32 %v325, %v451
    %v482 = vmul.f32 %v330, %v453
    %v483 = vmul.f32 %v333, %v455
    %v484 = vmul.f32 %v338, %v457
    %v485 = vmul.f32 %v341, %v459
    %v486 = vmul.f32 %v346, %v461
    %v487 = vmul.f32 %v349, %v463
    %v488 = vmul.f32 %v354, %v465
    %v489 = vmul.f32 %v357, %v467
    %v490 = vmul.f32 %v362, %v469
    %v491 = vmul.f32 %v365, %v471
    %v492 = vmul.f32 %v370, %v473
    %v493 = vmul.f32 %v373, %v475
    %v494 = vmul.f32 %v378, %v477
    %v495 = vmul.f32 %v381, %v479
    %v496 = vadd.f32 %v480, %v481
    %v497 = vadd.f32 %v496, %v482
    %v498 = vadd.f32 %v497, %v483
    %v499 = vadd.f32 %v498, %v484
    %v500 = vadd.f32 %v499, %v485
    %v501 = vadd.f32 %v500, %v486
    %v502 = vadd.f32 %v501, %v487
    %v503 = vrot.slane %v502, 4
    %v504 = vadd.f32 %v502, %v503
    %v505 = vrot.slane %v504, 2
    %v506 = vadd.f32 %v504, %v505
    %v507 = vrot.slane %v506, 1
    %v508 = vadd.f32 %v506, %v507
    %v509 = vadd.f32 %v488, %v489
    %v510 = vadd.f32 %v509, %v490
    %v511 = vadd.f32 %v510, %v491
    %v512 = vadd.f32 %v511, %v492
    %v513 = vadd.f32 %v512, %v493
    %v514 = vadd.f32 %v513, %v494
    %v515 = vadd.f32 %v514, %v495
    %v516 = vrot.slane %v515, 4
    %v517 = vadd.f32 %v515, %v516
    %v518 = vrot.slane %v517, 2
    %v519 = vadd.f32 %v517, %v518
    %v520 = vrot.slane %v519, 1
    %v521 = vadd.f32 %v519, %v520
    %v522 = vrcp.pop 64.0
    %v523 = vmul.f32 %v508, %v522
    %v524 = vmul.f32 %v521, %v522
    %v525 = vpack.c.bf16 %v523, %v523
    %v526 = vpack.c.bf16 %v524, %v524
    %v527 = vld [vmem:[%s6] sm:$0xff]
    %v528 = vld [vmem:[%s6 + $0x8] sm:$0xff]
    %v529 = vld [vmem:[%s6 + $0x10] sm:$0xff]
    %v530 = vld [vmem:[%s6 + $0x18] sm:$0xff]
    %v531 = vld [vmem:[%s6 + $0x20] sm:$0xff]
    %v532 = vld [vmem:[%s6 + $0x28] sm:$0xff]
    %v533 = vld [vmem:[%s6 + $0x30] sm:$0xff]
    %v534 = vld [vmem:[%s6 + $0x38] sm:$0xff]
    %v535 = vld [vmem:[%s6 + $0x40] sm:$0xff]
    %v536 = vld [vmem:[%s6 + $0x48] sm:$0xff]
    %v537 = vld [vmem:[%s6 + $0x50] sm:$0xff]
    %v538 = vld [vmem:[%s6 + $0x58] sm:$0xff]
    %v539 = vld [vmem:[%s6 + $0x60] sm:$0xff]
    %v540 = vld [vmem:[%s6 + $0x68] sm:$0xff]
    %v541 = vld [vmem:[%s6 + $0x70] sm:$0xff]
    %v542 = vld [vmem:[%s6 + $0x78] sm:$0xff]
    %v543 = vld [vmem:[%s6 + $0x80] sm:$0xff]
    %v544 = vld [vmem:[%s6 + $0x88] sm:$0xff]
    %v545 = vld [vmem:[%s6 + $0x90] sm:$0xff]
    %v546 = vld [vmem:[%s6 + $0x98] sm:$0xff]
    %v547 = vld [vmem:[%s6 + $0xa0] sm:$0xff]
    %v548 = vld [vmem:[%s6 + $0xa8] sm:$0xff]
    %v549 = vld [vmem:[%s6 + $0xb0] sm:$0xff]
    %v550 = vld [vmem:[%s6 + $0xb8] sm:$0xff]
    %v551 = vld [vmem:[%s6 + $0xc0] sm:$0xff]
    %v552 = vld [vmem:[%s6 + $0xc8] sm:$0xff]
    %v553 = vld [vmem:[%s6 + $0xd0] sm:$0xff]
    %v554 = vld [vmem:[%s6 + $0xd8] sm:$0xff]
    %v555 = vld [vmem:[%s6 + $0xe0] sm:$0xff]
    %v556 = vld [vmem:[%s6 + $0xe8] sm:$0xff]
    %v557 = vld [vmem:[%s6 + $0xf0] sm:$0xff]
    %v558 = vld [vmem:[%s6 + $0xf8] sm:$0xff]
    %v559 = vld [vmem:[%s6 + $0x100] sm:$0xff]
    %v560 = vld [vmem:[%s6 + $0x108] sm:$0xff]
    %v561 = vld [vmem:[%s6 + $0x110] sm:$0xff]
    %v562 = vld [vmem:[%s6 + $0x118] sm:$0xff]
    %v563 = vld [vmem:[%s6 + $0x120] sm:$0xff]
    %v564 = vld [vmem:[%s6 + $0x128] sm:$0xff]
    %v565 = vld [vmem:[%s6 + $0x130] sm:$0xff]
    %v566 = vld [vmem:[%s6 + $0x138] sm:$0xff]
    %v567 = vld [vmem:[%s6 + $0x140] sm:$0xff]
    %v568 = vld [vmem:[%s6 + $0x148] sm:$0xff]
    %v569 = vld [vmem:[%s6 + $0x150] sm:$0xff]
    %v570 = vld [vmem:[%s6 + $0x158] sm:$0xff]
    %v571 = vld [vmem:[%s6 + $0x160] sm:$0xff]
    %v572 = vld [vmem:[%s6 + $0x168] sm:$0xff]
    %v573 = vld [vmem:[%s6 + $0x170] sm:$0xff]
    %v574 = vld [vmem:[%s6 + $0x178] sm:$0xff]
    %v575 = vld [vmem:[%s6 + $0x180] sm:$0xff]
    %v576 = vld [vmem:[%s6 + $0x188] sm:$0xff]
    %v577 = vld [vmem:[%s6 + $0x190] sm:$0xff]
    %v578 = vld [vmem:[%s6 + $0x198] sm:$0xff]
    %v579 = vld [vmem:[%s6 + $0x1a0] sm:$0xff]
    %v580 = vld [vmem:[%s6 + $0x1a8] sm:$0xff]
    %v581 = vld [vmem:[%s6 + $0x1b0] sm:$0xff]
    %v582 = vld [vmem:[%s6 + $0x1b8] sm:$0xff]
    %v583 = vld [vmem:[%s6 + $0x1c0] sm:$0xff]
    %v584 = vld [vmem:[%s6 + $0x1c8] sm:$0xff]
    %v585 = vld [vmem:[%s6 + $0x1d0] sm:$0xff]
    %v586 = vld [vmem:[%s6 + $0x1d8] sm:$0xff]
    %v587 = vld [vmem:[%s6 + $0x1e0] sm:$0xff]
    %v588 = vld [vmem:[%s6 + $0x1e8] sm:$0xff]
    %v589 = vld [vmem:[%s6 + $0x1f0] sm:$0xff]
    %v590 = vld [vmem:[%s6 + $0x1f8] sm:$0xff]
    %v591 = vld [vmem:[%s6 + $0x200] sm:$0xff]
    %v592 = vld [vmem:[%s6 + $0x208] sm:$0xff]
    %v593 = vld [vmem:[%s6 + $0x210] sm:$0xff]
    %v594 = vld [vmem:[%s6 + $0x218] sm:$0xff]
    %v595 = vld [vmem:[%s6 + $0x220] sm:$0xff]
    %v596 = vld [vmem:[%s6 + $0x228] sm:$0xff]
    %v597 = vld [vmem:[%s6 + $0x230] sm:$0xff]
    %v598 = vld [vmem:[%s6 + $0x238] sm:$0xff]
    %v599 = vld [vmem:[%s6 + $0x240] sm:$0xff]
    %v600 = vld [vmem:[%s6 + $0x248] sm:$0xff]
    %v601 = vld [vmem:[%s6 + $0x250] sm:$0xff]
    %v602 = vld [vmem:[%s6 + $0x258] sm:$0xff]
    %v603 = vld [vmem:[%s6 + $0x260] sm:$0xff]
    %v604 = vld [vmem:[%s6 + $0x268] sm:$0xff]
    %v605 = vld [vmem:[%s6 + $0x270] sm:$0xff]
    %v606 = vld [vmem:[%s6 + $0x278] sm:$0xff]
    %v607 = vld [vmem:[%s6 + $0x280] sm:$0xff]
    %v608 = vld [vmem:[%s6 + $0x288] sm:$0xff]
    %v609 = vld [vmem:[%s6 + $0x290] sm:$0xff]
    %v610 = vld [vmem:[%s6 + $0x298] sm:$0xff]
    %v611 = vld [vmem:[%s6 + $0x2a0] sm:$0xff]
    %v612 = vld [vmem:[%s6 + $0x2a8] sm:$0xff]
    %v613 = vld [vmem:[%s6 + $0x2b0] sm:$0xff]
    %v614 = vld [vmem:[%s6 + $0x2b8] sm:$0xff]
    %v615 = vld [vmem:[%s6 + $0x2c0] sm:$0xff]
    %v616 = vld [vmem:[%s6 + $0x2c8] sm:$0xff]
    %v617 = vld [vmem:[%s6 + $0x2d0] sm:$0xff]
    %v618 = vld [vmem:[%s6 + $0x2d8] sm:$0xff]
    %v619 = vld [vmem:[%s6 + $0x2e0] sm:$0xff]
    %v620 = vld [vmem:[%s6 + $0x2e8] sm:$0xff]
    %v621 = vld [vmem:[%s6 + $0x2f0] sm:$0xff]
    %v622 = vld [vmem:[%s6 + $0x2f8] sm:$0xff]
    %v623 = vld [vmem:[%s7] sm:$0xff]
    %v624 = vld [vmem:[%s7 + $0x8] sm:$0xf]
    %v627 = vlaneseq
    %v628 = vshrl.u32 %v627, 7
    %v629 = vsub.s32 0, %v628
    %v630 = vrot.slane %v623, %v629
    %v631 = vlaneseq
    %v632 = vshrl.u32 %v631, 7
    %v633 = vsub.s32 1, %v632
    %v634 = vrot.slane %v623, %v633
    %v635 = vlaneseq
    %v636 = vshrl.u32 %v635, 7
    %v637 = vsub.s32 2, %v636
    %v638 = vrot.slane %v623, %v637
    %v639 = vlaneseq
    %v640 = vshrl.u32 %v639, 7
    %v641 = vsub.s32 3, %v640
    %v642 = vrot.slane %v623, %v641
    %v643 = vlaneseq
    %v644 = vshrl.u32 %v643, 7
    %v645 = vsub.s32 4, %v644
    %v646 = vrot.slane %v623, %v645
    %v647 = vlaneseq
    %v648 = vshrl.u32 %v647, 7
    %v649 = vsub.s32 5, %v648
    %v650 = vrot.slane %v623, %v649
    %v651 = vlaneseq
    %v652 = vshrl.u32 %v651, 7
    %v653 = vsub.s32 6, %v652
    %v654 = vrot.slane %v623, %v653
    %v655 = vlaneseq
    %v656 = vshrl.u32 %v655, 7
    %v657 = vsub.s32 7, %v656
    %v658 = vrot.slane %v623, %v657
    %v659 = vlaneseq
    %v660 = vshrl.u32 %v659, 7
    %v661 = vsub.s32 0, %v660
    %v662 = vrot.slane %v624, %v661
    %v663 = vlaneseq
    %v664 = vshrl.u32 %v663, 7
    %v665 = vsub.s32 1, %v664
    %v666 = vrot.slane %v624, %v665
    %v667 = vlaneseq
    %v668 = vshrl.u32 %v667, 7
    %v669 = vsub.s32 2, %v668
    %v670 = vrot.slane %v624, %v669
    %v671 = vlaneseq
    %v672 = vshrl.u32 %v671, 7
    %v673 = vsub.s32 3, %v672
    %v674 = vrot.slane %v624, %v673
    %v689 = vunpack.c.l.b16 %v525
    %v690 = vunpack.c.l.b16 %v526
    %vm691 = vcmask 1041409
    %v692 = vsel %vm691, %v690, %v689
    %v693 = vpack.c.b16 %v692, %v692
    %v791 = vunpack.c.l.b16 %v527
    %v792 = vunpack.c.h.b16 %v527
    %v793 = vunpack.c.l.b16 %v528
    %v794 = vunpack.c.h.b16 %v528
    %v795 = vunpack.c.l.b16 %v529
    %v796 = vunpack.c.h.b16 %v529
    %v797 = vunpack.c.l.b16 %v530
    %v798 = vunpack.c.h.b16 %v530
    %v799 = vunpack.c.l.b16 %v531
    %v800 = vunpack.c.h.b16 %v531
    %v801 = vunpack.c.l.b16 %v532
    %v802 = vunpack.c.h.b16 %v532
    %v803 = vunpack.c.l.b16 %v533
    %v804 = vunpack.c.h.b16 %v533
    %v805 = vunpack.c.l.b16 %v534
    %v806 = vunpack.c.h.b16 %v534
    %v807 = vunpack.c.l.b16 %v535
    %v808 = vunpack.c.h.b16 %v535
    %v809 = vunpack.c.l.b16 %v536
    %v810 = vunpack.c.h.b16 %v536
    %v811 = vunpack.c.l.b16 %v537
    %v812 = vunpack.c.h.b16 %v537
    %v813 = vunpack.c.l.b16 %v538
    %v814 = vunpack.c.h.b16 %v538
    %v815 = vunpack.c.l.b16 %v539
    %v816 = vunpack.c.h.b16 %v539
    %v817 = vunpack.c.l.b16 %v540
    %v818 = vunpack.c.h.b16 %v540
    %v819 = vunpack.c.l.b16 %v541
    %v820 = vunpack.c.h.b16 %v541
    %v821 = vunpack.c.l.b16 %v542
    %v822 = vunpack.c.h.b16 %v542
    %v823 = vunpack.c.l.b16 %v543
    %v824 = vunpack.c.h.b16 %v543
    %v825 = vunpack.c.l.b16 %v544
    %v826 = vunpack.c.h.b16 %v544
    %v827 = vunpack.c.l.b16 %v545
    %v828 = vunpack.c.h.b16 %v545
    %v829 = vunpack.c.l.b16 %v546
    %v830 = vunpack.c.h.b16 %v546
    %v831 = vunpack.c.l.b16 %v547
    %v832 = vunpack.c.h.b16 %v547
    %v833 = vunpack.c.l.b16 %v548
    %v834 = vunpack.c.h.b16 %v548
    %v835 = vunpack.c.l.b16 %v549
    %v836 = vunpack.c.h.b16 %v549
    %v837 = vunpack.c.l.b16 %v550
    %v838 = vunpack.c.h.b16 %v550
    %v839 = vunpack.c.l.b16 %v551
    %v840 = vunpack.c.h.b16 %v551
    %v841 = vunpack.c.l.b16 %v552
    %v842 = vunpack.c.h.b16 %v552
    %v843 = vunpack.c.l.b16 %v553
    %v844 = vunpack.c.h.b16 %v553
    %v845 = vunpack.c.l.b16 %v554
    %v846 = vunpack.c.h.b16 %v554
    %v847 = vunpack.c.l.b16 %v555
    %v848 = vunpack.c.h.b16 %v555
    %v849 = vunpack.c.l.b16 %v556
    %v850 = vunpack.c.h.b16 %v556
    %v851 = vunpack.c.l.b16 %v557
    %v852 = vunpack.c.h.b16 %v557
    %v853 = vunpack.c.l.b16 %v558
    %v854 = vunpack.c.h.b16 %v558
    %v855 = vunpack.c.l.b16 %v559
    %v856 = vunpack.c.h.b16 %v559
    %v857 = vunpack.c.l.b16 %v560
    %v858 = vunpack.c.h.b16 %v560
    %v859 = vunpack.c.l.b16 %v561
    %v860 = vunpack.c.h.b16 %v561
    %v861 = vunpack.c.l.b16 %v562
    %v862 = vunpack.c.h.b16 %v562
    %v863 = vunpack.c.l.b16 %v563
    %v864 = vunpack.c.h.b16 %v563
    %v865 = vunpack.c.l.b16 %v564
    %v866 = vunpack.c.h.b16 %v564
    %v867 = vunpack.c.l.b16 %v565
    %v868 = vunpack.c.h.b16 %v565
    %v869 = vunpack.c.l.b16 %v566
    %v870 = vunpack.c.h.b16 %v566
    %v871 = vunpack.c.l.b16 %v567
    %v872 = vunpack.c.h.b16 %v567
    %v873 = vunpack.c.l.b16 %v568
    %v874 = vunpack.c.h.b16 %v568
    %v875 = vunpack.c.l.b16 %v569
    %v876 = vunpack.c.h.b16 %v569
    %v877 = vunpack.c.l.b16 %v570
    %v878 = vunpack.c.h.b16 %v570
    %v879 = vunpack.c.l.b16 %v571
    %v880 = vunpack.c.h.b16 %v571
    %v881 = vunpack.c.l.b16 %v572
    %v882 = vunpack.c.h.b16 %v572
    %v883 = vunpack.c.l.b16 %v573
    %v884 = vunpack.c.h.b16 %v573
    %v885 = vunpack.c.l.b16 %v574
    %v886 = vunpack.c.h.b16 %v574
    %v887 = vunpack.c.l.b16 %v575
    %v888 = vunpack.c.h.b16 %v575
    %v889 = vunpack.c.l.b16 %v576
    %v890 = vunpack.c.h.b16 %v576
    %v891 = vunpack.c.l.b16 %v577
    %v892 = vunpack.c.h.b16 %v577
    %v893 = vunpack.c.l.b16 %v578
    %v894 = vunpack.c.h.b16 %v578
    %v895 = vunpack.c.l.b16 %v579
    %v896 = vunpack.c.h.b16 %v579
    %v897 = vunpack.c.l.b16 %v580
    %v898 = vunpack.c.h.b16 %v580
    %v899 = vunpack.c.l.b16 %v581
    %v900 = vunpack.c.h.b16 %v581
    %v901 = vunpack.c.l.b16 %v582
    %v902 = vunpack.c.h.b16 %v582
    %v903 = vunpack.c.l.b16 %v583
    %v904 = vunpack.c.h.b16 %v583
    %v905 = vunpack.c.l.b16 %v584
    %v906 = vunpack.c.h.b16 %v584
    %v907 = vunpack.c.l.b16 %v585
    %v908 = vunpack.c.h.b16 %v585
    %v909 = vunpack.c.l.b16 %v586
    %v910 = vunpack.c.h.b16 %v586
    %v911 = vunpack.c.l.b16 %v587
    %v912 = vunpack.c.h.b16 %v587
    %v913 = vunpack.c.l.b16 %v588
    %v914 = vunpack.c.h.b16 %v588
    %v915 = vunpack.c.l.b16 %v589
    %v916 = vunpack.c.h.b16 %v589
    %v917 = vunpack.c.l.b16 %v590
    %v918 = vunpack.c.h.b16 %v590
    %v919 = vunpack.c.l.b16 %v591
    %v920 = vunpack.c.h.b16 %v591
    %v921 = vunpack.c.l.b16 %v592
    %v922 = vunpack.c.h.b16 %v592
    %v923 = vunpack.c.l.b16 %v593
    %v924 = vunpack.c.h.b16 %v593
    %v925 = vunpack.c.l.b16 %v594
    %v926 = vunpack.c.h.b16 %v594
    %v927 = vunpack.c.l.b16 %v595
    %v928 = vunpack.c.h.b16 %v595
    %v929 = vunpack.c.l.b16 %v596
    %v930 = vunpack.c.h.b16 %v596
    %v931 = vunpack.c.l.b16 %v597
    %v932 = vunpack.c.h.b16 %v597
    %v933 = vunpack.c.l.b16 %v598
    %v934 = vunpack.c.h.b16 %v598
    %v935 = vunpack.c.l.b16 %v599
    %v936 = vunpack.c.h.b16 %v599
    %v937 = vunpack.c.l.b16 %v600
    %v938 = vunpack.c.h.b16 %v600
    %v939 = vunpack.c.l.b16 %v601
    %v940 = vunpack.c.h.b16 %v601
    %v941 = vunpack.c.l.b16 %v602
    %v942 = vunpack.c.h.b16 %v602
    %v943 = vunpack.c.l.b16 %v603
    %v944 = vunpack.c.h.b16 %v603
    %v945 = vunpack.c.l.b16 %v604
    %v946 = vunpack.c.h.b16 %v604
    %v947 = vunpack.c.l.b16 %v605
    %v948 = vunpack.c.h.b16 %v605
    %v949 = vunpack.c.l.b16 %v606
    %v950 = vunpack.c.h.b16 %v606
    %v951 = vunpack.c.l.b16 %v607
    %v952 = vunpack.c.h.b16 %v607
    %v953 = vunpack.c.l.b16 %v608
    %v954 = vunpack.c.h.b16 %v608
    %v955 = vunpack.c.l.b16 %v609
    %v956 = vunpack.c.h.b16 %v609
    %v957 = vunpack.c.l.b16 %v610
    %v958 = vunpack.c.h.b16 %v610
    %v959 = vunpack.c.l.b16 %v611
    %v960 = vunpack.c.h.b16 %v611
    %v961 = vunpack.c.l.b16 %v612
    %v962 = vunpack.c.h.b16 %v612
    %v963 = vunpack.c.l.b16 %v613
    %v964 = vunpack.c.h.b16 %v613
    %v965 = vunpack.c.l.b16 %v614
    %v966 = vunpack.c.h.b16 %v614
    %v967 = vunpack.c.l.b16 %v615
    %v968 = vunpack.c.h.b16 %v615
    %v969 = vunpack.c.l.b16 %v616
    %v970 = vunpack.c.h.b16 %v616
    %v971 = vunpack.c.l.b16 %v617
    %v972 = vunpack.c.h.b16 %v617
    %v973 = vunpack.c.l.b16 %v618
    %v974 = vunpack.c.h.b16 %v618
    %v975 = vunpack.c.l.b16 %v619
    %v976 = vunpack.c.h.b16 %v619
    %v977 = vunpack.c.l.b16 %v620
    %v978 = vunpack.c.h.b16 %v620
    %v979 = vunpack.c.l.b16 %v621
    %v980 = vunpack.c.h.b16 %v621
    %v981 = vunpack.c.l.b16 %v622
    %v982 = vunpack.c.h.b16 %v622
    %v983 = vpack.c.b16 %v803, %v791
    %v984 = vpack.c.b16 %v804, %v792
    %v985 = vpack.c.b16 %v805, %v793
    %v986 = vpack.c.b16 %v806, %v794
    %v987 = vpack.c.b16 %v807, %v795
    %v988 = vpack.c.b16 %v808, %v796
    %v989 = vpack.c.b16 %v809, %v797
    %v990 = vpack.c.b16 %v810, %v798
    %v991 = vpack.c.b16 %v811, %v799
    %v992 = vpack.c.b16 %v812, %v800
    %v993 = vpack.c.b16 %v813, %v801
    %v994 = vpack.c.b16 %v814, %v802
    %v995 = vpack.c.b16 %v827, %v815
    %v996 = vpack.c.b16 %v828, %v816
    %v997 = vpack.c.b16 %v829, %v817
    %v998 = vpack.c.b16 %v830, %v818
    %v999 = vpack.c.b16 %v831, %v819
    %v1000 = vpack.c.b16 %v832, %v820
    %v1001 = vpack.c.b16 %v833, %v821
    %v1002 = vpack.c.b16 %v834, %v822
    %v1003 = vpack.c.b16 %v835, %v823
    %v1004 = vpack.c.b16 %v836, %v824
    %v1005 = vpack.c.b16 %v837, %v825
    %v1006 = vpack.c.b16 %v838, %v826
    %v1007 = vpack.c.b16 %v851, %v839
    %v1008 = vpack.c.b16 %v852, %v840
    %v1009 = vpack.c.b16 %v853, %v841
    %v1010 = vpack.c.b16 %v854, %v842
    %v1011 = vpack.c.b16 %v855, %v843
    %v1012 = vpack.c.b16 %v856, %v844
    %v1013 = vpack.c.b16 %v857, %v845
    %v1014 = vpack.c.b16 %v858, %v846
    %v1015 = vpack.c.b16 %v859, %v847
    %v1016 = vpack.c.b16 %v860, %v848
    %v1017 = vpack.c.b16 %v861, %v849
    %v1018 = vpack.c.b16 %v862, %v850
    %v1019 = vpack.c.b16 %v875, %v863
    %v1020 = vpack.c.b16 %v876, %v864
    %v1021 = vpack.c.b16 %v877, %v865
    %v1022 = vpack.c.b16 %v878, %v866
    %v1023 = vpack.c.b16 %v879, %v867
    %v1024 = vpack.c.b16 %v880, %v868
    %v1025 = vpack.c.b16 %v881, %v869
    %v1026 = vpack.c.b16 %v882, %v870
    %v1027 = vpack.c.b16 %v883, %v871
    %v1028 = vpack.c.b16 %v884, %v872
    %v1029 = vpack.c.b16 %v885, %v873
    %v1030 = vpack.c.b16 %v886, %v874
    %v1031 = vpack.c.b16 %v899, %v887
    %v1032 = vpack.c.b16 %v900, %v888
    %v1033 = vpack.c.b16 %v901, %v889
    %v1034 = vpack.c.b16 %v902, %v890
    %v1035 = vpack.c.b16 %v903, %v891
    %v1036 = vpack.c.b16 %v904, %v892
    %v1037 = vpack.c.b16 %v905, %v893
    %v1038 = vpack.c.b16 %v906, %v894
    %v1039 = vpack.c.b16 %v907, %v895
    %v1040 = vpack.c.b16 %v908, %v896
    %v1041 = vpack.c.b16 %v909, %v897
    %v1042 = vpack.c.b16 %v910, %v898
    %v1043 = vpack.c.b16 %v923, %v911
    %v1044 = vpack.c.b16 %v924, %v912
    %v1045 = vpack.c.b16 %v925, %v913
    %v1046 = vpack.c.b16 %v926, %v914
    %v1047 = vpack.c.b16 %v927, %v915
    %v1048 = vpack.c.b16 %v928, %v916
    %v1049 = vpack.c.b16 %v929, %v917
    %v1050 = vpack.c.b16 %v930, %v918
    %v1051 = vpack.c.b16 %v931, %v919
    %v1052 = vpack.c.b16 %v932, %v920
    %v1053 = vpack.c.b16 %v933, %v921
    %v1054 = vpack.c.b16 %v934, %v922
    %v1055 = vpack.c.b16 %v947, %v935
    %v1056 = vpack.c.b16 %v948, %v936
    %v1057 = vpack.c.b16 %v949, %v937
    %v1058 = vpack.c.b16 %v950, %v938
    %v1059 = vpack.c.b16 %v951, %v939
    %v1060 = vpack.c.b16 %v952, %v940
    %v1061 = vpack.c.b16 %v953, %v941
    %v1062 = vpack.c.b16 %v954, %v942
    %v1063 = vpack.c.b16 %v955, %v943
    %v1064 = vpack.c.b16 %v956, %v944
    %v1065 = vpack.c.b16 %v957, %v945
    %v1066 = vpack.c.b16 %v958, %v946
    %v1067 = vpack.c.b16 %v971, %v959
    %v1068 = vpack.c.b16 %v972, %v960
    %v1069 = vpack.c.b16 %v973, %v961
    %v1070 = vpack.c.b16 %v974, %v962
    %v1071 = vpack.c.b16 %v975, %v963
    %v1072 = vpack.c.b16 %v976, %v964
    %v1073 = vpack.c.b16 %v977, %v965
    %v1074 = vpack.c.b16 %v978, %v966
    %v1075 = vpack.c.b16 %v979, %v967
    %v1076 = vpack.c.b16 %v980, %v968
    %v1077 = vpack.c.b16 %v981, %v969
    %v1078 = vpack.c.b16 %v982, %v970
    %1175 = vmatprep.subr.bf16.mxu0 %v984
    %1176 = vmatpush1.bf16.msra.mxu0 %v983
    %1177 = vmatprep.subr.bf16.mxu0 %v996
    %1178 = vmatpush1.bf16.msra.mxu0 %v995
    %1179 = vmatprep.subr.bf16.mxu0 %v1008
    %1180 = vmatpush1.bf16.msra.mxu0 %v1007
    %1181 = vmatprep.subr.bf16.mxu0 %v1020
    %1182 = vmatpush1.bf16.msra.mxu0 %v1019
    %1183 = vmatprep.subr.bf16.mxu0 %v1032
    %1184 = vmatpush1.bf16.msra.mxu0 %v1031
    %1185 = vmatprep.subr.bf16.mxu0 %v1044
    %1186 = vmatpush1.bf16.msra.mxu0 %v1043
    %1187 = vmatprep.subr.bf16.mxu0 %v1056
    %1188 = vmatpush1.bf16.msra.mxu0 %v1055
    %1189 = vmatprep.subr.bf16.mxu0 %v1068
    %1190 = vmatpush1.bf16.msra.mxu0 %v1067
    %1191 = vmatprep.subr.bf16.mxu0 0
    %1192 = vmatpush1.bf16.msra.mxu0 0
    %1193 = vmatprep.subr.bf16.mxu0 0
    %1194 = vmatpush1.bf16.msra.mxu0 0
    %1195 = vmatprep.subr.bf16.mxu0 0
    %1196 = vmatpush1.bf16.msra.mxu0 0
    %1197 = vmatprep.subr.bf16.mxu0 0
    %1198 = vmatpush1.bf16.msra.mxu0 0
    %1199 = vmatprep.subr.bf16.mxu0 0
    %1200 = vmatpush1.bf16.msra.mxu0 0
    %1201 = vmatprep.subr.bf16.mxu0 0
    %1202 = vmatpush1.bf16.msra.mxu0 0
    %1203 = vmatprep.subr.bf16.mxu0 0
    %1204 = vmatpush1.bf16.msra.mxu0 0
    %1205 = vmatprep.subr.bf16.mxu0 0
    %1206 = vmatpush1.bf16.msra.mxu0 0
    %1207 = vmatprep.mubr.bf16.mxu0 0
    %1208 = vmatmul.mubr.bf16.gmra.mrb[0].mxu0 %v693
    %v1209 = vpop.f32.mrb[0].mxu0
    %v1210 = vadd.f32 %v630, %v1209
    %v1211 = vpop.f32.mrb[0].mxu0
    %v1212 = vadd.f32 %v634, %v1211
    %v1213 = vpop.f32.mrb[0].mxu0
    %v1214 = vpop.f32.mrb[0].mxu0
    %1215 = vdwg.mxu0
    %1216 = vmatprep.subr.bf16.mxu0 %v986
    %1217 = vmatpush1.bf16.msra.mxu0 %v985
    %1218 = vmatprep.subr.bf16.mxu0 %v998
    %1219 = vmatpush1.bf16.msra.mxu0 %v997
    %1220 = vmatprep.subr.bf16.mxu0 %v1010
    %1221 = vmatpush1.bf16.msra.mxu0 %v1009
    %1222 = vmatprep.subr.bf16.mxu0 %v1022
    %1223 = vmatpush1.bf16.msra.mxu0 %v1021
    %1224 = vmatprep.subr.bf16.mxu0 %v1034
    %1225 = vmatpush1.bf16.msra.mxu0 %v1033
    %1226 = vmatprep.subr.bf16.mxu0 %v1046
    %1227 = vmatpush1.bf16.msra.mxu0 %v1045
    %1228 = vmatprep.subr.bf16.mxu0 %v1058
    %1229 = vmatpush1.bf16.msra.mxu0 %v1057
    %1230 = vmatprep.subr.bf16.mxu0 %v1070
    %1231 = vmatpush1.bf16.msra.mxu0 %v1069
    %1232 = vmatprep.subr.bf16.mxu0 0
    %1233 = vmatpush1.bf16.msra.mxu0 0
    %1234 = vmatprep.subr.bf16.mxu0 0
    %1235 = vmatpush1.bf16.msra.mxu0 0
    %1236 = vmatprep.subr.bf16.mxu0 0
    %1237 = vmatpush1.bf16.msra.mxu0 0
    %1238 = vmatprep.subr.bf16.mxu0 0
    %1239 = vmatpush1.bf16.msra.mxu0 0
    %1240 = vmatprep.subr.bf16.mxu0 0
    %1241 = vmatpush1.bf16.msra.mxu0 0
    %1242 = vmatprep.subr.bf16.mxu0 0
    %1243 = vmatpush1.bf16.msra.mxu0 0
    %1244 = vmatprep.subr.bf16.mxu0 0
    %1245 = vmatpush1.bf16.msra.mxu0 0
    %1246 = vmatprep.subr.bf16.mxu0 0
    %1247 = vmatpush1.bf16.msra.mxu0 0
    %1248 = vmatprep.mubr.bf16.mxu0 0
    %1249 = vmatmul.mubr.bf16.gmra.mrb[0].mxu0 %v693
    %v1250 = vpop.f32.mrb[0].mxu0
    %v1251 = vadd.f32 %v638, %v1250
    %v1252 = vpop.f32.mrb[0].mxu0
    %v1253 = vadd.f32 %v642, %v1252
    %v1254 = vpop.f32.mrb[0].mxu0
    %v1255 = vpop.f32.mrb[0].mxu0
    %1256 = vdwg.mxu0
    %1257 = vmatprep.subr.bf16.mxu0 %v988
    %1258 = vmatpush1.bf16.msra.mxu0 %v987
    %1259 = vmatprep.subr.bf16.mxu0 %v1000
    %1260 = vmatpush1.bf16.msra.mxu0 %v999
    %1261 = vmatprep.subr.bf16.mxu0 %v1012
    %1262 = vmatpush1.bf16.msra.mxu0 %v1011
    %1263 = vmatprep.subr.bf16.mxu0 %v1024
    %1264 = vmatpush1.bf16.msra.mxu0 %v1023
    %1265 = vmatprep.subr.bf16.mxu0 %v1036
    %1266 = vmatpush1.bf16.msra.mxu0 %v1035
    %1267 = vmatprep.subr.bf16.mxu0 %v1048
    %1268 = vmatpush1.bf16.msra.mxu0 %v1047
    %1269 = vmatprep.subr.bf16.mxu0 %v1060
    %1270 = vmatpush1.bf16.msra.mxu0 %v1059
    %1271 = vmatprep.subr.bf16.mxu0 %v1072
    %1272 = vmatpush1.bf16.msra.mxu0 %v1071
    %1273 = vmatprep.subr.bf16.mxu0 0
    %1274 = vmatpush1.bf16.msra.mxu0 0
    %1275 = vmatprep.subr.bf16.mxu0 0
    %1276 = vmatpush1.bf16.msra.mxu0 0
    %1277 = vmatprep.subr.bf16.mxu0 0
    %1278 = vmatpush1.bf16.msra.mxu0 0
    %1279 = vmatprep.subr.bf16.mxu0 0
    %1280 = vmatpush1.bf16.msra.mxu0 0
    %1281 = vmatprep.subr.bf16.mxu0 0
    %1282 = vmatpush1.bf16.msra.mxu0 0
    %1283 = vmatprep.subr.bf16.mxu0 0
    %1284 = vmatpush1.bf16.msra.mxu0 0
    %1285 = vmatprep.subr.bf16.mxu0 0
    %1286 = vmatpush1.bf16.msra.mxu0 0
    %1287 = vmatprep.subr.bf16.mxu0 0
    %1288 = vmatpush1.bf16.msra.mxu0 0
    %1289 = vmatprep.mubr.bf16.mxu0 0
    %1290 = vmatmul.mubr.bf16.gmra.mrb[0].mxu0 %v693
    %v1291 = vpop.f32.mrb[0].mxu0
    %v1292 = vadd.f32 %v646, %v1291
    %v1293 = vpop.f32.mrb[0].mxu0
    %v1294 = vadd.f32 %v650, %v1293
    %v1295 = vpop.f32.mrb[0].mxu0
    %v1296 = vpop.f32.mrb[0].mxu0
    %1297 = vdwg.mxu0
    %1298 = vmatprep.subr.bf16.mxu0 %v990
    %1299 = vmatpush1.bf16.msra.mxu0 %v989
    %1300 = vmatprep.subr.bf16.mxu0 %v1002
    %1301 = vmatpush1.bf16.msra.mxu0 %v1001
    %1302 = vmatprep.subr.bf16.mxu0 %v1014
    %1303 = vmatpush1.bf16.msra.mxu0 %v1013
    %1304 = vmatprep.subr.bf16.mxu0 %v1026
    %1305 = vmatpush1.bf16.msra.mxu0 %v1025
    %1306 = vmatprep.subr.bf16.mxu0 %v1038
    %1307 = vmatpush1.bf16.msra.mxu0 %v1037
    %1308 = vmatprep.subr.bf16.mxu0 %v1050
    %1309 = vmatpush1.bf16.msra.mxu0 %v1049
    %1310 = vmatprep.subr.bf16.mxu0 %v1062
    %1311 = vmatpush1.bf16.msra.mxu0 %v1061
    %1312 = vmatprep.subr.bf16.mxu0 %v1074
    %1313 = vmatpush1.bf16.msra.mxu0 %v1073
    %1314 = vmatprep.subr.bf16.mxu0 0
    %1315 = vmatpush1.bf16.msra.mxu0 0
    %1316 = vmatprep.subr.bf16.mxu0 0
    %1317 = vmatpush1.bf16.msra.mxu0 0
    %1318 = vmatprep.subr.bf16.mxu0 0
    %1319 = vmatpush1.bf16.msra.mxu0 0
    %1320 = vmatprep.subr.bf16.mxu0 0
    %1321 = vmatpush1.bf16.msra.mxu0 0
    %1322 = vmatprep.subr.bf16.mxu0 0
    %1323 = vmatpush1.bf16.msra.mxu0 0
    %1324 = vmatprep.subr.bf16.mxu0 0
    %1325 = vmatpush1.bf16.msra.mxu0 0
    %1326 = vmatprep.subr.bf16.mxu0 0
    %1327 = vmatpush1.bf16.msra.mxu0 0
    %1328 = vmatprep.subr.bf16.mxu0 0
    %1329 = vmatpush1.bf16.msra.mxu0 0
    %1330 = vmatprep.mubr.bf16.mxu0 0
    %1331 = vmatmul.mubr.bf16.gmra.mrb[0].mxu0 %v693
    %v1332 = vpop.f32.mrb[0].mxu0
    %v1333 = vadd.f32 %v654, %v1332
    %v1334 = vpop.f32.mrb[0].mxu0
    %v1335 = vadd.f32 %v658, %v1334
    %v1336 = vpop.f32.mrb[0].mxu0
    %v1337 = vpop.f32.mrb[0].mxu0
    %1338 = vdwg.mxu0
    %1339 = vmatprep.subr.bf16.mxu0 %v992
    %1340 = vmatpush1.bf16.msra.mxu0 %v991
    %1341 = vmatprep.subr.bf16.mxu0 %v1004
    %1342 = vmatpush1.bf16.msra.mxu0 %v1003
    %1343 = vmatprep.subr.bf16.mxu0 %v1016
    %1344 = vmatpush1.bf16.msra.mxu0 %v1015
    %1345 = vmatprep.subr.bf16.mxu0 %v1028
    %1346 = vmatpush1.bf16.msra.mxu0 %v1027
    %1347 = vmatprep.subr.bf16.mxu0 %v1040
    %1348 = vmatpush1.bf16.msra.mxu0 %v1039
    %1349 = vmatprep.subr.bf16.mxu0 %v1052
    %1350 = vmatpush1.bf16.msra.mxu0 %v1051
    %1351 = vmatprep.subr.bf16.mxu0 %v1064
    %1352 = vmatpush1.bf16.msra.mxu0 %v1063
    %1353 = vmatprep.subr.bf16.mxu0 %v1076
    %1354 = vmatpush1.bf16.msra.mxu0 %v1075
    %1355 = vmatprep.subr.bf16.mxu0 0
    %1356 = vmatpush1.bf16.msra.mxu0 0
    %1357 = vmatprep.subr.bf16.mxu0 0
    %1358 = vmatpush1.bf16.msra.mxu0 0
    %1359 = vmatprep.subr.bf16.mxu0 0
    %1360 = vmatpush1.bf16.msra.mxu0 0
    %1361 = vmatprep.subr.bf16.mxu0 0
    %1362 = vmatpush1.bf16.msra.mxu0 0
    %1363 = vmatprep.subr.bf16.mxu0 0
    %1364 = vmatpush1.bf16.msra.mxu0 0
    %1365 = vmatprep.subr.bf16.mxu0 0
    %1366 = vmatpush1.bf16.msra.mxu0 0
    %1367 = vmatprep.subr.bf16.mxu0 0
    %1368 = vmatpush1.bf16.msra.mxu0 0
    %1369 = vmatprep.subr.bf16.mxu0 0
    %1370 = vmatpush1.bf16.msra.mxu0 0
    %1371 = vmatprep.mubr.bf16.mxu0 0
    %1372 = vmatmul.mubr.bf16.gmra.mrb[0].mxu0 %v693
    %v1373 = vpop.f32.mrb[0].mxu0
    %v1374 = vadd.f32 %v662, %v1373
    %v1375 = vpop.f32.mrb[0].mxu0
    %v1376 = vadd.f32 %v666, %v1375
    %v1377 = vpop.f32.mrb[0].mxu0
    %v1378 = vpop.f32.mrb[0].mxu0
    %1379 = vdwg.mxu0
    %1380 = vmatprep.subr.bf16.mxu0 %v994
    %1381 = vmatpush1.bf16.msra.mxu0 %v993
    %1382 = vmatprep.subr.bf16.mxu0 %v1006
    %1383 = vmatpush1.bf16.msra.mxu0 %v1005
    %1384 = vmatprep.subr.bf16.mxu0 %v1018
    %1385 = vmatpush1.bf16.msra.mxu0 %v1017
    %1386 = vmatprep.subr.bf16.mxu0 %v1030
    %1387 = vmatpush1.bf16.msra.mxu0 %v1029
    %1388 = vmatprep.subr.bf16.mxu0 %v1042
    %1389 = vmatpush1.bf16.msra.mxu0 %v1041
    %1390 = vmatprep.subr.bf16.mxu0 %v1054
    %1391 = vmatpush1.bf16.msra.mxu0 %v1053
    %1392 = vmatprep.subr.bf16.mxu0 %v1066
    %1393 = vmatpush1.bf16.msra.mxu0 %v1065
    %1394 = vmatprep.subr.bf16.mxu0 %v1078
    %1395 = vmatpush1.bf16.msra.mxu0 %v1077
    %1396 = vmatprep.subr.bf16.mxu0 0
    %1397 = vmatpush1.bf16.msra.mxu0 0
    %1398 = vmatprep.subr.bf16.mxu0 0
    %1399 = vmatpush1.bf16.msra.mxu0 0
    %1400 = vmatprep.subr.bf16.mxu0 0
    %1401 = vmatpush1.bf16.msra.mxu0 0
    %1402 = vmatprep.subr.bf16.mxu0 0
    %1403 = vmatpush1.bf16.msra.mxu0 0
    %1404 = vmatprep.subr.bf16.mxu0 0
    %1405 = vmatpush1.bf16.msra.mxu0 0
    %1406 = vmatprep.subr.bf16.mxu0 0
    %1407 = vmatpush1.bf16.msra.mxu0 0
    %1408 = vmatprep.subr.bf16.mxu0 0
    %1409 = vmatpush1.bf16.msra.mxu0 0
    %1410 = vmatprep.subr.bf16.mxu0 0
    %1411 = vmatpush1.bf16.msra.mxu0 0
    %1412 = vmatprep.mubr.bf16.mxu0 0
    %1413 = vmatmul.mubr.bf16.gmra.mrb[0].mxu0 %v693
    %v1414 = vpop.f32.mrb[0].mxu0
    %v1415 = vadd.f32 %v670, %v1414
    %v1416 = vpop.f32.mrb[0].mxu0
    %v1417 = vadd.f32 %v674, %v1416
    %v1418 = vpop.f32.mrb[0].mxu0
    %v1419 = vpop.f32.mrb[0].mxu0
    %1420 = vdwg.mxu0
    %v1421 = vld [vmem:[%s1] sm:$0xff]
    %v1422 = vld [vmem:[%s1 + $0x8] sm:$0xff]
    %v1423 = vld [vmem:[%s1 + $0x10] sm:$0xff]
    %v1424 = vld [vmem:[%s1 + $0x18] sm:$0xff]
    %v1425 = vld [vmem:[%s1 + $0x20] sm:$0xff]
    %v1426 = vld [vmem:[%s1 + $0x28] sm:$0xff]
    %v1427 = vld [vmem:[%s1 + $0x30] sm:$0xff]
    %v1428 = vld [vmem:[%s1 + $0x38] sm:$0xff]
    %v1429 = vld [vmem:[%s1 + $0x40] sm:$0xff]
    %v1430 = vld [vmem:[%s1 + $0x48] sm:$0xff]
    %v1431 = vld [vmem:[%s1 + $0x50] sm:$0xff]
    %v1432 = vld [vmem:[%s1 + $0x58] sm:$0xff]
    %v1433 = vld [vmem:[%s1 + $0x60] sm:$0xff]
    %v1434 = vld [vmem:[%s1 + $0x68] sm:$0xff]
    %v1435 = vld [vmem:[%s1 + $0x70] sm:$0xff]
    %v1436 = vld [vmem:[%s1 + $0x78] sm:$0xff]
    %v1437 = vld [vmem:[%s4] sm:$0xf]
    %v1438 = vld [vmem:[%s4 + $0x4] sm:$0xf]
    %v1439 = vld [vmem:[%s4 + $0x8] sm:$0xf]
    %v1440 = vld [vmem:[%s4 + $0xc] sm:$0xf]
    %v1441 = vld [vmem:[%s4 + $0x10] sm:$0xf]
    %v1442 = vld [vmem:[%s4 + $0x14] sm:$0xf]
    %v1443 = vld [vmem:[%s4 + $0x18] sm:$0xf]
    %v1444 = vld [vmem:[%s4 + $0x1c] sm:$0xf]
    %v1445 = vld [vmem:[%s4 + $0x20] sm:$0xf]
    %v1446 = vld [vmem:[%s4 + $0x24] sm:$0xf]
    %v1447 = vld [vmem:[%s4 + $0x28] sm:$0xf]
    %v1448 = vld [vmem:[%s4 + $0x2c] sm:$0xf]
    %v1449 = vld [vmem:[%s4 + $0x30] sm:$0xf]
    %v1450 = vld [vmem:[%s4 + $0x34] sm:$0xf]
    %v1451 = vld [vmem:[%s4 + $0x38] sm:$0xf]
    %v1452 = vld [vmem:[%s4 + $0x3c] sm:$0xf]
    %v1453 = vld [vmem:[%s4 + $0x40] sm:$0xf]
    %v1454 = vld [vmem:[%s4 + $0x44] sm:$0xf]
    %v1455 = vld [vmem:[%s4 + $0x48] sm:$0xf]
    %v1456 = vld [vmem:[%s4 + $0x4c] sm:$0xf]
    %v1457 = vld [vmem:[%s4 + $0x50] sm:$0xf]
    %v1458 = vld [vmem:[%s4 + $0x54] sm:$0xf]
    %v1459 = vld [vmem:[%s4 + $0x58] sm:$0xf]
    %v1460 = vld [vmem:[%s4 + $0x5c] sm:$0xf]
    %v1461 = vld [vmem:[%s4 + $0x60] sm:$0xf]
    %v1462 = vld [vmem:[%s4 + $0x64] sm:$0xf]
    %v1463 = vld [vmem:[%s4 + $0x68] sm:$0xf]
    %v1464 = vld [vmem:[%s4 + $0x6c] sm:$0xf]
    %v1465 = vld [vmem:[%s4 + $0x70] sm:$0xf]
    %v1466 = vld [vmem:[%s4 + $0x74] sm:$0xf]
    %v1467 = vld [vmem:[%s4 + $0x78] sm:$0xf]
    %v1468 = vld [vmem:[%s4 + $0x7c] sm:$0xf]
    %v1469 = vld [vmem:[%s5] sm:$0x1]
    %v1471 = vlaneseq
    %v1472 = vshrl.u32 %v1471, 7
    %v1473 = vsub.s32 0, %v1472
    %v1474 = vrot.slane %v1469, %v1473
    %v1492 = vunpack.c.l.b16 %v1421
    %v1493 = vunpack.c.h.b16 %v1421
    %v1494 = vunpack.c.l.b16 %v1422
    %v1495 = vunpack.c.h.b16 %v1422
    %v1496 = vunpack.c.l.b16 %v1423
    %v1497 = vunpack.c.h.b16 %v1423
    %v1498 = vunpack.c.l.b16 %v1424
    %v1499 = vunpack.c.h.b16 %v1424
    %v1500 = vunpack.c.l.b16 %v1425
    %v1501 = vunpack.c.h.b16 %v1425
    %v1502 = vunpack.c.l.b16 %v1426
    %v1503 = vunpack.c.h.b16 %v1426
    %v1504 = vunpack.c.l.b16 %v1427
    %v1505 = vunpack.c.h.b16 %v1427
    %v1506 = vunpack.c.l.b16 %v1428
    %v1507 = vunpack.c.h.b16 %v1428
    %v1508 = vunpack.c.l.b16 %v1429
    %v1509 = vunpack.c.h.b16 %v1429
    %v1510 = vunpack.c.l.b16 %v1430
    %v1511 = vunpack.c.h.b16 %v1430
    %v1512 = vunpack.c.l.b16 %v1431
    %v1513 = vunpack.c.h.b16 %v1431
    %v1514 = vunpack.c.l.b16 %v1432
    %v1515 = vunpack.c.h.b16 %v1432
    %v1516 = vunpack.c.l.b16 %v1433
    %v1517 = vunpack.c.h.b16 %v1433
    %v1518 = vunpack.c.l.b16 %v1434
    %v1519 = vunpack.c.h.b16 %v1434
    %v1520 = vunpack.c.l.b16 %v1435
    %v1521 = vunpack.c.h.b16 %v1435
    %v1522 = vunpack.c.l.b16 %v1436
    %v1523 = vunpack.c.h.b16 %v1436
    %v1524 = vpack.c.b16 %v1494, %v1492
    %v1525 = vpack.c.b16 %v1495, %v1493
    %v1526 = vpack.c.b16 %v1498, %v1496
    %v1527 = vpack.c.b16 %v1499, %v1497
    %v1528 = vpack.c.b16 %v1502, %v1500
    %v1529 = vpack.c.b16 %v1503, %v1501
    %v1530 = vpack.c.b16 %v1506, %v1504
    %v1531 = vpack.c.b16 %v1507, %v1505
    %v1532 = vpack.c.b16 %v1510, %v1508
    %v1533 = vpack.c.b16 %v1511, %v1509
    %v1534 = vpack.c.b16 %v1514, %v1512
    %v1535 = vpack.c.b16 %v1515, %v1513
    %v1536 = vpack.c.b16 %v1518, %v1516
    %v1537 = vpack.c.b16 %v1519, %v1517
    %v1538 = vpack.c.b16 %v1522, %v1520
    %v1539 = vpack.c.b16 %v1523, %v1521
    %v1588 = vunpack.c.l.b16 %v1437
    %v1589 = vunpack.c.l.b16 %v1438
    %v1590 = vunpack.c.l.b16 %v1439
    %v1591 = vunpack.c.l.b16 %v1440
    %v1592 = vunpack.c.l.b16 %v1441
    %v1593 = vunpack.c.l.b16 %v1442
    %v1594 = vunpack.c.l.b16 %v1443
    %v1595 = vunpack.c.l.b16 %v1444
    %v1596 = vunpack.c.l.b16 %v1445
    %v1597 = vunpack.c.l.b16 %v1446
    %v1598 = vunpack.c.l.b16 %v1447
    %v1599 = vunpack.c.l.b16 %v1448
    %v1600 = vunpack.c.l.b16 %v1449
    %v1601 = vunpack.c.l.b16 %v1450
    %v1602 = vunpack.c.l.b16 %v1451
    %v1603 = vunpack.c.l.b16 %v1452
    %v1604 = vunpack.c.l.b16 %v1453
    %v1605 = vunpack.c.l.b16 %v1454
    %v1606 = vunpack.c.l.b16 %v1455
    %v1607 = vunpack.c.l.b16 %v1456
    %v1608 = vunpack.c.l.b16 %v1457
    %v1609 = vunpack.c.l.b16 %v1458
    %v1610 = vunpack.c.l.b16 %v1459
    %v1611 = vunpack.c.l.b16 %v1460
    %v1612 = vunpack.c.l.b16 %v1461
    %v1613 = vunpack.c.l.b16 %v1462
    %v1614 = vunpack.c.l.b16 %v1463
    %v1615 = vunpack.c.l.b16 %v1464
    %v1616 = vunpack.c.l.b16 %v1465
    %v1617 = vunpack.c.l.b16 %v1466
    %v1618 = vunpack.c.l.b16 %v1467
    %v1619 = vunpack.c.l.b16 %v1468
    %v1620 = vpack.c.b16 %v1589, %v1588
    %v1621 = vpack.c.b16 %v1591, %v1590
    %v1622 = vpack.c.b16 %v1593, %v1592
    %v1623 = vpack.c.b16 %v1595, %v1594
    %v1624 = vpack.c.b16 %v1597, %v1596
    %v1625 = vpack.c.b16 %v1599, %v1598
    %v1626 = vpack.c.b16 %v1601, %v1600
    %v1627 = vpack.c.b16 %v1603, %v1602
    %v1628 = vpack.c.b16 %v1605, %v1604
    %v1629 = vpack.c.b16 %v1607, %v1606
    %v1630 = vpack.c.b16 %v1609, %v1608
    %v1631 = vpack.c.b16 %v1611, %v1610
    %v1632 = vpack.c.b16 %v1613, %v1612
    %v1633 = vpack.c.b16 %v1615, %v1614
    %v1634 = vpack.c.b16 %v1617, %v1616
    %v1635 = vpack.c.b16 %v1619, %v1618
    %1652 = vmatprep.subr.bf16.mxu0 0
    %1653 = vmatpush1.bf16.msra.mxu0 %v1620
    %1654 = vmatprep.subr.bf16.mxu0 0
    %1655 = vmatpush1.bf16.msra.mxu0 %v1621
    %1656 = vmatprep.subr.bf16.mxu0 0
    %1657 = vmatpush1.bf16.msra.mxu0 %v1622
    %1658 = vmatprep.subr.bf16.mxu0 0
    %1659 = vmatpush1.bf16.msra.mxu0 %v1623
    %1660 = vmatprep.subr.bf16.mxu0 0
    %1661 = vmatpush1.bf16.msra.mxu0 %v1624
    %1662 = vmatprep.subr.bf16.mxu0 0
    %1663 = vmatpush1.bf16.msra.mxu0 %v1625
    %1664 = vmatprep.subr.bf16.mxu0 0
    %1665 = vmatpush1.bf16.msra.mxu0 %v1626
    %1666 = vmatprep.subr.bf16.mxu0 0
    %1667 = vmatpush1.bf16.msra.mxu0 %v1627
    %1668 = vmatprep.subr.bf16.mxu0 0
    %1669 = vmatpush1.bf16.msra.mxu0 %v1628
    %1670 = vmatprep.subr.bf16.mxu0 0
    %1671 = vmatpush1.bf16.msra.mxu0 %v1629
    %1672 = vmatprep.subr.bf16.mxu0 0
    %1673 = vmatpush1.bf16.msra.mxu0 %v1630
    %1674 = vmatprep.subr.bf16.mxu0 0
    %1675 = vmatpush1.bf16.msra.mxu0 %v1631
    %1676 = vmatprep.subr.bf16.mxu0 0
    %1677 = vmatpush1.bf16.msra.mxu0 %v1632
    %1678 = vmatprep.subr.bf16.mxu0 0
    %1679 = vmatpush1.bf16.msra.mxu0 %v1633
    %1680 = vmatprep.subr.bf16.mxu0 0
    %1681 = vmatpush1.bf16.msra.mxu0 %v1634
    %1682 = vmatprep.subr.bf16.mxu0 0
    %1683 = vmatpush1.bf16.msra.mxu0 %v1635
    %1684 = vmatprep.mubr.bf16.mxu0 %v1525
    %1685 = vmatmul.mubr.bf16.gmra.mrb[0].mxu0 %v1524
    %v1686 = vpop.f32.mrb[0].mxu0
    %v1687 = vadd.f32 %v1474, %v1686
    %v1688 = vpop.f32.mrb[0].mxu0
    %v1689 = vpop.f32.mrb[0].mxu0
    %v1690 = vadd.f32 %v1474, %v1689
    %v1691 = vpop.f32.mrb[0].mxu0
    %1692 = vmatprep.mubr.bf16.mxu0 %v1527
    %1693 = vmatmul.mubr.bf16.gmra.mrb[0].mxu0 %v1526
    %v1694 = vpop.f32.mrb[0].mxu0
    %v1695 = vadd.f32 %v1474, %v1694
    %v1696 = vpop.f32.mrb[0].mxu0
    %v1697 = vpop.f32.mrb[0].mxu0
    %v1698 = vadd.f32 %v1474, %v1697
    %v1699 = vpop.f32.mrb[0].mxu0
    %1700 = vmatprep.mubr.bf16.mxu0 %v1529
    %1701 = vmatmul.mubr.bf16.gmra.mrb[0].mxu0 %v1528
    %v1702 = vpop.f32.mrb[0].mxu0
    %v1703 = vadd.f32 %v1474, %v1702
    %v1704 = vpop.f32.mrb[0].mxu0
    %v1705 = vpop.f32.mrb[0].mxu0
    %v1706 = vadd.f32 %v1474, %v1705
    %v1707 = vpop.f32.mrb[0].mxu0
    %1708 = vmatprep.mubr.bf16.mxu0 %v1531
    %1709 = vmatmul.mubr.bf16.gmra.mrb[0].mxu0 %v1530
    %v1710 = vpop.f32.mrb[0].mxu0
    %v1711 = vadd.f32 %v1474, %v1710
    %v1712 = vpop.f32.mrb[0].mxu0
    %v1713 = vpop.f32.mrb[0].mxu0
    %v1714 = vadd.f32 %v1474, %v1713
    %v1715 = vpop.f32.mrb[0].mxu0
    %1716 = vmatprep.mubr.bf16.mxu0 %v1533
    %1717 = vmatmul.mubr.bf16.gmra.mrb[0].mxu0 %v1532
    %v1718 = vpop.f32.mrb[0].mxu0
    %v1719 = vadd.f32 %v1474, %v1718
    %v1720 = vpop.f32.mrb[0].mxu0
    %v1721 = vpop.f32.mrb[0].mxu0
    %v1722 = vadd.f32 %v1474, %v1721
    %v1723 = vpop.f32.mrb[0].mxu0
    %1724 = vmatprep.mubr.bf16.mxu0 %v1535
    %1725 = vmatmul.mubr.bf16.gmra.mrb[0].mxu0 %v1534
    %v1726 = vpop.f32.mrb[0].mxu0
    %v1727 = vadd.f32 %v1474, %v1726
    %v1728 = vpop.f32.mrb[0].mxu0
    %v1729 = vpop.f32.mrb[0].mxu0
    %v1730 = vadd.f32 %v1474, %v1729
    %v1731 = vpop.f32.mrb[0].mxu0
    %1732 = vmatprep.mubr.bf16.mxu0 %v1537
    %1733 = vmatmul.mubr.bf16.gmra.mrb[0].mxu0 %v1536
    %v1734 = vpop.f32.mrb[0].mxu0
    %v1735 = vadd.f32 %v1474, %v1734
    %v1736 = vpop.f32.mrb[0].mxu0
    %v1737 = vpop.f32.mrb[0].mxu0
    %v1738 = vadd.f32 %v1474, %v1737
    %v1739 = vpop.f32.mrb[0].mxu0
    %1740 = vmatprep.mubr.bf16.mxu0 %v1539
    %1741 = vmatmul.mubr.bf16.gmra.mrb[0].mxu0 %v1538
    %v1742 = vpop.f32.mrb[0].mxu0
    %v1743 = vadd.f32 %v1474, %v1742
    %v1744 = vpop.f32.mrb[0].mxu0
    %v1745 = vpop.f32.mrb[0].mxu0
    %v1746 = vadd.f32 %v1474, %v1745
    %v1747 = vpop.f32.mrb[0].mxu0
    %1748 = vdwg.mxu0
    %v1749 = vxor.u32 %v1687, 2147483648
    %v1750 = vxor.u32 %v1690, 2147483648
    %v1751 = vxor.u32 %v1695, 2147483648
    %v1752 = vxor.u32 %v1698, 2147483648
    %v1753 = vxor.u32 %v1703, 2147483648
    %v1754 = vxor.u32 %v1706, 2147483648
    %v1755 = vxor.u32 %v1711, 2147483648
    %v1756 = vxor.u32 %v1714, 2147483648
    %v1757 = vxor.u32 %v1719, 2147483648
    %v1758 = vxor.u32 %v1722, 2147483648
    %v1759 = vxor.u32 %v1727, 2147483648
    %v1760 = vxor.u32 %v1730, 2147483648
    %v1761 = vxor.u32 %v1735, 2147483648
    %v1762 = vxor.u32 %v1738, 2147483648
    %v1763 = vxor.u32 %v1743, 2147483648
    %v1764 = vxor.u32 %v1746, 2147483648
    %v1765 = vmul.f32 %v1749, 1.442695
    %v1766 = vpow.pop %v1765
    %v1767 = vmul.f32 %v1750, 1.442695
    %v1768 = vpow.pop %v1767
    %v1769 = vmul.f32 %v1751, 1.442695
    %v1770 = vpow.pop %v1769
    %v1771 = vmul.f32 %v1752, 1.442695
    %v1772 = vpow.pop %v1771
    %v1773 = vmul.f32 %v1753, 1.442695
    %v1774 = vpow.pop %v1773
    %v1775 = vmul.f32 %v1754, 1.442695
    %v1776 = vpow.pop %v1775
    %v1777 = vmul.f32 %v1755, 1.442695
    %v1778 = vpow.pop %v1777
    %v1779 = vmul.f32 %v1756, 1.442695
    %v1780 = vpow.pop %v1779
    %v1781 = vmul.f32 %v1757, 1.442695
    %v1782 = vpow.pop %v1781
    %v1783 = vmul.f32 %v1758, 1.442695
    %v1784 = vpow.pop %v1783
    %v1785 = vmul.f32 %v1759, 1.442695
    %v1786 = vpow.pop %v1785
    %v1787 = vmul.f32 %v1760, 1.442695
    %v1788 = vpow.pop %v1787
    %v1789 = vmul.f32 %v1761, 1.442695
    %v1790 = vpow.pop %v1789
    %v1791 = vmul.f32 %v1762, 1.442695
    %v1792 = vpow.pop %v1791
    %v1793 = vmul.f32 %v1763, 1.442695
    %v1794 = vpow.pop %v1793
    %v1795 = vmul.f32 %v1764, 1.442695
    %v1796 = vpow.pop %v1795
    %v1797 = vadd.f32 %v1766, 1.0
    %v1798 = vadd.f32 %v1768, 1.0
    %v1799 = vadd.f32 %v1770, 1.0
    %v1800 = vadd.f32 %v1772, 1.0
    %v1801 = vadd.f32 %v1774, 1.0
    %v1802 = vadd.f32 %v1776, 1.0
    %v1803 = vadd.f32 %v1778, 1.0
    %v1804 = vadd.f32 %v1780, 1.0
    %v1805 = vadd.f32 %v1782, 1.0
    %v1806 = vadd.f32 %v1784, 1.0
    %v1807 = vadd.f32 %v1786, 1.0
    %v1808 = vadd.f32 %v1788, 1.0
    %v1809 = vadd.f32 %v1790, 1.0
    %v1810 = vadd.f32 %v1792, 1.0
    %v1811 = vadd.f32 %v1794, 1.0
    %v1812 = vadd.f32 %v1796, 1.0
    %v1813 = vrcp.pop %v1797
    %v1814 = vmul.f32 1.0, %v1813
    %v1815 = vrcp.pop %v1798
    %v1816 = vmul.f32 1.0, %v1815
    %v1817 = vrcp.pop %v1799
    %v1818 = vmul.f32 1.0, %v1817
    %v1819 = vrcp.pop %v1800
    %v1820 = vmul.f32 1.0, %v1819
    %v1821 = vrcp.pop %v1801
    %v1822 = vmul.f32 1.0, %v1821
    %v1823 = vrcp.pop %v1802
    %v1824 = vmul.f32 1.0, %v1823
    %v1825 = vrcp.pop %v1803
    %v1826 = vmul.f32 1.0, %v1825
    %v1827 = vrcp.pop %v1804
    %v1828 = vmul.f32 1.0, %v1827
    %v1829 = vrcp.pop %v1805
    %v1830 = vmul.f32 1.0, %v1829
    %v1831 = vrcp.pop %v1806
    %v1832 = vmul.f32 1.0, %v1831
    %v1833 = vrcp.pop %v1807
    %v1834 = vmul.f32 1.0, %v1833
    %v1835 = vrcp.pop %v1808
    %v1836 = vmul.f32 1.0, %v1835
    %v1837 = vrcp.pop %v1809
    %v1838 = vmul.f32 1.0, %v1837
    %v1839 = vrcp.pop %v1810
    %v1840 = vmul.f32 1.0, %v1839
    %v1841 = vrcp.pop %v1811
    %v1842 = vmul.f32 1.0, %v1841
    %v1843 = vrcp.pop %v1812
    %v1844 = vmul.f32 1.0, %v1843
    %v1845 = vmul.f32 %v1687, %v1814
    %v1846 = vmul.f32 %v1690, %v1816
    %v1847 = vmul.f32 %v1695, %v1818
    %v1848 = vmul.f32 %v1698, %v1820
    %v1849 = vmul.f32 %v1703, %v1822
    %v1850 = vmul.f32 %v1706, %v1824
    %v1851 = vmul.f32 %v1711, %v1826
    %v1852 = vmul.f32 %v1714, %v1828
    %v1853 = vmul.f32 %v1719, %v1830
    %v1854 = vmul.f32 %v1722, %v1832
    %v1855 = vmul.f32 %v1727, %v1834
    %v1856 = vmul.f32 %v1730, %v1836
    %v1857 = vmul.f32 %v1735, %v1838
    %v1858 = vmul.f32 %v1738, %v1840
    %v1859 = vmul.f32 %v1743, %v1842
    %v1860 = vmul.f32 %v1746, %v1844
    %v1861 = vadd.f32 %v1845, %v1846
    %v1862 = vadd.f32 %v1861, %v1847
    %v1863 = vadd.f32 %v1862, %v1848
    %v1864 = vadd.f32 %v1863, %v1849
    %v1865 = vadd.f32 %v1864, %v1850
    %v1866 = vadd.f32 %v1865, %v1851
    %v1867 = vadd.f32 %v1866, %v1852
    %v1868 = vrot.slane %v1867, 4
    %v1869 = vadd.f32 %v1867, %v1868
    %v1870 = vrot.slane %v1869, 2
    %v1871 = vadd.f32 %v1869, %v1870
    %v1872 = vrot.slane %v1871, 1
    %v1873 = vadd.f32 %v1871, %v1872
    %v1874 = vadd.f32 %v1853, %v1854
    %v1875 = vadd.f32 %v1874, %v1855
    %v1876 = vadd.f32 %v1875, %v1856
    %v1877 = vadd.f32 %v1876, %v1857
    %v1878 = vadd.f32 %v1877, %v1858
    %v1879 = vadd.f32 %v1878, %v1859
    %v1880 = vadd.f32 %v1879, %v1860
    %v1881 = vrot.slane %v1880, 4
    %v1882 = vadd.f32 %v1880, %v1881
    %v1883 = vrot.slane %v1882, 2
    %v1884 = vadd.f32 %v1882, %v1883
    %v1885 = vrot.slane %v1884, 1
    %v1886 = vadd.f32 %v1884, %v1885
    %v1887 = vmul.f32 %v1873, %v522
    %v1888 = vmul.f32 %v1886, %v522
    %v1889 = vpack.c.bf16 %v1887, %v1887
    %v1890 = vpack.c.bf16 %v1888, %v1888
    %v1891 = vld [vmem:[%s8] sm:$0xff]
    %v1892 = vld [vmem:[%s8 + $0x8] sm:$0xff]
    %v1893 = vld [vmem:[%s8 + $0x10] sm:$0xff]
    %v1894 = vld [vmem:[%s8 + $0x18] sm:$0xff]
    %v1895 = vld [vmem:[%s8 + $0x20] sm:$0xff]
    %v1896 = vld [vmem:[%s8 + $0x28] sm:$0xff]
    %v1897 = vld [vmem:[%s8 + $0x30] sm:$0xff]
    %v1898 = vld [vmem:[%s8 + $0x38] sm:$0xff]
    %v1899 = vld [vmem:[%s8 + $0x40] sm:$0xff]
    %v1900 = vld [vmem:[%s8 + $0x48] sm:$0xff]
    %v1901 = vld [vmem:[%s8 + $0x50] sm:$0xff]
    %v1902 = vld [vmem:[%s8 + $0x58] sm:$0xff]
    %v1903 = vld [vmem:[%s8 + $0x60] sm:$0xff]
    %v1904 = vld [vmem:[%s8 + $0x68] sm:$0xff]
    %v1905 = vld [vmem:[%s8 + $0x70] sm:$0xff]
    %v1906 = vld [vmem:[%s8 + $0x78] sm:$0xff]
    %v1907 = vld [vmem:[%s8 + $0x80] sm:$0xff]
    %v1908 = vld [vmem:[%s8 + $0x88] sm:$0xff]
    %v1909 = vld [vmem:[%s8 + $0x90] sm:$0xff]
    %v1910 = vld [vmem:[%s8 + $0x98] sm:$0xff]
    %v1911 = vld [vmem:[%s8 + $0xa0] sm:$0xff]
    %v1912 = vld [vmem:[%s8 + $0xa8] sm:$0xff]
    %v1913 = vld [vmem:[%s8 + $0xb0] sm:$0xff]
    %v1914 = vld [vmem:[%s8 + $0xb8] sm:$0xff]
    %v1915 = vld [vmem:[%s8 + $0xc0] sm:$0xff]
    %v1916 = vld [vmem:[%s8 + $0xc8] sm:$0xff]
    %v1917 = vld [vmem:[%s8 + $0xd0] sm:$0xff]
    %v1918 = vld [vmem:[%s8 + $0xd8] sm:$0xff]
    %v1919 = vld [vmem:[%s8 + $0xe0] sm:$0xff]
    %v1920 = vld [vmem:[%s8 + $0xe8] sm:$0xff]
    %v1921 = vld [vmem:[%s8 + $0xf0] sm:$0xff]
    %v1922 = vld [vmem:[%s8 + $0xf8] sm:$0xff]
    %v1923 = vld [vmem:[%s8 + $0x100] sm:$0xff]
    %v1924 = vld [vmem:[%s8 + $0x108] sm:$0xff]
    %v1925 = vld [vmem:[%s8 + $0x110] sm:$0xff]
    %v1926 = vld [vmem:[%s8 + $0x118] sm:$0xff]
    %v1927 = vld [vmem:[%s8 + $0x120] sm:$0xff]
    %v1928 = vld [vmem:[%s8 + $0x128] sm:$0xff]
    %v1929 = vld [vmem:[%s8 + $0x130] sm:$0xff]
    %v1930 = vld [vmem:[%s8 + $0x138] sm:$0xff]
    %v1931 = vld [vmem:[%s8 + $0x140] sm:$0xff]
    %v1932 = vld [vmem:[%s8 + $0x148] sm:$0xff]
    %v1933 = vld [vmem:[%s8 + $0x150] sm:$0xff]
    %v1934 = vld [vmem:[%s8 + $0x158] sm:$0xff]
    %v1935 = vld [vmem:[%s8 + $0x160] sm:$0xff]
    %v1936 = vld [vmem:[%s8 + $0x168] sm:$0xff]
    %v1937 = vld [vmem:[%s8 + $0x170] sm:$0xff]
    %v1938 = vld [vmem:[%s8 + $0x178] sm:$0xff]
    %v1939 = vld [vmem:[%s8 + $0x180] sm:$0xff]
    %v1940 = vld [vmem:[%s8 + $0x188] sm:$0xff]
    %v1941 = vld [vmem:[%s8 + $0x190] sm:$0xff]
    %v1942 = vld [vmem:[%s8 + $0x198] sm:$0xff]
    %v1943 = vld [vmem:[%s8 + $0x1a0] sm:$0xff]
    %v1944 = vld [vmem:[%s8 + $0x1a8] sm:$0xff]
    %v1945 = vld [vmem:[%s8 + $0x1b0] sm:$0xff]
    %v1946 = vld [vmem:[%s8 + $0x1b8] sm:$0xff]
    %v1947 = vld [vmem:[%s8 + $0x1c0] sm:$0xff]
    %v1948 = vld [vmem:[%s8 + $0x1c8] sm:$0xff]
    %v1949 = vld [vmem:[%s8 + $0x1d0] sm:$0xff]
    %v1950 = vld [vmem:[%s8 + $0x1d8] sm:$0xff]
    %v1951 = vld [vmem:[%s8 + $0x1e0] sm:$0xff]
    %v1952 = vld [vmem:[%s8 + $0x1e8] sm:$0xff]
    %v1953 = vld [vmem:[%s8 + $0x1f0] sm:$0xff]
    %v1954 = vld [vmem:[%s8 + $0x1f8] sm:$0xff]
    %v1955 = vld [vmem:[%s8 + $0x200] sm:$0xff]
    %v1956 = vld [vmem:[%s8 + $0x208] sm:$0xff]
    %v1957 = vld [vmem:[%s8 + $0x210] sm:$0xff]
    %v1958 = vld [vmem:[%s8 + $0x218] sm:$0xff]
    %v1959 = vld [vmem:[%s8 + $0x220] sm:$0xff]
    %v1960 = vld [vmem:[%s8 + $0x228] sm:$0xff]
    %v1961 = vld [vmem:[%s8 + $0x230] sm:$0xff]
    %v1962 = vld [vmem:[%s8 + $0x238] sm:$0xff]
    %v1963 = vld [vmem:[%s8 + $0x240] sm:$0xff]
    %v1964 = vld [vmem:[%s8 + $0x248] sm:$0xff]
    %v1965 = vld [vmem:[%s8 + $0x250] sm:$0xff]
    %v1966 = vld [vmem:[%s8 + $0x258] sm:$0xff]
    %v1967 = vld [vmem:[%s8 + $0x260] sm:$0xff]
    %v1968 = vld [vmem:[%s8 + $0x268] sm:$0xff]
    %v1969 = vld [vmem:[%s8 + $0x270] sm:$0xff]
    %v1970 = vld [vmem:[%s8 + $0x278] sm:$0xff]
    %v1971 = vld [vmem:[%s8 + $0x280] sm:$0xff]
    %v1972 = vld [vmem:[%s8 + $0x288] sm:$0xff]
    %v1973 = vld [vmem:[%s8 + $0x290] sm:$0xff]
    %v1974 = vld [vmem:[%s8 + $0x298] sm:$0xff]
    %v1975 = vld [vmem:[%s8 + $0x2a0] sm:$0xff]
    %v1976 = vld [vmem:[%s8 + $0x2a8] sm:$0xff]
    %v1977 = vld [vmem:[%s8 + $0x2b0] sm:$0xff]
    %v1978 = vld [vmem:[%s8 + $0x2b8] sm:$0xff]
    %v1979 = vld [vmem:[%s8 + $0x2c0] sm:$0xff]
    %v1980 = vld [vmem:[%s8 + $0x2c8] sm:$0xff]
    %v1981 = vld [vmem:[%s8 + $0x2d0] sm:$0xff]
    %v1982 = vld [vmem:[%s8 + $0x2d8] sm:$0xff]
    %v1983 = vld [vmem:[%s8 + $0x2e0] sm:$0xff]
    %v1984 = vld [vmem:[%s8 + $0x2e8] sm:$0xff]
    %v1985 = vld [vmem:[%s8 + $0x2f0] sm:$0xff]
    %v1986 = vld [vmem:[%s8 + $0x2f8] sm:$0xff]
    %v1987 = vld [vmem:[%s9] sm:$0xff]
    %v1988 = vld [vmem:[%s9 + $0x8] sm:$0xf]
    %v1991 = vlaneseq
    %v1992 = vshrl.u32 %v1991, 7
    %v1993 = vsub.s32 0, %v1992
    %v1994 = vrot.slane %v1987, %v1993
    %v1995 = vlaneseq
    %v1996 = vshrl.u32 %v1995, 7
    %v1997 = vsub.s32 1, %v1996
    %v1998 = vrot.slane %v1987, %v1997
    %v1999 = vlaneseq
    %v2000 = vshrl.u32 %v1999, 7
    %v2001 = vsub.s32 2, %v2000
    %v2002 = vrot.slane %v1987, %v2001
    %v2003 = vlaneseq
    %v2004 = vshrl.u32 %v2003, 7
    %v2005 = vsub.s32 3, %v2004
    %v2006 = vrot.slane %v1987, %v2005
    %v2007 = vlaneseq
    %v2008 = vshrl.u32 %v2007, 7
    %v2009 = vsub.s32 4, %v2008
    %v2010 = vrot.slane %v1987, %v2009
    %v2011 = vlaneseq
    %v2012 = vshrl.u32 %v2011, 7
    %v2013 = vsub.s32 5, %v2012
    %v2014 = vrot.slane %v1987, %v2013
    %v2015 = vlaneseq
    %v2016 = vshrl.u32 %v2015, 7
    %v2017 = vsub.s32 6, %v2016
    %v2018 = vrot.slane %v1987, %v2017
    %v2019 = vlaneseq
    %v2020 = vshrl.u32 %v2019, 7
    %v2021 = vsub.s32 7, %v2020
    %v2022 = vrot.slane %v1987, %v2021
    %v2023 = vlaneseq
    %v2024 = vshrl.u32 %v2023, 7
    %v2025 = vsub.s32 0, %v2024
    %v2026 = vrot.slane %v1988, %v2025
    %v2027 = vlaneseq
    %v2028 = vshrl.u32 %v2027, 7
    %v2029 = vsub.s32 1, %v2028
    %v2030 = vrot.slane %v1988, %v2029
    %v2031 = vlaneseq
    %v2032 = vshrl.u32 %v2031, 7
    %v2033 = vsub.s32 2, %v2032
    %v2034 = vrot.slane %v1988, %v2033
    %v2035 = vlaneseq
    %v2036 = vshrl.u32 %v2035, 7
    %v2037 = vsub.s32 3, %v2036
    %v2038 = vrot.slane %v1988, %v2037
    %v2053 = vunpack.c.l.b16 %v1889
    %v2054 = vunpack.c.l.b16 %v1890
    %v2055 = vsel %vm691, %v2054, %v2053
    %v2056 = vpack.c.b16 %v2055, %v2055
    %v2154 = vunpack.c.l.b16 %v1891
    %v2155 = vunpack.c.h.b16 %v1891
    %v2156 = vunpack.c.l.b16 %v1892
    %v2157 = vunpack.c.h.b16 %v1892
    %v2158 = vunpack.c.l.b16 %v1893
    %v2159 = vunpack.c.h.b16 %v1893
    %v2160 = vunpack.c.l.b16 %v1894
    %v2161 = vunpack.c.h.b16 %v1894
    %v2162 = vunpack.c.l.b16 %v1895
    %v2163 = vunpack.c.h.b16 %v1895
    %v2164 = vunpack.c.l.b16 %v1896
    %v2165 = vunpack.c.h.b16 %v1896
    %v2166 = vunpack.c.l.b16 %v1897
    %v2167 = vunpack.c.h.b16 %v1897
    %v2168 = vunpack.c.l.b16 %v1898
    %v2169 = vunpack.c.h.b16 %v1898
    %v2170 = vunpack.c.l.b16 %v1899
    %v2171 = vunpack.c.h.b16 %v1899
    %v2172 = vunpack.c.l.b16 %v1900
    %v2173 = vunpack.c.h.b16 %v1900
    %v2174 = vunpack.c.l.b16 %v1901
    %v2175 = vunpack.c.h.b16 %v1901
    %v2176 = vunpack.c.l.b16 %v1902
    %v2177 = vunpack.c.h.b16 %v1902
    %v2178 = vunpack.c.l.b16 %v1903
    %v2179 = vunpack.c.h.b16 %v1903
    %v2180 = vunpack.c.l.b16 %v1904
    %v2181 = vunpack.c.h.b16 %v1904
    %v2182 = vunpack.c.l.b16 %v1905
    %v2183 = vunpack.c.h.b16 %v1905
    %v2184 = vunpack.c.l.b16 %v1906
    %v2185 = vunpack.c.h.b16 %v1906
    %v2186 = vunpack.c.l.b16 %v1907
    %v2187 = vunpack.c.h.b16 %v1907
    %v2188 = vunpack.c.l.b16 %v1908
    %v2189 = vunpack.c.h.b16 %v1908
    %v2190 = vunpack.c.l.b16 %v1909
    %v2191 = vunpack.c.h.b16 %v1909
    %v2192 = vunpack.c.l.b16 %v1910
    %v2193 = vunpack.c.h.b16 %v1910
    %v2194 = vunpack.c.l.b16 %v1911
    %v2195 = vunpack.c.h.b16 %v1911
    %v2196 = vunpack.c.l.b16 %v1912
    %v2197 = vunpack.c.h.b16 %v1912
    %v2198 = vunpack.c.l.b16 %v1913
    %v2199 = vunpack.c.h.b16 %v1913
    %v2200 = vunpack.c.l.b16 %v1914
    %v2201 = vunpack.c.h.b16 %v1914
    %v2202 = vunpack.c.l.b16 %v1915
    %v2203 = vunpack.c.h.b16 %v1915
    %v2204 = vunpack.c.l.b16 %v1916
    %v2205 = vunpack.c.h.b16 %v1916
    %v2206 = vunpack.c.l.b16 %v1917
    %v2207 = vunpack.c.h.b16 %v1917
    %v2208 = vunpack.c.l.b16 %v1918
    %v2209 = vunpack.c.h.b16 %v1918
    %v2210 = vunpack.c.l.b16 %v1919
    %v2211 = vunpack.c.h.b16 %v1919
    %v2212 = vunpack.c.l.b16 %v1920
    %v2213 = vunpack.c.h.b16 %v1920
    %v2214 = vunpack.c.l.b16 %v1921
    %v2215 = vunpack.c.h.b16 %v1921
    %v2216 = vunpack.c.l.b16 %v1922
    %v2217 = vunpack.c.h.b16 %v1922
    %v2218 = vunpack.c.l.b16 %v1923
    %v2219 = vunpack.c.h.b16 %v1923
    %v2220 = vunpack.c.l.b16 %v1924
    %v2221 = vunpack.c.h.b16 %v1924
    %v2222 = vunpack.c.l.b16 %v1925
    %v2223 = vunpack.c.h.b16 %v1925
    %v2224 = vunpack.c.l.b16 %v1926
    %v2225 = vunpack.c.h.b16 %v1926
    %v2226 = vunpack.c.l.b16 %v1927
    %v2227 = vunpack.c.h.b16 %v1927
    %v2228 = vunpack.c.l.b16 %v1928
    %v2229 = vunpack.c.h.b16 %v1928
    %v2230 = vunpack.c.l.b16 %v1929
    %v2231 = vunpack.c.h.b16 %v1929
    %v2232 = vunpack.c.l.b16 %v1930
    %v2233 = vunpack.c.h.b16 %v1930
    %v2234 = vunpack.c.l.b16 %v1931
    %v2235 = vunpack.c.h.b16 %v1931
    %v2236 = vunpack.c.l.b16 %v1932
    %v2237 = vunpack.c.h.b16 %v1932
    %v2238 = vunpack.c.l.b16 %v1933
    %v2239 = vunpack.c.h.b16 %v1933
    %v2240 = vunpack.c.l.b16 %v1934
    %v2241 = vunpack.c.h.b16 %v1934
    %v2242 = vunpack.c.l.b16 %v1935
    %v2243 = vunpack.c.h.b16 %v1935
    %v2244 = vunpack.c.l.b16 %v1936
    %v2245 = vunpack.c.h.b16 %v1936
    %v2246 = vunpack.c.l.b16 %v1937
    %v2247 = vunpack.c.h.b16 %v1937
    %v2248 = vunpack.c.l.b16 %v1938
    %v2249 = vunpack.c.h.b16 %v1938
    %v2250 = vunpack.c.l.b16 %v1939
    %v2251 = vunpack.c.h.b16 %v1939
    %v2252 = vunpack.c.l.b16 %v1940
    %v2253 = vunpack.c.h.b16 %v1940
    %v2254 = vunpack.c.l.b16 %v1941
    %v2255 = vunpack.c.h.b16 %v1941
    %v2256 = vunpack.c.l.b16 %v1942
    %v2257 = vunpack.c.h.b16 %v1942
    %v2258 = vunpack.c.l.b16 %v1943
    %v2259 = vunpack.c.h.b16 %v1943
    %v2260 = vunpack.c.l.b16 %v1944
    %v2261 = vunpack.c.h.b16 %v1944
    %v2262 = vunpack.c.l.b16 %v1945
    %v2263 = vunpack.c.h.b16 %v1945
    %v2264 = vunpack.c.l.b16 %v1946
    %v2265 = vunpack.c.h.b16 %v1946
    %v2266 = vunpack.c.l.b16 %v1947
    %v2267 = vunpack.c.h.b16 %v1947
    %v2268 = vunpack.c.l.b16 %v1948
    %v2269 = vunpack.c.h.b16 %v1948
    %v2270 = vunpack.c.l.b16 %v1949
    %v2271 = vunpack.c.h.b16 %v1949
    %v2272 = vunpack.c.l.b16 %v1950
    %v2273 = vunpack.c.h.b16 %v1950
    %v2274 = vunpack.c.l.b16 %v1951
    %v2275 = vunpack.c.h.b16 %v1951
    %v2276 = vunpack.c.l.b16 %v1952
    %v2277 = vunpack.c.h.b16 %v1952
    %v2278 = vunpack.c.l.b16 %v1953
    %v2279 = vunpack.c.h.b16 %v1953
    %v2280 = vunpack.c.l.b16 %v1954
    %v2281 = vunpack.c.h.b16 %v1954
    %v2282 = vunpack.c.l.b16 %v1955
    %v2283 = vunpack.c.h.b16 %v1955
    %v2284 = vunpack.c.l.b16 %v1956
    %v2285 = vunpack.c.h.b16 %v1956
    %v2286 = vunpack.c.l.b16 %v1957
    %v2287 = vunpack.c.h.b16 %v1957
    %v2288 = vunpack.c.l.b16 %v1958
    %v2289 = vunpack.c.h.b16 %v1958
    %v2290 = vunpack.c.l.b16 %v1959
    %v2291 = vunpack.c.h.b16 %v1959
    %v2292 = vunpack.c.l.b16 %v1960
    %v2293 = vunpack.c.h.b16 %v1960
    %v2294 = vunpack.c.l.b16 %v1961
    %v2295 = vunpack.c.h.b16 %v1961
    %v2296 = vunpack.c.l.b16 %v1962
    %v2297 = vunpack.c.h.b16 %v1962
    %v2298 = vunpack.c.l.b16 %v1963
    %v2299 = vunpack.c.h.b16 %v1963
    %v2300 = vunpack.c.l.b16 %v1964
    %v2301 = vunpack.c.h.b16 %v1964
    %v2302 = vunpack.c.l.b16 %v1965
    %v2303 = vunpack.c.h.b16 %v1965
    %v2304 = vunpack.c.l.b16 %v1966
    %v2305 = vunpack.c.h.b16 %v1966
    %v2306 = vunpack.c.l.b16 %v1967
    %v2307 = vunpack.c.h.b16 %v1967
    %v2308 = vunpack.c.l.b16 %v1968
    %v2309 = vunpack.c.h.b16 %v1968
    %v2310 = vunpack.c.l.b16 %v1969
    %v2311 = vunpack.c.h.b16 %v1969
    %v2312 = vunpack.c.l.b16 %v1970
    %v2313 = vunpack.c.h.b16 %v1970
    %v2314 = vunpack.c.l.b16 %v1971
    %v2315 = vunpack.c.h.b16 %v1971
    %v2316 = vunpack.c.l.b16 %v1972
    %v2317 = vunpack.c.h.b16 %v1972
    %v2318 = vunpack.c.l.b16 %v1973
    %v2319 = vunpack.c.h.b16 %v1973
    %v2320 = vunpack.c.l.b16 %v1974
    %v2321 = vunpack.c.h.b16 %v1974
    %v2322 = vunpack.c.l.b16 %v1975
    %v2323 = vunpack.c.h.b16 %v1975
    %v2324 = vunpack.c.l.b16 %v1976
    %v2325 = vunpack.c.h.b16 %v1976
    %v2326 = vunpack.c.l.b16 %v1977
    %v2327 = vunpack.c.h.b16 %v1977
    %v2328 = vunpack.c.l.b16 %v1978
    %v2329 = vunpack.c.h.b16 %v1978
    %v2330 = vunpack.c.l.b16 %v1979
    %v2331 = vunpack.c.h.b16 %v1979
    %v2332 = vunpack.c.l.b16 %v1980
    %v2333 = vunpack.c.h.b16 %v1980
    %v2334 = vunpack.c.l.b16 %v1981
    %v2335 = vunpack.c.h.b16 %v1981
    %v2336 = vunpack.c.l.b16 %v1982
    %v2337 = vunpack.c.h.b16 %v1982
    %v2338 = vunpack.c.l.b16 %v1983
    %v2339 = vunpack.c.h.b16 %v1983
    %v2340 = vunpack.c.l.b16 %v1984
    %v2341 = vunpack.c.h.b16 %v1984
    %v2342 = vunpack.c.l.b16 %v1985
    %v2343 = vunpack.c.h.b16 %v1985
    %v2344 = vunpack.c.l.b16 %v1986
    %v2345 = vunpack.c.h.b16 %v1986
    %v2346 = vpack.c.b16 %v2166, %v2154
    %v2347 = vpack.c.b16 %v2167, %v2155
    %v2348 = vpack.c.b16 %v2168, %v2156
    %v2349 = vpack.c.b16 %v2169, %v2157
    %v2350 = vpack.c.b16 %v2170, %v2158
    %v2351 = vpack.c.b16 %v2171, %v2159
    %v2352 = vpack.c.b16 %v2172, %v2160
    %v2353 = vpack.c.b16 %v2173, %v2161
    %v2354 = vpack.c.b16 %v2174, %v2162
    %v2355 = vpack.c.b16 %v2175, %v2163
    %v2356 = vpack.c.b16 %v2176, %v2164
    %v2357 = vpack.c.b16 %v2177, %v2165
    %v2358 = vpack.c.b16 %v2190, %v2178
    %v2359 = vpack.c.b16 %v2191, %v2179
    %v2360 = vpack.c.b16 %v2192, %v2180
    %v2361 = vpack.c.b16 %v2193, %v2181
    %v2362 = vpack.c.b16 %v2194, %v2182
    %v2363 = vpack.c.b16 %v2195, %v2183
    %v2364 = vpack.c.b16 %v2196, %v2184
    %v2365 = vpack.c.b16 %v2197, %v2185
    %v2366 = vpack.c.b16 %v2198, %v2186
    %v2367 = vpack.c.b16 %v2199, %v2187
    %v2368 = vpack.c.b16 %v2200, %v2188
    %v2369 = vpack.c.b16 %v2201, %v2189
    %v2370 = vpack.c.b16 %v2214, %v2202
    %v2371 = vpack.c.b16 %v2215, %v2203
    %v2372 = vpack.c.b16 %v2216, %v2204
    %v2373 = vpack.c.b16 %v2217, %v2205
    %v2374 = vpack.c.b16 %v2218, %v2206
    %v2375 = vpack.c.b16 %v2219, %v2207
    %v2376 = vpack.c.b16 %v2220, %v2208
    %v2377 = vpack.c.b16 %v2221, %v2209
    %v2378 = vpack.c.b16 %v2222, %v2210
    %v2379 = vpack.c.b16 %v2223, %v2211
    %v2380 = vpack.c.b16 %v2224, %v2212
    %v2381 = vpack.c.b16 %v2225, %v2213
    %v2382 = vpack.c.b16 %v2238, %v2226
    %v2383 = vpack.c.b16 %v2239, %v2227
    %v2384 = vpack.c.b16 %v2240, %v2228
    %v2385 = vpack.c.b16 %v2241, %v2229
    %v2386 = vpack.c.b16 %v2242, %v2230
    %v2387 = vpack.c.b16 %v2243, %v2231
    %v2388 = vpack.c.b16 %v2244, %v2232
    %v2389 = vpack.c.b16 %v2245, %v2233
    %v2390 = vpack.c.b16 %v2246, %v2234
    %v2391 = vpack.c.b16 %v2247, %v2235
    %v2392 = vpack.c.b16 %v2248, %v2236
    %v2393 = vpack.c.b16 %v2249, %v2237
    %v2394 = vpack.c.b16 %v2262, %v2250
    %v2395 = vpack.c.b16 %v2263, %v2251
    %v2396 = vpack.c.b16 %v2264, %v2252
    %v2397 = vpack.c.b16 %v2265, %v2253
    %v2398 = vpack.c.b16 %v2266, %v2254
    %v2399 = vpack.c.b16 %v2267, %v2255
    %v2400 = vpack.c.b16 %v2268, %v2256
    %v2401 = vpack.c.b16 %v2269, %v2257
    %v2402 = vpack.c.b16 %v2270, %v2258
    %v2403 = vpack.c.b16 %v2271, %v2259
    %v2404 = vpack.c.b16 %v2272, %v2260
    %v2405 = vpack.c.b16 %v2273, %v2261
    %v2406 = vpack.c.b16 %v2286, %v2274
    %v2407 = vpack.c.b16 %v2287, %v2275
    %v2408 = vpack.c.b16 %v2288, %v2276
    %v2409 = vpack.c.b16 %v2289, %v2277
    %v2410 = vpack.c.b16 %v2290, %v2278
    %v2411 = vpack.c.b16 %v2291, %v2279
    %v2412 = vpack.c.b16 %v2292, %v2280
    %v2413 = vpack.c.b16 %v2293, %v2281
    %v2414 = vpack.c.b16 %v2294, %v2282
    %v2415 = vpack.c.b16 %v2295, %v2283
    %v2416 = vpack.c.b16 %v2296, %v2284
    %v2417 = vpack.c.b16 %v2297, %v2285
    %v2418 = vpack.c.b16 %v2310, %v2298
    %v2419 = vpack.c.b16 %v2311, %v2299
    %v2420 = vpack.c.b16 %v2312, %v2300
    %v2421 = vpack.c.b16 %v2313, %v2301
    %v2422 = vpack.c.b16 %v2314, %v2302
    %v2423 = vpack.c.b16 %v2315, %v2303
    %v2424 = vpack.c.b16 %v2316, %v2304
    %v2425 = vpack.c.b16 %v2317, %v2305
    %v2426 = vpack.c.b16 %v2318, %v2306
    %v2427 = vpack.c.b16 %v2319, %v2307
    %v2428 = vpack.c.b16 %v2320, %v2308
    %v2429 = vpack.c.b16 %v2321, %v2309
    %v2430 = vpack.c.b16 %v2334, %v2322
    %v2431 = vpack.c.b16 %v2335, %v2323
    %v2432 = vpack.c.b16 %v2336, %v2324
    %v2433 = vpack.c.b16 %v2337, %v2325
    %v2434 = vpack.c.b16 %v2338, %v2326
    %v2435 = vpack.c.b16 %v2339, %v2327
    %v2436 = vpack.c.b16 %v2340, %v2328
    %v2437 = vpack.c.b16 %v2341, %v2329
    %v2438 = vpack.c.b16 %v2342, %v2330
    %v2439 = vpack.c.b16 %v2343, %v2331
    %v2440 = vpack.c.b16 %v2344, %v2332
    %v2441 = vpack.c.b16 %v2345, %v2333
    %2538 = vmatprep.subr.bf16.mxu0 %v2347
    %2539 = vmatpush1.bf16.msra.mxu0 %v2346
    %2540 = vmatprep.subr.bf16.mxu0 %v2359
    %2541 = vmatpush1.bf16.msra.mxu0 %v2358
    %2542 = vmatprep.subr.bf16.mxu0 %v2371
    %2543 = vmatpush1.bf16.msra.mxu0 %v2370
    %2544 = vmatprep.subr.bf16.mxu0 %v2383
    %2545 = vmatpush1.bf16.msra.mxu0 %v2382
    %2546 = vmatprep.subr.bf16.mxu0 %v2395
    %2547 = vmatpush1.bf16.msra.mxu0 %v2394
    %2548 = vmatprep.subr.bf16.mxu0 %v2407
    %2549 = vmatpush1.bf16.msra.mxu0 %v2406
    %2550 = vmatprep.subr.bf16.mxu0 %v2419
    %2551 = vmatpush1.bf16.msra.mxu0 %v2418
    %2552 = vmatprep.subr.bf16.mxu0 %v2431
    %2553 = vmatpush1.bf16.msra.mxu0 %v2430
    %2554 = vmatprep.subr.bf16.mxu0 0
    %2555 = vmatpush1.bf16.msra.mxu0 0
    %2556 = vmatprep.subr.bf16.mxu0 0
    %2557 = vmatpush1.bf16.msra.mxu0 0
    %2558 = vmatprep.subr.bf16.mxu0 0
    %2559 = vmatpush1.bf16.msra.mxu0 0
    %2560 = vmatprep.subr.bf16.mxu0 0
    %2561 = vmatpush1.bf16.msra.mxu0 0
    %2562 = vmatprep.subr.bf16.mxu0 0
    %2563 = vmatpush1.bf16.msra.mxu0 0
    %2564 = vmatprep.subr.bf16.mxu0 0
    %2565 = vmatpush1.bf16.msra.mxu0 0
    %2566 = vmatprep.subr.bf16.mxu0 0
    %2567 = vmatpush1.bf16.msra.mxu0 0
    %2568 = vmatprep.subr.bf16.mxu0 0
    %2569 = vmatpush1.bf16.msra.mxu0 0
    %2570 = vmatprep.mubr.bf16.mxu0 0
    %2571 = vmatmul.mubr.bf16.gmra.mrb[0].mxu0 %v2056
    %v2572 = vpop.f32.mrb[0].mxu0
    %v2573 = vadd.f32 %v1994, %v2572
    %v2574 = vpop.f32.mrb[0].mxu0
    %v2575 = vadd.f32 %v1998, %v2574
    %v2576 = vpop.f32.mrb[0].mxu0
    %v2577 = vpop.f32.mrb[0].mxu0
    %2578 = vdwg.mxu0
    %2579 = vmatprep.subr.bf16.mxu0 %v2349
    %2580 = vmatpush1.bf16.msra.mxu0 %v2348
    %2581 = vmatprep.subr.bf16.mxu0 %v2361
    %2582 = vmatpush1.bf16.msra.mxu0 %v2360
    %2583 = vmatprep.subr.bf16.mxu0 %v2373
    %2584 = vmatpush1.bf16.msra.mxu0 %v2372
    %2585 = vmatprep.subr.bf16.mxu0 %v2385
    %2586 = vmatpush1.bf16.msra.mxu0 %v2384
    %2587 = vmatprep.subr.bf16.mxu0 %v2397
    %2588 = vmatpush1.bf16.msra.mxu0 %v2396
    %2589 = vmatprep.subr.bf16.mxu0 %v2409
    %2590 = vmatpush1.bf16.msra.mxu0 %v2408
    %2591 = vmatprep.subr.bf16.mxu0 %v2421
    %2592 = vmatpush1.bf16.msra.mxu0 %v2420
    %2593 = vmatprep.subr.bf16.mxu0 %v2433
    %2594 = vmatpush1.bf16.msra.mxu0 %v2432
    %2595 = vmatprep.subr.bf16.mxu0 0
    %2596 = vmatpush1.bf16.msra.mxu0 0
    %2597 = vmatprep.subr.bf16.mxu0 0
    %2598 = vmatpush1.bf16.msra.mxu0 0
    %2599 = vmatprep.subr.bf16.mxu0 0
    %2600 = vmatpush1.bf16.msra.mxu0 0
    %2601 = vmatprep.subr.bf16.mxu0 0
    %2602 = vmatpush1.bf16.msra.mxu0 0
    %2603 = vmatprep.subr.bf16.mxu0 0
    %2604 = vmatpush1.bf16.msra.mxu0 0
    %2605 = vmatprep.subr.bf16.mxu0 0
    %2606 = vmatpush1.bf16.msra.mxu0 0
    %2607 = vmatprep.subr.bf16.mxu0 0
    %2608 = vmatpush1.bf16.msra.mxu0 0
    %2609 = vmatprep.subr.bf16.mxu0 0
    %2610 = vmatpush1.bf16.msra.mxu0 0
    %2611 = vmatprep.mubr.bf16.mxu0 0
    %2612 = vmatmul.mubr.bf16.gmra.mrb[0].mxu0 %v2056
    %v2613 = vpop.f32.mrb[0].mxu0
    %v2614 = vadd.f32 %v2002, %v2613
    %v2615 = vpop.f32.mrb[0].mxu0
    %v2616 = vadd.f32 %v2006, %v2615
    %v2617 = vpop.f32.mrb[0].mxu0
    %v2618 = vpop.f32.mrb[0].mxu0
    %2619 = vdwg.mxu0
    %2620 = vmatprep.subr.bf16.mxu0 %v2351
    %2621 = vmatpush1.bf16.msra.mxu0 %v2350
    %2622 = vmatprep.subr.bf16.mxu0 %v2363
    %2623 = vmatpush1.bf16.msra.mxu0 %v2362
    %2624 = vmatprep.subr.bf16.mxu0 %v2375
    %2625 = vmatpush1.bf16.msra.mxu0 %v2374
    %2626 = vmatprep.subr.bf16.mxu0 %v2387
    %2627 = vmatpush1.bf16.msra.mxu0 %v2386
    %2628 = vmatprep.subr.bf16.mxu0 %v2399
    %2629 = vmatpush1.bf16.msra.mxu0 %v2398
    %2630 = vmatprep.subr.bf16.mxu0 %v2411
    %2631 = vmatpush1.bf16.msra.mxu0 %v2410
    %2632 = vmatprep.subr.bf16.mxu0 %v2423
    %2633 = vmatpush1.bf16.msra.mxu0 %v2422
    %2634 = vmatprep.subr.bf16.mxu0 %v2435
    %2635 = vmatpush1.bf16.msra.mxu0 %v2434
    %2636 = vmatprep.subr.bf16.mxu0 0
    %2637 = vmatpush1.bf16.msra.mxu0 0
    %2638 = vmatprep.subr.bf16.mxu0 0
    %2639 = vmatpush1.bf16.msra.mxu0 0
    %2640 = vmatprep.subr.bf16.mxu0 0
    %2641 = vmatpush1.bf16.msra.mxu0 0
    %2642 = vmatprep.subr.bf16.mxu0 0
    %2643 = vmatpush1.bf16.msra.mxu0 0
    %2644 = vmatprep.subr.bf16.mxu0 0
    %2645 = vmatpush1.bf16.msra.mxu0 0
    %2646 = vmatprep.subr.bf16.mxu0 0
    %2647 = vmatpush1.bf16.msra.mxu0 0
    %2648 = vmatprep.subr.bf16.mxu0 0
    %2649 = vmatpush1.bf16.msra.mxu0 0
    %2650 = vmatprep.subr.bf16.mxu0 0
    %2651 = vmatpush1.bf16.msra.mxu0 0
    %2652 = vmatprep.mubr.bf16.mxu0 0
    %2653 = vmatmul.mubr.bf16.gmra.mrb[0].mxu0 %v2056
    %v2654 = vpop.f32.mrb[0].mxu0
    %v2655 = vadd.f32 %v2010, %v2654
    %v2656 = vpop.f32.mrb[0].mxu0
    %v2657 = vadd.f32 %v2014, %v2656
    %v2658 = vpop.f32.mrb[0].mxu0
    %v2659 = vpop.f32.mrb[0].mxu0
    %2660 = vdwg.mxu0
    %2661 = vmatprep.subr.bf16.mxu0 %v2353
    %2662 = vmatpush1.bf16.msra.mxu0 %v2352
    %2663 = vmatprep.subr.bf16.mxu0 %v2365
    %2664 = vmatpush1.bf16.msra.mxu0 %v2364
    %2665 = vmatprep.subr.bf16.mxu0 %v2377
    %2666 = vmatpush1.bf16.msra.mxu0 %v2376
    %2667 = vmatprep.subr.bf16.mxu0 %v2389
    %2668 = vmatpush1.bf16.msra.mxu0 %v2388
    %2669 = vmatprep.subr.bf16.mxu0 %v2401
    %2670 = vmatpush1.bf16.msra.mxu0 %v2400
    %2671 = vmatprep.subr.bf16.mxu0 %v2413
    %2672 = vmatpush1.bf16.msra.mxu0 %v2412
    %2673 = vmatprep.subr.bf16.mxu0 %v2425
    %2674 = vmatpush1.bf16.msra.mxu0 %v2424
    %2675 = vmatprep.subr.bf16.mxu0 %v2437
    %2676 = vmatpush1.bf16.msra.mxu0 %v2436
    %2677 = vmatprep.subr.bf16.mxu0 0
    %2678 = vmatpush1.bf16.msra.mxu0 0
    %2679 = vmatprep.subr.bf16.mxu0 0
    %2680 = vmatpush1.bf16.msra.mxu0 0
    %2681 = vmatprep.subr.bf16.mxu0 0
    %2682 = vmatpush1.bf16.msra.mxu0 0
    %2683 = vmatprep.subr.bf16.mxu0 0
    %2684 = vmatpush1.bf16.msra.mxu0 0
    %2685 = vmatprep.subr.bf16.mxu0 0
    %2686 = vmatpush1.bf16.msra.mxu0 0
    %2687 = vmatprep.subr.bf16.mxu0 0
    %2688 = vmatpush1.bf16.msra.mxu0 0
    %2689 = vmatprep.subr.bf16.mxu0 0
    %2690 = vmatpush1.bf16.msra.mxu0 0
    %2691 = vmatprep.subr.bf16.mxu0 0
    %2692 = vmatpush1.bf16.msra.mxu0 0
    %2693 = vmatprep.mubr.bf16.mxu0 0
    %2694 = vmatmul.mubr.bf16.gmra.mrb[0].mxu0 %v2056
    %v2695 = vpop.f32.mrb[0].mxu0
    %v2696 = vadd.f32 %v2018, %v2695
    %v2697 = vpop.f32.mrb[0].mxu0
    %v2698 = vadd.f32 %v2022, %v2697
    %v2699 = vpop.f32.mrb[0].mxu0
    %v2700 = vpop.f32.mrb[0].mxu0
    %2701 = vdwg.mxu0
    %2702 = vmatprep.subr.bf16.mxu0 %v2355
    %2703 = vmatpush1.bf16.msra.mxu0 %v2354
    %2704 = vmatprep.subr.bf16.mxu0 %v2367
    %2705 = vmatpush1.bf16.msra.mxu0 %v2366
    %2706 = vmatprep.subr.bf16.mxu0 %v2379
    %2707 = vmatpush1.bf16.msra.mxu0 %v2378
    %2708 = vmatprep.subr.bf16.mxu0 %v2391
    %2709 = vmatpush1.bf16.msra.mxu0 %v2390
    %2710 = vmatprep.subr.bf16.mxu0 %v2403
    %2711 = vmatpush1.bf16.msra.mxu0 %v2402
    %2712 = vmatprep.subr.bf16.mxu0 %v2415
    %2713 = vmatpush1.bf16.msra.mxu0 %v2414
    %2714 = vmatprep.subr.bf16.mxu0 %v2427
    %2715 = vmatpush1.bf16.msra.mxu0 %v2426
    %2716 = vmatprep.subr.bf16.mxu0 %v2439
    %2717 = vmatpush1.bf16.msra.mxu0 %v2438
    %2718 = vmatprep.subr.bf16.mxu0 0
    %2719 = vmatpush1.bf16.msra.mxu0 0
    %2720 = vmatprep.subr.bf16.mxu0 0
    %2721 = vmatpush1.bf16.msra.mxu0 0
    %2722 = vmatprep.subr.bf16.mxu0 0
    %2723 = vmatpush1.bf16.msra.mxu0 0
    %2724 = vmatprep.subr.bf16.mxu0 0
    %2725 = vmatpush1.bf16.msra.mxu0 0
    %2726 = vmatprep.subr.bf16.mxu0 0
    %2727 = vmatpush1.bf16.msra.mxu0 0
    %2728 = vmatprep.subr.bf16.mxu0 0
    %2729 = vmatpush1.bf16.msra.mxu0 0
    %2730 = vmatprep.subr.bf16.mxu0 0
    %2731 = vmatpush1.bf16.msra.mxu0 0
    %2732 = vmatprep.subr.bf16.mxu0 0
    %2733 = vmatpush1.bf16.msra.mxu0 0
    %2734 = vmatprep.mubr.bf16.mxu0 0
    %2735 = vmatmul.mubr.bf16.gmra.mrb[0].mxu0 %v2056
    %v2736 = vpop.f32.mrb[0].mxu0
    %v2737 = vadd.f32 %v2026, %v2736
    %v2738 = vpop.f32.mrb[0].mxu0
    %v2739 = vadd.f32 %v2030, %v2738
    %v2740 = vpop.f32.mrb[0].mxu0
    %v2741 = vpop.f32.mrb[0].mxu0
    %2742 = vdwg.mxu0
    %2743 = vmatprep.subr.bf16.mxu0 %v2357
    %2744 = vmatpush1.bf16.msra.mxu0 %v2356
    %2745 = vmatprep.subr.bf16.mxu0 %v2369
    %2746 = vmatpush1.bf16.msra.mxu0 %v2368
    %2747 = vmatprep.subr.bf16.mxu0 %v2381
    %2748 = vmatpush1.bf16.msra.mxu0 %v2380
    %2749 = vmatprep.subr.bf16.mxu0 %v2393
    %2750 = vmatpush1.bf16.msra.mxu0 %v2392
    %2751 = vmatprep.subr.bf16.mxu0 %v2405
    %2752 = vmatpush1.bf16.msra.mxu0 %v2404
    %2753 = vmatprep.subr.bf16.mxu0 %v2417
    %2754 = vmatpush1.bf16.msra.mxu0 %v2416
    %2755 = vmatprep.subr.bf16.mxu0 %v2429
    %2756 = vmatpush1.bf16.msra.mxu0 %v2428
    %2757 = vmatprep.subr.bf16.mxu0 %v2441
    %2758 = vmatpush1.bf16.msra.mxu0 %v2440
    %2759 = vmatprep.subr.bf16.mxu0 0
    %2760 = vmatpush1.bf16.msra.mxu0 0
    %2761 = vmatprep.subr.bf16.mxu0 0
    %2762 = vmatpush1.bf16.msra.mxu0 0
    %2763 = vmatprep.subr.bf16.mxu0 0
    %2764 = vmatpush1.bf16.msra.mxu0 0
    %2765 = vmatprep.subr.bf16.mxu0 0
    %2766 = vmatpush1.bf16.msra.mxu0 0
    %2767 = vmatprep.subr.bf16.mxu0 0
    %2768 = vmatpush1.bf16.msra.mxu0 0
    %2769 = vmatprep.subr.bf16.mxu0 0
    %2770 = vmatpush1.bf16.msra.mxu0 0
    %2771 = vmatprep.subr.bf16.mxu0 0
    %2772 = vmatpush1.bf16.msra.mxu0 0
    %2773 = vmatprep.subr.bf16.mxu0 0
    %2774 = vmatpush1.bf16.msra.mxu0 0
    %2775 = vmatprep.mubr.bf16.mxu0 0
    %2776 = vmatmul.mubr.bf16.gmra.mrb[0].mxu0 %v2056
    %v2777 = vpop.f32.mrb[0].mxu0
    %v2778 = vadd.f32 %v2034, %v2777
    %v2779 = vpop.f32.mrb[0].mxu0
    %v2780 = vadd.f32 %v2038, %v2779
    %v2781 = vpop.f32.mrb[0].mxu0
    %v2782 = vpop.f32.mrb[0].mxu0
    %2783 = vdwg.mxu0
    %v2796 = vcombine.low %v1210, %v1212
    %v2797 = vcombine.low %v1251, %v1253
    %v2799 = vunpack.c.l.s4 1983009808
    %v2800 = vunpack.c.0.s8 %v2799
    %v2801 = vlaneseq
    %v2802 = vshrl.u32 %v2801, 7
    %v2803 = vsub.s32 %v2800, %v2802
    %v2804 = vrot.slane %v2796, %v2803
    %v2806 = vunpack.c.l.s4 1983009808
    %v2807 = vunpack.c.0.s8 %v2806
    %v2808 = vlaneseq
    %v2809 = vshrl.u32 %v2808, 7
    %v2810 = vsub.s32 %v2807, %v2809
    %v2811 = vrot.slane %v2797, %v2810
    %v2812 = vcombine.low %v2804, %v2811
    %v2813 = vcombine.low %v1292, %v1294
    %v2814 = vcombine.low %v1333, %v1335
    %v2816 = vunpack.c.l.s4 1983009808
    %v2817 = vunpack.c.0.s8 %v2816
    %v2818 = vlaneseq
    %v2819 = vshrl.u32 %v2818, 7
    %v2820 = vsub.s32 %v2817, %v2819
    %v2821 = vrot.slane %v2813, %v2820
    %v2823 = vunpack.c.l.s4 1983009808
    %v2824 = vunpack.c.0.s8 %v2823
    %v2825 = vlaneseq
    %v2826 = vshrl.u32 %v2825, 7
    %v2827 = vsub.s32 %v2824, %v2826
    %v2828 = vrot.slane %v2814, %v2827
    %v2829 = vcombine.low %v2821, %v2828
    %v2830 = vcombine.low %v1374, %v1376
    %v2831 = vcombine.low %v1415, %v1417
    %v2833 = vunpack.c.l.s4 1983009808
    %v2834 = vunpack.c.0.s8 %v2833
    %v2835 = vlaneseq
    %v2836 = vshrl.u32 %v2835, 7
    %v2837 = vsub.s32 %v2834, %v2836
    %v2838 = vrot.slane %v2830, %v2837
    %v2840 = vunpack.c.l.s4 1983009808
    %v2841 = vunpack.c.0.s8 %v2840
    %v2842 = vlaneseq
    %v2843 = vshrl.u32 %v2842, 7
    %v2844 = vsub.s32 %v2841, %v2843
    %v2845 = vrot.slane %v2831, %v2844
    %v2846 = vcombine.low %v2838, %v2845
    %2850 = vst [vmem:[#allocation2] sm:$0xff] %v2812
    %2851 = vst [vmem:[#allocation2 + $0x8] sm:$0xff] %v2829
    %2852 = vst [vmem:[#allocation2 + $0x10] sm:$0xff] %v2846
    %v2865 = vcombine.low %v2573, %v2575
    %v2866 = vcombine.low %v2614, %v2616
    %v2868 = vunpack.c.l.s4 1983009808
    %v2869 = vunpack.c.0.s8 %v2868
    %v2870 = vlaneseq
    %v2871 = vshrl.u32 %v2870, 7
    %v2872 = vsub.s32 %v2869, %v2871
    %v2873 = vrot.slane %v2865, %v2872
    %v2875 = vunpack.c.l.s4 1983009808
    %v2876 = vunpack.c.0.s8 %v2875
    %v2877 = vlaneseq
    %v2878 = vshrl.u32 %v2877, 7
    %v2879 = vsub.s32 %v2876, %v2878
    %v2880 = vrot.slane %v2866, %v2879
    %v2881 = vcombine.low %v2873, %v2880
    %v2882 = vcombine.low %v2655, %v2657
    %v2883 = vcombine.low %v2696, %v2698
    %v2885 = vunpack.c.l.s4 1983009808
    %v2886 = vunpack.c.0.s8 %v2885
    %v2887 = vlaneseq
    %v2888 = vshrl.u32 %v2887, 7
    %v2889 = vsub.s32 %v2886, %v2888
    %v2890 = vrot.slane %v2882, %v2889
    %v2892 = vunpack.c.l.s4 1983009808
    %v2893 = vunpack.c.0.s8 %v2892
    %v2894 = vlaneseq
    %v2895 = vshrl.u32 %v2894, 7
    %v2896 = vsub.s32 %v2893, %v2895
    %v2897 = vrot.slane %v2883, %v2896
    %v2898 = vcombine.low %v2890, %v2897
    %v2899 = vcombine.low %v2737, %v2739
    %v2900 = vcombine.low %v2778, %v2780
    %v2902 = vunpack.c.l.s4 1983009808
    %v2903 = vunpack.c.0.s8 %v2902
    %v2904 = vlaneseq
    %v2905 = vshrl.u32 %v2904, 7
    %v2906 = vsub.s32 %v2903, %v2905
    %v2907 = vrot.slane %v2899, %v2906
    %v2909 = vunpack.c.l.s4 1983009808
    %v2910 = vunpack.c.0.s8 %v2909
    %v2911 = vlaneseq
    %v2912 = vshrl.u32 %v2911, 7
    %v2913 = vsub.s32 %v2910, %v2912
    %v2914 = vrot.slane %v2900, %v2913
    %v2915 = vcombine.low %v2907, %v2914
    %2919 = vst [vmem:[#allocation4] sm:$0xff] %v2881
    %2920 = vst [vmem:[#allocation4 + $0x8] sm:$0xff] %v2898
    %2921 = vst [vmem:[#allocation4 + $0x10] sm:$0xff] %v2915
    %v2922 = vpack.c.bf16 %v1210, %v1210
    %v2923 = vpack.c.bf16 %v1212, %v1212
    %v2924 = vpack.c.bf16 %v1251, %v1251
    %v2925 = vpack.c.bf16 %v1253, %v1253
    %v2926 = vpack.c.bf16 %v1292, %v1292
    %v2927 = vpack.c.bf16 %v1294, %v1294
    %v2928 = vpack.c.bf16 %v1333, %v1333
    %v2929 = vpack.c.bf16 %v1335, %v1335
    %v2930 = vpack.c.bf16 %v1374, %v1374
    %v2931 = vpack.c.bf16 %v1376, %v1376
    %v2932 = vpack.c.bf16 %v1415, %v1415
    %v2933 = vpack.c.bf16 %v1417, %v1417
    %v2934 = vld [vmem:[%s10] sm:$0xff]
    %v2935 = vld [vmem:[%s10 + $0x8] sm:$0xff]
    %v2936 = vld [vmem:[%s10 + $0x10] sm:$0xff]
    %v2937 = vld [vmem:[%s10 + $0x18] sm:$0xff]
    %v2938 = vld [vmem:[%s10 + $0x20] sm:$0xff]
    %v2939 = vld [vmem:[%s10 + $0x28] sm:$0xff]
    %v2940 = vld [vmem:[%s10 + $0x30] sm:$0xff]
    %v2941 = vld [vmem:[%s10 + $0x38] sm:$0xff]
    %v2942 = vld [vmem:[%s10 + $0x40] sm:$0xff]
    %v2943 = vld [vmem:[%s10 + $0x48] sm:$0xff]
    %v2944 = vld [vmem:[%s10 + $0x50] sm:$0xff]
    %v2945 = vld [vmem:[%s10 + $0x58] sm:$0xff]
    %v2946 = vld [vmem:[%s10 + $0x60] sm:$0xff]
    %v2947 = vld [vmem:[%s10 + $0x68] sm:$0xff]
    %v2948 = vld [vmem:[%s10 + $0x70] sm:$0xff]
    %v2949 = vld [vmem:[%s10 + $0x78] sm:$0xff]
    %v2950 = vld [vmem:[%s10 + $0x80] sm:$0xff]
    %v2951 = vld [vmem:[%s10 + $0x88] sm:$0xff]
    %v2952 = vld [vmem:[%s10 + $0x90] sm:$0xff]
    %v2953 = vld [vmem:[%s10 + $0x98] sm:$0xff]
    %v2954 = vld [vmem:[%s10 + $0xa0] sm:$0xff]
    %v2955 = vld [vmem:[%s10 + $0xa8] sm:$0xff]
    %v2956 = vld [vmem:[%s10 + $0xb0] sm:$0xff]
    %v2957 = vld [vmem:[%s10 + $0xb8] sm:$0xff]
    %v2958 = vld [vmem:[%s10 + $0xc0] sm:$0xff]
    %v2959 = vld [vmem:[%s10 + $0xc8] sm:$0xff]
    %v2960 = vld [vmem:[%s10 + $0xd0] sm:$0xff]
    %v2961 = vld [vmem:[%s10 + $0xd8] sm:$0xff]
    %v2962 = vld [vmem:[%s10 + $0xe0] sm:$0xff]
    %v2963 = vld [vmem:[%s10 + $0xe8] sm:$0xff]
    %v2964 = vld [vmem:[%s10 + $0xf0] sm:$0xff]
    %v2965 = vld [vmem:[%s10 + $0xf8] sm:$0xff]
    %v2966 = vld [vmem:[%s10 + $0x100] sm:$0xff]
    %v2967 = vld [vmem:[%s10 + $0x108] sm:$0xff]
    %v2968 = vld [vmem:[%s10 + $0x110] sm:$0xff]
    %v2969 = vld [vmem:[%s10 + $0x118] sm:$0xff]
    %v2970 = vld [vmem:[%s10 + $0x120] sm:$0xff]
    %v2971 = vld [vmem:[%s10 + $0x128] sm:$0xff]
    %v2972 = vld [vmem:[%s10 + $0x130] sm:$0xff]
    %v2973 = vld [vmem:[%s10 + $0x138] sm:$0xff]
    %v2974 = vld [vmem:[%s10 + $0x140] sm:$0xff]
    %v2975 = vld [vmem:[%s10 + $0x148] sm:$0xff]
    %v2976 = vld [vmem:[%s10 + $0x150] sm:$0xff]
    %v2977 = vld [vmem:[%s10 + $0x158] sm:$0xff]
    %v2978 = vld [vmem:[%s10 + $0x160] sm:$0xff]
    %v2979 = vld [vmem:[%s10 + $0x168] sm:$0xff]
    %v2980 = vld [vmem:[%s10 + $0x170] sm:$0xff]
    %v2981 = vld [vmem:[%s10 + $0x178] sm:$0xff]
    %v2982 = vld [vmem:[%s10 + $0x180] sm:$0xff]
    %v2983 = vld [vmem:[%s10 + $0x188] sm:$0xff]
    %v2984 = vld [vmem:[%s10 + $0x190] sm:$0xff]
    %v2985 = vld [vmem:[%s10 + $0x198] sm:$0xff]
    %v2986 = vld [vmem:[%s10 + $0x1a0] sm:$0xff]
    %v2987 = vld [vmem:[%s10 + $0x1a8] sm:$0xff]
    %v2988 = vld [vmem:[%s10 + $0x1b0] sm:$0xff]
    %v2989 = vld [vmem:[%s10 + $0x1b8] sm:$0xff]
    %v2990 = vld [vmem:[%s10 + $0x1c0] sm:$0xff]
    %v2991 = vld [vmem:[%s10 + $0x1c8] sm:$0xff]
    %v2992 = vld [vmem:[%s10 + $0x1d0] sm:$0xff]
    %v2993 = vld [vmem:[%s10 + $0x1d8] sm:$0xff]
    %v2994 = vld [vmem:[%s10 + $0x1e0] sm:$0xff]
    %v2995 = vld [vmem:[%s10 + $0x1e8] sm:$0xff]
    %v2996 = vld [vmem:[%s10 + $0x1f0] sm:$0xff]
    %v2997 = vld [vmem:[%s10 + $0x1f8] sm:$0xff]
    %v2998 = vld [vmem:[%s10 + $0x200] sm:$0xff]
    %v2999 = vld [vmem:[%s10 + $0x208] sm:$0xff]
    %v3000 = vld [vmem:[%s10 + $0x210] sm:$0xff]
    %v3001 = vld [vmem:[%s10 + $0x218] sm:$0xff]
    %v3002 = vld [vmem:[%s10 + $0x220] sm:$0xff]
    %v3003 = vld [vmem:[%s10 + $0x228] sm:$0xff]
    %v3004 = vld [vmem:[%s10 + $0x230] sm:$0xff]
    %v3005 = vld [vmem:[%s10 + $0x238] sm:$0xff]
    %v3006 = vld [vmem:[%s10 + $0x240] sm:$0xff]
    %v3007 = vld [vmem:[%s10 + $0x248] sm:$0xff]
    %v3008 = vld [vmem:[%s10 + $0x250] sm:$0xff]
    %v3009 = vld [vmem:[%s10 + $0x258] sm:$0xff]
    %v3010 = vld [vmem:[%s10 + $0x260] sm:$0xff]
    %v3011 = vld [vmem:[%s10 + $0x268] sm:$0xff]
    %v3012 = vld [vmem:[%s10 + $0x270] sm:$0xff]
    %v3013 = vld [vmem:[%s10 + $0x278] sm:$0xff]
    %v3014 = vld [vmem:[%s10 + $0x280] sm:$0xff]
    %v3015 = vld [vmem:[%s10 + $0x288] sm:$0xff]
    %v3016 = vld [vmem:[%s10 + $0x290] sm:$0xff]
    %v3017 = vld [vmem:[%s10 + $0x298] sm:$0xff]
    %v3018 = vld [vmem:[%s10 + $0x2a0] sm:$0xff]
    %v3019 = vld [vmem:[%s10 + $0x2a8] sm:$0xff]
    %v3020 = vld [vmem:[%s10 + $0x2b0] sm:$0xff]
    %v3021 = vld [vmem:[%s10 + $0x2b8] sm:$0xff]
    %v3022 = vld [vmem:[%s10 + $0x2c0] sm:$0xff]
    %v3023 = vld [vmem:[%s10 + $0x2c8] sm:$0xff]
    %v3024 = vld [vmem:[%s10 + $0x2d0] sm:$0xff]
    %v3025 = vld [vmem:[%s10 + $0x2d8] sm:$0xff]
    %v3026 = vld [vmem:[%s10 + $0x2e0] sm:$0xff]
    %v3027 = vld [vmem:[%s10 + $0x2e8] sm:$0xff]
    %v3028 = vld [vmem:[%s10 + $0x2f0] sm:$0xff]
    %v3029 = vld [vmem:[%s10 + $0x2f8] sm:$0xff]
    %v3030 = vld [vmem:[%s10 + $0x300] sm:$0xff]
    %v3031 = vld [vmem:[%s10 + $0x308] sm:$0xff]
    %v3032 = vld [vmem:[%s10 + $0x310] sm:$0xff]
    %v3033 = vld [vmem:[%s10 + $0x318] sm:$0xff]
    %v3034 = vld [vmem:[%s10 + $0x320] sm:$0xff]
    %v3035 = vld [vmem:[%s10 + $0x328] sm:$0xff]
    %v3036 = vld [vmem:[%s10 + $0x330] sm:$0xff]
    %v3037 = vld [vmem:[%s10 + $0x338] sm:$0xff]
    %v3038 = vld [vmem:[%s10 + $0x340] sm:$0xff]
    %v3039 = vld [vmem:[%s10 + $0x348] sm:$0xff]
    %v3040 = vld [vmem:[%s10 + $0x350] sm:$0xff]
    %v3041 = vld [vmem:[%s10 + $0x358] sm:$0xff]
    %v3042 = vld [vmem:[%s10 + $0x360] sm:$0xff]
    %v3043 = vld [vmem:[%s10 + $0x368] sm:$0xff]
    %v3044 = vld [vmem:[%s10 + $0x370] sm:$0xff]
    %v3045 = vld [vmem:[%s10 + $0x378] sm:$0xff]
    %v3046 = vld [vmem:[%s10 + $0x380] sm:$0xff]
    %v3047 = vld [vmem:[%s10 + $0x388] sm:$0xff]
    %v3048 = vld [vmem:[%s10 + $0x390] sm:$0xff]
    %v3049 = vld [vmem:[%s10 + $0x398] sm:$0xff]
    %v3050 = vld [vmem:[%s10 + $0x3a0] sm:$0xff]
    %v3051 = vld [vmem:[%s10 + $0x3a8] sm:$0xff]
    %v3052 = vld [vmem:[%s10 + $0x3b0] sm:$0xff]
    %v3053 = vld [vmem:[%s10 + $0x3b8] sm:$0xff]
    %v3054 = vld [vmem:[%s10 + $0x3c0] sm:$0xff]
    %v3055 = vld [vmem:[%s10 + $0x3c8] sm:$0xff]
    %v3056 = vld [vmem:[%s10 + $0x3d0] sm:$0xff]
    %v3057 = vld [vmem:[%s10 + $0x3d8] sm:$0xff]
    %v3058 = vld [vmem:[%s10 + $0x3e0] sm:$0xff]
    %v3059 = vld [vmem:[%s10 + $0x3e8] sm:$0xff]
    %v3060 = vld [vmem:[%s10 + $0x3f0] sm:$0xff]
    %v3061 = vld [vmem:[%s10 + $0x3f8] sm:$0xff]
    %v3062 = vld [vmem:[%s10 + $0x400] sm:$0xff]
    %v3063 = vld [vmem:[%s10 + $0x408] sm:$0xff]
    %v3064 = vld [vmem:[%s10 + $0x410] sm:$0xff]
    %v3065 = vld [vmem:[%s10 + $0x418] sm:$0xff]
    %v3066 = vld [vmem:[%s10 + $0x420] sm:$0xff]
    %v3067 = vld [vmem:[%s10 + $0x428] sm:$0xff]
    %v3068 = vld [vmem:[%s10 + $0x430] sm:$0xff]
    %v3069 = vld [vmem:[%s10 + $0x438] sm:$0xff]
    %v3070 = vld [vmem:[%s10 + $0x440] sm:$0xff]
    %v3071 = vld [vmem:[%s10 + $0x448] sm:$0xff]
    %v3072 = vld [vmem:[%s10 + $0x450] sm:$0xff]
    %v3073 = vld [vmem:[%s10 + $0x458] sm:$0xff]
    %v3074 = vld [vmem:[%s10 + $0x460] sm:$0xff]
    %v3075 = vld [vmem:[%s10 + $0x468] sm:$0xff]
    %v3076 = vld [vmem:[%s10 + $0x470] sm:$0xff]
    %v3077 = vld [vmem:[%s10 + $0x478] sm:$0xff]
    %v3078 = vld [vmem:[%s10 + $0x480] sm:$0xff]
    %v3079 = vld [vmem:[%s10 + $0x488] sm:$0xff]
    %v3080 = vld [vmem:[%s10 + $0x490] sm:$0xff]
    %v3081 = vld [vmem:[%s10 + $0x498] sm:$0xff]
    %v3082 = vld [vmem:[%s10 + $0x4a0] sm:$0xff]
    %v3083 = vld [vmem:[%s10 + $0x4a8] sm:$0xff]
    %v3084 = vld [vmem:[%s10 + $0x4b0] sm:$0xff]
    %v3085 = vld [vmem:[%s10 + $0x4b8] sm:$0xff]
    %v3086 = vld [vmem:[%s10 + $0x4c0] sm:$0xff]
    %v3087 = vld [vmem:[%s10 + $0x4c8] sm:$0xff]
    %v3088 = vld [vmem:[%s10 + $0x4d0] sm:$0xff]
    %v3089 = vld [vmem:[%s10 + $0x4d8] sm:$0xff]
    %v3090 = vld [vmem:[%s10 + $0x4e0] sm:$0xff]
    %v3091 = vld [vmem:[%s10 + $0x4e8] sm:$0xff]
    %v3092 = vld [vmem:[%s10 + $0x4f0] sm:$0xff]
    %v3093 = vld [vmem:[%s10 + $0x4f8] sm:$0xff]
    %v3094 = vld [vmem:[%s10 + $0x500] sm:$0xff]
    %v3095 = vld [vmem:[%s10 + $0x508] sm:$0xff]
    %v3096 = vld [vmem:[%s10 + $0x510] sm:$0xff]
    %v3097 = vld [vmem:[%s10 + $0x518] sm:$0xff]
    %v3098 = vld [vmem:[%s10 + $0x520] sm:$0xff]
    %v3099 = vld [vmem:[%s10 + $0x528] sm:$0xff]
    %v3100 = vld [vmem:[%s10 + $0x530] sm:$0xff]
    %v3101 = vld [vmem:[%s10 + $0x538] sm:$0xff]
    %v3102 = vld [vmem:[%s10 + $0x540] sm:$0xff]
    %v3103 = vld [vmem:[%s10 + $0x548] sm:$0xff]
    %v3104 = vld [vmem:[%s10 + $0x550] sm:$0xff]
    %v3105 = vld [vmem:[%s10 + $0x558] sm:$0xff]
    %v3106 = vld [vmem:[%s10 + $0x560] sm:$0xff]
    %v3107 = vld [vmem:[%s10 + $0x568] sm:$0xff]
    %v3108 = vld [vmem:[%s10 + $0x570] sm:$0xff]
    %v3109 = vld [vmem:[%s10 + $0x578] sm:$0xff]
    %v3110 = vld [vmem:[%s10 + $0x580] sm:$0xff]
    %v3111 = vld [vmem:[%s10 + $0x588] sm:$0xff]
    %v3112 = vld [vmem:[%s10 + $0x590] sm:$0xff]
    %v3113 = vld [vmem:[%s10 + $0x598] sm:$0xff]
    %v3114 = vld [vmem:[%s10 + $0x5a0] sm:$0xff]
    %v3115 = vld [vmem:[%s10 + $0x5a8] sm:$0xff]
    %v3116 = vld [vmem:[%s10 + $0x5b0] sm:$0xff]
    %v3117 = vld [vmem:[%s10 + $0x5b8] sm:$0xff]
    %v3118 = vld [vmem:[%s10 + $0x5c0] sm:$0xff]
    %v3119 = vld [vmem:[%s10 + $0x5c8] sm:$0xff]
    %v3120 = vld [vmem:[%s10 + $0x5d0] sm:$0xff]
    %v3121 = vld [vmem:[%s10 + $0x5d8] sm:$0xff]
    %v3122 = vld [vmem:[%s10 + $0x5e0] sm:$0xff]
    %v3123 = vld [vmem:[%s10 + $0x5e8] sm:$0xff]
    %v3124 = vld [vmem:[%s10 + $0x5f0] sm:$0xff]
    %v3125 = vld [vmem:[%s10 + $0x5f8] sm:$0xff]
    %v3126 = vld [vmem:[%s10 + $0x600] sm:$0xff]
    %v3127 = vld [vmem:[%s10 + $0x608] sm:$0xff]
    %v3128 = vld [vmem:[%s10 + $0x610] sm:$0xff]
    %v3129 = vld [vmem:[%s10 + $0x618] sm:$0xff]
    %v3130 = vld [vmem:[%s10 + $0x620] sm:$0xff]
    %v3131 = vld [vmem:[%s10 + $0x628] sm:$0xff]
    %v3132 = vld [vmem:[%s10 + $0x630] sm:$0xff]
    %v3133 = vld [vmem:[%s10 + $0x638] sm:$0xff]
    %v3134 = vld [vmem:[%s10 + $0x640] sm:$0xff]
    %v3135 = vld [vmem:[%s10 + $0x648] sm:$0xff]
    %v3136 = vld [vmem:[%s10 + $0x650] sm:$0xff]
    %v3137 = vld [vmem:[%s10 + $0x658] sm:$0xff]
    %v3138 = vld [vmem:[%s10 + $0x660] sm:$0xff]
    %v3139 = vld [vmem:[%s10 + $0x668] sm:$0xff]
    %v3140 = vld [vmem:[%s10 + $0x670] sm:$0xff]
    %v3141 = vld [vmem:[%s10 + $0x678] sm:$0xff]
    %v3142 = vld [vmem:[%s10 + $0x680] sm:$0xff]
    %v3143 = vld [vmem:[%s10 + $0x688] sm:$0xff]
    %v3144 = vld [vmem:[%s10 + $0x690] sm:$0xff]
    %v3145 = vld [vmem:[%s10 + $0x698] sm:$0xff]
    %v3146 = vld [vmem:[%s10 + $0x6a0] sm:$0xff]
    %v3147 = vld [vmem:[%s10 + $0x6a8] sm:$0xff]
    %v3148 = vld [vmem:[%s10 + $0x6b0] sm:$0xff]
    %v3149 = vld [vmem:[%s10 + $0x6b8] sm:$0xff]
    %v3150 = vld [vmem:[%s10 + $0x6c0] sm:$0xff]
    %v3151 = vld [vmem:[%s10 + $0x6c8] sm:$0xff]
    %v3152 = vld [vmem:[%s10 + $0x6d0] sm:$0xff]
    %v3153 = vld [vmem:[%s10 + $0x6d8] sm:$0xff]
    %v3154 = vld [vmem:[%s10 + $0x6e0] sm:$0xff]
    %v3155 = vld [vmem:[%s10 + $0x6e8] sm:$0xff]
    %v3156 = vld [vmem:[%s10 + $0x6f0] sm:$0xff]
    %v3157 = vld [vmem:[%s10 + $0x6f8] sm:$0xff]
    %v3158 = vld [vmem:[%s10 + $0x700] sm:$0xff]
    %v3159 = vld [vmem:[%s10 + $0x708] sm:$0xff]
    %v3160 = vld [vmem:[%s10 + $0x710] sm:$0xff]
    %v3161 = vld [vmem:[%s10 + $0x718] sm:$0xff]
    %v3162 = vld [vmem:[%s10 + $0x720] sm:$0xff]
    %v3163 = vld [vmem:[%s10 + $0x728] sm:$0xff]
    %v3164 = vld [vmem:[%s10 + $0x730] sm:$0xff]
    %v3165 = vld [vmem:[%s10 + $0x738] sm:$0xff]
    %v3166 = vld [vmem:[%s10 + $0x740] sm:$0xff]
    %v3167 = vld [vmem:[%s10 + $0x748] sm:$0xff]
    %v3168 = vld [vmem:[%s10 + $0x750] sm:$0xff]
    %v3169 = vld [vmem:[%s10 + $0x758] sm:$0xff]
    %v3170 = vld [vmem:[%s10 + $0x760] sm:$0xff]
    %v3171 = vld [vmem:[%s10 + $0x768] sm:$0xff]
    %v3172 = vld [vmem:[%s10 + $0x770] sm:$0xff]
    %v3173 = vld [vmem:[%s10 + $0x778] sm:$0xff]
    %v3174 = vld [vmem:[%s10 + $0x780] sm:$0xff]
    %v3175 = vld [vmem:[%s10 + $0x788] sm:$0xff]
    %v3176 = vld [vmem:[%s10 + $0x790] sm:$0xff]
    %v3177 = vld [vmem:[%s10 + $0x798] sm:$0xff]
    %v3178 = vld [vmem:[%s10 + $0x7a0] sm:$0xff]
    %v3179 = vld [vmem:[%s10 + $0x7a8] sm:$0xff]
    %v3180 = vld [vmem:[%s10 + $0x7b0] sm:$0xff]
    %v3181 = vld [vmem:[%s10 + $0x7b8] sm:$0xff]
    %v3182 = vld [vmem:[%s10 + $0x7c0] sm:$0xff]
    %v3183 = vld [vmem:[%s10 + $0x7c8] sm:$0xff]
    %v3184 = vld [vmem:[%s10 + $0x7d0] sm:$0xff]
    %v3185 = vld [vmem:[%s10 + $0x7d8] sm:$0xff]
    %v3186 = vld [vmem:[%s10 + $0x7e0] sm:$0xff]
    %v3187 = vld [vmem:[%s10 + $0x7e8] sm:$0xff]
    %v3188 = vld [vmem:[%s10 + $0x7f0] sm:$0xff]
    %v3189 = vld [vmem:[%s10 + $0x7f8] sm:$0xff]
    %v3190 = vld [vmem:[%s10 + $0x800] sm:$0xff]
    %v3191 = vld [vmem:[%s10 + $0x808] sm:$0xff]
    %v3192 = vld [vmem:[%s10 + $0x810] sm:$0xff]
    %v3193 = vld [vmem:[%s10 + $0x818] sm:$0xff]
    %v3194 = vld [vmem:[%s10 + $0x820] sm:$0xff]
    %v3195 = vld [vmem:[%s10 + $0x828] sm:$0xff]
    %v3196 = vld [vmem:[%s10 + $0x830] sm:$0xff]
    %v3197 = vld [vmem:[%s10 + $0x838] sm:$0xff]
    %v3198 = vld [vmem:[%s10 + $0x840] sm:$0xff]
    %v3199 = vld [vmem:[%s10 + $0x848] sm:$0xff]
    %v3200 = vld [vmem:[%s10 + $0x850] sm:$0xff]
    %v3201 = vld [vmem:[%s10 + $0x858] sm:$0xff]
    %v3202 = vld [vmem:[%s10 + $0x860] sm:$0xff]
    %v3203 = vld [vmem:[%s10 + $0x868] sm:$0xff]
    %v3204 = vld [vmem:[%s10 + $0x870] sm:$0xff]
    %v3205 = vld [vmem:[%s10 + $0x878] sm:$0xff]
    %v3206 = vld [vmem:[%s10 + $0x880] sm:$0xff]
    %v3207 = vld [vmem:[%s10 + $0x888] sm:$0xff]
    %v3208 = vld [vmem:[%s10 + $0x890] sm:$0xff]
    %v3209 = vld [vmem:[%s10 + $0x898] sm:$0xff]
    %v3210 = vld [vmem:[%s10 + $0x8a0] sm:$0xff]
    %v3211 = vld [vmem:[%s10 + $0x8a8] sm:$0xff]
    %v3212 = vld [vmem:[%s10 + $0x8b0] sm:$0xff]
    %v3213 = vld [vmem:[%s10 + $0x8b8] sm:$0xff]
    %v3214 = vld [vmem:[%s10 + $0x8c0] sm:$0xff]
    %v3215 = vld [vmem:[%s10 + $0x8c8] sm:$0xff]
    %v3216 = vld [vmem:[%s10 + $0x8d0] sm:$0xff]
    %v3217 = vld [vmem:[%s10 + $0x8d8] sm:$0xff]
    %v3218 = vld [vmem:[%s10 + $0x8e0] sm:$0xff]
    %v3219 = vld [vmem:[%s10 + $0x8e8] sm:$0xff]
    %v3220 = vld [vmem:[%s10 + $0x8f0] sm:$0xff]
    %v3221 = vld [vmem:[%s10 + $0x8f8] sm:$0xff]
    %v3222 = vld [vmem:[%s10 + $0x900] sm:$0xff]
    %v3223 = vld [vmem:[%s10 + $0x908] sm:$0xff]
    %v3224 = vld [vmem:[%s10 + $0x910] sm:$0xff]
    %v3225 = vld [vmem:[%s10 + $0x918] sm:$0xff]
    %v3226 = vld [vmem:[%s10 + $0x920] sm:$0xff]
    %v3227 = vld [vmem:[%s10 + $0x928] sm:$0xff]
    %v3228 = vld [vmem:[%s10 + $0x930] sm:$0xff]
    %v3229 = vld [vmem:[%s10 + $0x938] sm:$0xff]
    %v3230 = vld [vmem:[%s10 + $0x940] sm:$0xff]
    %v3231 = vld [vmem:[%s10 + $0x948] sm:$0xff]
    %v3232 = vld [vmem:[%s10 + $0x950] sm:$0xff]
    %v3233 = vld [vmem:[%s10 + $0x958] sm:$0xff]
    %v3234 = vld [vmem:[%s10 + $0x960] sm:$0xff]
    %v3235 = vld [vmem:[%s10 + $0x968] sm:$0xff]
    %v3236 = vld [vmem:[%s10 + $0x970] sm:$0xff]
    %v3237 = vld [vmem:[%s10 + $0x978] sm:$0xff]
    %v3238 = vld [vmem:[%s10 + $0x980] sm:$0xff]
    %v3239 = vld [vmem:[%s10 + $0x988] sm:$0xff]
    %v3240 = vld [vmem:[%s10 + $0x990] sm:$0xff]
    %v3241 = vld [vmem:[%s10 + $0x998] sm:$0xff]
    %v3242 = vld [vmem:[%s10 + $0x9a0] sm:$0xff]
    %v3243 = vld [vmem:[%s10 + $0x9a8] sm:$0xff]
    %v3244 = vld [vmem:[%s10 + $0x9b0] sm:$0xff]
    %v3245 = vld [vmem:[%s10 + $0x9b8] sm:$0xff]
    %v3246 = vld [vmem:[%s10 + $0x9c0] sm:$0xff]
    %v3247 = vld [vmem:[%s10 + $0x9c8] sm:$0xff]
    %v3248 = vld [vmem:[%s10 + $0x9d0] sm:$0xff]
    %v3249 = vld [vmem:[%s10 + $0x9d8] sm:$0xff]
    %v3250 = vld [vmem:[%s10 + $0x9e0] sm:$0xff]
    %v3251 = vld [vmem:[%s10 + $0x9e8] sm:$0xff]
    %v3252 = vld [vmem:[%s10 + $0x9f0] sm:$0xff]
    %v3253 = vld [vmem:[%s10 + $0x9f8] sm:$0xff]
    %v3254 = vld [vmem:[%s10 + $0xa00] sm:$0xff]
    %v3255 = vld [vmem:[%s10 + $0xa08] sm:$0xff]
    %v3256 = vld [vmem:[%s10 + $0xa10] sm:$0xff]
    %v3257 = vld [vmem:[%s10 + $0xa18] sm:$0xff]
    %v3258 = vld [vmem:[%s10 + $0xa20] sm:$0xff]
    %v3259 = vld [vmem:[%s10 + $0xa28] sm:$0xff]
    %v3260 = vld [vmem:[%s10 + $0xa30] sm:$0xff]
    %v3261 = vld [vmem:[%s10 + $0xa38] sm:$0xff]
    %v3262 = vld [vmem:[%s10 + $0xa40] sm:$0xff]
    %v3263 = vld [vmem:[%s10 + $0xa48] sm:$0xff]
    %v3264 = vld [vmem:[%s10 + $0xa50] sm:$0xff]
    %v3265 = vld [vmem:[%s10 + $0xa58] sm:$0xff]
    %v3266 = vld [vmem:[%s10 + $0xa60] sm:$0xff]
    %v3267 = vld [vmem:[%s10 + $0xa68] sm:$0xff]
    %v3268 = vld [vmem:[%s10 + $0xa70] sm:$0xff]
    %v3269 = vld [vmem:[%s10 + $0xa78] sm:$0xff]
    %v3270 = vld [vmem:[%s10 + $0xa80] sm:$0xff]
    %v3271 = vld [vmem:[%s10 + $0xa88] sm:$0xff]
    %v3272 = vld [vmem:[%s10 + $0xa90] sm:$0xff]
    %v3273 = vld [vmem:[%s10 + $0xa98] sm:$0xff]
    %v3274 = vld [vmem:[%s10 + $0xaa0] sm:$0xff]
    %v3275 = vld [vmem:[%s10 + $0xaa8] sm:$0xff]
    %v3276 = vld [vmem:[%s10 + $0xab0] sm:$0xff]
    %v3277 = vld [vmem:[%s10 + $0xab8] sm:$0xff]
    %v3278 = vld [vmem:[%s10 + $0xac0] sm:$0xff]
    %v3279 = vld [vmem:[%s10 + $0xac8] sm:$0xff]
    %v3280 = vld [vmem:[%s10 + $0xad0] sm:$0xff]
    %v3281 = vld [vmem:[%s10 + $0xad8] sm:$0xff]
    %v3282 = vld [vmem:[%s10 + $0xae0] sm:$0xff]
    %v3283 = vld [vmem:[%s10 + $0xae8] sm:$0xff]
    %v3284 = vld [vmem:[%s10 + $0xaf0] sm:$0xff]
    %v3285 = vld [vmem:[%s10 + $0xaf8] sm:$0xff]
    %v3286 = vld [vmem:[%s10 + $0xb00] sm:$0xff]
    %v3287 = vld [vmem:[%s10 + $0xb08] sm:$0xff]
    %v3288 = vld [vmem:[%s10 + $0xb10] sm:$0xff]
    %v3289 = vld [vmem:[%s10 + $0xb18] sm:$0xff]
    %v3290 = vld [vmem:[%s10 + $0xb20] sm:$0xff]
    %v3291 = vld [vmem:[%s10 + $0xb28] sm:$0xff]
    %v3292 = vld [vmem:[%s10 + $0xb30] sm:$0xff]
    %v3293 = vld [vmem:[%s10 + $0xb38] sm:$0xff]
    %v3294 = vld [vmem:[%s10 + $0xb40] sm:$0xff]
    %v3295 = vld [vmem:[%s10 + $0xb48] sm:$0xff]
    %v3296 = vld [vmem:[%s10 + $0xb50] sm:$0xff]
    %v3297 = vld [vmem:[%s10 + $0xb58] sm:$0xff]
    %v3298 = vld [vmem:[%s10 + $0xb60] sm:$0xff]
    %v3299 = vld [vmem:[%s10 + $0xb68] sm:$0xff]
    %v3300 = vld [vmem:[%s10 + $0xb70] sm:$0xff]
    %v3301 = vld [vmem:[%s10 + $0xb78] sm:$0xff]
    %v3302 = vld [vmem:[%s10 + $0xb80] sm:$0xff]
    %v3303 = vld [vmem:[%s10 + $0xb88] sm:$0xff]
    %v3304 = vld [vmem:[%s10 + $0xb90] sm:$0xff]
    %v3305 = vld [vmem:[%s10 + $0xb98] sm:$0xff]
    %v3306 = vld [vmem:[%s10 + $0xba0] sm:$0xff]
    %v3307 = vld [vmem:[%s10 + $0xba8] sm:$0xff]
    %v3308 = vld [vmem:[%s10 + $0xbb0] sm:$0xff]
    %v3309 = vld [vmem:[%s10 + $0xbb8] sm:$0xff]
    %v3310 = vld [vmem:[%s10 + $0xbc0] sm:$0xff]
    %v3311 = vld [vmem:[%s10 + $0xbc8] sm:$0xff]
    %v3312 = vld [vmem:[%s10 + $0xbd0] sm:$0xff]
    %v3313 = vld [vmem:[%s10 + $0xbd8] sm:$0xff]
    %v3314 = vld [vmem:[%s10 + $0xbe0] sm:$0xff]
    %v3315 = vld [vmem:[%s10 + $0xbe8] sm:$0xff]
    %v3316 = vld [vmem:[%s10 + $0xbf0] sm:$0xff]
    %v3317 = vld [vmem:[%s10 + $0xbf8] sm:$0xff]
    %v3318 = vpack.c.bf16 %v2573, %v2573
    %v3319 = vpack.c.bf16 %v2575, %v2575
    %v3320 = vpack.c.bf16 %v2614, %v2614
    %v3321 = vpack.c.bf16 %v2616, %v2616
    %v3322 = vpack.c.bf16 %v2655, %v2655
    %v3323 = vpack.c.bf16 %v2657, %v2657
    %v3324 = vpack.c.bf16 %v2696, %v2696
    %v3325 = vpack.c.bf16 %v2698, %v2698
    %v3326 = vpack.c.bf16 %v2737, %v2737
    %v3327 = vpack.c.bf16 %v2739, %v2739
    %v3328 = vpack.c.bf16 %v2778, %v2778
    %v3329 = vpack.c.bf16 %v2780, %v2780
    %v3330 = vld [vmem:[%s11] sm:$0xff]
    %v3331 = vld [vmem:[%s11 + $0x8] sm:$0xff]
    %v3332 = vld [vmem:[%s11 + $0x10] sm:$0xff]
    %v3333 = vld [vmem:[%s11 + $0x18] sm:$0xff]
    %v3334 = vld [vmem:[%s11 + $0x20] sm:$0xff]
    %v3335 = vld [vmem:[%s11 + $0x28] sm:$0xff]
    %v3336 = vld [vmem:[%s11 + $0x30] sm:$0xff]
    %v3337 = vld [vmem:[%s11 + $0x38] sm:$0xff]
    %v3338 = vld [vmem:[%s11 + $0x40] sm:$0xff]
    %v3339 = vld [vmem:[%s11 + $0x48] sm:$0xff]
    %v3340 = vld [vmem:[%s11 + $0x50] sm:$0xff]
    %v3341 = vld [vmem:[%s11 + $0x58] sm:$0xff]
    %v3342 = vld [vmem:[%s11 + $0x60] sm:$0xff]
    %v3343 = vld [vmem:[%s11 + $0x68] sm:$0xff]
    %v3344 = vld [vmem:[%s11 + $0x70] sm:$0xff]
    %v3345 = vld [vmem:[%s11 + $0x78] sm:$0xff]
    %v3346 = vld [vmem:[%s11 + $0x80] sm:$0xff]
    %v3347 = vld [vmem:[%s11 + $0x88] sm:$0xff]
    %v3348 = vld [vmem:[%s11 + $0x90] sm:$0xff]
    %v3349 = vld [vmem:[%s11 + $0x98] sm:$0xff]
    %v3350 = vld [vmem:[%s11 + $0xa0] sm:$0xff]
    %v3351 = vld [vmem:[%s11 + $0xa8] sm:$0xff]
    %v3352 = vld [vmem:[%s11 + $0xb0] sm:$0xff]
    %v3353 = vld [vmem:[%s11 + $0xb8] sm:$0xff]
    %v3354 = vld [vmem:[%s11 + $0xc0] sm:$0xff]
    %v3355 = vld [vmem:[%s11 + $0xc8] sm:$0xff]
    %v3356 = vld [vmem:[%s11 + $0xd0] sm:$0xff]
    %v3357 = vld [vmem:[%s11 + $0xd8] sm:$0xff]
    %v3358 = vld [vmem:[%s11 + $0xe0] sm:$0xff]
    %v3359 = vld [vmem:[%s11 + $0xe8] sm:$0xff]
    %v3360 = vld [vmem:[%s11 + $0xf0] sm:$0xff]
    %v3361 = vld [vmem:[%s11 + $0xf8] sm:$0xff]
    %v3362 = vld [vmem:[%s11 + $0x100] sm:$0xff]
    %v3363 = vld [vmem:[%s11 + $0x108] sm:$0xff]
    %v3364 = vld [vmem:[%s11 + $0x110] sm:$0xff]
    %v3365 = vld [vmem:[%s11 + $0x118] sm:$0xff]
    %v3366 = vld [vmem:[%s11 + $0x120] sm:$0xff]
    %v3367 = vld [vmem:[%s11 + $0x128] sm:$0xff]
    %v3368 = vld [vmem:[%s11 + $0x130] sm:$0xff]
    %v3369 = vld [vmem:[%s11 + $0x138] sm:$0xff]
    %v3370 = vld [vmem:[%s11 + $0x140] sm:$0xff]
    %v3371 = vld [vmem:[%s11 + $0x148] sm:$0xff]
    %v3372 = vld [vmem:[%s11 + $0x150] sm:$0xff]
    %v3373 = vld [vmem:[%s11 + $0x158] sm:$0xff]
    %v3374 = vld [vmem:[%s11 + $0x160] sm:$0xff]
    %v3375 = vld [vmem:[%s11 + $0x168] sm:$0xff]
    %v3376 = vld [vmem:[%s11 + $0x170] sm:$0xff]
    %v3377 = vld [vmem:[%s11 + $0x178] sm:$0xff]
    %v3378 = vld [vmem:[%s11 + $0x180] sm:$0xff]
    %v3379 = vld [vmem:[%s11 + $0x188] sm:$0xff]
    %v3380 = vld [vmem:[%s11 + $0x190] sm:$0xff]
    %v3381 = vld [vmem:[%s11 + $0x198] sm:$0xff]
    %v3382 = vld [vmem:[%s11 + $0x1a0] sm:$0xff]
    %v3383 = vld [vmem:[%s11 + $0x1a8] sm:$0xff]
    %v3384 = vld [vmem:[%s11 + $0x1b0] sm:$0xff]
    %v3385 = vld [vmem:[%s11 + $0x1b8] sm:$0xff]
    %v3386 = vld [vmem:[%s11 + $0x1c0] sm:$0xff]
    %v3387 = vld [vmem:[%s11 + $0x1c8] sm:$0xff]
    %v3388 = vld [vmem:[%s11 + $0x1d0] sm:$0xff]
    %v3389 = vld [vmem:[%s11 + $0x1d8] sm:$0xff]
    %v3390 = vld [vmem:[%s11 + $0x1e0] sm:$0xff]
    %v3391 = vld [vmem:[%s11 + $0x1e8] sm:$0xff]
    %v3392 = vld [vmem:[%s11 + $0x1f0] sm:$0xff]
    %v3393 = vld [vmem:[%s11 + $0x1f8] sm:$0xff]
    %v3394 = vld [vmem:[%s11 + $0x200] sm:$0xff]
    %v3395 = vld [vmem:[%s11 + $0x208] sm:$0xff]
    %v3396 = vld [vmem:[%s11 + $0x210] sm:$0xff]
    %v3397 = vld [vmem:[%s11 + $0x218] sm:$0xff]
    %v3398 = vld [vmem:[%s11 + $0x220] sm:$0xff]
    %v3399 = vld [vmem:[%s11 + $0x228] sm:$0xff]
    %v3400 = vld [vmem:[%s11 + $0x230] sm:$0xff]
    %v3401 = vld [vmem:[%s11 + $0x238] sm:$0xff]
    %v3402 = vld [vmem:[%s11 + $0x240] sm:$0xff]
    %v3403 = vld [vmem:[%s11 + $0x248] sm:$0xff]
    %v3404 = vld [vmem:[%s11 + $0x250] sm:$0xff]
    %v3405 = vld [vmem:[%s11 + $0x258] sm:$0xff]
    %v3406 = vld [vmem:[%s11 + $0x260] sm:$0xff]
    %v3407 = vld [vmem:[%s11 + $0x268] sm:$0xff]
    %v3408 = vld [vmem:[%s11 + $0x270] sm:$0xff]
    %v3409 = vld [vmem:[%s11 + $0x278] sm:$0xff]
    %v3410 = vld [vmem:[%s11 + $0x280] sm:$0xff]
    %v3411 = vld [vmem:[%s11 + $0x288] sm:$0xff]
    %v3412 = vld [vmem:[%s11 + $0x290] sm:$0xff]
    %v3413 = vld [vmem:[%s11 + $0x298] sm:$0xff]
    %v3414 = vld [vmem:[%s11 + $0x2a0] sm:$0xff]
    %v3415 = vld [vmem:[%s11 + $0x2a8] sm:$0xff]
    %v3416 = vld [vmem:[%s11 + $0x2b0] sm:$0xff]
    %v3417 = vld [vmem:[%s11 + $0x2b8] sm:$0xff]
    %v3418 = vld [vmem:[%s11 + $0x2c0] sm:$0xff]
    %v3419 = vld [vmem:[%s11 + $0x2c8] sm:$0xff]
    %v3420 = vld [vmem:[%s11 + $0x2d0] sm:$0xff]
    %v3421 = vld [vmem:[%s11 + $0x2d8] sm:$0xff]
    %v3422 = vld [vmem:[%s11 + $0x2e0] sm:$0xff]
    %v3423 = vld [vmem:[%s11 + $0x2e8] sm:$0xff]
    %v3424 = vld [vmem:[%s11 + $0x2f0] sm:$0xff]
    %v3425 = vld [vmem:[%s11 + $0x2f8] sm:$0xff]
    %v3426 = vld [vmem:[%s11 + $0x300] sm:$0xff]
    %v3427 = vld [vmem:[%s11 + $0x308] sm:$0xff]
    %v3428 = vld [vmem:[%s11 + $0x310] sm:$0xff]
    %v3429 = vld [vmem:[%s11 + $0x318] sm:$0xff]
    %v3430 = vld [vmem:[%s11 + $0x320] sm:$0xff]
    %v3431 = vld [vmem:[%s11 + $0x328] sm:$0xff]
    %v3432 = vld [vmem:[%s11 + $0x330] sm:$0xff]
    %v3433 = vld [vmem:[%s11 + $0x338] sm:$0xff]
    %v3434 = vld [vmem:[%s11 + $0x340] sm:$0xff]
    %v3435 = vld [vmem:[%s11 + $0x348] sm:$0xff]
    %v3436 = vld [vmem:[%s11 + $0x350] sm:$0xff]
    %v3437 = vld [vmem:[%s11 + $0x358] sm:$0xff]
    %v3438 = vld [vmem:[%s11 + $0x360] sm:$0xff]
    %v3439 = vld [vmem:[%s11 + $0x368] sm:$0xff]
    %v3440 = vld [vmem:[%s11 + $0x370] sm:$0xff]
    %v3441 = vld [vmem:[%s11 + $0x378] sm:$0xff]
    %v3442 = vld [vmem:[%s11 + $0x380] sm:$0xff]
    %v3443 = vld [vmem:[%s11 + $0x388] sm:$0xff]
    %v3444 = vld [vmem:[%s11 + $0x390] sm:$0xff]
    %v3445 = vld [vmem:[%s11 + $0x398] sm:$0xff]
    %v3446 = vld [vmem:[%s11 + $0x3a0] sm:$0xff]
    %v3447 = vld [vmem:[%s11 + $0x3a8] sm:$0xff]
    %v3448 = vld [vmem:[%s11 + $0x3b0] sm:$0xff]
    %v3449 = vld [vmem:[%s11 + $0x3b8] sm:$0xff]
    %v3450 = vld [vmem:[%s11 + $0x3c0] sm:$0xff]
    %v3451 = vld [vmem:[%s11 + $0x3c8] sm:$0xff]
    %v3452 = vld [vmem:[%s11 + $0x3d0] sm:$0xff]
    %v3453 = vld [vmem:[%s11 + $0x3d8] sm:$0xff]
    %v3454 = vld [vmem:[%s11 + $0x3e0] sm:$0xff]
    %v3455 = vld [vmem:[%s11 + $0x3e8] sm:$0xff]
    %v3456 = vld [vmem:[%s11 + $0x3f0] sm:$0xff]
    %v3457 = vld [vmem:[%s11 + $0x3f8] sm:$0xff]
    %v3458 = vld [vmem:[%s11 + $0x400] sm:$0xff]
    %v3459 = vld [vmem:[%s11 + $0x408] sm:$0xff]
    %v3460 = vld [vmem:[%s11 + $0x410] sm:$0xff]
    %v3461 = vld [vmem:[%s11 + $0x418] sm:$0xff]
    %v3462 = vld [vmem:[%s11 + $0x420] sm:$0xff]
    %v3463 = vld [vmem:[%s11 + $0x428] sm:$0xff]
    %v3464 = vld [vmem:[%s11 + $0x430] sm:$0xff]
    %v3465 = vld [vmem:[%s11 + $0x438] sm:$0xff]
    %v3466 = vld [vmem:[%s11 + $0x440] sm:$0xff]
    %v3467 = vld [vmem:[%s11 + $0x448] sm:$0xff]
    %v3468 = vld [vmem:[%s11 + $0x450] sm:$0xff]
    %v3469 = vld [vmem:[%s11 + $0x458] sm:$0xff]
    %v3470 = vld [vmem:[%s11 + $0x460] sm:$0xff]
    %v3471 = vld [vmem:[%s11 + $0x468] sm:$0xff]
    %v3472 = vld [vmem:[%s11 + $0x470] sm:$0xff]
    %v3473 = vld [vmem:[%s11 + $0x478] sm:$0xff]
    %v3474 = vld [vmem:[%s11 + $0x480] sm:$0xff]
    %v3475 = vld [vmem:[%s11 + $0x488] sm:$0xff]
    %v3476 = vld [vmem:[%s11 + $0x490] sm:$0xff]
    %v3477 = vld [vmem:[%s11 + $0x498] sm:$0xff]
    %v3478 = vld [vmem:[%s11 + $0x4a0] sm:$0xff]
    %v3479 = vld [vmem:[%s11 + $0x4a8] sm:$0xff]
    %v3480 = vld [vmem:[%s11 + $0x4b0] sm:$0xff]
    %v3481 = vld [vmem:[%s11 + $0x4b8] sm:$0xff]
    %v3482 = vld [vmem:[%s11 + $0x4c0] sm:$0xff]
    %v3483 = vld [vmem:[%s11 + $0x4c8] sm:$0xff]
    %v3484 = vld [vmem:[%s11 + $0x4d0] sm:$0xff]
    %v3485 = vld [vmem:[%s11 + $0x4d8] sm:$0xff]
    %v3486 = vld [vmem:[%s11 + $0x4e0] sm:$0xff]
    %v3487 = vld [vmem:[%s11 + $0x4e8] sm:$0xff]
    %v3488 = vld [vmem:[%s11 + $0x4f0] sm:$0xff]
    %v3489 = vld [vmem:[%s11 + $0x4f8] sm:$0xff]
    %v3490 = vld [vmem:[%s11 + $0x500] sm:$0xff]
    %v3491 = vld [vmem:[%s11 + $0x508] sm:$0xff]
    %v3492 = vld [vmem:[%s11 + $0x510] sm:$0xff]
    %v3493 = vld [vmem:[%s11 + $0x518] sm:$0xff]
    %v3494 = vld [vmem:[%s11 + $0x520] sm:$0xff]
    %v3495 = vld [vmem:[%s11 + $0x528] sm:$0xff]
    %v3496 = vld [vmem:[%s11 + $0x530] sm:$0xff]
    %v3497 = vld [vmem:[%s11 + $0x538] sm:$0xff]
    %v3498 = vld [vmem:[%s11 + $0x540] sm:$0xff]
    %v3499 = vld [vmem:[%s11 + $0x548] sm:$0xff]
    %v3500 = vld [vmem:[%s11 + $0x550] sm:$0xff]
    %v3501 = vld [vmem:[%s11 + $0x558] sm:$0xff]
    %v3502 = vld [vmem:[%s11 + $0x560] sm:$0xff]
    %v3503 = vld [vmem:[%s11 + $0x568] sm:$0xff]
    %v3504 = vld [vmem:[%s11 + $0x570] sm:$0xff]
    %v3505 = vld [vmem:[%s11 + $0x578] sm:$0xff]
    %v3506 = vld [vmem:[%s11 + $0x580] sm:$0xff]
    %v3507 = vld [vmem:[%s11 + $0x588] sm:$0xff]
    %v3508 = vld [vmem:[%s11 + $0x590] sm:$0xff]
    %v3509 = vld [vmem:[%s11 + $0x598] sm:$0xff]
    %v3510 = vld [vmem:[%s11 + $0x5a0] sm:$0xff]
    %v3511 = vld [vmem:[%s11 + $0x5a8] sm:$0xff]
    %v3512 = vld [vmem:[%s11 + $0x5b0] sm:$0xff]
    %v3513 = vld [vmem:[%s11 + $0x5b8] sm:$0xff]
    %v3514 = vld [vmem:[%s11 + $0x5c0] sm:$0xff]
    %v3515 = vld [vmem:[%s11 + $0x5c8] sm:$0xff]
    %v3516 = vld [vmem:[%s11 + $0x5d0] sm:$0xff]
    %v3517 = vld [vmem:[%s11 + $0x5d8] sm:$0xff]
    %v3518 = vld [vmem:[%s11 + $0x5e0] sm:$0xff]
    %v3519 = vld [vmem:[%s11 + $0x5e8] sm:$0xff]
    %v3520 = vld [vmem:[%s11 + $0x5f0] sm:$0xff]
    %v3521 = vld [vmem:[%s11 + $0x5f8] sm:$0xff]
    %v3522 = vld [vmem:[%s11 + $0x600] sm:$0xff]
    %v3523 = vld [vmem:[%s11 + $0x608] sm:$0xff]
    %v3524 = vld [vmem:[%s11 + $0x610] sm:$0xff]
    %v3525 = vld [vmem:[%s11 + $0x618] sm:$0xff]
    %v3526 = vld [vmem:[%s11 + $0x620] sm:$0xff]
    %v3527 = vld [vmem:[%s11 + $0x628] sm:$0xff]
    %v3528 = vld [vmem:[%s11 + $0x630] sm:$0xff]
    %v3529 = vld [vmem:[%s11 + $0x638] sm:$0xff]
    %v3530 = vld [vmem:[%s11 + $0x640] sm:$0xff]
    %v3531 = vld [vmem:[%s11 + $0x648] sm:$0xff]
    %v3532 = vld [vmem:[%s11 + $0x650] sm:$0xff]
    %v3533 = vld [vmem:[%s11 + $0x658] sm:$0xff]
    %v3534 = vld [vmem:[%s11 + $0x660] sm:$0xff]
    %v3535 = vld [vmem:[%s11 + $0x668] sm:$0xff]
    %v3536 = vld [vmem:[%s11 + $0x670] sm:$0xff]
    %v3537 = vld [vmem:[%s11 + $0x678] sm:$0xff]
    %v3538 = vld [vmem:[%s11 + $0x680] sm:$0xff]
    %v3539 = vld [vmem:[%s11 + $0x688] sm:$0xff]
    %v3540 = vld [vmem:[%s11 + $0x690] sm:$0xff]
    %v3541 = vld [vmem:[%s11 + $0x698] sm:$0xff]
    %v3542 = vld [vmem:[%s11 + $0x6a0] sm:$0xff]
    %v3543 = vld [vmem:[%s11 + $0x6a8] sm:$0xff]
    %v3544 = vld [vmem:[%s11 + $0x6b0] sm:$0xff]
    %v3545 = vld [vmem:[%s11 + $0x6b8] sm:$0xff]
    %v3546 = vld [vmem:[%s11 + $0x6c0] sm:$0xff]
    %v3547 = vld [vmem:[%s11 + $0x6c8] sm:$0xff]
    %v3548 = vld [vmem:[%s11 + $0x6d0] sm:$0xff]
    %v3549 = vld [vmem:[%s11 + $0x6d8] sm:$0xff]
    %v3550 = vld [vmem:[%s11 + $0x6e0] sm:$0xff]
    %v3551 = vld [vmem:[%s11 + $0x6e8] sm:$0xff]
    %v3552 = vld [vmem:[%s11 + $0x6f0] sm:$0xff]
    %v3553 = vld [vmem:[%s11 + $0x6f8] sm:$0xff]
    %v3554 = vld [vmem:[%s11 + $0x700] sm:$0xff]
    %v3555 = vld [vmem:[%s11 + $0x708] sm:$0xff]
    %v3556 = vld [vmem:[%s11 + $0x710] sm:$0xff]
    %v3557 = vld [vmem:[%s11 + $0x718] sm:$0xff]
    %v3558 = vld [vmem:[%s11 + $0x720] sm:$0xff]
    %v3559 = vld [vmem:[%s11 + $0x728] sm:$0xff]
    %v3560 = vld [vmem:[%s11 + $0x730] sm:$0xff]
    %v3561 = vld [vmem:[%s11 + $0x738] sm:$0xff]
    %v3562 = vld [vmem:[%s11 + $0x740] sm:$0xff]
    %v3563 = vld [vmem:[%s11 + $0x748] sm:$0xff]
    %v3564 = vld [vmem:[%s11 + $0x750] sm:$0xff]
    %v3565 = vld [vmem:[%s11 + $0x758] sm:$0xff]
    %v3566 = vld [vmem:[%s11 + $0x760] sm:$0xff]
    %v3567 = vld [vmem:[%s11 + $0x768] sm:$0xff]
    %v3568 = vld [vmem:[%s11 + $0x770] sm:$0xff]
    %v3569 = vld [vmem:[%s11 + $0x778] sm:$0xff]
    %v3570 = vld [vmem:[%s11 + $0x780] sm:$0xff]
    %v3571 = vld [vmem:[%s11 + $0x788] sm:$0xff]
    %v3572 = vld [vmem:[%s11 + $0x790] sm:$0xff]
    %v3573 = vld [vmem:[%s11 + $0x798] sm:$0xff]
    %v3574 = vld [vmem:[%s11 + $0x7a0] sm:$0xff]
    %v3575 = vld [vmem:[%s11 + $0x7a8] sm:$0xff]
    %v3576 = vld [vmem:[%s11 + $0x7b0] sm:$0xff]
    %v3577 = vld [vmem:[%s11 + $0x7b8] sm:$0xff]
    %v3578 = vld [vmem:[%s11 + $0x7c0] sm:$0xff]
    %v3579 = vld [vmem:[%s11 + $0x7c8] sm:$0xff]
    %v3580 = vld [vmem:[%s11 + $0x7d0] sm:$0xff]
    %v3581 = vld [vmem:[%s11 + $0x7d8] sm:$0xff]
    %v3582 = vld [vmem:[%s11 + $0x7e0] sm:$0xff]
    %v3583 = vld [vmem:[%s11 + $0x7e8] sm:$0xff]
    %v3584 = vld [vmem:[%s11 + $0x7f0] sm:$0xff]
    %v3585 = vld [vmem:[%s11 + $0x7f8] sm:$0xff]
    %v3586 = vld [vmem:[%s11 + $0x800] sm:$0xff]
    %v3587 = vld [vmem:[%s11 + $0x808] sm:$0xff]
    %v3588 = vld [vmem:[%s11 + $0x810] sm:$0xff]
    %v3589 = vld [vmem:[%s11 + $0x818] sm:$0xff]
    %v3590 = vld [vmem:[%s11 + $0x820] sm:$0xff]
    %v3591 = vld [vmem:[%s11 + $0x828] sm:$0xff]
    %v3592 = vld [vmem:[%s11 + $0x830] sm:$0xff]
    %v3593 = vld [vmem:[%s11 + $0x838] sm:$0xff]
    %v3594 = vld [vmem:[%s11 + $0x840] sm:$0xff]
    %v3595 = vld [vmem:[%s11 + $0x848] sm:$0xff]
    %v3596 = vld [vmem:[%s11 + $0x850] sm:$0xff]
    %v3597 = vld [vmem:[%s11 + $0x858] sm:$0xff]
    %v3598 = vld [vmem:[%s11 + $0x860] sm:$0xff]
    %v3599 = vld [vmem:[%s11 + $0x868] sm:$0xff]
    %v3600 = vld [vmem:[%s11 + $0x870] sm:$0xff]
    %v3601 = vld [vmem:[%s11 + $0x878] sm:$0xff]
    %v3602 = vld [vmem:[%s11 + $0x880] sm:$0xff]
    %v3603 = vld [vmem:[%s11 + $0x888] sm:$0xff]
    %v3604 = vld [vmem:[%s11 + $0x890] sm:$0xff]
    %v3605 = vld [vmem:[%s11 + $0x898] sm:$0xff]
    %v3606 = vld [vmem:[%s11 + $0x8a0] sm:$0xff]
    %v3607 = vld [vmem:[%s11 + $0x8a8] sm:$0xff]
    %v3608 = vld [vmem:[%s11 + $0x8b0] sm:$0xff]
    %v3609 = vld [vmem:[%s11 + $0x8b8] sm:$0xff]
    %v3610 = vld [vmem:[%s11 + $0x8c0] sm:$0xff]
    %v3611 = vld [vmem:[%s11 + $0x8c8] sm:$0xff]
    %v3612 = vld [vmem:[%s11 + $0x8d0] sm:$0xff]
    %v3613 = vld [vmem:[%s11 + $0x8d8] sm:$0xff]
    %v3614 = vld [vmem:[%s11 + $0x8e0] sm:$0xff]
    %v3615 = vld [vmem:[%s11 + $0x8e8] sm:$0xff]
    %v3616 = vld [vmem:[%s11 + $0x8f0] sm:$0xff]
    %v3617 = vld [vmem:[%s11 + $0x8f8] sm:$0xff]
    %v3618 = vld [vmem:[%s11 + $0x900] sm:$0xff]
    %v3619 = vld [vmem:[%s11 + $0x908] sm:$0xff]
    %v3620 = vld [vmem:[%s11 + $0x910] sm:$0xff]
    %v3621 = vld [vmem:[%s11 + $0x918] sm:$0xff]
    %v3622 = vld [vmem:[%s11 + $0x920] sm:$0xff]
    %v3623 = vld [vmem:[%s11 + $0x928] sm:$0xff]
    %v3624 = vld [vmem:[%s11 + $0x930] sm:$0xff]
    %v3625 = vld [vmem:[%s11 + $0x938] sm:$0xff]
    %v3626 = vld [vmem:[%s11 + $0x940] sm:$0xff]
    %v3627 = vld [vmem:[%s11 + $0x948] sm:$0xff]
    %v3628 = vld [vmem:[%s11 + $0x950] sm:$0xff]
    %v3629 = vld [vmem:[%s11 + $0x958] sm:$0xff]
    %v3630 = vld [vmem:[%s11 + $0x960] sm:$0xff]
    %v3631 = vld [vmem:[%s11 + $0x968] sm:$0xff]
    %v3632 = vld [vmem:[%s11 + $0x970] sm:$0xff]
    %v3633 = vld [vmem:[%s11 + $0x978] sm:$0xff]
    %v3634 = vld [vmem:[%s11 + $0x980] sm:$0xff]
    %v3635 = vld [vmem:[%s11 + $0x988] sm:$0xff]
    %v3636 = vld [vmem:[%s11 + $0x990] sm:$0xff]
    %v3637 = vld [vmem:[%s11 + $0x998] sm:$0xff]
    %v3638 = vld [vmem:[%s11 + $0x9a0] sm:$0xff]
    %v3639 = vld [vmem:[%s11 + $0x9a8] sm:$0xff]
    %v3640 = vld [vmem:[%s11 + $0x9b0] sm:$0xff]
    %v3641 = vld [vmem:[%s11 + $0x9b8] sm:$0xff]
    %v3642 = vld [vmem:[%s11 + $0x9c0] sm:$0xff]
    %v3643 = vld [vmem:[%s11 + $0x9c8] sm:$0xff]
    %v3644 = vld [vmem:[%s11 + $0x9d0] sm:$0xff]
    %v3645 = vld [vmem:[%s11 + $0x9d8] sm:$0xff]
    %v3646 = vld [vmem:[%s11 + $0x9e0] sm:$0xff]
    %v3647 = vld [vmem:[%s11 + $0x9e8] sm:$0xff]
    %v3648 = vld [vmem:[%s11 + $0x9f0] sm:$0xff]
    %v3649 = vld [vmem:[%s11 + $0x9f8] sm:$0xff]
    %v3650 = vld [vmem:[%s11 + $0xa00] sm:$0xff]
    %v3651 = vld [vmem:[%s11 + $0xa08] sm:$0xff]
    %v3652 = vld [vmem:[%s11 + $0xa10] sm:$0xff]
    %v3653 = vld [vmem:[%s11 + $0xa18] sm:$0xff]
    %v3654 = vld [vmem:[%s11 + $0xa20] sm:$0xff]
    %v3655 = vld [vmem:[%s11 + $0xa28] sm:$0xff]
    %v3656 = vld [vmem:[%s11 + $0xa30] sm:$0xff]
    %v3657 = vld [vmem:[%s11 + $0xa38] sm:$0xff]
    %v3658 = vld [vmem:[%s11 + $0xa40] sm:$0xff]
    %v3659 = vld [vmem:[%s11 + $0xa48] sm:$0xff]
    %v3660 = vld [vmem:[%s11 + $0xa50] sm:$0xff]
    %v3661 = vld [vmem:[%s11 + $0xa58] sm:$0xff]
    %v3662 = vld [vmem:[%s11 + $0xa60] sm:$0xff]
    %v3663 = vld [vmem:[%s11 + $0xa68] sm:$0xff]
    %v3664 = vld [vmem:[%s11 + $0xa70] sm:$0xff]
    %v3665 = vld [vmem:[%s11 + $0xa78] sm:$0xff]
    %v3666 = vld [vmem:[%s11 + $0xa80] sm:$0xff]
    %v3667 = vld [vmem:[%s11 + $0xa88] sm:$0xff]
    %v3668 = vld [vmem:[%s11 + $0xa90] sm:$0xff]
    %v3669 = vld [vmem:[%s11 + $0xa98] sm:$0xff]
    %v3670 = vld [vmem:[%s11 + $0xaa0] sm:$0xff]
    %v3671 = vld [vmem:[%s11 + $0xaa8] sm:$0xff]
    %v3672 = vld [vmem:[%s11 + $0xab0] sm:$0xff]
    %v3673 = vld [vmem:[%s11 + $0xab8] sm:$0xff]
    %v3674 = vld [vmem:[%s11 + $0xac0] sm:$0xff]
    %v3675 = vld [vmem:[%s11 + $0xac8] sm:$0xff]
    %v3676 = vld [vmem:[%s11 + $0xad0] sm:$0xff]
    %v3677 = vld [vmem:[%s11 + $0xad8] sm:$0xff]
    %v3678 = vld [vmem:[%s11 + $0xae0] sm:$0xff]
    %v3679 = vld [vmem:[%s11 + $0xae8] sm:$0xff]
    %v3680 = vld [vmem:[%s11 + $0xaf0] sm:$0xff]
    %v3681 = vld [vmem:[%s11 + $0xaf8] sm:$0xff]
    %v3682 = vld [vmem:[%s11 + $0xb00] sm:$0xff]
    %v3683 = vld [vmem:[%s11 + $0xb08] sm:$0xff]
    %v3684 = vld [vmem:[%s11 + $0xb10] sm:$0xff]
    %v3685 = vld [vmem:[%s11 + $0xb18] sm:$0xff]
    %v3686 = vld [vmem:[%s11 + $0xb20] sm:$0xff]
    %v3687 = vld [vmem:[%s11 + $0xb28] sm:$0xff]
    %v3688 = vld [vmem:[%s11 + $0xb30] sm:$0xff]
    %v3689 = vld [vmem:[%s11 + $0xb38] sm:$0xff]
    %v3690 = vld [vmem:[%s11 + $0xb40] sm:$0xff]
    %v3691 = vld [vmem:[%s11 + $0xb48] sm:$0xff]
    %v3692 = vld [vmem:[%s11 + $0xb50] sm:$0xff]
    %v3693 = vld [vmem:[%s11 + $0xb58] sm:$0xff]
    %v3694 = vld [vmem:[%s11 + $0xb60] sm:$0xff]
    %v3695 = vld [vmem:[%s11 + $0xb68] sm:$0xff]
    %v3696 = vld [vmem:[%s11 + $0xb70] sm:$0xff]
    %v3697 = vld [vmem:[%s11 + $0xb78] sm:$0xff]
    %v3698 = vld [vmem:[%s11 + $0xb80] sm:$0xff]
    %v3699 = vld [vmem:[%s11 + $0xb88] sm:$0xff]
    %v3700 = vld [vmem:[%s11 + $0xb90] sm:$0xff]
    %v3701 = vld [vmem:[%s11 + $0xb98] sm:$0xff]
    %v3702 = vld [vmem:[%s11 + $0xba0] sm:$0xff]
    %v3703 = vld [vmem:[%s11 + $0xba8] sm:$0xff]
    %v3704 = vld [vmem:[%s11 + $0xbb0] sm:$0xff]
    %v3705 = vld [vmem:[%s11 + $0xbb8] sm:$0xff]
    %v3706 = vld [vmem:[%s11 + $0xbc0] sm:$0xff]
    %v3707 = vld [vmem:[%s11 + $0xbc8] sm:$0xff]
    %v3708 = vld [vmem:[%s11 + $0xbd0] sm:$0xff]
    %v3709 = vld [vmem:[%s11 + $0xbd8] sm:$0xff]
    %v3710 = vld [vmem:[%s11 + $0xbe0] sm:$0xff]
    %v3711 = vld [vmem:[%s11 + $0xbe8] sm:$0xff]
    %v3712 = vld [vmem:[%s11 + $0xbf0] sm:$0xff]
    %v3713 = vld [vmem:[%s11 + $0xbf8] sm:$0xff]
    %v4098 = vunpack.c.l.b16 %v3330
    %v4099 = vunpack.c.h.b16 %v3330
    %v4100 = vunpack.c.l.b16 %v3331
    %v4101 = vunpack.c.h.b16 %v3331
    %v4102 = vunpack.c.l.b16 %v3332
    %v4103 = vunpack.c.h.b16 %v3332
    %v4104 = vunpack.c.l.b16 %v3333
    %v4105 = vunpack.c.h.b16 %v3333
    %v4106 = vunpack.c.l.b16 %v3334
    %v4107 = vunpack.c.h.b16 %v3334
    %v4108 = vunpack.c.l.b16 %v3335
    %v4109 = vunpack.c.h.b16 %v3335
    %v4110 = vunpack.c.l.b16 %v3336
    %v4111 = vunpack.c.h.b16 %v3336
    %v4112 = vunpack.c.l.b16 %v3337
    %v4113 = vunpack.c.h.b16 %v3337
    %v4114 = vunpack.c.l.b16 %v3338
    %v4115 = vunpack.c.h.b16 %v3338
    %v4116 = vunpack.c.l.b16 %v3339
    %v4117 = vunpack.c.h.b16 %v3339
    %v4118 = vunpack.c.l.b16 %v3340
    %v4119 = vunpack.c.h.b16 %v3340
    %v4120 = vunpack.c.l.b16 %v3341
    %v4121 = vunpack.c.h.b16 %v3341
    %v4122 = vunpack.c.l.b16 %v3342
    %v4123 = vunpack.c.h.b16 %v3342
    %v4124 = vunpack.c.l.b16 %v3343
    %v4125 = vunpack.c.h.b16 %v3343
    %v4126 = vunpack.c.l.b16 %v3344
    %v4127 = vunpack.c.h.b16 %v3344
    %v4128 = vunpack.c.l.b16 %v3345
    %v4129 = vunpack.c.h.b16 %v3345
    %v4130 = vunpack.c.l.b16 %v3346
    %v4131 = vunpack.c.h.b16 %v3346
    %v4132 = vunpack.c.l.b16 %v3347
    %v4133 = vunpack.c.h.b16 %v3347
    %v4134 = vunpack.c.l.b16 %v3348
    %v4135 = vunpack.c.h.b16 %v3348
    %v4136 = vunpack.c.l.b16 %v3349
    %v4137 = vunpack.c.h.b16 %v3349
    %v4138 = vunpack.c.l.b16 %v3350
    %v4139 = vunpack.c.h.b16 %v3350
    %v4140 = vunpack.c.l.b16 %v3351
    %v4141 = vunpack.c.h.b16 %v3351
    %v4142 = vunpack.c.l.b16 %v3352
    %v4143 = vunpack.c.h.b16 %v3352
    %v4144 = vunpack.c.l.b16 %v3353
    %v4145 = vunpack.c.h.b16 %v3353
    %v4146 = vunpack.c.l.b16 %v3354
    %v4147 = vunpack.c.h.b16 %v3354
    %v4148 = vunpack.c.l.b16 %v3355
    %v4149 = vunpack.c.h.b16 %v3355
    %v4150 = vunpack.c.l.b16 %v3356
    %v4151 = vunpack.c.h.b16 %v3356
    %v4152 = vunpack.c.l.b16 %v3357
    %v4153 = vunpack.c.h.b16 %v3357
    %v4154 = vunpack.c.l.b16 %v3358
    %v4155 = vunpack.c.h.b16 %v3358
    %v4156 = vunpack.c.l.b16 %v3359
    %v4157 = vunpack.c.h.b16 %v3359
    %v4158 = vunpack.c.l.b16 %v3360
    %v4159 = vunpack.c.h.b16 %v3360
    %v4160 = vunpack.c.l.b16 %v3361
    %v4161 = vunpack.c.h.b16 %v3361
    %v4162 = vunpack.c.l.b16 %v3362
    %v4163 = vunpack.c.h.b16 %v3362
    %v4164 = vunpack.c.l.b16 %v3363
    %v4165 = vunpack.c.h.b16 %v3363
    %v4166 = vunpack.c.l.b16 %v3364
    %v4167 = vunpack.c.h.b16 %v3364
    %v4168 = vunpack.c.l.b16 %v3365
    %v4169 = vunpack.c.h.b16 %v3365
    %v4170 = vunpack.c.l.b16 %v3366
    %v4171 = vunpack.c.h.b16 %v3366
    %v4172 = vunpack.c.l.b16 %v3367
    %v4173 = vunpack.c.h.b16 %v3367
    %v4174 = vunpack.c.l.b16 %v3368
    %v4175 = vunpack.c.h.b16 %v3368
    %v4176 = vunpack.c.l.b16 %v3369
    %v4177 = vunpack.c.h.b16 %v3369
    %v4178 = vunpack.c.l.b16 %v3370
    %v4179 = vunpack.c.h.b16 %v3370
    %v4180 = vunpack.c.l.b16 %v3371
    %v4181 = vunpack.c.h.b16 %v3371
    %v4182 = vunpack.c.l.b16 %v3372
    %v4183 = vunpack.c.h.b16 %v3372
    %v4184 = vunpack.c.l.b16 %v3373
    %v4185 = vunpack.c.h.b16 %v3373
    %v4186 = vunpack.c.l.b16 %v3374
    %v4187 = vunpack.c.h.b16 %v3374
    %v4188 = vunpack.c.l.b16 %v3375
    %v4189 = vunpack.c.h.b16 %v3375
    %v4190 = vunpack.c.l.b16 %v3376
    %v4191 = vunpack.c.h.b16 %v3376
    %v4192 = vunpack.c.l.b16 %v3377
    %v4193 = vunpack.c.h.b16 %v3377
    %v4194 = vunpack.c.l.b16 %v3378
    %v4195 = vunpack.c.h.b16 %v3378
    %v4196 = vunpack.c.l.b16 %v3379
    %v4197 = vunpack.c.h.b16 %v3379
    %v4198 = vunpack.c.l.b16 %v3380
    %v4199 = vunpack.c.h.b16 %v3380
    %v4200 = vunpack.c.l.b16 %v3381
    %v4201 = vunpack.c.h.b16 %v3381
    %v4202 = vunpack.c.l.b16 %v3382
    %v4203 = vunpack.c.h.b16 %v3382
    %v4204 = vunpack.c.l.b16 %v3383
    %v4205 = vunpack.c.h.b16 %v3383
    %v4206 = vunpack.c.l.b16 %v3384
    %v4207 = vunpack.c.h.b16 %v3384
    %v4208 = vunpack.c.l.b16 %v3385
    %v4209 = vunpack.c.h.b16 %v3385
    %v4210 = vunpack.c.l.b16 %v3386
    %v4211 = vunpack.c.h.b16 %v3386
    %v4212 = vunpack.c.l.b16 %v3387
    %v4213 = vunpack.c.h.b16 %v3387
    %v4214 = vunpack.c.l.b16 %v3388
    %v4215 = vunpack.c.h.b16 %v3388
    %v4216 = vunpack.c.l.b16 %v3389
    %v4217 = vunpack.c.h.b16 %v3389
    %v4218 = vunpack.c.l.b16 %v3390
    %v4219 = vunpack.c.h.b16 %v3390
    %v4220 = vunpack.c.l.b16 %v3391
    %v4221 = vunpack.c.h.b16 %v3391
    %v4222 = vunpack.c.l.b16 %v3392
    %v4223 = vunpack.c.h.b16 %v3392
    %v4224 = vunpack.c.l.b16 %v3393
    %v4225 = vunpack.c.h.b16 %v3393
    %v4226 = vunpack.c.l.b16 %v3394
    %v4227 = vunpack.c.h.b16 %v3394
    %v4228 = vunpack.c.l.b16 %v3395
    %v4229 = vunpack.c.h.b16 %v3395
    %v4230 = vunpack.c.l.b16 %v3396
    %v4231 = vunpack.c.h.b16 %v3396
    %v4232 = vunpack.c.l.b16 %v3397
    %v4233 = vunpack.c.h.b16 %v3397
    %v4234 = vunpack.c.l.b16 %v3398
    %v4235 = vunpack.c.h.b16 %v3398
    %v4236 = vunpack.c.l.b16 %v3399
    %v4237 = vunpack.c.h.b16 %v3399
    %v4238 = vunpack.c.l.b16 %v3400
    %v4239 = vunpack.c.h.b16 %v3400
    %v4240 = vunpack.c.l.b16 %v3401
    %v4241 = vunpack.c.h.b16 %v3401
    %v4242 = vunpack.c.l.b16 %v3402
    %v4243 = vunpack.c.h.b16 %v3402
    %v4244 = vunpack.c.l.b16 %v3403
    %v4245 = vunpack.c.h.b16 %v3403
    %v4246 = vunpack.c.l.b16 %v3404
    %v4247 = vunpack.c.h.b16 %v3404
    %v4248 = vunpack.c.l.b16 %v3405
    %v4249 = vunpack.c.h.b16 %v3405
    %v4250 = vunpack.c.l.b16 %v3406
    %v4251 = vunpack.c.h.b16 %v3406
    %v4252 = vunpack.c.l.b16 %v3407
    %v4253 = vunpack.c.h.b16 %v3407
    %v4254 = vunpack.c.l.b16 %v3408
    %v4255 = vunpack.c.h.b16 %v3408
    %v4256 = vunpack.c.l.b16 %v3409
    %v4257 = vunpack.c.h.b16 %v3409
    %v4258 = vunpack.c.l.b16 %v3410
    %v4259 = vunpack.c.h.b16 %v3410
    %v4260 = vunpack.c.l.b16 %v3411
    %v4261 = vunpack.c.h.b16 %v3411
    %v4262 = vunpack.c.l.b16 %v3412
    %v4263 = vunpack.c.h.b16 %v3412
    %v4264 = vunpack.c.l.b16 %v3413
    %v4265 = vunpack.c.h.b16 %v3413
    %v4266 = vunpack.c.l.b16 %v3414
    %v4267 = vunpack.c.h.b16 %v3414
    %v4268 = vunpack.c.l.b16 %v3415
    %v4269 = vunpack.c.h.b16 %v3415
    %v4270 = vunpack.c.l.b16 %v3416
    %v4271 = vunpack.c.h.b16 %v3416
    %v4272 = vunpack.c.l.b16 %v3417
    %v4273 = vunpack.c.h.b16 %v3417
    %v4274 = vunpack.c.l.b16 %v3418
    %v4275 = vunpack.c.h.b16 %v3418
    %v4276 = vunpack.c.l.b16 %v3419
    %v4277 = vunpack.c.h.b16 %v3419
    %v4278 = vunpack.c.l.b16 %v3420
    %v4279 = vunpack.c.h.b16 %v3420
    %v4280 = vunpack.c.l.b16 %v3421
    %v4281 = vunpack.c.h.b16 %v3421
    %v4282 = vunpack.c.l.b16 %v3422
    %v4283 = vunpack.c.h.b16 %v3422
    %v4284 = vunpack.c.l.b16 %v3423
    %v4285 = vunpack.c.h.b16 %v3423
    %v4286 = vunpack.c.l.b16 %v3424
    %v4287 = vunpack.c.h.b16 %v3424
    %v4288 = vunpack.c.l.b16 %v3425
    %v4289 = vunpack.c.h.b16 %v3425
    %v4290 = vunpack.c.l.b16 %v3426
    %v4291 = vunpack.c.h.b16 %v3426
    %v4292 = vunpack.c.l.b16 %v3427
    %v4293 = vunpack.c.h.b16 %v3427
    %v4294 = vunpack.c.l.b16 %v3428
    %v4295 = vunpack.c.h.b16 %v3428
    %v4296 = vunpack.c.l.b16 %v3429
    %v4297 = vunpack.c.h.b16 %v3429
    %v4298 = vunpack.c.l.b16 %v3430
    %v4299 = vunpack.c.h.b16 %v3430
    %v4300 = vunpack.c.l.b16 %v3431
    %v4301 = vunpack.c.h.b16 %v3431
    %v4302 = vunpack.c.l.b16 %v3432
    %v4303 = vunpack.c.h.b16 %v3432
    %v4304 = vunpack.c.l.b16 %v3433
    %v4305 = vunpack.c.h.b16 %v3433
    %v4306 = vunpack.c.l.b16 %v3434
    %v4307 = vunpack.c.h.b16 %v3434
    %v4308 = vunpack.c.l.b16 %v3435
    %v4309 = vunpack.c.h.b16 %v3435
    %v4310 = vunpack.c.l.b16 %v3436
    %v4311 = vunpack.c.h.b16 %v3436
    %v4312 = vunpack.c.l.b16 %v3437
    %v4313 = vunpack.c.h.b16 %v3437
    %v4314 = vunpack.c.l.b16 %v3438
    %v4315 = vunpack.c.h.b16 %v3438
    %v4316 = vunpack.c.l.b16 %v3439
    %v4317 = vunpack.c.h.b16 %v3439
    %v4318 = vunpack.c.l.b16 %v3440
    %v4319 = vunpack.c.h.b16 %v3440
    %v4320 = vunpack.c.l.b16 %v3441
    %v4321 = vunpack.c.h.b16 %v3441
    %v4322 = vunpack.c.l.b16 %v3442
    %v4323 = vunpack.c.h.b16 %v3442
    %v4324 = vunpack.c.l.b16 %v3443
    %v4325 = vunpack.c.h.b16 %v3443
    %v4326 = vunpack.c.l.b16 %v3444
    %v4327 = vunpack.c.h.b16 %v3444
    %v4328 = vunpack.c.l.b16 %v3445
    %v4329 = vunpack.c.h.b16 %v3445
    %v4330 = vunpack.c.l.b16 %v3446
    %v4331 = vunpack.c.h.b16 %v3446
    %v4332 = vunpack.c.l.b16 %v3447
    %v4333 = vunpack.c.h.b16 %v3447
    %v4334 = vunpack.c.l.b16 %v3448
    %v4335 = vunpack.c.h.b16 %v3448
    %v4336 = vunpack.c.l.b16 %v3449
    %v4337 = vunpack.c.h.b16 %v3449
    %v4338 = vunpack.c.l.b16 %v3450
    %v4339 = vunpack.c.h.b16 %v3450
    %v4340 = vunpack.c.l.b16 %v3451
    %v4341 = vunpack.c.h.b16 %v3451
    %v4342 = vunpack.c.l.b16 %v3452
    %v4343 = vunpack.c.h.b16 %v3452
    %v4344 = vunpack.c.l.b16 %v3453
    %v4345 = vunpack.c.h.b16 %v3453
    %v4346 = vunpack.c.l.b16 %v3454
    %v4347 = vunpack.c.h.b16 %v3454
    %v4348 = vunpack.c.l.b16 %v3455
    %v4349 = vunpack.c.h.b16 %v3455
    %v4350 = vunpack.c.l.b16 %v3456
    %v4351 = vunpack.c.h.b16 %v3456
    %v4352 = vunpack.c.l.b16 %v3457
    %v4353 = vunpack.c.h.b16 %v3457
    %v4354 = vunpack.c.l.b16 %v3458
    %v4355 = vunpack.c.h.b16 %v3458
    %v4356 = vunpack.c.l.b16 %v3459
    %v4357 = vunpack.c.h.b16 %v3459
    %v4358 = vunpack.c.l.b16 %v3460
    %v4359 = vunpack.c.h.b16 %v3460
    %v4360 = vunpack.c.l.b16 %v3461
    %v4361 = vunpack.c.h.b16 %v3461
    %v4362 = vunpack.c.l.b16 %v3462
    %v4363 = vunpack.c.h.b16 %v3462
    %v4364 = vunpack.c.l.b16 %v3463
    %v4365 = vunpack.c.h.b16 %v3463
    %v4366 = vunpack.c.l.b16 %v3464
    %v4367 = vunpack.c.h.b16 %v3464
    %v4368 = vunpack.c.l.b16 %v3465
    %v4369 = vunpack.c.h.b16 %v3465
    %v4370 = vunpack.c.l.b16 %v3466
    %v4371 = vunpack.c.h.b16 %v3466
    %v4372 = vunpack.c.l.b16 %v3467
    %v4373 = vunpack.c.h.b16 %v3467
    %v4374 = vunpack.c.l.b16 %v3468
    %v4375 = vunpack.c.h.b16 %v3468
    %v4376 = vunpack.c.l.b16 %v3469
    %v4377 = vunpack.c.h.b16 %v3469
    %v4378 = vunpack.c.l.b16 %v3470
    %v4379 = vunpack.c.h.b16 %v3470
    %v4380 = vunpack.c.l.b16 %v3471
    %v4381 = vunpack.c.h.b16 %v3471
    %v4382 = vunpack.c.l.b16 %v3472
    %v4383 = vunpack.c.h.b16 %v3472
    %v4384 = vunpack.c.l.b16 %v3473
    %v4385 = vunpack.c.h.b16 %v3473
    %v4386 = vunpack.c.l.b16 %v3474
    %v4387 = vunpack.c.h.b16 %v3474
    %v4388 = vunpack.c.l.b16 %v3475
    %v4389 = vunpack.c.h.b16 %v3475
    %v4390 = vunpack.c.l.b16 %v3476
    %v4391 = vunpack.c.h.b16 %v3476
    %v4392 = vunpack.c.l.b16 %v3477
    %v4393 = vunpack.c.h.b16 %v3477
    %v4394 = vunpack.c.l.b16 %v3478
    %v4395 = vunpack.c.h.b16 %v3478
    %v4396 = vunpack.c.l.b16 %v3479
    %v4397 = vunpack.c.h.b16 %v3479
    %v4398 = vunpack.c.l.b16 %v3480
    %v4399 = vunpack.c.h.b16 %v3480
    %v4400 = vunpack.c.l.b16 %v3481
    %v4401 = vunpack.c.h.b16 %v3481
    %v4402 = vunpack.c.l.b16 %v3482
    %v4403 = vunpack.c.h.b16 %v3482
    %v4404 = vunpack.c.l.b16 %v3483
    %v4405 = vunpack.c.h.b16 %v3483
    %v4406 = vunpack.c.l.b16 %v3484
    %v4407 = vunpack.c.h.b16 %v3484
    %v4408 = vunpack.c.l.b16 %v3485
    %v4409 = vunpack.c.h.b16 %v3485
    %v4410 = vunpack.c.l.b16 %v3486
    %v4411 = vunpack.c.h.b16 %v3486
    %v4412 = vunpack.c.l.b16 %v3487
    %v4413 = vunpack.c.h.b16 %v3487
    %v4414 = vunpack.c.l.b16 %v3488
    %v4415 = vunpack.c.h.b16 %v3488
    %v4416 = vunpack.c.l.b16 %v3489
    %v4417 = vunpack.c.h.b16 %v3489
    %v4418 = vunpack.c.l.b16 %v3490
    %v4419 = vunpack.c.h.b16 %v3490
    %v4420 = vunpack.c.l.b16 %v3491
    %v4421 = vunpack.c.h.b16 %v3491
    %v4422 = vunpack.c.l.b16 %v3492
    %v4423 = vunpack.c.h.b16 %v3492
    %v4424 = vunpack.c.l.b16 %v3493
    %v4425 = vunpack.c.h.b16 %v3493
    %v4426 = vunpack.c.l.b16 %v3494
    %v4427 = vunpack.c.h.b16 %v3494
    %v4428 = vunpack.c.l.b16 %v3495
    %v4429 = vunpack.c.h.b16 %v3495
    %v4430 = vunpack.c.l.b16 %v3496
    %v4431 = vunpack.c.h.b16 %v3496
    %v4432 = vunpack.c.l.b16 %v3497
    %v4433 = vunpack.c.h.b16 %v3497
    %v4434 = vunpack.c.l.b16 %v3498
    %v4435 = vunpack.c.h.b16 %v3498
    %v4436 = vunpack.c.l.b16 %v3499
    %v4437 = vunpack.c.h.b16 %v3499
    %v4438 = vunpack.c.l.b16 %v3500
    %v4439 = vunpack.c.h.b16 %v3500
    %v4440 = vunpack.c.l.b16 %v3501
    %v4441 = vunpack.c.h.b16 %v3501
    %v4442 = vunpack.c.l.b16 %v3502
    %v4443 = vunpack.c.h.b16 %v3502
    %v4444 = vunpack.c.l.b16 %v3503
    %v4445 = vunpack.c.h.b16 %v3503
    %v4446 = vunpack.c.l.b16 %v3504
    %v4447 = vunpack.c.h.b16 %v3504
    %v4448 = vunpack.c.l.b16 %v3505
    %v4449 = vunpack.c.h.b16 %v3505
    %v4450 = vunpack.c.l.b16 %v3506
    %v4451 = vunpack.c.h.b16 %v3506
    %v4452 = vunpack.c.l.b16 %v3507
    %v4453 = vunpack.c.h.b16 %v3507
    %v4454 = vunpack.c.l.b16 %v3508
    %v4455 = vunpack.c.h.b16 %v3508
    %v4456 = vunpack.c.l.b16 %v3509
    %v4457 = vunpack.c.h.b16 %v3509
    %v4458 = vunpack.c.l.b16 %v3510
    %v4459 = vunpack.c.h.b16 %v3510
    %v4460 = vunpack.c.l.b16 %v3511
    %v4461 = vunpack.c.h.b16 %v3511
    %v4462 = vunpack.c.l.b16 %v3512
    %v4463 = vunpack.c.h.b16 %v3512
    %v4464 = vunpack.c.l.b16 %v3513
    %v4465 = vunpack.c.h.b16 %v3513
    %v4466 = vunpack.c.l.b16 %v3514
    %v4467 = vunpack.c.h.b16 %v3514
    %v4468 = vunpack.c.l.b16 %v3515
    %v4469 = vunpack.c.h.b16 %v3515
    %v4470 = vunpack.c.l.b16 %v3516
    %v4471 = vunpack.c.h.b16 %v3516
    %v4472 = vunpack.c.l.b16 %v3517
    %v4473 = vunpack.c.h.b16 %v3517
    %v4474 = vunpack.c.l.b16 %v3518
    %v4475 = vunpack.c.h.b16 %v3518
    %v4476 = vunpack.c.l.b16 %v3519
    %v4477 = vunpack.c.h.b16 %v3519
    %v4478 = vunpack.c.l.b16 %v3520
    %v4479 = vunpack.c.h.b16 %v3520
    %v4480 = vunpack.c.l.b16 %v3521
    %v4481 = vunpack.c.h.b16 %v3521
    %v4482 = vunpack.c.l.b16 %v3522
    %v4483 = vunpack.c.h.b16 %v3522
    %v4484 = vunpack.c.l.b16 %v3523
    %v4485 = vunpack.c.h.b16 %v3523
    %v4486 = vunpack.c.l.b16 %v3524
    %v4487 = vunpack.c.h.b16 %v3524
    %v4488 = vunpack.c.l.b16 %v3525
    %v4489 = vunpack.c.h.b16 %v3525
    %v4490 = vunpack.c.l.b16 %v3526
    %v4491 = vunpack.c.h.b16 %v3526
    %v4492 = vunpack.c.l.b16 %v3527
    %v4493 = vunpack.c.h.b16 %v3527
    %v4494 = vunpack.c.l.b16 %v3528
    %v4495 = vunpack.c.h.b16 %v3528
    %v4496 = vunpack.c.l.b16 %v3529
    %v4497 = vunpack.c.h.b16 %v3529
    %v4498 = vunpack.c.l.b16 %v3530
    %v4499 = vunpack.c.h.b16 %v3530
    %v4500 = vunpack.c.l.b16 %v3531
    %v4501 = vunpack.c.h.b16 %v3531
    %v4502 = vunpack.c.l.b16 %v3532
    %v4503 = vunpack.c.h.b16 %v3532
    %v4504 = vunpack.c.l.b16 %v3533
    %v4505 = vunpack.c.h.b16 %v3533
    %v4506 = vunpack.c.l.b16 %v3534
    %v4507 = vunpack.c.h.b16 %v3534
    %v4508 = vunpack.c.l.b16 %v3535
    %v4509 = vunpack.c.h.b16 %v3535
    %v4510 = vunpack.c.l.b16 %v3536
    %v4511 = vunpack.c.h.b16 %v3536
    %v4512 = vunpack.c.l.b16 %v3537
    %v4513 = vunpack.c.h.b16 %v3537
    %v4514 = vunpack.c.l.b16 %v3538
    %v4515 = vunpack.c.h.b16 %v3538
    %v4516 = vunpack.c.l.b16 %v3539
    %v4517 = vunpack.c.h.b16 %v3539
    %v4518 = vunpack.c.l.b16 %v3540
    %v4519 = vunpack.c.h.b16 %v3540
    %v4520 = vunpack.c.l.b16 %v3541
    %v4521 = vunpack.c.h.b16 %v3541
    %v4522 = vunpack.c.l.b16 %v3542
    %v4523 = vunpack.c.h.b16 %v3542
    %v4524 = vunpack.c.l.b16 %v3543
    %v4525 = vunpack.c.h.b16 %v3543
    %v4526 = vunpack.c.l.b16 %v3544
    %v4527 = vunpack.c.h.b16 %v3544
    %v4528 = vunpack.c.l.b16 %v3545
    %v4529 = vunpack.c.h.b16 %v3545
    %v4530 = vunpack.c.l.b16 %v3546
    %v4531 = vunpack.c.h.b16 %v3546
    %v4532 = vunpack.c.l.b16 %v3547
    %v4533 = vunpack.c.h.b16 %v3547
    %v4534 = vunpack.c.l.b16 %v3548
    %v4535 = vunpack.c.h.b16 %v3548
    %v4536 = vunpack.c.l.b16 %v3549
    %v4537 = vunpack.c.h.b16 %v3549
    %v4538 = vunpack.c.l.b16 %v3550
    %v4539 = vunpack.c.h.b16 %v3550
    %v4540 = vunpack.c.l.b16 %v3551
    %v4541 = vunpack.c.h.b16 %v3551
    %v4542 = vunpack.c.l.b16 %v3552
    %v4543 = vunpack.c.h.b16 %v3552
    %v4544 = vunpack.c.l.b16 %v3553
    %v4545 = vunpack.c.h.b16 %v3553
    %v4546 = vunpack.c.l.b16 %v3554
    %v4547 = vunpack.c.h.b16 %v3554
    %v4548 = vunpack.c.l.b16 %v3555
    %v4549 = vunpack.c.h.b16 %v3555
    %v4550 = vunpack.c.l.b16 %v3556
    %v4551 = vunpack.c.h.b16 %v3556
    %v4552 = vunpack.c.l.b16 %v3557
    %v4553 = vunpack.c.h.b16 %v3557
    %v4554 = vunpack.c.l.b16 %v3558
    %v4555 = vunpack.c.h.b16 %v3558
    %v4556 = vunpack.c.l.b16 %v3559
    %v4557 = vunpack.c.h.b16 %v3559
    %v4558 = vunpack.c.l.b16 %v3560
    %v4559 = vunpack.c.h.b16 %v3560
    %v4560 = vunpack.c.l.b16 %v3561
    %v4561 = vunpack.c.h.b16 %v3561
    %v4562 = vunpack.c.l.b16 %v3562
    %v4563 = vunpack.c.h.b16 %v3562
    %v4564 = vunpack.c.l.b16 %v3563
    %v4565 = vunpack.c.h.b16 %v3563
    %v4566 = vunpack.c.l.b16 %v3564
    %v4567 = vunpack.c.h.b16 %v3564
    %v4568 = vunpack.c.l.b16 %v3565
    %v4569 = vunpack.c.h.b16 %v3565
    %v4570 = vunpack.c.l.b16 %v3566
    %v4571 = vunpack.c.h.b16 %v3566
    %v4572 = vunpack.c.l.b16 %v3567
    %v4573 = vunpack.c.h.b16 %v3567
    %v4574 = vunpack.c.l.b16 %v3568
    %v4575 = vunpack.c.h.b16 %v3568
    %v4576 = vunpack.c.l.b16 %v3569
    %v4577 = vunpack.c.h.b16 %v3569
    %v4578 = vunpack.c.l.b16 %v3570
    %v4579 = vunpack.c.h.b16 %v3570
    %v4580 = vunpack.c.l.b16 %v3571
    %v4581 = vunpack.c.h.b16 %v3571
    %v4582 = vunpack.c.l.b16 %v3572
    %v4583 = vunpack.c.h.b16 %v3572
    %v4584 = vunpack.c.l.b16 %v3573
    %v4585 = vunpack.c.h.b16 %v3573
    %v4586 = vunpack.c.l.b16 %v3574
    %v4587 = vunpack.c.h.b16 %v3574
    %v4588 = vunpack.c.l.b16 %v3575
    %v4589 = vunpack.c.h.b16 %v3575
    %v4590 = vunpack.c.l.b16 %v3576
    %v4591 = vunpack.c.h.b16 %v3576
    %v4592 = vunpack.c.l.b16 %v3577
    %v4593 = vunpack.c.h.b16 %v3577
    %v4594 = vunpack.c.l.b16 %v3578
    %v4595 = vunpack.c.h.b16 %v3578
    %v4596 = vunpack.c.l.b16 %v3579
    %v4597 = vunpack.c.h.b16 %v3579
    %v4598 = vunpack.c.l.b16 %v3580
    %v4599 = vunpack.c.h.b16 %v3580
    %v4600 = vunpack.c.l.b16 %v3581
    %v4601 = vunpack.c.h.b16 %v3581
    %v4602 = vunpack.c.l.b16 %v3582
    %v4603 = vunpack.c.h.b16 %v3582
    %v4604 = vunpack.c.l.b16 %v3583
    %v4605 = vunpack.c.h.b16 %v3583
    %v4606 = vunpack.c.l.b16 %v3584
    %v4607 = vunpack.c.h.b16 %v3584
    %v4608 = vunpack.c.l.b16 %v3585
    %v4609 = vunpack.c.h.b16 %v3585
    %v4610 = vunpack.c.l.b16 %v3586
    %v4611 = vunpack.c.h.b16 %v3586
    %v4612 = vunpack.c.l.b16 %v3587
    %v4613 = vunpack.c.h.b16 %v3587
    %v4614 = vunpack.c.l.b16 %v3588
    %v4615 = vunpack.c.h.b16 %v3588
    %v4616 = vunpack.c.l.b16 %v3589
    %v4617 = vunpack.c.h.b16 %v3589
    %v4618 = vunpack.c.l.b16 %v3590
    %v4619 = vunpack.c.h.b16 %v3590
    %v4620 = vunpack.c.l.b16 %v3591
    %v4621 = vunpack.c.h.b16 %v3591
    %v4622 = vunpack.c.l.b16 %v3592
    %v4623 = vunpack.c.h.b16 %v3592
    %v4624 = vunpack.c.l.b16 %v3593
    %v4625 = vunpack.c.h.b16 %v3593
    %v4626 = vunpack.c.l.b16 %v3594
    %v4627 = vunpack.c.h.b16 %v3594
    %v4628 = vunpack.c.l.b16 %v3595
    %v4629 = vunpack.c.h.b16 %v3595
    %v4630 = vunpack.c.l.b16 %v3596
    %v4631 = vunpack.c.h.b16 %v3596
    %v4632 = vunpack.c.l.b16 %v3597
    %v4633 = vunpack.c.h.b16 %v3597
    %v4634 = vunpack.c.l.b16 %v3598
    %v4635 = vunpack.c.h.b16 %v3598
    %v4636 = vunpack.c.l.b16 %v3599
    %v4637 = vunpack.c.h.b16 %v3599
    %v4638 = vunpack.c.l.b16 %v3600
    %v4639 = vunpack.c.h.b16 %v3600
    %v4640 = vunpack.c.l.b16 %v3601
    %v4641 = vunpack.c.h.b16 %v3601
    %v4642 = vunpack.c.l.b16 %v3602
    %v4643 = vunpack.c.h.b16 %v3602
    %v4644 = vunpack.c.l.b16 %v3603
    %v4645 = vunpack.c.h.b16 %v3603
    %v4646 = vunpack.c.l.b16 %v3604
    %v4647 = vunpack.c.h.b16 %v3604
    %v4648 = vunpack.c.l.b16 %v3605
    %v4649 = vunpack.c.h.b16 %v3605
    %v4650 = vunpack.c.l.b16 %v3606
    %v4651 = vunpack.c.h.b16 %v3606
    %v4652 = vunpack.c.l.b16 %v3607
    %v4653 = vunpack.c.h.b16 %v3607
    %v4654 = vunpack.c.l.b16 %v3608
    %v4655 = vunpack.c.h.b16 %v3608
    %v4656 = vunpack.c.l.b16 %v3609
    %v4657 = vunpack.c.h.b16 %v3609
    %v4658 = vunpack.c.l.b16 %v3610
    %v4659 = vunpack.c.h.b16 %v3610
    %v4660 = vunpack.c.l.b16 %v3611
    %v4661 = vunpack.c.h.b16 %v3611
    %v4662 = vunpack.c.l.b16 %v3612
    %v4663 = vunpack.c.h.b16 %v3612
    %v4664 = vunpack.c.l.b16 %v3613
    %v4665 = vunpack.c.h.b16 %v3613
    %v4666 = vunpack.c.l.b16 %v3614
    %v4667 = vunpack.c.h.b16 %v3614
    %v4668 = vunpack.c.l.b16 %v3615
    %v4669 = vunpack.c.h.b16 %v3615
    %v4670 = vunpack.c.l.b16 %v3616
    %v4671 = vunpack.c.h.b16 %v3616
    %v4672 = vunpack.c.l.b16 %v3617
    %v4673 = vunpack.c.h.b16 %v3617
    %v4674 = vunpack.c.l.b16 %v3618
    %v4675 = vunpack.c.h.b16 %v3618
    %v4676 = vunpack.c.l.b16 %v3619
    %v4677 = vunpack.c.h.b16 %v3619
    %v4678 = vunpack.c.l.b16 %v3620
    %v4679 = vunpack.c.h.b16 %v3620
    %v4680 = vunpack.c.l.b16 %v3621
    %v4681 = vunpack.c.h.b16 %v3621
    %v4682 = vunpack.c.l.b16 %v3622
    %v4683 = vunpack.c.h.b16 %v3622
    %v4684 = vunpack.c.l.b16 %v3623
    %v4685 = vunpack.c.h.b16 %v3623
    %v4686 = vunpack.c.l.b16 %v3624
    %v4687 = vunpack.c.h.b16 %v3624
    %v4688 = vunpack.c.l.b16 %v3625
    %v4689 = vunpack.c.h.b16 %v3625
    %v4690 = vunpack.c.l.b16 %v3626
    %v4691 = vunpack.c.h.b16 %v3626
    %v4692 = vunpack.c.l.b16 %v3627
    %v4693 = vunpack.c.h.b16 %v3627
    %v4694 = vunpack.c.l.b16 %v3628
    %v4695 = vunpack.c.h.b16 %v3628
    %v4696 = vunpack.c.l.b16 %v3629
    %v4697 = vunpack.c.h.b16 %v3629
    %v4698 = vunpack.c.l.b16 %v3630
    %v4699 = vunpack.c.h.b16 %v3630
    %v4700 = vunpack.c.l.b16 %v3631
    %v4701 = vunpack.c.h.b16 %v3631
    %v4702 = vunpack.c.l.b16 %v3632
    %v4703 = vunpack.c.h.b16 %v3632
    %v4704 = vunpack.c.l.b16 %v3633
    %v4705 = vunpack.c.h.b16 %v3633
    %v4706 = vunpack.c.l.b16 %v3634
    %v4707 = vunpack.c.h.b16 %v3634
    %v4708 = vunpack.c.l.b16 %v3635
    %v4709 = vunpack.c.h.b16 %v3635
    %v4710 = vunpack.c.l.b16 %v3636
    %v4711 = vunpack.c.h.b16 %v3636
    %v4712 = vunpack.c.l.b16 %v3637
    %v4713 = vunpack.c.h.b16 %v3637
    %v4714 = vunpack.c.l.b16 %v3638
    %v4715 = vunpack.c.h.b16 %v3638
    %v4716 = vunpack.c.l.b16 %v3639
    %v4717 = vunpack.c.h.b16 %v3639
    %v4718 = vunpack.c.l.b16 %v3640
    %v4719 = vunpack.c.h.b16 %v3640
    %v4720 = vunpack.c.l.b16 %v3641
    %v4721 = vunpack.c.h.b16 %v3641
    %v4722 = vunpack.c.l.b16 %v3642
    %v4723 = vunpack.c.h.b16 %v3642
    %v4724 = vunpack.c.l.b16 %v3643
    %v4725 = vunpack.c.h.b16 %v3643
    %v4726 = vunpack.c.l.b16 %v3644
    %v4727 = vunpack.c.h.b16 %v3644
    %v4728 = vunpack.c.l.b16 %v3645
    %v4729 = vunpack.c.h.b16 %v3645
    %v4730 = vunpack.c.l.b16 %v3646
    %v4731 = vunpack.c.h.b16 %v3646
    %v4732 = vunpack.c.l.b16 %v3647
    %v4733 = vunpack.c.h.b16 %v3647
    %v4734 = vunpack.c.l.b16 %v3648
    %v4735 = vunpack.c.h.b16 %v3648
    %v4736 = vunpack.c.l.b16 %v3649
    %v4737 = vunpack.c.h.b16 %v3649
    %v4738 = vunpack.c.l.b16 %v3650
    %v4739 = vunpack.c.h.b16 %v3650
    %v4740 = vunpack.c.l.b16 %v3651
    %v4741 = vunpack.c.h.b16 %v3651
    %v4742 = vunpack.c.l.b16 %v3652
    %v4743 = vunpack.c.h.b16 %v3652
    %v4744 = vunpack.c.l.b16 %v3653
    %v4745 = vunpack.c.h.b16 %v3653
    %v4746 = vunpack.c.l.b16 %v3654
    %v4747 = vunpack.c.h.b16 %v3654
    %v4748 = vunpack.c.l.b16 %v3655
    %v4749 = vunpack.c.h.b16 %v3655
    %v4750 = vunpack.c.l.b16 %v3656
    %v4751 = vunpack.c.h.b16 %v3656
    %v4752 = vunpack.c.l.b16 %v3657
    %v4753 = vunpack.c.h.b16 %v3657
    %v4754 = vunpack.c.l.b16 %v3658
    %v4755 = vunpack.c.h.b16 %v3658
    %v4756 = vunpack.c.l.b16 %v3659
    %v4757 = vunpack.c.h.b16 %v3659
    %v4758 = vunpack.c.l.b16 %v3660
    %v4759 = vunpack.c.h.b16 %v3660
    %v4760 = vunpack.c.l.b16 %v3661
    %v4761 = vunpack.c.h.b16 %v3661
    %v4762 = vunpack.c.l.b16 %v3662
    %v4763 = vunpack.c.h.b16 %v3662
    %v4764 = vunpack.c.l.b16 %v3663
    %v4765 = vunpack.c.h.b16 %v3663
    %v4766 = vunpack.c.l.b16 %v3664
    %v4767 = vunpack.c.h.b16 %v3664
    %v4768 = vunpack.c.l.b16 %v3665
    %v4769 = vunpack.c.h.b16 %v3665
    %v4770 = vunpack.c.l.b16 %v3666
    %v4771 = vunpack.c.h.b16 %v3666
    %v4772 = vunpack.c.l.b16 %v3667
    %v4773 = vunpack.c.h.b16 %v3667
    %v4774 = vunpack.c.l.b16 %v3668
    %v4775 = vunpack.c.h.b16 %v3668
    %v4776 = vunpack.c.l.b16 %v3669
    %v4777 = vunpack.c.h.b16 %v3669
    %v4778 = vunpack.c.l.b16 %v3670
    %v4779 = vunpack.c.h.b16 %v3670
    %v4780 = vunpack.c.l.b16 %v3671
    %v4781 = vunpack.c.h.b16 %v3671
    %v4782 = vunpack.c.l.b16 %v3672
    %v4783 = vunpack.c.h.b16 %v3672
    %v4784 = vunpack.c.l.b16 %v3673
    %v4785 = vunpack.c.h.b16 %v3673
    %v4786 = vunpack.c.l.b16 %v3674
    %v4787 = vunpack.c.h.b16 %v3674
    %v4788 = vunpack.c.l.b16 %v3675
    %v4789 = vunpack.c.h.b16 %v3675
    %v4790 = vunpack.c.l.b16 %v3676
    %v4791 = vunpack.c.h.b16 %v3676
    %v4792 = vunpack.c.l.b16 %v3677
    %v4793 = vunpack.c.h.b16 %v3677
    %v4794 = vunpack.c.l.b16 %v3678
    %v4795 = vunpack.c.h.b16 %v3678
    %v4796 = vunpack.c.l.b16 %v3679
    %v4797 = vunpack.c.h.b16 %v3679
    %v4798 = vunpack.c.l.b16 %v3680
    %v4799 = vunpack.c.h.b16 %v3680
    %v4800 = vunpack.c.l.b16 %v3681
    %v4801 = vunpack.c.h.b16 %v3681
    %v4802 = vunpack.c.l.b16 %v3682
    %v4803 = vunpack.c.h.b16 %v3682
    %v4804 = vunpack.c.l.b16 %v3683
    %v4805 = vunpack.c.h.b16 %v3683
    %v4806 = vunpack.c.l.b16 %v3684
    %v4807 = vunpack.c.h.b16 %v3684
    %v4808 = vunpack.c.l.b16 %v3685
    %v4809 = vunpack.c.h.b16 %v3685
    %v4810 = vunpack.c.l.b16 %v3686
    %v4811 = vunpack.c.h.b16 %v3686
    %v4812 = vunpack.c.l.b16 %v3687
    %v4813 = vunpack.c.h.b16 %v3687
    %v4814 = vunpack.c.l.b16 %v3688
    %v4815 = vunpack.c.h.b16 %v3688
    %v4816 = vunpack.c.l.b16 %v3689
    %v4817 = vunpack.c.h.b16 %v3689
    %v4818 = vunpack.c.l.b16 %v3690
    %v4819 = vunpack.c.h.b16 %v3690
    %v4820 = vunpack.c.l.b16 %v3691
    %v4821 = vunpack.c.h.b16 %v3691
    %v4822 = vunpack.c.l.b16 %v3692
    %v4823 = vunpack.c.h.b16 %v3692
    %v4824 = vunpack.c.l.b16 %v3693
    %v4825 = vunpack.c.h.b16 %v3693
    %v4826 = vunpack.c.l.b16 %v3694
    %v4827 = vunpack.c.h.b16 %v3694
    %v4828 = vunpack.c.l.b16 %v3695
    %v4829 = vunpack.c.h.b16 %v3695
    %v4830 = vunpack.c.l.b16 %v3696
    %v4831 = vunpack.c.h.b16 %v3696
    %v4832 = vunpack.c.l.b16 %v3697
    %v4833 = vunpack.c.h.b16 %v3697
    %v4834 = vunpack.c.l.b16 %v3698
    %v4835 = vunpack.c.h.b16 %v3698
    %v4836 = vunpack.c.l.b16 %v3699
    %v4837 = vunpack.c.h.b16 %v3699
    %v4838 = vunpack.c.l.b16 %v3700
    %v4839 = vunpack.c.h.b16 %v3700
    %v4840 = vunpack.c.l.b16 %v3701
    %v4841 = vunpack.c.h.b16 %v3701
    %v4842 = vunpack.c.l.b16 %v3702
    %v4843 = vunpack.c.h.b16 %v3702
    %v4844 = vunpack.c.l.b16 %v3703
    %v4845 = vunpack.c.h.b16 %v3703
    %v4846 = vunpack.c.l.b16 %v3704
    %v4847 = vunpack.c.h.b16 %v3704
    %v4848 = vunpack.c.l.b16 %v3705
    %v4849 = vunpack.c.h.b16 %v3705
    %v4850 = vunpack.c.l.b16 %v3706
    %v4851 = vunpack.c.h.b16 %v3706
    %v4852 = vunpack.c.l.b16 %v3707
    %v4853 = vunpack.c.h.b16 %v3707
    %v4854 = vunpack.c.l.b16 %v3708
    %v4855 = vunpack.c.h.b16 %v3708
    %v4856 = vunpack.c.l.b16 %v3709
    %v4857 = vunpack.c.h.b16 %v3709
    %v4858 = vunpack.c.l.b16 %v3710
    %v4859 = vunpack.c.h.b16 %v3710
    %v4860 = vunpack.c.l.b16 %v3711
    %v4861 = vunpack.c.h.b16 %v3711
    %v4862 = vunpack.c.l.b16 %v3712
    %v4863 = vunpack.c.h.b16 %v3712
    %v4864 = vunpack.c.l.b16 %v3713
    %v4865 = vunpack.c.h.b16 %v3713
    %v4866 = vpack.c.b16 %v4102, %v4098
    %v4867 = vpack.c.b16 %v4103, %v4099
    %v4868 = vpack.c.b16 %v4104, %v4100
    %v4869 = vpack.c.b16 %v4105, %v4101
    %v4870 = vpack.c.b16 %v4110, %v4106
    %v4871 = vpack.c.b16 %v4111, %v4107
    %v4872 = vpack.c.b16 %v4112, %v4108
    %v4873 = vpack.c.b16 %v4113, %v4109
    %v4874 = vpack.c.b16 %v4118, %v4114
    %v4875 = vpack.c.b16 %v4119, %v4115
    %v4876 = vpack.c.b16 %v4120, %v4116
    %v4877 = vpack.c.b16 %v4121, %v4117
    %v4878 = vpack.c.b16 %v4126, %v4122
    %v4879 = vpack.c.b16 %v4127, %v4123
    %v4880 = vpack.c.b16 %v4128, %v4124
    %v4881 = vpack.c.b16 %v4129, %v4125
    %v4882 = vpack.c.b16 %v4134, %v4130
    %v4883 = vpack.c.b16 %v4135, %v4131
    %v4884 = vpack.c.b16 %v4136, %v4132
    %v4885 = vpack.c.b16 %v4137, %v4133
    %v4886 = vpack.c.b16 %v4142, %v4138
    %v4887 = vpack.c.b16 %v4143, %v4139
    %v4888 = vpack.c.b16 %v4144, %v4140
    %v4889 = vpack.c.b16 %v4145, %v4141
    %v4890 = vpack.c.b16 %v4150, %v4146
    %v4891 = vpack.c.b16 %v4151, %v4147
    %v4892 = vpack.c.b16 %v4152, %v4148
    %v4893 = vpack.c.b16 %v4153, %v4149
    %v4894 = vpack.c.b16 %v4158, %v4154
    %v4895 = vpack.c.b16 %v4159, %v4155
    %v4896 = vpack.c.b16 %v4160, %v4156
    %v4897 = vpack.c.b16 %v4161, %v4157
    %v4898 = vpack.c.b16 %v4166, %v4162
    %v4899 = vpack.c.b16 %v4167, %v4163
    %v4900 = vpack.c.b16 %v4168, %v4164
    %v4901 = vpack.c.b16 %v4169, %v4165
    %v4902 = vpack.c.b16 %v4174, %v4170
    %v4903 = vpack.c.b16 %v4175, %v4171
    %v4904 = vpack.c.b16 %v4176, %v4172
    %v4905 = vpack.c.b16 %v4177, %v4173
    %v4906 = vpack.c.b16 %v4182, %v4178
    %v4907 = vpack.c.b16 %v4183, %v4179
    %v4908 = vpack.c.b16 %v4184, %v4180
    %v4909 = vpack.c.b16 %v4185, %v4181
    %v4910 = vpack.c.b16 %v4190, %v4186
    %v4911 = vpack.c.b16 %v4191, %v4187
    %v4912 = vpack.c.b16 %v4192, %v4188
    %v4913 = vpack.c.b16 %v4193, %v4189
    %v4914 = vpack.c.b16 %v4198, %v4194
    %v4915 = vpack.c.b16 %v4199, %v4195
    %v4916 = vpack.c.b16 %v4200, %v4196
    %v4917 = vpack.c.b16 %v4201, %v4197
    %v4918 = vpack.c.b16 %v4206, %v4202
    %v4919 = vpack.c.b16 %v4207, %v4203
    %v4920 = vpack.c.b16 %v4208, %v4204
    %v4921 = vpack.c.b16 %v4209, %v4205
    %v4922 = vpack.c.b16 %v4214, %v4210
    %v4923 = vpack.c.b16 %v4215, %v4211
    %v4924 = vpack.c.b16 %v4216, %v4212
    %v4925 = vpack.c.b16 %v4217, %v4213
    %v4926 = vpack.c.b16 %v4222, %v4218
    %v4927 = vpack.c.b16 %v4223, %v4219
    %v4928 = vpack.c.b16 %v4224, %v4220
    %v4929 = vpack.c.b16 %v4225, %v4221
    %v4930 = vpack.c.b16 %v4230, %v4226
    %v4931 = vpack.c.b16 %v4231, %v4227
    %v4932 = vpack.c.b16 %v4232, %v4228
    %v4933 = vpack.c.b16 %v4233, %v4229
    %v4934 = vpack.c.b16 %v4238, %v4234
    %v4935 = vpack.c.b16 %v4239, %v4235
    %v4936 = vpack.c.b16 %v4240, %v4236
    %v4937 = vpack.c.b16 %v4241, %v4237
    %v4938 = vpack.c.b16 %v4246, %v4242
    %v4939 = vpack.c.b16 %v4247, %v4243
    %v4940 = vpack.c.b16 %v4248, %v4244
    %v4941 = vpack.c.b16 %v4249, %v4245
    %v4942 = vpack.c.b16 %v4254, %v4250
    %v4943 = vpack.c.b16 %v4255, %v4251
    %v4944 = vpack.c.b16 %v4256, %v4252
    %v4945 = vpack.c.b16 %v4257, %v4253
    %v4946 = vpack.c.b16 %v4262, %v4258
    %v4947 = vpack.c.b16 %v4263, %v4259
    %v4948 = vpack.c.b16 %v4264, %v4260
    %v4949 = vpack.c.b16 %v4265, %v4261
    %v4950 = vpack.c.b16 %v4270, %v4266
    %v4951 = vpack.c.b16 %v4271, %v4267
    %v4952 = vpack.c.b16 %v4272, %v4268
    %v4953 = vpack.c.b16 %v4273, %v4269
    %v4954 = vpack.c.b16 %v4278, %v4274
    %v4955 = vpack.c.b16 %v4279, %v4275
    %v4956 = vpack.c.b16 %v4280, %v4276
    %v4957 = vpack.c.b16 %v4281, %v4277
    %v4958 = vpack.c.b16 %v4286, %v4282
    %v4959 = vpack.c.b16 %v4287, %v4283
    %v4960 = vpack.c.b16 %v4288, %v4284
    %v4961 = vpack.c.b16 %v4289, %v4285
    %v4962 = vpack.c.b16 %v4294, %v4290
    %v4963 = vpack.c.b16 %v4295, %v4291
    %v4964 = vpack.c.b16 %v4296, %v4292
    %v4965 = vpack.c.b16 %v4297, %v4293
    %v4966 = vpack.c.b16 %v4302, %v4298
    %v4967 = vpack.c.b16 %v4303, %v4299
    %v4968 = vpack.c.b16 %v4304, %v4300
    %v4969 = vpack.c.b16 %v4305, %v4301
    %v4970 = vpack.c.b16 %v4310, %v4306
    %v4971 = vpack.c.b16 %v4311, %v4307
    %v4972 = vpack.c.b16 %v4312, %v4308
    %v4973 = vpack.c.b16 %v4313, %v4309
    %v4974 = vpack.c.b16 %v4318, %v4314
    %v4975 = vpack.c.b16 %v4319, %v4315
    %v4976 = vpack.c.b16 %v4320, %v4316
    %v4977 = vpack.c.b16 %v4321, %v4317
    %v4978 = vpack.c.b16 %v4326, %v4322
    %v4979 = vpack.c.b16 %v4327, %v4323
    %v4980 = vpack.c.b16 %v4328, %v4324
    %v4981 = vpack.c.b16 %v4329, %v4325
    %v4982 = vpack.c.b16 %v4334, %v4330
    %v4983 = vpack.c.b16 %v4335, %v4331
    %v4984 = vpack.c.b16 %v4336, %v4332
    %v4985 = vpack.c.b16 %v4337, %v4333
    %v4986 = vpack.c.b16 %v4342, %v4338
    %v4987 = vpack.c.b16 %v4343, %v4339
    %v4988 = vpack.c.b16 %v4344, %v4340
    %v4989 = vpack.c.b16 %v4345, %v4341
    %v4990 = vpack.c.b16 %v4350, %v4346
    %v4991 = vpack.c.b16 %v4351, %v4347
    %v4992 = vpack.c.b16 %v4352, %v4348
    %v4993 = vpack.c.b16 %v4353, %v4349
    %v4994 = vpack.c.b16 %v4358, %v4354
    %v4995 = vpack.c.b16 %v4359, %v4355
    %v4996 = vpack.c.b16 %v4360, %v4356
    %v4997 = vpack.c.b16 %v4361, %v4357
    %v4998 = vpack.c.b16 %v4366, %v4362
    %v4999 = vpack.c.b16 %v4367, %v4363
    %v5000 = vpack.c.b16 %v4368, %v4364
    %v5001 = vpack.c.b16 %v4369, %v4365
    %v5002 = vpack.c.b16 %v4374, %v4370
    %v5003 = vpack.c.b16 %v4375, %v4371
    %v5004 = vpack.c.b16 %v4376, %v4372
    %v5005 = vpack.c.b16 %v4377, %v4373
    %v5006 = vpack.c.b16 %v4382, %v4378
    %v5007 = vpack.c.b16 %v4383, %v4379
    %v5008 = vpack.c.b16 %v4384, %v4380
    %v5009 = vpack.c.b16 %v4385, %v4381
    %v5010 = vpack.c.b16 %v4390, %v4386
    %v5011 = vpack.c.b16 %v4391, %v4387
    %v5012 = vpack.c.b16 %v4392, %v4388
    %v5013 = vpack.c.b16 %v4393, %v4389
    %v5014 = vpack.c.b16 %v4398, %v4394
    %v5015 = vpack.c.b16 %v4399, %v4395
    %v5016 = vpack.c.b16 %v4400, %v4396
    %v5017 = vpack.c.b16 %v4401, %v4397
    %v5018 = vpack.c.b16 %v4406, %v4402
    %v5019 = vpack.c.b16 %v4407, %v4403
    %v5020 = vpack.c.b16 %v4408, %v4404
    %v5021 = vpack.c.b16 %v4409, %v4405
    %v5022 = vpack.c.b16 %v4414, %v4410
    %v5023 = vpack.c.b16 %v4415, %v4411
    %v5024 = vpack.c.b16 %v4416, %v4412
    %v5025 = vpack.c.b16 %v4417, %v4413
    %v5026 = vpack.c.b16 %v4422, %v4418
    %v5027 = vpack.c.b16 %v4423, %v4419
    %v5028 = vpack.c.b16 %v4424, %v4420
    %v5029 = vpack.c.b16 %v4425, %v4421
    %v5030 = vpack.c.b16 %v4430, %v4426
    %v5031 = vpack.c.b16 %v4431, %v4427
    %v5032 = vpack.c.b16 %v4432, %v4428
    %v5033 = vpack.c.b16 %v4433, %v4429
    %v5034 = vpack.c.b16 %v4438, %v4434
    %v5035 = vpack.c.b16 %v4439, %v4435
    %v5036 = vpack.c.b16 %v4440, %v4436
    %v5037 = vpack.c.b16 %v4441, %v4437
    %v5038 = vpack.c.b16 %v4446, %v4442
    %v5039 = vpack.c.b16 %v4447, %v4443
    %v5040 = vpack.c.b16 %v4448, %v4444
    %v5041 = vpack.c.b16 %v4449, %v4445
    %v5042 = vpack.c.b16 %v4454, %v4450
    %v5043 = vpack.c.b16 %v4455, %v4451
    %v5044 = vpack.c.b16 %v4456, %v4452
    %v5045 = vpack.c.b16 %v4457, %v4453
    %v5046 = vpack.c.b16 %v4462, %v4458
    %v5047 = vpack.c.b16 %v4463, %v4459
    %v5048 = vpack.c.b16 %v4464, %v4460
    %v5049 = vpack.c.b16 %v4465, %v4461
    %v5050 = vpack.c.b16 %v4470, %v4466
    %v5051 = vpack.c.b16 %v4471, %v4467
    %v5052 = vpack.c.b16 %v4472, %v4468
    %v5053 = vpack.c.b16 %v4473, %v4469
    %v5054 = vpack.c.b16 %v4478, %v4474
    %v5055 = vpack.c.b16 %v4479, %v4475
    %v5056 = vpack.c.b16 %v4480, %v4476
    %v5057 = vpack.c.b16 %v4481, %v4477
    %v5058 = vpack.c.b16 %v4486, %v4482
    %v5059 = vpack.c.b16 %v4487, %v4483
    %v5060 = vpack.c.b16 %v4488, %v4484
    %v5061 = vpack.c.b16 %v4489, %v4485
    %v5062 = vpack.c.b16 %v4494, %v4490
    %v5063 = vpack.c.b16 %v4495, %v4491
    %v5064 = vpack.c.b16 %v4496, %v4492
    %v5065 = vpack.c.b16 %v4497, %v4493
    %v5066 = vpack.c.b16 %v4502, %v4498
    %v5067 = vpack.c.b16 %v4503, %v4499
    %v5068 = vpack.c.b16 %v4504, %v4500
    %v5069 = vpack.c.b16 %v4505, %v4501
    %v5070 = vpack.c.b16 %v4510, %v4506
    %v5071 = vpack.c.b16 %v4511, %v4507
    %v5072 = vpack.c.b16 %v4512, %v4508
    %v5073 = vpack.c.b16 %v4513, %v4509
    %v5074 = vpack.c.b16 %v4518, %v4514
    %v5075 = vpack.c.b16 %v4519, %v4515
    %v5076 = vpack.c.b16 %v4520, %v4516
    %v5077 = vpack.c.b16 %v4521, %v4517
    %v5078 = vpack.c.b16 %v4526, %v4522
    %v5079 = vpack.c.b16 %v4527, %v4523
    %v5080 = vpack.c.b16 %v4528, %v4524
    %v5081 = vpack.c.b16 %v4529, %v4525
    %v5082 = vpack.c.b16 %v4534, %v4530
    %v5083 = vpack.c.b16 %v4535, %v4531
    %v5084 = vpack.c.b16 %v4536, %v4532
    %v5085 = vpack.c.b16 %v4537, %v4533
    %v5086 = vpack.c.b16 %v4542, %v4538
    %v5087 = vpack.c.b16 %v4543, %v4539
    %v5088 = vpack.c.b16 %v4544, %v4540
    %v5089 = vpack.c.b16 %v4545, %v4541
    %v5090 = vpack.c.b16 %v4550, %v4546
    %v5091 = vpack.c.b16 %v4551, %v4547
    %v5092 = vpack.c.b16 %v4552, %v4548
    %v5093 = vpack.c.b16 %v4553, %v4549
    %v5094 = vpack.c.b16 %v4558, %v4554
    %v5095 = vpack.c.b16 %v4559, %v4555
    %v5096 = vpack.c.b16 %v4560, %v4556
    %v5097 = vpack.c.b16 %v4561, %v4557
    %v5098 = vpack.c.b16 %v4566, %v4562
    %v5099 = vpack.c.b16 %v4567, %v4563
    %v5100 = vpack.c.b16 %v4568, %v4564
    %v5101 = vpack.c.b16 %v4569, %v4565
    %v5102 = vpack.c.b16 %v4574, %v4570
    %v5103 = vpack.c.b16 %v4575, %v4571
    %v5104 = vpack.c.b16 %v4576, %v4572
    %v5105 = vpack.c.b16 %v4577, %v4573
    %v5106 = vpack.c.b16 %v4582, %v4578
    %v5107 = vpack.c.b16 %v4583, %v4579
    %v5108 = vpack.c.b16 %v4584, %v4580
    %v5109 = vpack.c.b16 %v4585, %v4581
    %v5110 = vpack.c.b16 %v4590, %v4586
    %v5111 = vpack.c.b16 %v4591, %v4587
    %v5112 = vpack.c.b16 %v4592, %v4588
    %v5113 = vpack.c.b16 %v4593, %v4589
    %v5114 = vpack.c.b16 %v4598, %v4594
    %v5115 = vpack.c.b16 %v4599, %v4595
    %v5116 = vpack.c.b16 %v4600, %v4596
    %v5117 = vpack.c.b16 %v4601, %v4597
    %v5118 = vpack.c.b16 %v4606, %v4602
    %v5119 = vpack.c.b16 %v4607, %v4603
    %v5120 = vpack.c.b16 %v4608, %v4604
    %v5121 = vpack.c.b16 %v4609, %v4605
    %v5122 = vpack.c.b16 %v4614, %v4610
    %v5123 = vpack.c.b16 %v4615, %v4611
    %v5124 = vpack.c.b16 %v4616, %v4612
    %v5125 = vpack.c.b16 %v4617, %v4613
    %v5126 = vpack.c.b16 %v4622, %v4618
    %v5127 = vpack.c.b16 %v4623, %v4619
    %v5128 = vpack.c.b16 %v4624, %v4620
    %v5129 = vpack.c.b16 %v4625, %v4621
    %v5130 = vpack.c.b16 %v4630, %v4626
    %v5131 = vpack.c.b16 %v4631, %v4627
    %v5132 = vpack.c.b16 %v4632, %v4628
    %v5133 = vpack.c.b16 %v4633, %v4629
    %v5134 = vpack.c.b16 %v4638, %v4634
    %v5135 = vpack.c.b16 %v4639, %v4635
    %v5136 = vpack.c.b16 %v4640, %v4636
    %v5137 = vpack.c.b16 %v4641, %v4637
    %v5138 = vpack.c.b16 %v4646, %v4642
    %v5139 = vpack.c.b16 %v4647, %v4643
    %v5140 = vpack.c.b16 %v4648, %v4644
    %v5141 = vpack.c.b16 %v4649, %v4645
    %v5142 = vpack.c.b16 %v4654, %v4650
    %v5143 = vpack.c.b16 %v4655, %v4651
    %v5144 = vpack.c.b16 %v4656, %v4652
    %v5145 = vpack.c.b16 %v4657, %v4653
    %v5146 = vpack.c.b16 %v4662, %v4658
    %v5147 = vpack.c.b16 %v4663, %v4659
    %v5148 = vpack.c.b16 %v4664, %v4660
    %v5149 = vpack.c.b16 %v4665, %v4661
    %v5150 = vpack.c.b16 %v4670, %v4666
    %v5151 = vpack.c.b16 %v4671, %v4667
    %v5152 = vpack.c.b16 %v4672, %v4668
    %v5153 = vpack.c.b16 %v4673, %v4669
    %v5154 = vpack.c.b16 %v4678, %v4674
    %v5155 = vpack.c.b16 %v4679, %v4675
    %v5156 = vpack.c.b16 %v4680, %v4676
    %v5157 = vpack.c.b16 %v4681, %v4677
    %v5158 = vpack.c.b16 %v4686, %v4682
    %v5159 = vpack.c.b16 %v4687, %v4683
    %v5160 = vpack.c.b16 %v4688, %v4684
    %v5161 = vpack.c.b16 %v4689, %v4685
    %v5162 = vpack.c.b16 %v4694, %v4690
    %v5163 = vpack.c.b16 %v4695, %v4691
    %v5164 = vpack.c.b16 %v4696, %v4692
    %v5165 = vpack.c.b16 %v4697, %v4693
    %v5166 = vpack.c.b16 %v4702, %v4698
    %v5167 = vpack.c.b16 %v4703, %v4699
    %v5168 = vpack.c.b16 %v4704, %v4700
    %v5169 = vpack.c.b16 %v4705, %v4701
    %v5170 = vpack.c.b16 %v4710, %v4706
    %v5171 = vpack.c.b16 %v4711, %v4707
    %v5172 = vpack.c.b16 %v4712, %v4708
    %v5173 = vpack.c.b16 %v4713, %v4709
    %v5174 = vpack.c.b16 %v4718, %v4714
    %v5175 = vpack.c.b16 %v4719, %v4715
    %v5176 = vpack.c.b16 %v4720, %v4716
    %v5177 = vpack.c.b16 %v4721, %v4717
    %v5178 = vpack.c.b16 %v4726, %v4722
    %v5179 = vpack.c.b16 %v4727, %v4723
    %v5180 = vpack.c.b16 %v4728, %v4724
    %v5181 = vpack.c.b16 %v4729, %v4725
    %v5182 = vpack.c.b16 %v4734, %v4730
    %v5183 = vpack.c.b16 %v4735, %v4731
    %v5184 = vpack.c.b16 %v4736, %v4732
    %v5185 = vpack.c.b16 %v4737, %v4733
    %v5186 = vpack.c.b16 %v4742, %v4738
    %v5187 = vpack.c.b16 %v4743, %v4739
    %v5188 = vpack.c.b16 %v4744, %v4740
    %v5189 = vpack.c.b16 %v4745, %v4741
    %v5190 = vpack.c.b16 %v4750, %v4746
    %v5191 = vpack.c.b16 %v4751, %v4747
    %v5192 = vpack.c.b16 %v4752, %v4748
    %v5193 = vpack.c.b16 %v4753, %v4749
    %v5194 = vpack.c.b16 %v4758, %v4754
    %v5195 = vpack.c.b16 %v4759, %v4755
    %v5196 = vpack.c.b16 %v4760, %v4756
    %v5197 = vpack.c.b16 %v4761, %v4757
    %v5198 = vpack.c.b16 %v4766, %v4762
    %v5199 = vpack.c.b16 %v4767, %v4763
    %v5200 = vpack.c.b16 %v4768, %v4764
    %v5201 = vpack.c.b16 %v4769, %v4765
    %v5202 = vpack.c.b16 %v4774, %v4770
    %v5203 = vpack.c.b16 %v4775, %v4771
    %v5204 = vpack.c.b16 %v4776, %v4772
    %v5205 = vpack.c.b16 %v4777, %v4773
    %v5206 = vpack.c.b16 %v4782, %v4778
    %v5207 = vpack.c.b16 %v4783, %v4779
    %v5208 = vpack.c.b16 %v4784, %v4780
    %v5209 = vpack.c.b16 %v4785, %v4781
    %v5210 = vpack.c.b16 %v4790, %v4786
    %v5211 = vpack.c.b16 %v4791, %v4787
    %v5212 = vpack.c.b16 %v4792, %v4788
    %v5213 = vpack.c.b16 %v4793, %v4789
    %v5214 = vpack.c.b16 %v4798, %v4794
    %v5215 = vpack.c.b16 %v4799, %v4795
    %v5216 = vpack.c.b16 %v4800, %v4796
    %v5217 = vpack.c.b16 %v4801, %v4797
    %v5218 = vpack.c.b16 %v4806, %v4802
    %v5219 = vpack.c.b16 %v4807, %v4803
    %v5220 = vpack.c.b16 %v4808, %v4804
    %v5221 = vpack.c.b16 %v4809, %v4805
    %v5222 = vpack.c.b16 %v4814, %v4810
    %v5223 = vpack.c.b16 %v4815, %v4811
    %v5224 = vpack.c.b16 %v4816, %v4812
    %v5225 = vpack.c.b16 %v4817, %v4813
    %v5226 = vpack.c.b16 %v4822, %v4818
    %v5227 = vpack.c.b16 %v4823, %v4819
    %v5228 = vpack.c.b16 %v4824, %v4820
    %v5229 = vpack.c.b16 %v4825, %v4821
    %v5230 = vpack.c.b16 %v4830, %v4826
    %v5231 = vpack.c.b16 %v4831, %v4827
    %v5232 = vpack.c.b16 %v4832, %v4828
    %v5233 = vpack.c.b16 %v4833, %v4829
    %v5234 = vpack.c.b16 %v4838, %v4834
    %v5235 = vpack.c.b16 %v4839, %v4835
    %v5236 = vpack.c.b16 %v4840, %v4836
    %v5237 = vpack.c.b16 %v4841, %v4837
    %v5238 = vpack.c.b16 %v4846, %v4842
    %v5239 = vpack.c.b16 %v4847, %v4843
    %v5240 = vpack.c.b16 %v4848, %v4844
    %v5241 = vpack.c.b16 %v4849, %v4845
    %v5242 = vpack.c.b16 %v4854, %v4850
    %v5243 = vpack.c.b16 %v4855, %v4851
    %v5244 = vpack.c.b16 %v4856, %v4852
    %v5245 = vpack.c.b16 %v4857, %v4853
    %v5246 = vpack.c.b16 %v4862, %v4858
    %v5247 = vpack.c.b16 %v4863, %v4859
    %v5248 = vpack.c.b16 %v4864, %v4860
    %v5249 = vpack.c.b16 %v4865, %v4861
    %5634 = vmatprep.subr.bf16.mxu0 %v4867
    %5635 = vmatpush1.bf16.msra.mxu0 %v4866
    %5636 = vmatprep.subr.bf16.mxu0 %v4871
    %5637 = vmatpush1.bf16.msra.mxu0 %v4870
    %5638 = vmatprep.subr.bf16.mxu0 %v4875
    %5639 = vmatpush1.bf16.msra.mxu0 %v4874
    %5640 = vmatprep.subr.bf16.mxu0 %v4879
    %5641 = vmatpush1.bf16.msra.mxu0 %v4878
    %5642 = vmatprep.subr.bf16.mxu0 %v4883
    %5643 = vmatpush1.bf16.msra.mxu0 %v4882
    %5644 = vmatprep.subr.bf16.mxu0 %v4887
    %5645 = vmatpush1.bf16.msra.mxu0 %v4886
    %5646 = vmatprep.subr.bf16.mxu0 %v4891
    %5647 = vmatpush1.bf16.msra.mxu0 %v4890
    %5648 = vmatprep.subr.bf16.mxu0 %v4895
    %5649 = vmatpush1.bf16.msra.mxu0 %v4894
    %5650 = vmatprep.subr.bf16.mxu0 %v4899
    %5651 = vmatpush1.bf16.msra.mxu0 %v4898
    %5652 = vmatprep.subr.bf16.mxu0 %v4903
    %5653 = vmatpush1.bf16.msra.mxu0 %v4902
    %5654 = vmatprep.subr.bf16.mxu0 %v4907
    %5655 = vmatpush1.bf16.msra.mxu0 %v4906
    %5656 = vmatprep.subr.bf16.mxu0 %v4911
    %5657 = vmatpush1.bf16.msra.mxu0 %v4910
    %5658 = vmatprep.subr.bf16.mxu0 %v4915
    %5659 = vmatpush1.bf16.msra.mxu0 %v4914
    %5660 = vmatprep.subr.bf16.mxu0 %v4919
    %5661 = vmatpush1.bf16.msra.mxu0 %v4918
    %5662 = vmatprep.subr.bf16.mxu0 %v4923
    %5663 = vmatpush1.bf16.msra.mxu0 %v4922
    %5664 = vmatprep.subr.bf16.mxu0 %v4927
    %5665 = vmatpush1.bf16.msra.mxu0 %v4926
    %5666 = vmatprep.mubr.bf16.mxu0 %v3319
    %5667 = vmatmul.mubr.bf16.gmra.mrb[0].mxu0 %v3318
    %v5668 = vpop.f32.mrb[0].mxu0
    %v5669 = vadd.f32 0.0, %v5668
    %v5670 = vpop.f32.mrb[0].mxu0
    %v5671 = vadd.f32 0.0, %v5670
    %v5672 = vpop.f32.mrb[0].mxu0
    %v5673 = vpop.f32.mrb[0].mxu0
    %5674 = vdwg.mxu0
    %5675 = vmatprep.subr.bf16.mxu0 %v4931
    %5676 = vmatpush1.bf16.msra.mxu0 %v4930
    %5677 = vmatprep.subr.bf16.mxu0 %v4935
    %5678 = vmatpush1.bf16.msra.mxu0 %v4934
    %5679 = vmatprep.subr.bf16.mxu0 %v4939
    %5680 = vmatpush1.bf16.msra.mxu0 %v4938
    %5681 = vmatprep.subr.bf16.mxu0 %v4943
    %5682 = vmatpush1.bf16.msra.mxu0 %v4942
    %5683 = vmatprep.subr.bf16.mxu0 %v4947
    %5684 = vmatpush1.bf16.msra.mxu0 %v4946
    %5685 = vmatprep.subr.bf16.mxu0 %v4951
    %5686 = vmatpush1.bf16.msra.mxu0 %v4950
    %5687 = vmatprep.subr.bf16.mxu0 %v4955
    %5688 = vmatpush1.bf16.msra.mxu0 %v4954
    %5689 = vmatprep.subr.bf16.mxu0 %v4959
    %5690 = vmatpush1.bf16.msra.mxu0 %v4958
    %5691 = vmatprep.subr.bf16.mxu0 %v4963
    %5692 = vmatpush1.bf16.msra.mxu0 %v4962
    %5693 = vmatprep.subr.bf16.mxu0 %v4967
    %5694 = vmatpush1.bf16.msra.mxu0 %v4966
    %5695 = vmatprep.subr.bf16.mxu0 %v4971
    %5696 = vmatpush1.bf16.msra.mxu0 %v4970
    %5697 = vmatprep.subr.bf16.mxu0 %v4975
    %5698 = vmatpush1.bf16.msra.mxu0 %v4974
    %5699 = vmatprep.subr.bf16.mxu0 %v4979
    %5700 = vmatpush1.bf16.msra.mxu0 %v4978
    %5701 = vmatprep.subr.bf16.mxu0 %v4983
    %5702 = vmatpush1.bf16.msra.mxu0 %v4982
    %5703 = vmatprep.subr.bf16.mxu0 %v4987
    %5704 = vmatpush1.bf16.msra.mxu0 %v4986
    %5705 = vmatprep.subr.bf16.mxu0 %v4991
    %5706 = vmatpush1.bf16.msra.mxu0 %v4990
    %5707 = vmatprep.mubr.bf16.mxu0 %v3321
    %5708 = vmatmul.mubr.bf16.gmra.mrb[0].mxu0 %v3320
    %v5709 = vpop.f32.mrb[0].mxu0
    %v5710 = vadd.f32 %v5669, %v5709
    %v5711 = vpop.f32.mrb[0].mxu0
    %v5712 = vadd.f32 %v5671, %v5711
    %v5713 = vpop.f32.mrb[0].mxu0
    %v5714 = vpop.f32.mrb[0].mxu0
    %5715 = vdwg.mxu0
    %5716 = vmatprep.subr.bf16.mxu0 %v4995
    %5717 = vmatpush1.bf16.msra.mxu0 %v4994
    %5718 = vmatprep.subr.bf16.mxu0 %v4999
    %5719 = vmatpush1.bf16.msra.mxu0 %v4998
    %5720 = vmatprep.subr.bf16.mxu0 %v5003
    %5721 = vmatpush1.bf16.msra.mxu0 %v5002
    %5722 = vmatprep.subr.bf16.mxu0 %v5007
    %5723 = vmatpush1.bf16.msra.mxu0 %v5006
    %5724 = vmatprep.subr.bf16.mxu0 %v5011
    %5725 = vmatpush1.bf16.msra.mxu0 %v5010
    %5726 = vmatprep.subr.bf16.mxu0 %v5015
    %5727 = vmatpush1.bf16.msra.mxu0 %v5014
    %5728 = vmatprep.subr.bf16.mxu0 %v5019
    %5729 = vmatpush1.bf16.msra.mxu0 %v5018
    %5730 = vmatprep.subr.bf16.mxu0 %v5023
    %5731 = vmatpush1.bf16.msra.mxu0 %v5022
    %5732 = vmatprep.subr.bf16.mxu0 %v5027
    %5733 = vmatpush1.bf16.msra.mxu0 %v5026
    %5734 = vmatprep.subr.bf16.mxu0 %v5031
    %5735 = vmatpush1.bf16.msra.mxu0 %v5030
    %5736 = vmatprep.subr.bf16.mxu0 %v5035
    %5737 = vmatpush1.bf16.msra.mxu0 %v5034
    %5738 = vmatprep.subr.bf16.mxu0 %v5039
    %5739 = vmatpush1.bf16.msra.mxu0 %v5038
    %5740 = vmatprep.subr.bf16.mxu0 %v5043
    %5741 = vmatpush1.bf16.msra.mxu0 %v5042
    %5742 = vmatprep.subr.bf16.mxu0 %v5047
    %5743 = vmatpush1.bf16.msra.mxu0 %v5046
    %5744 = vmatprep.subr.bf16.mxu0 %v5051
    %5745 = vmatpush1.bf16.msra.mxu0 %v5050
    %5746 = vmatprep.subr.bf16.mxu0 %v5055
    %5747 = vmatpush1.bf16.msra.mxu0 %v5054
    %5748 = vmatprep.mubr.bf16.mxu0 %v3323
    %5749 = vmatmul.mubr.bf16.gmra.mrb[0].mxu0 %v3322
    %v5750 = vpop.f32.mrb[0].mxu0
    %v5751 = vadd.f32 %v5710, %v5750
    %v5752 = vpop.f32.mrb[0].mxu0
    %v5753 = vadd.f32 %v5712, %v5752
    %v5754 = vpop.f32.mrb[0].mxu0
    %v5755 = vpop.f32.mrb[0].mxu0
    %5756 = vdwg.mxu0
    %5757 = vmatprep.subr.bf16.mxu0 %v5059
    %5758 = vmatpush1.bf16.msra.mxu0 %v5058
    %5759 = vmatprep.subr.bf16.mxu0 %v5063
    %5760 = vmatpush1.bf16.msra.mxu0 %v5062
    %5761 = vmatprep.subr.bf16.mxu0 %v5067
    %5762 = vmatpush1.bf16.msra.mxu0 %v5066
    %5763 = vmatprep.subr.bf16.mxu0 %v5071
    %5764 = vmatpush1.bf16.msra.mxu0 %v5070
    %5765 = vmatprep.subr.bf16.mxu0 %v5075
    %5766 = vmatpush1.bf16.msra.mxu0 %v5074
    %5767 = vmatprep.subr.bf16.mxu0 %v5079
    %5768 = vmatpush1.bf16.msra.mxu0 %v5078
    %5769 = vmatprep.subr.bf16.mxu0 %v5083
    %5770 = vmatpush1.bf16.msra.mxu0 %v5082
    %5771 = vmatprep.subr.bf16.mxu0 %v5087
    %5772 = vmatpush1.bf16.msra.mxu0 %v5086
    %5773 = vmatprep.subr.bf16.mxu0 %v5091
    %5774 = vmatpush1.bf16.msra.mxu0 %v5090
    %5775 = vmatprep.subr.bf16.mxu0 %v5095
    %5776 = vmatpush1.bf16.msra.mxu0 %v5094
    %5777 = vmatprep.subr.bf16.mxu0 %v5099
    %5778 = vmatpush1.bf16.msra.mxu0 %v5098
    %5779 = vmatprep.subr.bf16.mxu0 %v5103
    %5780 = vmatpush1.bf16.msra.mxu0 %v5102
    %5781 = vmatprep.subr.bf16.mxu0 %v5107
    %5782 = vmatpush1.bf16.msra.mxu0 %v5106
    %5783 = vmatprep.subr.bf16.mxu0 %v5111
    %5784 = vmatpush1.bf16.msra.mxu0 %v5110
    %5785 = vmatprep.subr.bf16.mxu0 %v5115
    %5786 = vmatpush1.bf16.msra.mxu0 %v5114
    %5787 = vmatprep.subr.bf16.mxu0 %v5119
    %5788 = vmatpush1.bf16.msra.mxu0 %v5118
    %5789 = vmatprep.mubr.bf16.mxu0 %v3325
    %5790 = vmatmul.mubr.bf16.gmra.mrb[0].mxu0 %v3324
    %v5791 = vpop.f32.mrb[0].mxu0
    %v5792 = vadd.f32 %v5751, %v5791
    %v5793 = vpop.f32.mrb[0].mxu0
    %v5794 = vadd.f32 %v5753, %v5793
    %v5795 = vpop.f32.mrb[0].mxu0
    %v5796 = vpop.f32.mrb[0].mxu0
    %5797 = vdwg.mxu0
    %5798 = vmatprep.subr.bf16.mxu0 %v5123
    %5799 = vmatpush1.bf16.msra.mxu0 %v5122
    %5800 = vmatprep.subr.bf16.mxu0 %v5127
    %5801 = vmatpush1.bf16.msra.mxu0 %v5126
    %5802 = vmatprep.subr.bf16.mxu0 %v5131
    %5803 = vmatpush1.bf16.msra.mxu0 %v5130
    %5804 = vmatprep.subr.bf16.mxu0 %v5135
    %5805 = vmatpush1.bf16.msra.mxu0 %v5134
    %5806 = vmatprep.subr.bf16.mxu0 %v5139
    %5807 = vmatpush1.bf16.msra.mxu0 %v5138
    %5808 = vmatprep.subr.bf16.mxu0 %v5143
    %5809 = vmatpush1.bf16.msra.mxu0 %v5142
    %5810 = vmatprep.subr.bf16.mxu0 %v5147
    %5811 = vmatpush1.bf16.msra.mxu0 %v5146
    %5812 = vmatprep.subr.bf16.mxu0 %v5151
    %5813 = vmatpush1.bf16.msra.mxu0 %v5150
    %5814 = vmatprep.subr.bf16.mxu0 %v5155
    %5815 = vmatpush1.bf16.msra.mxu0 %v5154
    %5816 = vmatprep.subr.bf16.mxu0 %v5159
    %5817 = vmatpush1.bf16.msra.mxu0 %v5158
    %5818 = vmatprep.subr.bf16.mxu0 %v5163
    %5819 = vmatpush1.bf16.msra.mxu0 %v5162
    %5820 = vmatprep.subr.bf16.mxu0 %v5167
    %5821 = vmatpush1.bf16.msra.mxu0 %v5166
    %5822 = vmatprep.subr.bf16.mxu0 %v5171
    %5823 = vmatpush1.bf16.msra.mxu0 %v5170
    %5824 = vmatprep.subr.bf16.mxu0 %v5175
    %5825 = vmatpush1.bf16.msra.mxu0 %v5174
    %5826 = vmatprep.subr.bf16.mxu0 %v5179
    %5827 = vmatpush1.bf16.msra.mxu0 %v5178
    %5828 = vmatprep.subr.bf16.mxu0 %v5183
    %5829 = vmatpush1.bf16.msra.mxu0 %v5182
    %5830 = vmatprep.mubr.bf16.mxu0 %v3327
    %5831 = vmatmul.mubr.bf16.gmra.mrb[0].mxu0 %v3326
    %v5832 = vpop.f32.mrb[0].mxu0
    %v5833 = vadd.f32 %v5792, %v5832
    %v5834 = vpop.f32.mrb[0].mxu0
    %v5835 = vadd.f32 %v5794, %v5834
    %v5836 = vpop.f32.mrb[0].mxu0
    %v5837 = vpop.f32.mrb[0].mxu0
    %5838 = vdwg.mxu0
    %5839 = vmatprep.subr.bf16.mxu0 %v5187
    %5840 = vmatpush1.bf16.msra.mxu0 %v5186
    %5841 = vmatprep.subr.bf16.mxu0 %v5191
    %5842 = vmatpush1.bf16.msra.mxu0 %v5190
    %5843 = vmatprep.subr.bf16.mxu0 %v5195
    %5844 = vmatpush1.bf16.msra.mxu0 %v5194
    %5845 = vmatprep.subr.bf16.mxu0 %v5199
    %5846 = vmatpush1.bf16.msra.mxu0 %v5198
    %5847 = vmatprep.subr.bf16.mxu0 %v5203
    %5848 = vmatpush1.bf16.msra.mxu0 %v5202
    %5849 = vmatprep.subr.bf16.mxu0 %v5207
    %5850 = vmatpush1.bf16.msra.mxu0 %v5206
    %5851 = vmatprep.subr.bf16.mxu0 %v5211
    %5852 = vmatpush1.bf16.msra.mxu0 %v5210
    %5853 = vmatprep.subr.bf16.mxu0 %v5215
    %5854 = vmatpush1.bf16.msra.mxu0 %v5214
    %5855 = vmatprep.subr.bf16.mxu0 %v5219
    %5856 = vmatpush1.bf16.msra.mxu0 %v5218
    %5857 = vmatprep.subr.bf16.mxu0 %v5223
    %5858 = vmatpush1.bf16.msra.mxu0 %v5222
    %5859 = vmatprep.subr.bf16.mxu0 %v5227
    %5860 = vmatpush1.bf16.msra.mxu0 %v5226
    %5861 = vmatprep.subr.bf16.mxu0 %v5231
    %5862 = vmatpush1.bf16.msra.mxu0 %v5230
    %5863 = vmatprep.subr.bf16.mxu0 %v5235
    %5864 = vmatpush1.bf16.msra.mxu0 %v5234
    %5865 = vmatprep.subr.bf16.mxu0 %v5239
    %5866 = vmatpush1.bf16.msra.mxu0 %v5238
    %5867 = vmatprep.subr.bf16.mxu0 %v5243
    %5868 = vmatpush1.bf16.msra.mxu0 %v5242
    %5869 = vmatprep.subr.bf16.mxu0 %v5247
    %5870 = vmatpush1.bf16.msra.mxu0 %v5246
    %5871 = vmatprep.mubr.bf16.mxu0 %v3329
    %5872 = vmatmul.mubr.bf16.gmra.mrb[0].mxu0 %v3328
    %v5873 = vpop.f32.mrb[0].mxu0
    %v5874 = vadd.f32 %v5833, %v5873
    %v5875 = vpop.f32.mrb[0].mxu0
    %v5876 = vadd.f32 %v5835, %v5875
    %v5877 = vpop.f32.mrb[0].mxu0
    %v5878 = vpop.f32.mrb[0].mxu0
    %5879 = vdwg.mxu0
    %5880 = vmatprep.subr.bf16.mxu0 %v4869
    %5881 = vmatpush1.bf16.msra.mxu0 %v4868
    %5882 = vmatprep.subr.bf16.mxu0 %v4873
    %5883 = vmatpush1.bf16.msra.mxu0 %v4872
    %5884 = vmatprep.subr.bf16.mxu0 %v4877
    %5885 = vmatpush1.bf16.msra.mxu0 %v4876
    %5886 = vmatprep.subr.bf16.mxu0 %v4881
    %5887 = vmatpush1.bf16.msra.mxu0 %v4880
    %5888 = vmatprep.subr.bf16.mxu0 %v4885
    %5889 = vmatpush1.bf16.msra.mxu0 %v4884
    %5890 = vmatprep.subr.bf16.mxu0 %v4889
    %5891 = vmatpush1.bf16.msra.mxu0 %v4888
    %5892 = vmatprep.subr.bf16.mxu0 %v4893
    %5893 = vmatpush1.bf16.msra.mxu0 %v4892
    %5894 = vmatprep.subr.bf16.mxu0 %v4897
    %5895 = vmatpush1.bf16.msra.mxu0 %v4896
    %5896 = vmatprep.subr.bf16.mxu0 %v4901
    %5897 = vmatpush1.bf16.msra.mxu0 %v4900
    %5898 = vmatprep.subr.bf16.mxu0 %v4905
    %5899 = vmatpush1.bf16.msra.mxu0 %v4904
    %5900 = vmatprep.subr.bf16.mxu0 %v4909
    %5901 = vmatpush1.bf16.msra.mxu0 %v4908
    %5902 = vmatprep.subr.bf16.mxu0 %v4913
    %5903 = vmatpush1.bf16.msra.mxu0 %v4912
    %5904 = vmatprep.subr.bf16.mxu0 %v4917
    %5905 = vmatpush1.bf16.msra.mxu0 %v4916
    %5906 = vmatprep.subr.bf16.mxu0 %v4921
    %5907 = vmatpush1.bf16.msra.mxu0 %v4920
    %5908 = vmatprep.subr.bf16.mxu0 %v4925
    %5909 = vmatpush1.bf16.msra.mxu0 %v4924
    %5910 = vmatprep.subr.bf16.mxu0 %v4929
    %5911 = vmatpush1.bf16.msra.mxu0 %v4928
    %5912 = vmatprep.mubr.bf16.mxu0 %v3319
    %5913 = vmatmul.mubr.bf16.gmra.mrb[0].mxu0 %v3318
    %v5914 = vpop.f32.mrb[0].mxu0
    %v5915 = vadd.f32 0.0, %v5914
    %v5916 = vpop.f32.mrb[0].mxu0
    %v5917 = vadd.f32 0.0, %v5916
    %v5918 = vpop.f32.mrb[0].mxu0
    %v5919 = vpop.f32.mrb[0].mxu0
    %5920 = vdwg.mxu0
    %5921 = vmatprep.subr.bf16.mxu0 %v4933
    %5922 = vmatpush1.bf16.msra.mxu0 %v4932
    %5923 = vmatprep.subr.bf16.mxu0 %v4937
    %5924 = vmatpush1.bf16.msra.mxu0 %v4936
    %5925 = vmatprep.subr.bf16.mxu0 %v4941
    %5926 = vmatpush1.bf16.msra.mxu0 %v4940
    %5927 = vmatprep.subr.bf16.mxu0 %v4945
    %5928 = vmatpush1.bf16.msra.mxu0 %v4944
    %5929 = vmatprep.subr.bf16.mxu0 %v4949
    %5930 = vmatpush1.bf16.msra.mxu0 %v4948
    %5931 = vmatprep.subr.bf16.mxu0 %v4953
    %5932 = vmatpush1.bf16.msra.mxu0 %v4952
    %5933 = vmatprep.subr.bf16.mxu0 %v4957
    %5934 = vmatpush1.bf16.msra.mxu0 %v4956
    %5935 = vmatprep.subr.bf16.mxu0 %v4961
    %5936 = vmatpush1.bf16.msra.mxu0 %v4960
    %5937 = vmatprep.subr.bf16.mxu0 %v4965
    %5938 = vmatpush1.bf16.msra.mxu0 %v4964
    %5939 = vmatprep.subr.bf16.mxu0 %v4969
    %5940 = vmatpush1.bf16.msra.mxu0 %v4968
    %5941 = vmatprep.subr.bf16.mxu0 %v4973
    %5942 = vmatpush1.bf16.msra.mxu0 %v4972
    %5943 = vmatprep.subr.bf16.mxu0 %v4977
    %5944 = vmatpush1.bf16.msra.mxu0 %v4976
    %5945 = vmatprep.subr.bf16.mxu0 %v4981
    %5946 = vmatpush1.bf16.msra.mxu0 %v4980
    %5947 = vmatprep.subr.bf16.mxu0 %v4985
    %5948 = vmatpush1.bf16.msra.mxu0 %v4984
    %5949 = vmatprep.subr.bf16.mxu0 %v4989
    %5950 = vmatpush1.bf16.msra.mxu0 %v4988
    %5951 = vmatprep.subr.bf16.mxu0 %v4993
    %5952 = vmatpush1.bf16.msra.mxu0 %v4992
    %5953 = vmatprep.mubr.bf16.mxu0 %v3321
    %5954 = vmatmul.mubr.bf16.gmra.mrb[0].mxu0 %v3320
    %v5955 = vpop.f32.mrb[0].mxu0
    %v5956 = vadd.f32 %v5915, %v5955
    %v5957 = vpop.f32.mrb[0].mxu0
    %v5958 = vadd.f32 %v5917, %v5957
    %v5959 = vpop.f32.mrb[0].mxu0
    %v5960 = vpop.f32.mrb[0].mxu0
    %5961 = vdwg.mxu0
    %5962 = vmatprep.subr.bf16.mxu0 %v4997
    %5963 = vmatpush1.bf16.msra.mxu0 %v4996
    %5964 = vmatprep.subr.bf16.mxu0 %v5001
    %5965 = vmatpush1.bf16.msra.mxu0 %v5000
    %5966 = vmatprep.subr.bf16.mxu0 %v5005
    %5967 = vmatpush1.bf16.msra.mxu0 %v5004
    %5968 = vmatprep.subr.bf16.mxu0 %v5009
    %5969 = vmatpush1.bf16.msra.mxu0 %v5008
    %5970 = vmatprep.subr.bf16.mxu0 %v5013
    %5971 = vmatpush1.bf16.msra.mxu0 %v5012
    %5972 = vmatprep.subr.bf16.mxu0 %v5017
    %5973 = vmatpush1.bf16.msra.mxu0 %v5016
    %5974 = vmatprep.subr.bf16.mxu0 %v5021
    %5975 = vmatpush1.bf16.msra.mxu0 %v5020
    %5976 = vmatprep.subr.bf16.mxu0 %v5025
    %5977 = vmatpush1.bf16.msra.mxu0 %v5024
    %5978 = vmatprep.subr.bf16.mxu0 %v5029
    %5979 = vmatpush1.bf16.msra.mxu0 %v5028
    %5980 = vmatprep.subr.bf16.mxu0 %v5033
    %5981 = vmatpush1.bf16.msra.mxu0 %v5032
    %5982 = vmatprep.subr.bf16.mxu0 %v5037
    %5983 = vmatpush1.bf16.msra.mxu0 %v5036
    %5984 = vmatprep.subr.bf16.mxu0 %v5041
    %5985 = vmatpush1.bf16.msra.mxu0 %v5040
    %5986 = vmatprep.subr.bf16.mxu0 %v5045
    %5987 = vmatpush1.bf16.msra.mxu0 %v5044
    %5988 = vmatprep.subr.bf16.mxu0 %v5049
    %5989 = vmatpush1.bf16.msra.mxu0 %v5048
    %5990 = vmatprep.subr.bf16.mxu0 %v5053
    %5991 = vmatpush1.bf16.msra.mxu0 %v5052
    %5992 = vmatprep.subr.bf16.mxu0 %v5057
    %5993 = vmatpush1.bf16.msra.mxu0 %v5056
    %5994 = vmatprep.mubr.bf16.mxu0 %v3323
    %5995 = vmatmul.mubr.bf16.gmra.mrb[0].mxu0 %v3322
    %v5996 = vpop.f32.mrb[0].mxu0
    %v5997 = vadd.f32 %v5956, %v5996
    %v5998 = vpop.f32.mrb[0].mxu0
    %v5999 = vadd.f32 %v5958, %v5998
    %v6000 = vpop.f32.mrb[0].mxu0
    %v6001 = vpop.f32.mrb[0].mxu0
    %6002 = vdwg.mxu0
    %6003 = vmatprep.subr.bf16.mxu0 %v5061
    %6004 = vmatpush1.bf16.msra.mxu0 %v5060
    %6005 = vmatprep.subr.bf16.mxu0 %v5065
    %6006 = vmatpush1.bf16.msra.mxu0 %v5064
    %6007 = vmatprep.subr.bf16.mxu0 %v5069
    %6008 = vmatpush1.bf16.msra.mxu0 %v5068
    %6009 = vmatprep.subr.bf16.mxu0 %v5073
    %6010 = vmatpush1.bf16.msra.mxu0 %v5072
    %6011 = vmatprep.subr.bf16.mxu0 %v5077
    %6012 = vmatpush1.bf16.msra.mxu0 %v5076
    %6013 = vmatprep.subr.bf16.mxu0 %v5081
    %6014 = vmatpush1.bf16.msra.mxu0 %v5080
    %6015 = vmatprep.subr.bf16.mxu0 %v5085
    %6016 = vmatpush1.bf16.msra.mxu0 %v5084
    %6017 = vmatprep.subr.bf16.mxu0 %v5089
    %6018 = vmatpush1.bf16.msra.mxu0 %v5088
    %6019 = vmatprep.subr.bf16.mxu0 %v5093
    %6020 = vmatpush1.bf16.msra.mxu0 %v5092
    %6021 = vmatprep.subr.bf16.mxu0 %v5097
    %6022 = vmatpush1.bf16.msra.mxu0 %v5096
    %6023 = vmatprep.subr.bf16.mxu0 %v5101
    %6024 = vmatpush1.bf16.msra.mxu0 %v5100
    %6025 = vmatprep.subr.bf16.mxu0 %v5105
    %6026 = vmatpush1.bf16.msra.mxu0 %v5104
    %6027 = vmatprep.subr.bf16.mxu0 %v5109
    %6028 = vmatpush1.bf16.msra.mxu0 %v5108
    %6029 = vmatprep.subr.bf16.mxu0 %v5113
    %6030 = vmatpush1.bf16.msra.mxu0 %v5112
    %6031 = vmatprep.subr.bf16.mxu0 %v5117
    %6032 = vmatpush1.bf16.msra.mxu0 %v5116
    %6033 = vmatprep.subr.bf16.mxu0 %v5121
    %6034 = vmatpush1.bf16.msra.mxu0 %v5120
    %6035 = vmatprep.mubr.bf16.mxu0 %v3325
    %6036 = vmatmul.mubr.bf16.gmra.mrb[0].mxu0 %v3324
    %v6037 = vpop.f32.mrb[0].mxu0
    %v6038 = vadd.f32 %v5997, %v6037
    %v6039 = vpop.f32.mrb[0].mxu0
    %v6040 = vadd.f32 %v5999, %v6039
    %v6041 = vpop.f32.mrb[0].mxu0
    %v6042 = vpop.f32.mrb[0].mxu0
    %6043 = vdwg.mxu0
    %6044 = vmatprep.subr.bf16.mxu0 %v5125
    %6045 = vmatpush1.bf16.msra.mxu0 %v5124
    %6046 = vmatprep.subr.bf16.mxu0 %v5129
    %6047 = vmatpush1.bf16.msra.mxu0 %v5128
    %6048 = vmatprep.subr.bf16.mxu0 %v5133
    %6049 = vmatpush1.bf16.msra.mxu0 %v5132
    %6050 = vmatprep.subr.bf16.mxu0 %v5137
    %6051 = vmatpush1.bf16.msra.mxu0 %v5136
    %6052 = vmatprep.subr.bf16.mxu0 %v5141
    %6053 = vmatpush1.bf16.msra.mxu0 %v5140
    %6054 = vmatprep.subr.bf16.mxu0 %v5145
    %6055 = vmatpush1.bf16.msra.mxu0 %v5144
    %6056 = vmatprep.subr.bf16.mxu0 %v5149
    %6057 = vmatpush1.bf16.msra.mxu0 %v5148
    %6058 = vmatprep.subr.bf16.mxu0 %v5153
    %6059 = vmatpush1.bf16.msra.mxu0 %v5152
    %6060 = vmatprep.subr.bf16.mxu0 %v5157
    %6061 = vmatpush1.bf16.msra.mxu0 %v5156
    %6062 = vmatprep.subr.bf16.mxu0 %v5161
    %6063 = vmatpush1.bf16.msra.mxu0 %v5160
    %6064 = vmatprep.subr.bf16.mxu0 %v5165
    %6065 = vmatpush1.bf16.msra.mxu0 %v5164
    %6066 = vmatprep.subr.bf16.mxu0 %v5169
    %6067 = vmatpush1.bf16.msra.mxu0 %v5168
    %6068 = vmatprep.subr.bf16.mxu0 %v5173
    %6069 = vmatpush1.bf16.msra.mxu0 %v5172
    %6070 = vmatprep.subr.bf16.mxu0 %v5177
    %6071 = vmatpush1.bf16.msra.mxu0 %v5176
    %6072 = vmatprep.subr.bf16.mxu0 %v5181
    %6073 = vmatpush1.bf16.msra.mxu0 %v5180
    %6074 = vmatprep.subr.bf16.mxu0 %v5185
    %6075 = vmatpush1.bf16.msra.mxu0 %v5184
    %6076 = vmatprep.mubr.bf16.mxu0 %v3327
    %6077 = vmatmul.mubr.bf16.gmra.mrb[0].mxu0 %v3326
    %v6078 = vpop.f32.mrb[0].mxu0
    %v6079 = vadd.f32 %v6038, %v6078
    %v6080 = vpop.f32.mrb[0].mxu0
    %v6081 = vadd.f32 %v6040, %v6080
    %v6082 = vpop.f32.mrb[0].mxu0
    %v6083 = vpop.f32.mrb[0].mxu0
    %6084 = vdwg.mxu0
    %6085 = vmatprep.subr.bf16.mxu0 %v5189
    %6086 = vmatpush1.bf16.msra.mxu0 %v5188
    %6087 = vmatprep.subr.bf16.mxu0 %v5193
    %6088 = vmatpush1.bf16.msra.mxu0 %v5192
    %6089 = vmatprep.subr.bf16.mxu0 %v5197
    %6090 = vmatpush1.bf16.msra.mxu0 %v5196
    %6091 = vmatprep.subr.bf16.mxu0 %v5201
    %6092 = vmatpush1.bf16.msra.mxu0 %v5200
    %6093 = vmatprep.subr.bf16.mxu0 %v5205
    %6094 = vmatpush1.bf16.msra.mxu0 %v5204
    %6095 = vmatprep.subr.bf16.mxu0 %v5209
    %6096 = vmatpush1.bf16.msra.mxu0 %v5208
    %6097 = vmatprep.subr.bf16.mxu0 %v5213
    %6098 = vmatpush1.bf16.msra.mxu0 %v5212
    %6099 = vmatprep.subr.bf16.mxu0 %v5217
    %6100 = vmatpush1.bf16.msra.mxu0 %v5216
    %6101 = vmatprep.subr.bf16.mxu0 %v5221
    %6102 = vmatpush1.bf16.msra.mxu0 %v5220
    %6103 = vmatprep.subr.bf16.mxu0 %v5225
    %6104 = vmatpush1.bf16.msra.mxu0 %v5224
    %6105 = vmatprep.subr.bf16.mxu0 %v5229
    %6106 = vmatpush1.bf16.msra.mxu0 %v5228
    %6107 = vmatprep.subr.bf16.mxu0 %v5233
    %6108 = vmatpush1.bf16.msra.mxu0 %v5232
    %6109 = vmatprep.subr.bf16.mxu0 %v5237
    %6110 = vmatpush1.bf16.msra.mxu0 %v5236
    %6111 = vmatprep.subr.bf16.mxu0 %v5241
    %6112 = vmatpush1.bf16.msra.mxu0 %v5240
    %6113 = vmatprep.subr.bf16.mxu0 %v5245
    %6114 = vmatpush1.bf16.msra.mxu0 %v5244
    %6115 = vmatprep.subr.bf16.mxu0 %v5249
    %6116 = vmatpush1.bf16.msra.mxu0 %v5248
    %6117 = vmatprep.mubr.bf16.mxu0 %v3329
    %6118 = vmatmul.mubr.bf16.gmra.mrb[0].mxu0 %v3328
    %v6119 = vpop.f32.mrb[0].mxu0
    %v6120 = vadd.f32 %v6079, %v6119
    %v6121 = vpop.f32.mrb[0].mxu0
    %v6122 = vadd.f32 %v6081, %v6121
    %v6123 = vpop.f32.mrb[0].mxu0
    %v6124 = vpop.f32.mrb[0].mxu0
    %6125 = vdwg.mxu0
    %v6510 = vunpack.c.l.b16 %v2934
    %v6511 = vunpack.c.h.b16 %v2934
    %v6512 = vunpack.c.l.b16 %v2935
    %v6513 = vunpack.c.h.b16 %v2935
    %v6514 = vunpack.c.l.b16 %v2936
    %v6515 = vunpack.c.h.b16 %v2936
    %v6516 = vunpack.c.l.b16 %v2937
    %v6517 = vunpack.c.h.b16 %v2937
    %v6518 = vunpack.c.l.b16 %v2938
    %v6519 = vunpack.c.h.b16 %v2938
    %v6520 = vunpack.c.l.b16 %v2939
    %v6521 = vunpack.c.h.b16 %v2939
    %v6522 = vunpack.c.l.b16 %v2940
    %v6523 = vunpack.c.h.b16 %v2940
    %v6524 = vunpack.c.l.b16 %v2941
    %v6525 = vunpack.c.h.b16 %v2941
    %v6526 = vunpack.c.l.b16 %v2942
    %v6527 = vunpack.c.h.b16 %v2942
    %v6528 = vunpack.c.l.b16 %v2943
    %v6529 = vunpack.c.h.b16 %v2943
    %v6530 = vunpack.c.l.b16 %v2944
    %v6531 = vunpack.c.h.b16 %v2944
    %v6532 = vunpack.c.l.b16 %v2945
    %v6533 = vunpack.c.h.b16 %v2945
    %v6534 = vunpack.c.l.b16 %v2946
    %v6535 = vunpack.c.h.b16 %v2946
    %v6536 = vunpack.c.l.b16 %v2947
    %v6537 = vunpack.c.h.b16 %v2947
    %v6538 = vunpack.c.l.b16 %v2948
    %v6539 = vunpack.c.h.b16 %v2948
    %v6540 = vunpack.c.l.b16 %v2949
    %v6541 = vunpack.c.h.b16 %v2949
    %v6542 = vunpack.c.l.b16 %v2950
    %v6543 = vunpack.c.h.b16 %v2950
    %v6544 = vunpack.c.l.b16 %v2951
    %v6545 = vunpack.c.h.b16 %v2951
    %v6546 = vunpack.c.l.b16 %v2952
    %v6547 = vunpack.c.h.b16 %v2952
    %v6548 = vunpack.c.l.b16 %v2953
    %v6549 = vunpack.c.h.b16 %v2953
    %v6550 = vunpack.c.l.b16 %v2954
    %v6551 = vunpack.c.h.b16 %v2954
    %v6552 = vunpack.c.l.b16 %v2955
    %v6553 = vunpack.c.h.b16 %v2955
    %v6554 = vunpack.c.l.b16 %v2956
    %v6555 = vunpack.c.h.b16 %v2956
    %v6556 = vunpack.c.l.b16 %v2957
    %v6557 = vunpack.c.h.b16 %v2957
    %v6558 = vunpack.c.l.b16 %v2958
    %v6559 = vunpack.c.h.b16 %v2958
    %v6560 = vunpack.c.l.b16 %v2959
    %v6561 = vunpack.c.h.b16 %v2959
    %v6562 = vunpack.c.l.b16 %v2960
    %v6563 = vunpack.c.h.b16 %v2960
    %v6564 = vunpack.c.l.b16 %v2961
    %v6565 = vunpack.c.h.b16 %v2961
    %v6566 = vunpack.c.l.b16 %v2962
    %v6567 = vunpack.c.h.b16 %v2962
    %v6568 = vunpack.c.l.b16 %v2963
    %v6569 = vunpack.c.h.b16 %v2963
    %v6570 = vunpack.c.l.b16 %v2964
    %v6571 = vunpack.c.h.b16 %v2964
    %v6572 = vunpack.c.l.b16 %v2965
    %v6573 = vunpack.c.h.b16 %v2965
    %v6574 = vunpack.c.l.b16 %v2966
    %v6575 = vunpack.c.h.b16 %v2966
    %v6576 = vunpack.c.l.b16 %v2967
    %v6577 = vunpack.c.h.b16 %v2967
    %v6578 = vunpack.c.l.b16 %v2968
    %v6579 = vunpack.c.h.b16 %v2968
    %v6580 = vunpack.c.l.b16 %v2969
    %v6581 = vunpack.c.h.b16 %v2969
    %v6582 = vunpack.c.l.b16 %v2970
    %v6583 = vunpack.c.h.b16 %v2970
    %v6584 = vunpack.c.l.b16 %v2971
    %v6585 = vunpack.c.h.b16 %v2971
    %v6586 = vunpack.c.l.b16 %v2972
    %v6587 = vunpack.c.h.b16 %v2972
    %v6588 = vunpack.c.l.b16 %v2973
    %v6589 = vunpack.c.h.b16 %v2973
    %v6590 = vunpack.c.l.b16 %v2974
    %v6591 = vunpack.c.h.b16 %v2974
    %v6592 = vunpack.c.l.b16 %v2975
    %v6593 = vunpack.c.h.b16 %v2975
    %v6594 = vunpack.c.l.b16 %v2976
    %v6595 = vunpack.c.h.b16 %v2976
    %v6596 = vunpack.c.l.b16 %v2977
    %v6597 = vunpack.c.h.b16 %v2977
    %v6598 = vunpack.c.l.b16 %v2978
    %v6599 = vunpack.c.h.b16 %v2978
    %v6600 = vunpack.c.l.b16 %v2979
    %v6601 = vunpack.c.h.b16 %v2979
    %v6602 = vunpack.c.l.b16 %v2980
    %v6603 = vunpack.c.h.b16 %v2980
    %v6604 = vunpack.c.l.b16 %v2981
    %v6605 = vunpack.c.h.b16 %v2981
    %v6606 = vunpack.c.l.b16 %v2982
    %v6607 = vunpack.c.h.b16 %v2982
    %v6608 = vunpack.c.l.b16 %v2983
    %v6609 = vunpack.c.h.b16 %v2983
    %v6610 = vunpack.c.l.b16 %v2984
    %v6611 = vunpack.c.h.b16 %v2984
    %v6612 = vunpack.c.l.b16 %v2985
    %v6613 = vunpack.c.h.b16 %v2985
    %v6614 = vunpack.c.l.b16 %v2986
    %v6615 = vunpack.c.h.b16 %v2986
    %v6616 = vunpack.c.l.b16 %v2987
    %v6617 = vunpack.c.h.b16 %v2987
    %v6618 = vunpack.c.l.b16 %v2988
    %v6619 = vunpack.c.h.b16 %v2988
    %v6620 = vunpack.c.l.b16 %v2989
    %v6621 = vunpack.c.h.b16 %v2989
    %v6622 = vunpack.c.l.b16 %v2990
    %v6623 = vunpack.c.h.b16 %v2990
    %v6624 = vunpack.c.l.b16 %v2991
    %v6625 = vunpack.c.h.b16 %v2991
    %v6626 = vunpack.c.l.b16 %v2992
    %v6627 = vunpack.c.h.b16 %v2992
    %v6628 = vunpack.c.l.b16 %v2993
    %v6629 = vunpack.c.h.b16 %v2993
    %v6630 = vunpack.c.l.b16 %v2994
    %v6631 = vunpack.c.h.b16 %v2994
    %v6632 = vunpack.c.l.b16 %v2995
    %v6633 = vunpack.c.h.b16 %v2995
    %v6634 = vunpack.c.l.b16 %v2996
    %v6635 = vunpack.c.h.b16 %v2996
    %v6636 = vunpack.c.l.b16 %v2997
    %v6637 = vunpack.c.h.b16 %v2997
    %v6638 = vunpack.c.l.b16 %v2998
    %v6639 = vunpack.c.h.b16 %v2998
    %v6640 = vunpack.c.l.b16 %v2999
    %v6641 = vunpack.c.h.b16 %v2999
    %v6642 = vunpack.c.l.b16 %v3000
    %v6643 = vunpack.c.h.b16 %v3000
    %v6644 = vunpack.c.l.b16 %v3001
    %v6645 = vunpack.c.h.b16 %v3001
    %v6646 = vunpack.c.l.b16 %v3002
    %v6647 = vunpack.c.h.b16 %v3002
    %v6648 = vunpack.c.l.b16 %v3003
    %v6649 = vunpack.c.h.b16 %v3003
    %v6650 = vunpack.c.l.b16 %v3004
    %v6651 = vunpack.c.h.b16 %v3004
    %v6652 = vunpack.c.l.b16 %v3005
    %v6653 = vunpack.c.h.b16 %v3005
    %v6654 = vunpack.c.l.b16 %v3006
    %v6655 = vunpack.c.h.b16 %v3006
    %v6656 = vunpack.c.l.b16 %v3007
    %v6657 = vunpack.c.h.b16 %v3007
    %v6658 = vunpack.c.l.b16 %v3008
    %v6659 = vunpack.c.h.b16 %v3008
    %v6660 = vunpack.c.l.b16 %v3009
    %v6661 = vunpack.c.h.b16 %v3009
    %v6662 = vunpack.c.l.b16 %v3010
    %v6663 = vunpack.c.h.b16 %v3010
    %v6664 = vunpack.c.l.b16 %v3011
    %v6665 = vunpack.c.h.b16 %v3011
    %v6666 = vunpack.c.l.b16 %v3012
    %v6667 = vunpack.c.h.b16 %v3012
    %v6668 = vunpack.c.l.b16 %v3013
    %v6669 = vunpack.c.h.b16 %v3013
    %v6670 = vunpack.c.l.b16 %v3014
    %v6671 = vunpack.c.h.b16 %v3014
    %v6672 = vunpack.c.l.b16 %v3015
    %v6673 = vunpack.c.h.b16 %v3015
    %v6674 = vunpack.c.l.b16 %v3016
    %v6675 = vunpack.c.h.b16 %v3016
    %v6676 = vunpack.c.l.b16 %v3017
    %v6677 = vunpack.c.h.b16 %v3017
    %v6678 = vunpack.c.l.b16 %v3018
    %v6679 = vunpack.c.h.b16 %v3018
    %v6680 = vunpack.c.l.b16 %v3019
    %v6681 = vunpack.c.h.b16 %v3019
    %v6682 = vunpack.c.l.b16 %v3020
    %v6683 = vunpack.c.h.b16 %v3020
    %v6684 = vunpack.c.l.b16 %v3021
    %v6685 = vunpack.c.h.b16 %v3021
    %v6686 = vunpack.c.l.b16 %v3022
    %v6687 = vunpack.c.h.b16 %v3022
    %v6688 = vunpack.c.l.b16 %v3023
    %v6689 = vunpack.c.h.b16 %v3023
    %v6690 = vunpack.c.l.b16 %v3024
    %v6691 = vunpack.c.h.b16 %v3024
    %v6692 = vunpack.c.l.b16 %v3025
    %v6693 = vunpack.c.h.b16 %v3025
    %v6694 = vunpack.c.l.b16 %v3026
    %v6695 = vunpack.c.h.b16 %v3026
    %v6696 = vunpack.c.l.b16 %v3027
    %v6697 = vunpack.c.h.b16 %v3027
    %v6698 = vunpack.c.l.b16 %v3028
    %v6699 = vunpack.c.h.b16 %v3028
    %v6700 = vunpack.c.l.b16 %v3029
    %v6701 = vunpack.c.h.b16 %v3029
    %v6702 = vunpack.c.l.b16 %v3030
    %v6703 = vunpack.c.h.b16 %v3030
    %v6704 = vunpack.c.l.b16 %v3031
    %v6705 = vunpack.c.h.b16 %v3031
    %v6706 = vunpack.c.l.b16 %v3032
    %v6707 = vunpack.c.h.b16 %v3032
    %v6708 = vunpack.c.l.b16 %v3033
    %v6709 = vunpack.c.h.b16 %v3033
    %v6710 = vunpack.c.l.b16 %v3034
    %v6711 = vunpack.c.h.b16 %v3034
    %v6712 = vunpack.c.l.b16 %v3035
    %v6713 = vunpack.c.h.b16 %v3035
    %v6714 = vunpack.c.l.b16 %v3036
    %v6715 = vunpack.c.h.b16 %v3036
    %v6716 = vunpack.c.l.b16 %v3037
    %v6717 = vunpack.c.h.b16 %v3037
    %v6718 = vunpack.c.l.b16 %v3038
    %v6719 = vunpack.c.h.b16 %v3038
    %v6720 = vunpack.c.l.b16 %v3039
    %v6721 = vunpack.c.h.b16 %v3039
    %v6722 = vunpack.c.l.b16 %v3040
    %v6723 = vunpack.c.h.b16 %v3040
    %v6724 = vunpack.c.l.b16 %v3041
    %v6725 = vunpack.c.h.b16 %v3041
    %v6726 = vunpack.c.l.b16 %v3042
    %v6727 = vunpack.c.h.b16 %v3042
    %v6728 = vunpack.c.l.b16 %v3043
    %v6729 = vunpack.c.h.b16 %v3043
    %v6730 = vunpack.c.l.b16 %v3044
    %v6731 = vunpack.c.h.b16 %v3044
    %v6732 = vunpack.c.l.b16 %v3045
    %v6733 = vunpack.c.h.b16 %v3045
    %v6734 = vunpack.c.l.b16 %v3046
    %v6735 = vunpack.c.h.b16 %v3046
    %v6736 = vunpack.c.l.b16 %v3047
    %v6737 = vunpack.c.h.b16 %v3047
    %v6738 = vunpack.c.l.b16 %v3048
    %v6739 = vunpack.c.h.b16 %v3048
    %v6740 = vunpack.c.l.b16 %v3049
    %v6741 = vunpack.c.h.b16 %v3049
    %v6742 = vunpack.c.l.b16 %v3050
    %v6743 = vunpack.c.h.b16 %v3050
    %v6744 = vunpack.c.l.b16 %v3051
    %v6745 = vunpack.c.h.b16 %v3051
    %v6746 = vunpack.c.l.b16 %v3052
    %v6747 = vunpack.c.h.b16 %v3052
    %v6748 = vunpack.c.l.b16 %v3053
    %v6749 = vunpack.c.h.b16 %v3053
    %v6750 = vunpack.c.l.b16 %v3054
    %v6751 = vunpack.c.h.b16 %v3054
    %v6752 = vunpack.c.l.b16 %v3055
    %v6753 = vunpack.c.h.b16 %v3055
    %v6754 = vunpack.c.l.b16 %v3056
    %v6755 = vunpack.c.h.b16 %v3056
    %v6756 = vunpack.c.l.b16 %v3057
    %v6757 = vunpack.c.h.b16 %v3057
    %v6758 = vunpack.c.l.b16 %v3058
    %v6759 = vunpack.c.h.b16 %v3058
    %v6760 = vunpack.c.l.b16 %v3059
    %v6761 = vunpack.c.h.b16 %v3059
    %v6762 = vunpack.c.l.b16 %v3060
    %v6763 = vunpack.c.h.b16 %v3060
    %v6764 = vunpack.c.l.b16 %v3061
    %v6765 = vunpack.c.h.b16 %v3061
    %v6766 = vunpack.c.l.b16 %v3062
    %v6767 = vunpack.c.h.b16 %v3062
    %v6768 = vunpack.c.l.b16 %v3063
    %v6769 = vunpack.c.h.b16 %v3063
    %v6770 = vunpack.c.l.b16 %v3064
    %v6771 = vunpack.c.h.b16 %v3064
    %v6772 = vunpack.c.l.b16 %v3065
    %v6773 = vunpack.c.h.b16 %v3065
    %v6774 = vunpack.c.l.b16 %v3066
    %v6775 = vunpack.c.h.b16 %v3066
    %v6776 = vunpack.c.l.b16 %v3067
    %v6777 = vunpack.c.h.b16 %v3067
    %v6778 = vunpack.c.l.b16 %v3068
    %v6779 = vunpack.c.h.b16 %v3068
    %v6780 = vunpack.c.l.b16 %v3069
    %v6781 = vunpack.c.h.b16 %v3069
    %v6782 = vunpack.c.l.b16 %v3070
    %v6783 = vunpack.c.h.b16 %v3070
    %v6784 = vunpack.c.l.b16 %v3071
    %v6785 = vunpack.c.h.b16 %v3071
    %v6786 = vunpack.c.l.b16 %v3072
    %v6787 = vunpack.c.h.b16 %v3072
    %v6788 = vunpack.c.l.b16 %v3073
    %v6789 = vunpack.c.h.b16 %v3073
    %v6790 = vunpack.c.l.b16 %v3074
    %v6791 = vunpack.c.h.b16 %v3074
    %v6792 = vunpack.c.l.b16 %v3075
    %v6793 = vunpack.c.h.b16 %v3075
    %v6794 = vunpack.c.l.b16 %v3076
    %v6795 = vunpack.c.h.b16 %v3076
    %v6796 = vunpack.c.l.b16 %v3077
    %v6797 = vunpack.c.h.b16 %v3077
    %v6798 = vunpack.c.l.b16 %v3078
    %v6799 = vunpack.c.h.b16 %v3078
    %v6800 = vunpack.c.l.b16 %v3079
    %v6801 = vunpack.c.h.b16 %v3079
    %v6802 = vunpack.c.l.b16 %v3080
    %v6803 = vunpack.c.h.b16 %v3080
    %v6804 = vunpack.c.l.b16 %v3081
    %v6805 = vunpack.c.h.b16 %v3081
    %v6806 = vunpack.c.l.b16 %v3082
    %v6807 = vunpack.c.h.b16 %v3082
    %v6808 = vunpack.c.l.b16 %v3083
    %v6809 = vunpack.c.h.b16 %v3083
    %v6810 = vunpack.c.l.b16 %v3084
    %v6811 = vunpack.c.h.b16 %v3084
    %v6812 = vunpack.c.l.b16 %v3085
    %v6813 = vunpack.c.h.b16 %v3085
    %v6814 = vunpack.c.l.b16 %v3086
    %v6815 = vunpack.c.h.b16 %v3086
    %v6816 = vunpack.c.l.b16 %v3087
    %v6817 = vunpack.c.h.b16 %v3087
    %v6818 = vunpack.c.l.b16 %v3088
    %v6819 = vunpack.c.h.b16 %v3088
    %v6820 = vunpack.c.l.b16 %v3089
    %v6821 = vunpack.c.h.b16 %v3089
    %v6822 = vunpack.c.l.b16 %v3090
    %v6823 = vunpack.c.h.b16 %v3090
    %v6824 = vunpack.c.l.b16 %v3091
    %v6825 = vunpack.c.h.b16 %v3091
    %v6826 = vunpack.c.l.b16 %v3092
    %v6827 = vunpack.c.h.b16 %v3092
    %v6828 = vunpack.c.l.b16 %v3093
    %v6829 = vunpack.c.h.b16 %v3093
    %v6830 = vunpack.c.l.b16 %v3094
    %v6831 = vunpack.c.h.b16 %v3094
    %v6832 = vunpack.c.l.b16 %v3095
    %v6833 = vunpack.c.h.b16 %v3095
    %v6834 = vunpack.c.l.b16 %v3096
    %v6835 = vunpack.c.h.b16 %v3096
    %v6836 = vunpack.c.l.b16 %v3097
    %v6837 = vunpack.c.h.b16 %v3097
    %v6838 = vunpack.c.l.b16 %v3098
    %v6839 = vunpack.c.h.b16 %v3098
    %v6840 = vunpack.c.l.b16 %v3099
    %v6841 = vunpack.c.h.b16 %v3099
    %v6842 = vunpack.c.l.b16 %v3100
    %v6843 = vunpack.c.h.b16 %v3100
    %v6844 = vunpack.c.l.b16 %v3101
    %v6845 = vunpack.c.h.b16 %v3101
    %v6846 = vunpack.c.l.b16 %v3102
    %v6847 = vunpack.c.h.b16 %v3102
    %v6848 = vunpack.c.l.b16 %v3103
    %v6849 = vunpack.c.h.b16 %v3103
    %v6850 = vunpack.c.l.b16 %v3104
    %v6851 = vunpack.c.h.b16 %v3104
    %v6852 = vunpack.c.l.b16 %v3105
    %v6853 = vunpack.c.h.b16 %v3105
    %v6854 = vunpack.c.l.b16 %v3106
    %v6855 = vunpack.c.h.b16 %v3106
    %v6856 = vunpack.c.l.b16 %v3107
    %v6857 = vunpack.c.h.b16 %v3107
    %v6858 = vunpack.c.l.b16 %v3108
    %v6859 = vunpack.c.h.b16 %v3108
    %v6860 = vunpack.c.l.b16 %v3109
    %v6861 = vunpack.c.h.b16 %v3109
    %v6862 = vunpack.c.l.b16 %v3110
    %v6863 = vunpack.c.h.b16 %v3110
    %v6864 = vunpack.c.l.b16 %v3111
    %v6865 = vunpack.c.h.b16 %v3111
    %v6866 = vunpack.c.l.b16 %v3112
    %v6867 = vunpack.c.h.b16 %v3112
    %v6868 = vunpack.c.l.b16 %v3113
    %v6869 = vunpack.c.h.b16 %v3113
    %v6870 = vunpack.c.l.b16 %v3114
    %v6871 = vunpack.c.h.b16 %v3114
    %v6872 = vunpack.c.l.b16 %v3115
    %v6873 = vunpack.c.h.b16 %v3115
    %v6874 = vunpack.c.l.b16 %v3116
    %v6875 = vunpack.c.h.b16 %v3116
    %v6876 = vunpack.c.l.b16 %v3117
    %v6877 = vunpack.c.h.b16 %v3117
    %v6878 = vunpack.c.l.b16 %v3118
    %v6879 = vunpack.c.h.b16 %v3118
    %v6880 = vunpack.c.l.b16 %v3119
    %v6881 = vunpack.c.h.b16 %v3119
    %v6882 = vunpack.c.l.b16 %v3120
    %v6883 = vunpack.c.h.b16 %v3120
    %v6884 = vunpack.c.l.b16 %v3121
    %v6885 = vunpack.c.h.b16 %v3121
    %v6886 = vunpack.c.l.b16 %v3122
    %v6887 = vunpack.c.h.b16 %v3122
    %v6888 = vunpack.c.l.b16 %v3123
    %v6889 = vunpack.c.h.b16 %v3123
    %v6890 = vunpack.c.l.b16 %v3124
    %v6891 = vunpack.c.h.b16 %v3124
    %v6892 = vunpack.c.l.b16 %v3125
    %v6893 = vunpack.c.h.b16 %v3125
    %v6894 = vunpack.c.l.b16 %v3126
    %v6895 = vunpack.c.h.b16 %v3126
    %v6896 = vunpack.c.l.b16 %v3127
    %v6897 = vunpack.c.h.b16 %v3127
    %v6898 = vunpack.c.l.b16 %v3128
    %v6899 = vunpack.c.h.b16 %v3128
    %v6900 = vunpack.c.l.b16 %v3129
    %v6901 = vunpack.c.h.b16 %v3129
    %v6902 = vunpack.c.l.b16 %v3130
    %v6903 = vunpack.c.h.b16 %v3130
    %v6904 = vunpack.c.l.b16 %v3131
    %v6905 = vunpack.c.h.b16 %v3131
    %v6906 = vunpack.c.l.b16 %v3132
    %v6907 = vunpack.c.h.b16 %v3132
    %v6908 = vunpack.c.l.b16 %v3133
    %v6909 = vunpack.c.h.b16 %v3133
    %v6910 = vunpack.c.l.b16 %v3134
    %v6911 = vunpack.c.h.b16 %v3134
    %v6912 = vunpack.c.l.b16 %v3135
    %v6913 = vunpack.c.h.b16 %v3135
    %v6914 = vunpack.c.l.b16 %v3136
    %v6915 = vunpack.c.h.b16 %v3136
    %v6916 = vunpack.c.l.b16 %v3137
    %v6917 = vunpack.c.h.b16 %v3137
    %v6918 = vunpack.c.l.b16 %v3138
    %v6919 = vunpack.c.h.b16 %v3138
    %v6920 = vunpack.c.l.b16 %v3139
    %v6921 = vunpack.c.h.b16 %v3139
    %v6922 = vunpack.c.l.b16 %v3140
    %v6923 = vunpack.c.h.b16 %v3140
    %v6924 = vunpack.c.l.b16 %v3141
    %v6925 = vunpack.c.h.b16 %v3141
    %v6926 = vunpack.c.l.b16 %v3142
    %v6927 = vunpack.c.h.b16 %v3142
    %v6928 = vunpack.c.l.b16 %v3143
    %v6929 = vunpack.c.h.b16 %v3143
    %v6930 = vunpack.c.l.b16 %v3144
    %v6931 = vunpack.c.h.b16 %v3144
    %v6932 = vunpack.c.l.b16 %v3145
    %v6933 = vunpack.c.h.b16 %v3145
    %v6934 = vunpack.c.l.b16 %v3146
    %v6935 = vunpack.c.h.b16 %v3146
    %v6936 = vunpack.c.l.b16 %v3147
    %v6937 = vunpack.c.h.b16 %v3147
    %v6938 = vunpack.c.l.b16 %v3148
    %v6939 = vunpack.c.h.b16 %v3148
    %v6940 = vunpack.c.l.b16 %v3149
    %v6941 = vunpack.c.h.b16 %v3149
    %v6942 = vunpack.c.l.b16 %v3150
    %v6943 = vunpack.c.h.b16 %v3150
    %v6944 = vunpack.c.l.b16 %v3151
    %v6945 = vunpack.c.h.b16 %v3151
    %v6946 = vunpack.c.l.b16 %v3152
    %v6947 = vunpack.c.h.b16 %v3152
    %v6948 = vunpack.c.l.b16 %v3153
    %v6949 = vunpack.c.h.b16 %v3153
    %v6950 = vunpack.c.l.b16 %v3154
    %v6951 = vunpack.c.h.b16 %v3154
    %v6952 = vunpack.c.l.b16 %v3155
    %v6953 = vunpack.c.h.b16 %v3155
    %v6954 = vunpack.c.l.b16 %v3156
    %v6955 = vunpack.c.h.b16 %v3156
    %v6956 = vunpack.c.l.b16 %v3157
    %v6957 = vunpack.c.h.b16 %v3157
    %v6958 = vunpack.c.l.b16 %v3158
    %v6959 = vunpack.c.h.b16 %v3158
    %v6960 = vunpack.c.l.b16 %v3159
    %v6961 = vunpack.c.h.b16 %v3159
    %v6962 = vunpack.c.l.b16 %v3160
    %v6963 = vunpack.c.h.b16 %v3160
    %v6964 = vunpack.c.l.b16 %v3161
    %v6965 = vunpack.c.h.b16 %v3161
    %v6966 = vunpack.c.l.b16 %v3162
    %v6967 = vunpack.c.h.b16 %v3162
    %v6968 = vunpack.c.l.b16 %v3163
    %v6969 = vunpack.c.h.b16 %v3163
    %v6970 = vunpack.c.l.b16 %v3164
    %v6971 = vunpack.c.h.b16 %v3164
    %v6972 = vunpack.c.l.b16 %v3165
    %v6973 = vunpack.c.h.b16 %v3165
    %v6974 = vunpack.c.l.b16 %v3166
    %v6975 = vunpack.c.h.b16 %v3166
    %v6976 = vunpack.c.l.b16 %v3167
    %v6977 = vunpack.c.h.b16 %v3167
    %v6978 = vunpack.c.l.b16 %v3168
    %v6979 = vunpack.c.h.b16 %v3168
    %v6980 = vunpack.c.l.b16 %v3169
    %v6981 = vunpack.c.h.b16 %v3169
    %v6982 = vunpack.c.l.b16 %v3170
    %v6983 = vunpack.c.h.b16 %v3170
    %v6984 = vunpack.c.l.b16 %v3171
    %v6985 = vunpack.c.h.b16 %v3171
    %v6986 = vunpack.c.l.b16 %v3172
    %v6987 = vunpack.c.h.b16 %v3172
    %v6988 = vunpack.c.l.b16 %v3173
    %v6989 = vunpack.c.h.b16 %v3173
    %v6990 = vunpack.c.l.b16 %v3174
    %v6991 = vunpack.c.h.b16 %v3174
    %v6992 = vunpack.c.l.b16 %v3175
    %v6993 = vunpack.c.h.b16 %v3175
    %v6994 = vunpack.c.l.b16 %v3176
    %v6995 = vunpack.c.h.b16 %v3176
    %v6996 = vunpack.c.l.b16 %v3177
    %v6997 = vunpack.c.h.b16 %v3177
    %v6998 = vunpack.c.l.b16 %v3178
    %v6999 = vunpack.c.h.b16 %v3178
    %v7000 = vunpack.c.l.b16 %v3179
    %v7001 = vunpack.c.h.b16 %v3179
    %v7002 = vunpack.c.l.b16 %v3180
    %v7003 = vunpack.c.h.b16 %v3180
    %v7004 = vunpack.c.l.b16 %v3181
    %v7005 = vunpack.c.h.b16 %v3181
    %v7006 = vunpack.c.l.b16 %v3182
    %v7007 = vunpack.c.h.b16 %v3182
    %v7008 = vunpack.c.l.b16 %v3183
    %v7009 = vunpack.c.h.b16 %v3183
    %v7010 = vunpack.c.l.b16 %v3184
    %v7011 = vunpack.c.h.b16 %v3184
    %v7012 = vunpack.c.l.b16 %v3185
    %v7013 = vunpack.c.h.b16 %v3185
    %v7014 = vunpack.c.l.b16 %v3186
    %v7015 = vunpack.c.h.b16 %v3186
    %v7016 = vunpack.c.l.b16 %v3187
    %v7017 = vunpack.c.h.b16 %v3187
    %v7018 = vunpack.c.l.b16 %v3188
    %v7019 = vunpack.c.h.b16 %v3188
    %v7020 = vunpack.c.l.b16 %v3189
    %v7021 = vunpack.c.h.b16 %v3189
    %v7022 = vunpack.c.l.b16 %v3190
    %v7023 = vunpack.c.h.b16 %v3190
    %v7024 = vunpack.c.l.b16 %v3191
    %v7025 = vunpack.c.h.b16 %v3191
    %v7026 = vunpack.c.l.b16 %v3192
    %v7027 = vunpack.c.h.b16 %v3192
    %v7028 = vunpack.c.l.b16 %v3193
    %v7029 = vunpack.c.h.b16 %v3193
    %v7030 = vunpack.c.l.b16 %v3194
    %v7031 = vunpack.c.h.b16 %v3194
    %v7032 = vunpack.c.l.b16 %v3195
    %v7033 = vunpack.c.h.b16 %v3195
    %v7034 = vunpack.c.l.b16 %v3196
    %v7035 = vunpack.c.h.b16 %v3196
    %v7036 = vunpack.c.l.b16 %v3197
    %v7037 = vunpack.c.h.b16 %v3197
    %v7038 = vunpack.c.l.b16 %v3198
    %v7039 = vunpack.c.h.b16 %v3198
    %v7040 = vunpack.c.l.b16 %v3199
    %v7041 = vunpack.c.h.b16 %v3199
    %v7042 = vunpack.c.l.b16 %v3200
    %v7043 = vunpack.c.h.b16 %v3200
    %v7044 = vunpack.c.l.b16 %v3201
    %v7045 = vunpack.c.h.b16 %v3201
    %v7046 = vunpack.c.l.b16 %v3202
    %v7047 = vunpack.c.h.b16 %v3202
    %v7048 = vunpack.c.l.b16 %v3203
    %v7049 = vunpack.c.h.b16 %v3203
    %v7050 = vunpack.c.l.b16 %v3204
    %v7051 = vunpack.c.h.b16 %v3204
    %v7052 = vunpack.c.l.b16 %v3205
    %v7053 = vunpack.c.h.b16 %v3205
    %v7054 = vunpack.c.l.b16 %v3206
    %v7055 = vunpack.c.h.b16 %v3206
    %v7056 = vunpack.c.l.b16 %v3207
    %v7057 = vunpack.c.h.b16 %v3207
    %v7058 = vunpack.c.l.b16 %v3208
    %v7059 = vunpack.c.h.b16 %v3208
    %v7060 = vunpack.c.l.b16 %v3209
    %v7061 = vunpack.c.h.b16 %v3209
    %v7062 = vunpack.c.l.b16 %v3210
    %v7063 = vunpack.c.h.b16 %v3210
    %v7064 = vunpack.c.l.b16 %v3211
    %v7065 = vunpack.c.h.b16 %v3211
    %v7066 = vunpack.c.l.b16 %v3212
    %v7067 = vunpack.c.h.b16 %v3212
    %v7068 = vunpack.c.l.b16 %v3213
    %v7069 = vunpack.c.h.b16 %v3213
    %v7070 = vunpack.c.l.b16 %v3214
    %v7071 = vunpack.c.h.b16 %v3214
    %v7072 = vunpack.c.l.b16 %v3215
    %v7073 = vunpack.c.h.b16 %v3215
    %v7074 = vunpack.c.l.b16 %v3216
    %v7075 = vunpack.c.h.b16 %v3216
    %v7076 = vunpack.c.l.b16 %v3217
    %v7077 = vunpack.c.h.b16 %v3217
    %v7078 = vunpack.c.l.b16 %v3218
    %v7079 = vunpack.c.h.b16 %v3218
    %v7080 = vunpack.c.l.b16 %v3219
    %v7081 = vunpack.c.h.b16 %v3219
    %v7082 = vunpack.c.l.b16 %v3220
    %v7083 = vunpack.c.h.b16 %v3220
    %v7084 = vunpack.c.l.b16 %v3221
    %v7085 = vunpack.c.h.b16 %v3221
    %v7086 = vunpack.c.l.b16 %v3222
    %v7087 = vunpack.c.h.b16 %v3222
    %v7088 = vunpack.c.l.b16 %v3223
    %v7089 = vunpack.c.h.b16 %v3223
    %v7090 = vunpack.c.l.b16 %v3224
    %v7091 = vunpack.c.h.b16 %v3224
    %v7092 = vunpack.c.l.b16 %v3225
    %v7093 = vunpack.c.h.b16 %v3225
    %v7094 = vunpack.c.l.b16 %v3226
    %v7095 = vunpack.c.h.b16 %v3226
    %v7096 = vunpack.c.l.b16 %v3227
    %v7097 = vunpack.c.h.b16 %v3227
    %v7098 = vunpack.c.l.b16 %v3228
    %v7099 = vunpack.c.h.b16 %v3228
    %v7100 = vunpack.c.l.b16 %v3229
    %v7101 = vunpack.c.h.b16 %v3229
    %v7102 = vunpack.c.l.b16 %v3230
    %v7103 = vunpack.c.h.b16 %v3230
    %v7104 = vunpack.c.l.b16 %v3231
    %v7105 = vunpack.c.h.b16 %v3231
    %v7106 = vunpack.c.l.b16 %v3232
    %v7107 = vunpack.c.h.b16 %v3232
    %v7108 = vunpack.c.l.b16 %v3233
    %v7109 = vunpack.c.h.b16 %v3233
    %v7110 = vunpack.c.l.b16 %v3234
    %v7111 = vunpack.c.h.b16 %v3234
    %v7112 = vunpack.c.l.b16 %v3235
    %v7113 = vunpack.c.h.b16 %v3235
    %v7114 = vunpack.c.l.b16 %v3236
    %v7115 = vunpack.c.h.b16 %v3236
    %v7116 = vunpack.c.l.b16 %v3237
    %v7117 = vunpack.c.h.b16 %v3237
    %v7118 = vunpack.c.l.b16 %v3238
    %v7119 = vunpack.c.h.b16 %v3238
    %v7120 = vunpack.c.l.b16 %v3239
    %v7121 = vunpack.c.h.b16 %v3239
    %v7122 = vunpack.c.l.b16 %v3240
    %v7123 = vunpack.c.h.b16 %v3240
    %v7124 = vunpack.c.l.b16 %v3241
    %v7125 = vunpack.c.h.b16 %v3241
    %v7126 = vunpack.c.l.b16 %v3242
    %v7127 = vunpack.c.h.b16 %v3242
    %v7128 = vunpack.c.l.b16 %v3243
    %v7129 = vunpack.c.h.b16 %v3243
    %v7130 = vunpack.c.l.b16 %v3244
    %v7131 = vunpack.c.h.b16 %v3244
    %v7132 = vunpack.c.l.b16 %v3245
    %v7133 = vunpack.c.h.b16 %v3245
    %v7134 = vunpack.c.l.b16 %v3246
    %v7135 = vunpack.c.h.b16 %v3246
    %v7136 = vunpack.c.l.b16 %v3247
    %v7137 = vunpack.c.h.b16 %v3247
    %v7138 = vunpack.c.l.b16 %v3248
    %v7139 = vunpack.c.h.b16 %v3248
    %v7140 = vunpack.c.l.b16 %v3249
    %v7141 = vunpack.c.h.b16 %v3249
    %v7142 = vunpack.c.l.b16 %v3250
    %v7143 = vunpack.c.h.b16 %v3250
    %v7144 = vunpack.c.l.b16 %v3251
    %v7145 = vunpack.c.h.b16 %v3251
    %v7146 = vunpack.c.l.b16 %v3252
    %v7147 = vunpack.c.h.b16 %v3252
    %v7148 = vunpack.c.l.b16 %v3253
    %v7149 = vunpack.c.h.b16 %v3253
    %v7150 = vunpack.c.l.b16 %v3254
    %v7151 = vunpack.c.h.b16 %v3254
    %v7152 = vunpack.c.l.b16 %v3255
    %v7153 = vunpack.c.h.b16 %v3255
    %v7154 = vunpack.c.l.b16 %v3256
    %v7155 = vunpack.c.h.b16 %v3256
    %v7156 = vunpack.c.l.b16 %v3257
    %v7157 = vunpack.c.h.b16 %v3257
    %v7158 = vunpack.c.l.b16 %v3258
    %v7159 = vunpack.c.h.b16 %v3258
    %v7160 = vunpack.c.l.b16 %v3259
    %v7161 = vunpack.c.h.b16 %v3259
    %v7162 = vunpack.c.l.b16 %v3260
    %v7163 = vunpack.c.h.b16 %v3260
    %v7164 = vunpack.c.l.b16 %v3261
    %v7165 = vunpack.c.h.b16 %v3261
    %v7166 = vunpack.c.l.b16 %v3262
    %v7167 = vunpack.c.h.b16 %v3262
    %v7168 = vunpack.c.l.b16 %v3263
    %v7169 = vunpack.c.h.b16 %v3263
    %v7170 = vunpack.c.l.b16 %v3264
    %v7171 = vunpack.c.h.b16 %v3264
    %v7172 = vunpack.c.l.b16 %v3265
    %v7173 = vunpack.c.h.b16 %v3265
    %v7174 = vunpack.c.l.b16 %v3266
    %v7175 = vunpack.c.h.b16 %v3266
    %v7176 = vunpack.c.l.b16 %v3267
    %v7177 = vunpack.c.h.b16 %v3267
    %v7178 = vunpack.c.l.b16 %v3268
    %v7179 = vunpack.c.h.b16 %v3268
    %v7180 = vunpack.c.l.b16 %v3269
    %v7181 = vunpack.c.h.b16 %v3269
    %v7182 = vunpack.c.l.b16 %v3270
    %v7183 = vunpack.c.h.b16 %v3270
    %v7184 = vunpack.c.l.b16 %v3271
    %v7185 = vunpack.c.h.b16 %v3271
    %v7186 = vunpack.c.l.b16 %v3272
    %v7187 = vunpack.c.h.b16 %v3272
    %v7188 = vunpack.c.l.b16 %v3273
    %v7189 = vunpack.c.h.b16 %v3273
    %v7190 = vunpack.c.l.b16 %v3274
    %v7191 = vunpack.c.h.b16 %v3274
    %v7192 = vunpack.c.l.b16 %v3275
    %v7193 = vunpack.c.h.b16 %v3275
    %v7194 = vunpack.c.l.b16 %v3276
    %v7195 = vunpack.c.h.b16 %v3276
    %v7196 = vunpack.c.l.b16 %v3277
    %v7197 = vunpack.c.h.b16 %v3277
    %v7198 = vunpack.c.l.b16 %v3278
    %v7199 = vunpack.c.h.b16 %v3278
    %v7200 = vunpack.c.l.b16 %v3279
    %v7201 = vunpack.c.h.b16 %v3279
    %v7202 = vunpack.c.l.b16 %v3280
    %v7203 = vunpack.c.h.b16 %v3280
    %v7204 = vunpack.c.l.b16 %v3281
    %v7205 = vunpack.c.h.b16 %v3281
    %v7206 = vunpack.c.l.b16 %v3282
    %v7207 = vunpack.c.h.b16 %v3282
    %v7208 = vunpack.c.l.b16 %v3283
    %v7209 = vunpack.c.h.b16 %v3283
    %v7210 = vunpack.c.l.b16 %v3284
    %v7211 = vunpack.c.h.b16 %v3284
    %v7212 = vunpack.c.l.b16 %v3285
    %v7213 = vunpack.c.h.b16 %v3285
    %v7214 = vunpack.c.l.b16 %v3286
    %v7215 = vunpack.c.h.b16 %v3286
    %v7216 = vunpack.c.l.b16 %v3287
    %v7217 = vunpack.c.h.b16 %v3287
    %v7218 = vunpack.c.l.b16 %v3288
    %v7219 = vunpack.c.h.b16 %v3288
    %v7220 = vunpack.c.l.b16 %v3289
    %v7221 = vunpack.c.h.b16 %v3289
    %v7222 = vunpack.c.l.b16 %v3290
    %v7223 = vunpack.c.h.b16 %v3290
    %v7224 = vunpack.c.l.b16 %v3291
    %v7225 = vunpack.c.h.b16 %v3291
    %v7226 = vunpack.c.l.b16 %v3292
    %v7227 = vunpack.c.h.b16 %v3292
    %v7228 = vunpack.c.l.b16 %v3293
    %v7229 = vunpack.c.h.b16 %v3293
    %v7230 = vunpack.c.l.b16 %v3294
    %v7231 = vunpack.c.h.b16 %v3294
    %v7232 = vunpack.c.l.b16 %v3295
    %v7233 = vunpack.c.h.b16 %v3295
    %v7234 = vunpack.c.l.b16 %v3296
    %v7235 = vunpack.c.h.b16 %v3296
    %v7236 = vunpack.c.l.b16 %v3297
    %v7237 = vunpack.c.h.b16 %v3297
    %v7238 = vunpack.c.l.b16 %v3298
    %v7239 = vunpack.c.h.b16 %v3298
    %v7240 = vunpack.c.l.b16 %v3299
    %v7241 = vunpack.c.h.b16 %v3299
    %v7242 = vunpack.c.l.b16 %v3300
    %v7243 = vunpack.c.h.b16 %v3300
    %v7244 = vunpack.c.l.b16 %v3301
    %v7245 = vunpack.c.h.b16 %v3301
    %v7246 = vunpack.c.l.b16 %v3302
    %v7247 = vunpack.c.h.b16 %v3302
    %v7248 = vunpack.c.l.b16 %v3303
    %v7249 = vunpack.c.h.b16 %v3303
    %v7250 = vunpack.c.l.b16 %v3304
    %v7251 = vunpack.c.h.b16 %v3304
    %v7252 = vunpack.c.l.b16 %v3305
    %v7253 = vunpack.c.h.b16 %v3305
    %v7254 = vunpack.c.l.b16 %v3306
    %v7255 = vunpack.c.h.b16 %v3306
    %v7256 = vunpack.c.l.b16 %v3307
    %v7257 = vunpack.c.h.b16 %v3307
    %v7258 = vunpack.c.l.b16 %v3308
    %v7259 = vunpack.c.h.b16 %v3308
    %v7260 = vunpack.c.l.b16 %v3309
    %v7261 = vunpack.c.h.b16 %v3309
    %v7262 = vunpack.c.l.b16 %v3310
    %v7263 = vunpack.c.h.b16 %v3310
    %v7264 = vunpack.c.l.b16 %v3311
    %v7265 = vunpack.c.h.b16 %v3311
    %v7266 = vunpack.c.l.b16 %v3312
    %v7267 = vunpack.c.h.b16 %v3312
    %v7268 = vunpack.c.l.b16 %v3313
    %v7269 = vunpack.c.h.b16 %v3313
    %v7270 = vunpack.c.l.b16 %v3314
    %v7271 = vunpack.c.h.b16 %v3314
    %v7272 = vunpack.c.l.b16 %v3315
    %v7273 = vunpack.c.h.b16 %v3315
    %v7274 = vunpack.c.l.b16 %v3316
    %v7275 = vunpack.c.h.b16 %v3316
    %v7276 = vunpack.c.l.b16 %v3317
    %v7277 = vunpack.c.h.b16 %v3317
    %v7278 = vpack.c.b16 %v6514, %v6510
    %v7279 = vpack.c.b16 %v6515, %v6511
    %v7280 = vpack.c.b16 %v6516, %v6512
    %v7281 = vpack.c.b16 %v6517, %v6513
    %v7282 = vpack.c.b16 %v6522, %v6518
    %v7283 = vpack.c.b16 %v6523, %v6519
    %v7284 = vpack.c.b16 %v6524, %v6520
    %v7285 = vpack.c.b16 %v6525, %v6521
    %v7286 = vpack.c.b16 %v6530, %v6526
    %v7287 = vpack.c.b16 %v6531, %v6527
    %v7288 = vpack.c.b16 %v6532, %v6528
    %v7289 = vpack.c.b16 %v6533, %v6529
    %v7290 = vpack.c.b16 %v6538, %v6534
    %v7291 = vpack.c.b16 %v6539, %v6535
    %v7292 = vpack.c.b16 %v6540, %v6536
    %v7293 = vpack.c.b16 %v6541, %v6537
    %v7294 = vpack.c.b16 %v6546, %v6542
    %v7295 = vpack.c.b16 %v6547, %v6543
    %v7296 = vpack.c.b16 %v6548, %v6544
    %v7297 = vpack.c.b16 %v6549, %v6545
    %v7298 = vpack.c.b16 %v6554, %v6550
    %v7299 = vpack.c.b16 %v6555, %v6551
    %v7300 = vpack.c.b16 %v6556, %v6552
    %v7301 = vpack.c.b16 %v6557, %v6553
    %v7302 = vpack.c.b16 %v6562, %v6558
    %v7303 = vpack.c.b16 %v6563, %v6559
    %v7304 = vpack.c.b16 %v6564, %v6560
    %v7305 = vpack.c.b16 %v6565, %v6561
    %v7306 = vpack.c.b16 %v6570, %v6566
    %v7307 = vpack.c.b16 %v6571, %v6567
    %v7308 = vpack.c.b16 %v6572, %v6568
    %v7309 = vpack.c.b16 %v6573, %v6569
    %v7310 = vpack.c.b16 %v6578, %v6574
    %v7311 = vpack.c.b16 %v6579, %v6575
    %v7312 = vpack.c.b16 %v6580, %v6576
    %v7313 = vpack.c.b16 %v6581, %v6577
    %v7314 = vpack.c.b16 %v6586, %v6582
    %v7315 = vpack.c.b16 %v6587, %v6583
    %v7316 = vpack.c.b16 %v6588, %v6584
    %v7317 = vpack.c.b16 %v6589, %v6585
    %v7318 = vpack.c.b16 %v6594, %v6590
    %v7319 = vpack.c.b16 %v6595, %v6591
    %v7320 = vpack.c.b16 %v6596, %v6592
    %v7321 = vpack.c.b16 %v6597, %v6593
    %v7322 = vpack.c.b16 %v6602, %v6598
    %v7323 = vpack.c.b16 %v6603, %v6599
    %v7324 = vpack.c.b16 %v6604, %v6600
    %v7325 = vpack.c.b16 %v6605, %v6601
    %v7326 = vpack.c.b16 %v6610, %v6606
    %v7327 = vpack.c.b16 %v6611, %v6607
    %v7328 = vpack.c.b16 %v6612, %v6608
    %v7329 = vpack.c.b16 %v6613, %v6609
    %v7330 = vpack.c.b16 %v6618, %v6614
    %v7331 = vpack.c.b16 %v6619, %v6615
    %v7332 = vpack.c.b16 %v6620, %v6616
    %v7333 = vpack.c.b16 %v6621, %v6617
    %v7334 = vpack.c.b16 %v6626, %v6622
    %v7335 = vpack.c.b16 %v6627, %v6623
    %v7336 = vpack.c.b16 %v6628, %v6624
    %v7337 = vpack.c.b16 %v6629, %v6625
    %v7338 = vpack.c.b16 %v6634, %v6630
    %v7339 = vpack.c.b16 %v6635, %v6631
    %v7340 = vpack.c.b16 %v6636, %v6632
    %v7341 = vpack.c.b16 %v6637, %v6633
    %v7342 = vpack.c.b16 %v6642, %v6638
    %v7343 = vpack.c.b16 %v6643, %v6639
    %v7344 = vpack.c.b16 %v6644, %v6640
    %v7345 = vpack.c.b16 %v6645, %v6641
    %v7346 = vpack.c.b16 %v6650, %v6646
    %v7347 = vpack.c.b16 %v6651, %v6647
    %v7348 = vpack.c.b16 %v6652, %v6648
    %v7349 = vpack.c.b16 %v6653, %v6649
    %v7350 = vpack.c.b16 %v6658, %v6654
    %v7351 = vpack.c.b16 %v6659, %v6655
    %v7352 = vpack.c.b16 %v6660, %v6656
    %v7353 = vpack.c.b16 %v6661, %v6657
    %v7354 = vpack.c.b16 %v6666, %v6662
    %v7355 = vpack.c.b16 %v6667, %v6663
    %v7356 = vpack.c.b16 %v6668, %v6664
    %v7357 = vpack.c.b16 %v6669, %v6665
    %v7358 = vpack.c.b16 %v6674, %v6670
    %v7359 = vpack.c.b16 %v6675, %v6671
    %v7360 = vpack.c.b16 %v6676, %v6672
    %v7361 = vpack.c.b16 %v6677, %v6673
    %v7362 = vpack.c.b16 %v6682, %v6678
    %v7363 = vpack.c.b16 %v6683, %v6679
    %v7364 = vpack.c.b16 %v6684, %v6680
    %v7365 = vpack.c.b16 %v6685, %v6681
    %v7366 = vpack.c.b16 %v6690, %v6686
    %v7367 = vpack.c.b16 %v6691, %v6687
    %v7368 = vpack.c.b16 %v6692, %v6688
    %v7369 = vpack.c.b16 %v6693, %v6689
    %v7370 = vpack.c.b16 %v6698, %v6694
    %v7371 = vpack.c.b16 %v6699, %v6695
    %v7372 = vpack.c.b16 %v6700, %v6696
    %v7373 = vpack.c.b16 %v6701, %v6697
    %v7374 = vpack.c.b16 %v6706, %v6702
    %v7375 = vpack.c.b16 %v6707, %v6703
    %v7376 = vpack.c.b16 %v6708, %v6704
    %v7377 = vpack.c.b16 %v6709, %v6705
    %v7378 = vpack.c.b16 %v6714, %v6710
    %v7379 = vpack.c.b16 %v6715, %v6711
    %v7380 = vpack.c.b16 %v6716, %v6712
    %v7381 = vpack.c.b16 %v6717, %v6713
    %v7382 = vpack.c.b16 %v6722, %v6718
    %v7383 = vpack.c.b16 %v6723, %v6719
    %v7384 = vpack.c.b16 %v6724, %v6720
    %v7385 = vpack.c.b16 %v6725, %v6721
    %v7386 = vpack.c.b16 %v6730, %v6726
    %v7387 = vpack.c.b16 %v6731, %v6727
    %v7388 = vpack.c.b16 %v6732, %v6728
    %v7389 = vpack.c.b16 %v6733, %v6729
    %v7390 = vpack.c.b16 %v6738, %v6734
    %v7391 = vpack.c.b16 %v6739, %v6735
    %v7392 = vpack.c.b16 %v6740, %v6736
    %v7393 = vpack.c.b16 %v6741, %v6737
    %v7394 = vpack.c.b16 %v6746, %v6742
    %v7395 = vpack.c.b16 %v6747, %v6743
    %v7396 = vpack.c.b16 %v6748, %v6744
    %v7397 = vpack.c.b16 %v6749, %v6745
    %v7398 = vpack.c.b16 %v6754, %v6750
    %v7399 = vpack.c.b16 %v6755, %v6751
    %v7400 = vpack.c.b16 %v6756, %v6752
    %v7401 = vpack.c.b16 %v6757, %v6753
    %v7402 = vpack.c.b16 %v6762, %v6758
    %v7403 = vpack.c.b16 %v6763, %v6759
    %v7404 = vpack.c.b16 %v6764, %v6760
    %v7405 = vpack.c.b16 %v6765, %v6761
    %v7406 = vpack.c.b16 %v6770, %v6766
    %v7407 = vpack.c.b16 %v6771, %v6767
    %v7408 = vpack.c.b16 %v6772, %v6768
    %v7409 = vpack.c.b16 %v6773, %v6769
    %v7410 = vpack.c.b16 %v6778, %v6774
    %v7411 = vpack.c.b16 %v6779, %v6775
    %v7412 = vpack.c.b16 %v6780, %v6776
    %v7413 = vpack.c.b16 %v6781, %v6777
    %v7414 = vpack.c.b16 %v6786, %v6782
    %v7415 = vpack.c.b16 %v6787, %v6783
    %v7416 = vpack.c.b16 %v6788, %v6784
    %v7417 = vpack.c.b16 %v6789, %v6785
    %v7418 = vpack.c.b16 %v6794, %v6790
    %v7419 = vpack.c.b16 %v6795, %v6791
    %v7420 = vpack.c.b16 %v6796, %v6792
    %v7421 = vpack.c.b16 %v6797, %v6793
    %v7422 = vpack.c.b16 %v6802, %v6798
    %v7423 = vpack.c.b16 %v6803, %v6799
    %v7424 = vpack.c.b16 %v6804, %v6800
    %v7425 = vpack.c.b16 %v6805, %v6801
    %v7426 = vpack.c.b16 %v6810, %v6806
    %v7427 = vpack.c.b16 %v6811, %v6807
    %v7428 = vpack.c.b16 %v6812, %v6808
    %v7429 = vpack.c.b16 %v6813, %v6809
    %v7430 = vpack.c.b16 %v6818, %v6814
    %v7431 = vpack.c.b16 %v6819, %v6815
    %v7432 = vpack.c.b16 %v6820, %v6816
    %v7433 = vpack.c.b16 %v6821, %v6817
    %v7434 = vpack.c.b16 %v6826, %v6822
    %v7435 = vpack.c.b16 %v6827, %v6823
    %v7436 = vpack.c.b16 %v6828, %v6824
    %v7437 = vpack.c.b16 %v6829, %v6825
    %v7438 = vpack.c.b16 %v6834, %v6830
    %v7439 = vpack.c.b16 %v6835, %v6831
    %v7440 = vpack.c.b16 %v6836, %v6832
    %v7441 = vpack.c.b16 %v6837, %v6833
    %v7442 = vpack.c.b16 %v6842, %v6838
    %v7443 = vpack.c.b16 %v6843, %v6839
    %v7444 = vpack.c.b16 %v6844, %v6840
    %v7445 = vpack.c.b16 %v6845, %v6841
    %v7446 = vpack.c.b16 %v6850, %v6846
    %v7447 = vpack.c.b16 %v6851, %v6847
    %v7448 = vpack.c.b16 %v6852, %v6848
    %v7449 = vpack.c.b16 %v6853, %v6849
    %v7450 = vpack.c.b16 %v6858, %v6854
    %v7451 = vpack.c.b16 %v6859, %v6855
    %v7452 = vpack.c.b16 %v6860, %v6856
    %v7453 = vpack.c.b16 %v6861, %v6857
    %v7454 = vpack.c.b16 %v6866, %v6862
    %v7455 = vpack.c.b16 %v6867, %v6863
    %v7456 = vpack.c.b16 %v6868, %v6864
    %v7457 = vpack.c.b16 %v6869, %v6865
    %v7458 = vpack.c.b16 %v6874, %v6870
    %v7459 = vpack.c.b16 %v6875, %v6871
    %v7460 = vpack.c.b16 %v6876, %v6872
    %v7461 = vpack.c.b16 %v6877, %v6873
    %v7462 = vpack.c.b16 %v6882, %v6878
    %v7463 = vpack.c.b16 %v6883, %v6879
    %v7464 = vpack.c.b16 %v6884, %v6880
    %v7465 = vpack.c.b16 %v6885, %v6881
    %v7466 = vpack.c.b16 %v6890, %v6886
    %v7467 = vpack.c.b16 %v6891, %v6887
    %v7468 = vpack.c.b16 %v6892, %v6888
    %v7469 = vpack.c.b16 %v6893, %v6889
    %v7470 = vpack.c.b16 %v6898, %v6894
    %v7471 = vpack.c.b16 %v6899, %v6895
    %v7472 = vpack.c.b16 %v6900, %v6896
    %v7473 = vpack.c.b16 %v6901, %v6897
    %v7474 = vpack.c.b16 %v6906, %v6902
    %v7475 = vpack.c.b16 %v6907, %v6903
    %v7476 = vpack.c.b16 %v6908, %v6904
    %v7477 = vpack.c.b16 %v6909, %v6905
    %v7478 = vpack.c.b16 %v6914, %v6910
    %v7479 = vpack.c.b16 %v6915, %v6911
    %v7480 = vpack.c.b16 %v6916, %v6912
    %v7481 = vpack.c.b16 %v6917, %v6913
    %v7482 = vpack.c.b16 %v6922, %v6918
    %v7483 = vpack.c.b16 %v6923, %v6919
    %v7484 = vpack.c.b16 %v6924, %v6920
    %v7485 = vpack.c.b16 %v6925, %v6921
    %v7486 = vpack.c.b16 %v6930, %v6926
    %v7487 = vpack.c.b16 %v6931, %v6927
    %v7488 = vpack.c.b16 %v6932, %v6928
    %v7489 = vpack.c.b16 %v6933, %v6929
    %v7490 = vpack.c.b16 %v6938, %v6934
    %v7491 = vpack.c.b16 %v6939, %v6935
    %v7492 = vpack.c.b16 %v6940, %v6936
    %v7493 = vpack.c.b16 %v6941, %v6937
    %v7494 = vpack.c.b16 %v6946, %v6942
    %v7495 = vpack.c.b16 %v6947, %v6943
    %v7496 = vpack.c.b16 %v6948, %v6944
    %v7497 = vpack.c.b16 %v6949, %v6945
    %v7498 = vpack.c.b16 %v6954, %v6950
    %v7499 = vpack.c.b16 %v6955, %v6951
    %v7500 = vpack.c.b16 %v6956, %v6952
    %v7501 = vpack.c.b16 %v6957, %v6953
    %v7502 = vpack.c.b16 %v6962, %v6958
    %v7503 = vpack.c.b16 %v6963, %v6959
    %v7504 = vpack.c.b16 %v6964, %v6960
    %v7505 = vpack.c.b16 %v6965, %v6961
    %v7506 = vpack.c.b16 %v6970, %v6966
    %v7507 = vpack.c.b16 %v6971, %v6967
    %v7508 = vpack.c.b16 %v6972, %v6968
    %v7509 = vpack.c.b16 %v6973, %v6969
    %v7510 = vpack.c.b16 %v6978, %v6974
    %v7511 = vpack.c.b16 %v6979, %v6975
    %v7512 = vpack.c.b16 %v6980, %v6976
    %v7513 = vpack.c.b16 %v6981, %v6977
    %v7514 = vpack.c.b16 %v6986, %v6982
    %v7515 = vpack.c.b16 %v6987, %v6983
    %v7516 = vpack.c.b16 %v6988, %v6984
    %v7517 = vpack.c.b16 %v6989, %v6985
    %v7518 = vpack.c.b16 %v6994, %v6990
    %v7519 = vpack.c.b16 %v6995, %v6991
    %v7520 = vpack.c.b16 %v6996, %v6992
    %v7521 = vpack.c.b16 %v6997, %v6993
    %v7522 = vpack.c.b16 %v7002, %v6998
    %v7523 = vpack.c.b16 %v7003, %v6999
    %v7524 = vpack.c.b16 %v7004, %v7000
    %v7525 = vpack.c.b16 %v7005, %v7001
    %v7526 = vpack.c.b16 %v7010, %v7006
    %v7527 = vpack.c.b16 %v7011, %v7007
    %v7528 = vpack.c.b16 %v7012, %v7008
    %v7529 = vpack.c.b16 %v7013, %v7009
    %v7530 = vpack.c.b16 %v7018, %v7014
    %v7531 = vpack.c.b16 %v7019, %v7015
    %v7532 = vpack.c.b16 %v7020, %v7016
    %v7533 = vpack.c.b16 %v7021, %v7017
    %v7534 = vpack.c.b16 %v7026, %v7022
    %v7535 = vpack.c.b16 %v7027, %v7023
    %v7536 = vpack.c.b16 %v7028, %v7024
    %v7537 = vpack.c.b16 %v7029, %v7025
    %v7538 = vpack.c.b16 %v7034, %v7030
    %v7539 = vpack.c.b16 %v7035, %v7031
    %v7540 = vpack.c.b16 %v7036, %v7032
    %v7541 = vpack.c.b16 %v7037, %v7033
    %v7542 = vpack.c.b16 %v7042, %v7038
    %v7543 = vpack.c.b16 %v7043, %v7039
    %v7544 = vpack.c.b16 %v7044, %v7040
    %v7545 = vpack.c.b16 %v7045, %v7041
    %v7546 = vpack.c.b16 %v7050, %v7046
    %v7547 = vpack.c.b16 %v7051, %v7047
    %v7548 = vpack.c.b16 %v7052, %v7048
    %v7549 = vpack.c.b16 %v7053, %v7049
    %v7550 = vpack.c.b16 %v7058, %v7054
    %v7551 = vpack.c.b16 %v7059, %v7055
    %v7552 = vpack.c.b16 %v7060, %v7056
    %v7553 = vpack.c.b16 %v7061, %v7057
    %v7554 = vpack.c.b16 %v7066, %v7062
    %v7555 = vpack.c.b16 %v7067, %v7063
    %v7556 = vpack.c.b16 %v7068, %v7064
    %v7557 = vpack.c.b16 %v7069, %v7065
    %v7558 = vpack.c.b16 %v7074, %v7070
    %v7559 = vpack.c.b16 %v7075, %v7071
    %v7560 = vpack.c.b16 %v7076, %v7072
    %v7561 = vpack.c.b16 %v7077, %v7073
    %v7562 = vpack.c.b16 %v7082, %v7078
    %v7563 = vpack.c.b16 %v7083, %v7079
    %v7564 = vpack.c.b16 %v7084, %v7080
    %v7565 = vpack.c.b16 %v7085, %v7081
    %v7566 = vpack.c.b16 %v7090, %v7086
    %v7567 = vpack.c.b16 %v7091, %v7087
    %v7568 = vpack.c.b16 %v7092, %v7088
    %v7569 = vpack.c.b16 %v7093, %v7089
    %v7570 = vpack.c.b16 %v7098, %v7094
    %v7571 = vpack.c.b16 %v7099, %v7095
    %v7572 = vpack.c.b16 %v7100, %v7096
    %v7573 = vpack.c.b16 %v7101, %v7097
    %v7574 = vpack.c.b16 %v7106, %v7102
    %v7575 = vpack.c.b16 %v7107, %v7103
    %v7576 = vpack.c.b16 %v7108, %v7104
    %v7577 = vpack.c.b16 %v7109, %v7105
    %v7578 = vpack.c.b16 %v7114, %v7110
    %v7579 = vpack.c.b16 %v7115, %v7111
    %v7580 = vpack.c.b16 %v7116, %v7112
    %v7581 = vpack.c.b16 %v7117, %v7113
    %v7582 = vpack.c.b16 %v7122, %v7118
    %v7583 = vpack.c.b16 %v7123, %v7119
    %v7584 = vpack.c.b16 %v7124, %v7120
    %v7585 = vpack.c.b16 %v7125, %v7121
    %v7586 = vpack.c.b16 %v7130, %v7126
    %v7587 = vpack.c.b16 %v7131, %v7127
    %v7588 = vpack.c.b16 %v7132, %v7128
    %v7589 = vpack.c.b16 %v7133, %v7129
    %v7590 = vpack.c.b16 %v7138, %v7134
    %v7591 = vpack.c.b16 %v7139, %v7135
    %v7592 = vpack.c.b16 %v7140, %v7136
    %v7593 = vpack.c.b16 %v7141, %v7137
    %v7594 = vpack.c.b16 %v7146, %v7142
    %v7595 = vpack.c.b16 %v7147, %v7143
    %v7596 = vpack.c.b16 %v7148, %v7144
    %v7597 = vpack.c.b16 %v7149, %v7145
    %v7598 = vpack.c.b16 %v7154, %v7150
    %v7599 = vpack.c.b16 %v7155, %v7151
    %v7600 = vpack.c.b16 %v7156, %v7152
    %v7601 = vpack.c.b16 %v7157, %v7153
    %v7602 = vpack.c.b16 %v7162, %v7158
    %v7603 = vpack.c.b16 %v7163, %v7159
    %v7604 = vpack.c.b16 %v7164, %v7160
    %v7605 = vpack.c.b16 %v7165, %v7161
    %v7606 = vpack.c.b16 %v7170, %v7166
    %v7607 = vpack.c.b16 %v7171, %v7167
    %v7608 = vpack.c.b16 %v7172, %v7168
    %v7609 = vpack.c.b16 %v7173, %v7169
    %v7610 = vpack.c.b16 %v7178, %v7174
    %v7611 = vpack.c.b16 %v7179, %v7175
    %v7612 = vpack.c.b16 %v7180, %v7176
    %v7613 = vpack.c.b16 %v7181, %v7177
    %v7614 = vpack.c.b16 %v7186, %v7182
    %v7615 = vpack.c.b16 %v7187, %v7183
    %v7616 = vpack.c.b16 %v7188, %v7184
    %v7617 = vpack.c.b16 %v7189, %v7185
    %v7618 = vpack.c.b16 %v7194, %v7190
    %v7619 = vpack.c.b16 %v7195, %v7191
    %v7620 = vpack.c.b16 %v7196, %v7192
    %v7621 = vpack.c.b16 %v7197, %v7193
    %v7622 = vpack.c.b16 %v7202, %v7198
    %v7623 = vpack.c.b16 %v7203, %v7199
    %v7624 = vpack.c.b16 %v7204, %v7200
    %v7625 = vpack.c.b16 %v7205, %v7201
    %v7626 = vpack.c.b16 %v7210, %v7206
    %v7627 = vpack.c.b16 %v7211, %v7207
    %v7628 = vpack.c.b16 %v7212, %v7208
    %v7629 = vpack.c.b16 %v7213, %v7209
    %v7630 = vpack.c.b16 %v7218, %v7214
    %v7631 = vpack.c.b16 %v7219, %v7215
    %v7632 = vpack.c.b16 %v7220, %v7216
    %v7633 = vpack.c.b16 %v7221, %v7217
    %v7634 = vpack.c.b16 %v7226, %v7222
    %v7635 = vpack.c.b16 %v7227, %v7223
    %v7636 = vpack.c.b16 %v7228, %v7224
    %v7637 = vpack.c.b16 %v7229, %v7225
    %v7638 = vpack.c.b16 %v7234, %v7230
    %v7639 = vpack.c.b16 %v7235, %v7231
    %v7640 = vpack.c.b16 %v7236, %v7232
    %v7641 = vpack.c.b16 %v7237, %v7233
    %v7642 = vpack.c.b16 %v7242, %v7238
    %v7643 = vpack.c.b16 %v7243, %v7239
    %v7644 = vpack.c.b16 %v7244, %v7240
    %v7645 = vpack.c.b16 %v7245, %v7241
    %v7646 = vpack.c.b16 %v7250, %v7246
    %v7647 = vpack.c.b16 %v7251, %v7247
    %v7648 = vpack.c.b16 %v7252, %v7248
    %v7649 = vpack.c.b16 %v7253, %v7249
    %v7650 = vpack.c.b16 %v7258, %v7254
    %v7651 = vpack.c.b16 %v7259, %v7255
    %v7652 = vpack.c.b16 %v7260, %v7256
    %v7653 = vpack.c.b16 %v7261, %v7257
    %v7654 = vpack.c.b16 %v7266, %v7262
    %v7655 = vpack.c.b16 %v7267, %v7263
    %v7656 = vpack.c.b16 %v7268, %v7264
    %v7657 = vpack.c.b16 %v7269, %v7265
    %v7658 = vpack.c.b16 %v7274, %v7270
    %v7659 = vpack.c.b16 %v7275, %v7271
    %v7660 = vpack.c.b16 %v7276, %v7272
    %v7661 = vpack.c.b16 %v7277, %v7273
    %8046 = vmatprep.subr.bf16.mxu0 %v7279
    %8047 = vmatpush1.bf16.msra.mxu0 %v7278
    %8048 = vmatprep.subr.bf16.mxu0 %v7283
    %8049 = vmatpush1.bf16.msra.mxu0 %v7282
    %8050 = vmatprep.subr.bf16.mxu0 %v7287
    %8051 = vmatpush1.bf16.msra.mxu0 %v7286
    %8052 = vmatprep.subr.bf16.mxu0 %v7291
    %8053 = vmatpush1.bf16.msra.mxu0 %v7290
    %8054 = vmatprep.subr.bf16.mxu0 %v7295
    %8055 = vmatpush1.bf16.msra.mxu0 %v7294
    %8056 = vmatprep.subr.bf16.mxu0 %v7299
    %8057 = vmatpush1.bf16.msra.mxu0 %v7298
    %8058 = vmatprep.subr.bf16.mxu0 %v7303
    %8059 = vmatpush1.bf16.msra.mxu0 %v7302
    %8060 = vmatprep.subr.bf16.mxu0 %v7307
    %8061 = vmatpush1.bf16.msra.mxu0 %v7306
    %8062 = vmatprep.subr.bf16.mxu0 %v7311
    %8063 = vmatpush1.bf16.msra.mxu0 %v7310
    %8064 = vmatprep.subr.bf16.mxu0 %v7315
    %8065 = vmatpush1.bf16.msra.mxu0 %v7314
    %8066 = vmatprep.subr.bf16.mxu0 %v7319
    %8067 = vmatpush1.bf16.msra.mxu0 %v7318
    %8068 = vmatprep.subr.bf16.mxu0 %v7323
    %8069 = vmatpush1.bf16.msra.mxu0 %v7322
    %8070 = vmatprep.subr.bf16.mxu0 %v7327
    %8071 = vmatpush1.bf16.msra.mxu0 %v7326
    %8072 = vmatprep.subr.bf16.mxu0 %v7331
    %8073 = vmatpush1.bf16.msra.mxu0 %v7330
    %8074 = vmatprep.subr.bf16.mxu0 %v7335
    %8075 = vmatpush1.bf16.msra.mxu0 %v7334
    %8076 = vmatprep.subr.bf16.mxu0 %v7339
    %8077 = vmatpush1.bf16.msra.mxu0 %v7338
    %8078 = vmatprep.mubr.bf16.mxu0 %v2923
    %8079 = vmatmul.mubr.bf16.gmra.mrb[0].mxu0 %v2922
    %v8080 = vpop.f32.mrb[0].mxu0
    %v8081 = vadd.f32 %v5874, %v8080
    %v8082 = vpop.f32.mrb[0].mxu0
    %v8083 = vadd.f32 %v5876, %v8082
    %v8084 = vpop.f32.mrb[0].mxu0
    %v8085 = vpop.f32.mrb[0].mxu0
    %8086 = vdwg.mxu0
    %8087 = vmatprep.subr.bf16.mxu0 %v7343
    %8088 = vmatpush1.bf16.msra.mxu0 %v7342
    %8089 = vmatprep.subr.bf16.mxu0 %v7347
    %8090 = vmatpush1.bf16.msra.mxu0 %v7346
    %8091 = vmatprep.subr.bf16.mxu0 %v7351
    %8092 = vmatpush1.bf16.msra.mxu0 %v7350
    %8093 = vmatprep.subr.bf16.mxu0 %v7355
    %8094 = vmatpush1.bf16.msra.mxu0 %v7354
    %8095 = vmatprep.subr.bf16.mxu0 %v7359
    %8096 = vmatpush1.bf16.msra.mxu0 %v7358
    %8097 = vmatprep.subr.bf16.mxu0 %v7363
    %8098 = vmatpush1.bf16.msra.mxu0 %v7362
    %8099 = vmatprep.subr.bf16.mxu0 %v7367
    %8100 = vmatpush1.bf16.msra.mxu0 %v7366
    %8101 = vmatprep.subr.bf16.mxu0 %v7371
    %8102 = vmatpush1.bf16.msra.mxu0 %v7370
    %8103 = vmatprep.subr.bf16.mxu0 %v7375
    %8104 = vmatpush1.bf16.msra.mxu0 %v7374
    %8105 = vmatprep.subr.bf16.mxu0 %v7379
    %8106 = vmatpush1.bf16.msra.mxu0 %v7378
    %8107 = vmatprep.subr.bf16.mxu0 %v7383
    %8108 = vmatpush1.bf16.msra.mxu0 %v7382
    %8109 = vmatprep.subr.bf16.mxu0 %v7387
    %8110 = vmatpush1.bf16.msra.mxu0 %v7386
    %8111 = vmatprep.subr.bf16.mxu0 %v7391
    %8112 = vmatpush1.bf16.msra.mxu0 %v7390
    %8113 = vmatprep.subr.bf16.mxu0 %v7395
    %8114 = vmatpush1.bf16.msra.mxu0 %v7394
    %8115 = vmatprep.subr.bf16.mxu0 %v7399
    %8116 = vmatpush1.bf16.msra.mxu0 %v7398
    %8117 = vmatprep.subr.bf16.mxu0 %v7403
    %8118 = vmatpush1.bf16.msra.mxu0 %v7402
    %8119 = vmatprep.mubr.bf16.mxu0 %v2925
    %8120 = vmatmul.mubr.bf16.gmra.mrb[0].mxu0 %v2924
    %v8121 = vpop.f32.mrb[0].mxu0
    %v8122 = vadd.f32 %v8081, %v8121
    %v8123 = vpop.f32.mrb[0].mxu0
    %v8124 = vadd.f32 %v8083, %v8123
    %v8125 = vpop.f32.mrb[0].mxu0
    %v8126 = vpop.f32.mrb[0].mxu0
    %8127 = vdwg.mxu0
    %8128 = vmatprep.subr.bf16.mxu0 %v7407
    %8129 = vmatpush1.bf16.msra.mxu0 %v7406
    %8130 = vmatprep.subr.bf16.mxu0 %v7411
    %8131 = vmatpush1.bf16.msra.mxu0 %v7410
    %8132 = vmatprep.subr.bf16.mxu0 %v7415
    %8133 = vmatpush1.bf16.msra.mxu0 %v7414
    %8134 = vmatprep.subr.bf16.mxu0 %v7419
    %8135 = vmatpush1.bf16.msra.mxu0 %v7418
    %8136 = vmatprep.subr.bf16.mxu0 %v7423
    %8137 = vmatpush1.bf16.msra.mxu0 %v7422
    %8138 = vmatprep.subr.bf16.mxu0 %v7427
    %8139 = vmatpush1.bf16.msra.mxu0 %v7426
    %8140 = vmatprep.subr.bf16.mxu0 %v7431
    %8141 = vmatpush1.bf16.msra.mxu0 %v7430
    %8142 = vmatprep.subr.bf16.mxu0 %v7435
    %8143 = vmatpush1.bf16.msra.mxu0 %v7434
    %8144 = vmatprep.subr.bf16.mxu0 %v7439
    %8145 = vmatpush1.bf16.msra.mxu0 %v7438
    %8146 = vmatprep.subr.bf16.mxu0 %v7443
    %8147 = vmatpush1.bf16.msra.mxu0 %v7442
    %8148 = vmatprep.subr.bf16.mxu0 %v7447
    %8149 = vmatpush1.bf16.msra.mxu0 %v7446
    %8150 = vmatprep.subr.bf16.mxu0 %v7451
    %8151 = vmatpush1.bf16.msra.mxu0 %v7450
    %8152 = vmatprep.subr.bf16.mxu0 %v7455
    %8153 = vmatpush1.bf16.msra.mxu0 %v7454
    %8154 = vmatprep.subr.bf16.mxu0 %v7459
    %8155 = vmatpush1.bf16.msra.mxu0 %v7458
    %8156 = vmatprep.subr.bf16.mxu0 %v7463
    %8157 = vmatpush1.bf16.msra.mxu0 %v7462
    %8158 = vmatprep.subr.bf16.mxu0 %v7467
    %8159 = vmatpush1.bf16.msra.mxu0 %v7466
    %8160 = vmatprep.mubr.bf16.mxu0 %v2927
    %8161 = vmatmul.mubr.bf16.gmra.mrb[0].mxu0 %v2926
    %v8162 = vpop.f32.mrb[0].mxu0
    %v8163 = vadd.f32 %v8122, %v8162
    %v8164 = vpop.f32.mrb[0].mxu0
    %v8165 = vadd.f32 %v8124, %v8164
    %v8166 = vpop.f32.mrb[0].mxu0
    %v8167 = vpop.f32.mrb[0].mxu0
    %8168 = vdwg.mxu0
    %8169 = vmatprep.subr.bf16.mxu0 %v7471
    %8170 = vmatpush1.bf16.msra.mxu0 %v7470
    %8171 = vmatprep.subr.bf16.mxu0 %v7475
    %8172 = vmatpush1.bf16.msra.mxu0 %v7474
    %8173 = vmatprep.subr.bf16.mxu0 %v7479
    %8174 = vmatpush1.bf16.msra.mxu0 %v7478
    %8175 = vmatprep.subr.bf16.mxu0 %v7483
    %8176 = vmatpush1.bf16.msra.mxu0 %v7482
    %8177 = vmatprep.subr.bf16.mxu0 %v7487
    %8178 = vmatpush1.bf16.msra.mxu0 %v7486
    %8179 = vmatprep.subr.bf16.mxu0 %v7491
    %8180 = vmatpush1.bf16.msra.mxu0 %v7490
    %8181 = vmatprep.subr.bf16.mxu0 %v7495
    %8182 = vmatpush1.bf16.msra.mxu0 %v7494
    %8183 = vmatprep.subr.bf16.mxu0 %v7499
    %8184 = vmatpush1.bf16.msra.mxu0 %v7498
    %8185 = vmatprep.subr.bf16.mxu0 %v7503
    %8186 = vmatpush1.bf16.msra.mxu0 %v7502
    %8187 = vmatprep.subr.bf16.mxu0 %v7507
    %8188 = vmatpush1.bf16.msra.mxu0 %v7506
    %8189 = vmatprep.subr.bf16.mxu0 %v7511
    %8190 = vmatpush1.bf16.msra.mxu0 %v7510
    %8191 = vmatprep.subr.bf16.mxu0 %v7515
    %8192 = vmatpush1.bf16.msra.mxu0 %v7514
    %8193 = vmatprep.subr.bf16.mxu0 %v7519
    %8194 = vmatpush1.bf16.msra.mxu0 %v7518
    %8195 = vmatprep.subr.bf16.mxu0 %v7523
    %8196 = vmatpush1.bf16.msra.mxu0 %v7522
    %8197 = vmatprep.subr.bf16.mxu0 %v7527
    %8198 = vmatpush1.bf16.msra.mxu0 %v7526
    %8199 = vmatprep.subr.bf16.mxu0 %v7531
    %8200 = vmatpush1.bf16.msra.mxu0 %v7530
    %8201 = vmatprep.mubr.bf16.mxu0 %v2929
    %8202 = vmatmul.mubr.bf16.gmra.mrb[0].mxu0 %v2928
    %v8203 = vpop.f32.mrb[0].mxu0
    %v8204 = vadd.f32 %v8163, %v8203
    %v8205 = vpop.f32.mrb[0].mxu0
    %v8206 = vadd.f32 %v8165, %v8205
    %v8207 = vpop.f32.mrb[0].mxu0
    %v8208 = vpop.f32.mrb[0].mxu0
    %8209 = vdwg.mxu0
    %8210 = vmatprep.subr.bf16.mxu0 %v7535
    %8211 = vmatpush1.bf16.msra.mxu0 %v7534
    %8212 = vmatprep.subr.bf16.mxu0 %v7539
    %8213 = vmatpush1.bf16.msra.mxu0 %v7538
    %8214 = vmatprep.subr.bf16.mxu0 %v7543
    %8215 = vmatpush1.bf16.msra.mxu0 %v7542
    %8216 = vmatprep.subr.bf16.mxu0 %v7547
    %8217 = vmatpush1.bf16.msra.mxu0 %v7546
    %8218 = vmatprep.subr.bf16.mxu0 %v7551
    %8219 = vmatpush1.bf16.msra.mxu0 %v7550
    %8220 = vmatprep.subr.bf16.mxu0 %v7555
    %8221 = vmatpush1.bf16.msra.mxu0 %v7554
    %8222 = vmatprep.subr.bf16.mxu0 %v7559
    %8223 = vmatpush1.bf16.msra.mxu0 %v7558
    %8224 = vmatprep.subr.bf16.mxu0 %v7563
    %8225 = vmatpush1.bf16.msra.mxu0 %v7562
    %8226 = vmatprep.subr.bf16.mxu0 %v7567
    %8227 = vmatpush1.bf16.msra.mxu0 %v7566
    %8228 = vmatprep.subr.bf16.mxu0 %v7571
    %8229 = vmatpush1.bf16.msra.mxu0 %v7570
    %8230 = vmatprep.subr.bf16.mxu0 %v7575
    %8231 = vmatpush1.bf16.msra.mxu0 %v7574
    %8232 = vmatprep.subr.bf16.mxu0 %v7579
    %8233 = vmatpush1.bf16.msra.mxu0 %v7578
    %8234 = vmatprep.subr.bf16.mxu0 %v7583
    %8235 = vmatpush1.bf16.msra.mxu0 %v7582
    %8236 = vmatprep.subr.bf16.mxu0 %v7587
    %8237 = vmatpush1.bf16.msra.mxu0 %v7586
    %8238 = vmatprep.subr.bf16.mxu0 %v7591
    %8239 = vmatpush1.bf16.msra.mxu0 %v7590
    %8240 = vmatprep.subr.bf16.mxu0 %v7595
    %8241 = vmatpush1.bf16.msra.mxu0 %v7594
    %8242 = vmatprep.mubr.bf16.mxu0 %v2931
    %8243 = vmatmul.mubr.bf16.gmra.mrb[0].mxu0 %v2930
    %v8244 = vpop.f32.mrb[0].mxu0
    %v8245 = vadd.f32 %v8204, %v8244
    %v8246 = vpop.f32.mrb[0].mxu0
    %v8247 = vadd.f32 %v8206, %v8246
    %v8248 = vpop.f32.mrb[0].mxu0
    %v8249 = vpop.f32.mrb[0].mxu0
    %8250 = vdwg.mxu0
    %8251 = vmatprep.subr.bf16.mxu0 %v7599
    %8252 = vmatpush1.bf16.msra.mxu0 %v7598
    %8253 = vmatprep.subr.bf16.mxu0 %v7603
    %8254 = vmatpush1.bf16.msra.mxu0 %v7602
    %8255 = vmatprep.subr.bf16.mxu0 %v7607
    %8256 = vmatpush1.bf16.msra.mxu0 %v7606
    %8257 = vmatprep.subr.bf16.mxu0 %v7611
    %8258 = vmatpush1.bf16.msra.mxu0 %v7610
    %8259 = vmatprep.subr.bf16.mxu0 %v7615
    %8260 = vmatpush1.bf16.msra.mxu0 %v7614
    %8261 = vmatprep.subr.bf16.mxu0 %v7619
    %8262 = vmatpush1.bf16.msra.mxu0 %v7618
    %8263 = vmatprep.subr.bf16.mxu0 %v7623
    %8264 = vmatpush1.bf16.msra.mxu0 %v7622
    %8265 = vmatprep.subr.bf16.mxu0 %v7627
    %8266 = vmatpush1.bf16.msra.mxu0 %v7626
    %8267 = vmatprep.subr.bf16.mxu0 %v7631
    %8268 = vmatpush1.bf16.msra.mxu0 %v7630
    %8269 = vmatprep.subr.bf16.mxu0 %v7635
    %8270 = vmatpush1.bf16.msra.mxu0 %v7634
    %8271 = vmatprep.subr.bf16.mxu0 %v7639
    %8272 = vmatpush1.bf16.msra.mxu0 %v7638
    %8273 = vmatprep.subr.bf16.mxu0 %v7643
    %8274 = vmatpush1.bf16.msra.mxu0 %v7642
    %8275 = vmatprep.subr.bf16.mxu0 %v7647
    %8276 = vmatpush1.bf16.msra.mxu0 %v7646
    %8277 = vmatprep.subr.bf16.mxu0 %v7651
    %8278 = vmatpush1.bf16.msra.mxu0 %v7650
    %8279 = vmatprep.subr.bf16.mxu0 %v7655
    %8280 = vmatpush1.bf16.msra.mxu0 %v7654
    %8281 = vmatprep.subr.bf16.mxu0 %v7659
    %8282 = vmatpush1.bf16.msra.mxu0 %v7658
    %8283 = vmatprep.mubr.bf16.mxu0 %v2933
    %8284 = vmatmul.mubr.bf16.gmra.mrb[0].mxu0 %v2932
    %v8285 = vpop.f32.mrb[0].mxu0
    %v8286 = vadd.f32 %v8245, %v8285
    %v8287 = vpop.f32.mrb[0].mxu0
    %v8288 = vadd.f32 %v8247, %v8287
    %v8289 = vpop.f32.mrb[0].mxu0
    %v8290 = vpop.f32.mrb[0].mxu0
    %8291 = vdwg.mxu0
    %8292 = vmatprep.subr.bf16.mxu0 %v7281
    %8293 = vmatpush1.bf16.msra.mxu0 %v7280
    %8294 = vmatprep.subr.bf16.mxu0 %v7285
    %8295 = vmatpush1.bf16.msra.mxu0 %v7284
    %8296 = vmatprep.subr.bf16.mxu0 %v7289
    %8297 = vmatpush1.bf16.msra.mxu0 %v7288
    %8298 = vmatprep.subr.bf16.mxu0 %v7293
    %8299 = vmatpush1.bf16.msra.mxu0 %v7292
    %8300 = vmatprep.subr.bf16.mxu0 %v7297
    %8301 = vmatpush1.bf16.msra.mxu0 %v7296
    %8302 = vmatprep.subr.bf16.mxu0 %v7301
    %8303 = vmatpush1.bf16.msra.mxu0 %v7300
    %8304 = vmatprep.subr.bf16.mxu0 %v7305
    %8305 = vmatpush1.bf16.msra.mxu0 %v7304
    %8306 = vmatprep.subr.bf16.mxu0 %v7309
    %8307 = vmatpush1.bf16.msra.mxu0 %v7308
    %8308 = vmatprep.subr.bf16.mxu0 %v7313
    %8309 = vmatpush1.bf16.msra.mxu0 %v7312
    %8310 = vmatprep.subr.bf16.mxu0 %v7317
    %8311 = vmatpush1.bf16.msra.mxu0 %v7316
    %8312 = vmatprep.subr.bf16.mxu0 %v7321
    %8313 = vmatpush1.bf16.msra.mxu0 %v7320
    %8314 = vmatprep.subr.bf16.mxu0 %v7325
    %8315 = vmatpush1.bf16.msra.mxu0 %v7324
    %8316 = vmatprep.subr.bf16.mxu0 %v7329
    %8317 = vmatpush1.bf16.msra.mxu0 %v7328
    %8318 = vmatprep.subr.bf16.mxu0 %v7333
    %8319 = vmatpush1.bf16.msra.mxu0 %v7332
    %8320 = vmatprep.subr.bf16.mxu0 %v7337
    %8321 = vmatpush1.bf16.msra.mxu0 %v7336
    %8322 = vmatprep.subr.bf16.mxu0 %v7341
    %8323 = vmatpush1.bf16.msra.mxu0 %v7340
    %8324 = vmatprep.mubr.bf16.mxu0 %v2923
    %8325 = vmatmul.mubr.bf16.gmra.mrb[0].mxu0 %v2922
    %v8326 = vpop.f32.mrb[0].mxu0
    %v8327 = vadd.f32 %v6120, %v8326
    %v8328 = vpop.f32.mrb[0].mxu0
    %v8329 = vadd.f32 %v6122, %v8328
    %v8330 = vpop.f32.mrb[0].mxu0
    %v8331 = vpop.f32.mrb[0].mxu0
    %8332 = vdwg.mxu0
    %8333 = vmatprep.subr.bf16.mxu0 %v7345
    %8334 = vmatpush1.bf16.msra.mxu0 %v7344
    %8335 = vmatprep.subr.bf16.mxu0 %v7349
    %8336 = vmatpush1.bf16.msra.mxu0 %v7348
    %8337 = vmatprep.subr.bf16.mxu0 %v7353
    %8338 = vmatpush1.bf16.msra.mxu0 %v7352
    %8339 = vmatprep.subr.bf16.mxu0 %v7357
    %8340 = vmatpush1.bf16.msra.mxu0 %v7356
    %8341 = vmatprep.subr.bf16.mxu0 %v7361
    %8342 = vmatpush1.bf16.msra.mxu0 %v7360
    %8343 = vmatprep.subr.bf16.mxu0 %v7365
    %8344 = vmatpush1.bf16.msra.mxu0 %v7364
    %8345 = vmatprep.subr.bf16.mxu0 %v7369
    %8346 = vmatpush1.bf16.msra.mxu0 %v7368
    %8347 = vmatprep.subr.bf16.mxu0 %v7373
    %8348 = vmatpush1.bf16.msra.mxu0 %v7372
    %8349 = vmatprep.subr.bf16.mxu0 %v7377
    %8350 = vmatpush1.bf16.msra.mxu0 %v7376
    %8351 = vmatprep.subr.bf16.mxu0 %v7381
    %8352 = vmatpush1.bf16.msra.mxu0 %v7380
    %8353 = vmatprep.subr.bf16.mxu0 %v7385
    %8354 = vmatpush1.bf16.msra.mxu0 %v7384
    %8355 = vmatprep.subr.bf16.mxu0 %v7389
    %8356 = vmatpush1.bf16.msra.mxu0 %v7388
    %8357 = vmatprep.subr.bf16.mxu0 %v7393
    %8358 = vmatpush1.bf16.msra.mxu0 %v7392
    %8359 = vmatprep.subr.bf16.mxu0 %v7397
    %8360 = vmatpush1.bf16.msra.mxu0 %v7396
    %8361 = vmatprep.subr.bf16.mxu0 %v7401
    %8362 = vmatpush1.bf16.msra.mxu0 %v7400
    %8363 = vmatprep.subr.bf16.mxu0 %v7405
    %8364 = vmatpush1.bf16.msra.mxu0 %v7404
    %8365 = vmatprep.mubr.bf16.mxu0 %v2925
    %8366 = vmatmul.mubr.bf16.gmra.mrb[0].mxu0 %v2924
    %v8367 = vpop.f32.mrb[0].mxu0
    %v8368 = vadd.f32 %v8327, %v8367
    %v8369 = vpop.f32.mrb[0].mxu0
    %v8370 = vadd.f32 %v8329, %v8369
    %v8371 = vpop.f32.mrb[0].mxu0
    %v8372 = vpop.f32.mrb[0].mxu0
    %8373 = vdwg.mxu0
    %8374 = vmatprep.subr.bf16.mxu0 %v7409
    %8375 = vmatpush1.bf16.msra.mxu0 %v7408
    %8376 = vmatprep.subr.bf16.mxu0 %v7413
    %8377 = vmatpush1.bf16.msra.mxu0 %v7412
    %8378 = vmatprep.subr.bf16.mxu0 %v7417
    %8379 = vmatpush1.bf16.msra.mxu0 %v7416
    %8380 = vmatprep.subr.bf16.mxu0 %v7421
    %8381 = vmatpush1.bf16.msra.mxu0 %v7420
    %8382 = vmatprep.subr.bf16.mxu0 %v7425
    %8383 = vmatpush1.bf16.msra.mxu0 %v7424
    %8384 = vmatprep.subr.bf16.mxu0 %v7429
    %8385 = vmatpush1.bf16.msra.mxu0 %v7428
    %8386 = vmatprep.subr.bf16.mxu0 %v7433
    %8387 = vmatpush1.bf16.msra.mxu0 %v7432
    %8388 = vmatprep.subr.bf16.mxu0 %v7437
    %8389 = vmatpush1.bf16.msra.mxu0 %v7436
    %8390 = vmatprep.subr.bf16.mxu0 %v7441
    %8391 = vmatpush1.bf16.msra.mxu0 %v7440
    %8392 = vmatprep.subr.bf16.mxu0 %v7445
    %8393 = vmatpush1.bf16.msra.mxu0 %v7444
    %8394 = vmatprep.subr.bf16.mxu0 %v7449
    %8395 = vmatpush1.bf16.msra.mxu0 %v7448
    %8396 = vmatprep.subr.bf16.mxu0 %v7453
    %8397 = vmatpush1.bf16.msra.mxu0 %v7452
    %8398 = vmatprep.subr.bf16.mxu0 %v7457
    %8399 = vmatpush1.bf16.msra.mxu0 %v7456
    %8400 = vmatprep.subr.bf16.mxu0 %v7461
    %8401 = vmatpush1.bf16.msra.mxu0 %v7460
    %8402 = vmatprep.subr.bf16.mxu0 %v7465
    %8403 = vmatpush1.bf16.msra.mxu0 %v7464
    %8404 = vmatprep.subr.bf16.mxu0 %v7469
    %8405 = vmatpush1.bf16.msra.mxu0 %v7468
    %8406 = vmatprep.mubr.bf16.mxu0 %v2927
    %8407 = vmatmul.mubr.bf16.gmra.mrb[0].mxu0 %v2926
    %v8408 = vpop.f32.mrb[0].mxu0
    %v8409 = vadd.f32 %v8368, %v8408
    %v8410 = vpop.f32.mrb[0].mxu0
    %v8411 = vadd.f32 %v8370, %v8410
    %v8412 = vpop.f32.mrb[0].mxu0
    %v8413 = vpop.f32.mrb[0].mxu0
    %8414 = vdwg.mxu0
    %8415 = vmatprep.subr.bf16.mxu0 %v7473
    %8416 = vmatpush1.bf16.msra.mxu0 %v7472
    %8417 = vmatprep.subr.bf16.mxu0 %v7477
    %8418 = vmatpush1.bf16.msra.mxu0 %v7476
    %8419 = vmatprep.subr.bf16.mxu0 %v7481
    %8420 = vmatpush1.bf16.msra.mxu0 %v7480
    %8421 = vmatprep.subr.bf16.mxu0 %v7485
    %8422 = vmatpush1.bf16.msra.mxu0 %v7484
    %8423 = vmatprep.subr.bf16.mxu0 %v7489
    %8424 = vmatpush1.bf16.msra.mxu0 %v7488
    %8425 = vmatprep.subr.bf16.mxu0 %v7493
    %8426 = vmatpush1.bf16.msra.mxu0 %v7492
    %8427 = vmatprep.subr.bf16.mxu0 %v7497
    %8428 = vmatpush1.bf16.msra.mxu0 %v7496
    %8429 = vmatprep.subr.bf16.mxu0 %v7501
    %8430 = vmatpush1.bf16.msra.mxu0 %v7500
    %8431 = vmatprep.subr.bf16.mxu0 %v7505
    %8432 = vmatpush1.bf16.msra.mxu0 %v7504
    %8433 = vmatprep.subr.bf16.mxu0 %v7509
    %8434 = vmatpush1.bf16.msra.mxu0 %v7508
    %8435 = vmatprep.subr.bf16.mxu0 %v7513
    %8436 = vmatpush1.bf16.msra.mxu0 %v7512
    %8437 = vmatprep.subr.bf16.mxu0 %v7517
    %8438 = vmatpush1.bf16.msra.mxu0 %v7516
    %8439 = vmatprep.subr.bf16.mxu0 %v7521
    %8440 = vmatpush1.bf16.msra.mxu0 %v7520
    %8441 = vmatprep.subr.bf16.mxu0 %v7525
    %8442 = vmatpush1.bf16.msra.mxu0 %v7524
    %8443 = vmatprep.subr.bf16.mxu0 %v7529
    %8444 = vmatpush1.bf16.msra.mxu0 %v7528
    %8445 = vmatprep.subr.bf16.mxu0 %v7533
    %8446 = vmatpush1.bf16.msra.mxu0 %v7532
    %8447 = vmatprep.mubr.bf16.mxu0 %v2929
    %8448 = vmatmul.mubr.bf16.gmra.mrb[0].mxu0 %v2928
    %v8449 = vpop.f32.mrb[0].mxu0
    %v8450 = vadd.f32 %v8409, %v8449
    %v8451 = vpop.f32.mrb[0].mxu0
    %v8452 = vadd.f32 %v8411, %v8451
    %v8453 = vpop.f32.mrb[0].mxu0
    %v8454 = vpop.f32.mrb[0].mxu0
    %8455 = vdwg.mxu0
    %8456 = vmatprep.subr.bf16.mxu0 %v7537
    %8457 = vmatpush1.bf16.msra.mxu0 %v7536
    %8458 = vmatprep.subr.bf16.mxu0 %v7541
    %8459 = vmatpush1.bf16.msra.mxu0 %v7540
    %8460 = vmatprep.subr.bf16.mxu0 %v7545
    %8461 = vmatpush1.bf16.msra.mxu0 %v7544
    %8462 = vmatprep.subr.bf16.mxu0 %v7549
    %8463 = vmatpush1.bf16.msra.mxu0 %v7548
    %8464 = vmatprep.subr.bf16.mxu0 %v7553
    %8465 = vmatpush1.bf16.msra.mxu0 %v7552
    %8466 = vmatprep.subr.bf16.mxu0 %v7557
    %8467 = vmatpush1.bf16.msra.mxu0 %v7556
    %8468 = vmatprep.subr.bf16.mxu0 %v7561
    %8469 = vmatpush1.bf16.msra.mxu0 %v7560
    %8470 = vmatprep.subr.bf16.mxu0 %v7565
    %8471 = vmatpush1.bf16.msra.mxu0 %v7564
    %8472 = vmatprep.subr.bf16.mxu0 %v7569
    %8473 = vmatpush1.bf16.msra.mxu0 %v7568
    %8474 = vmatprep.subr.bf16.mxu0 %v7573
    %8475 = vmatpush1.bf16.msra.mxu0 %v7572
    %8476 = vmatprep.subr.bf16.mxu0 %v7577
    %8477 = vmatpush1.bf16.msra.mxu0 %v7576
    %8478 = vmatprep.subr.bf16.mxu0 %v7581
    %8479 = vmatpush1.bf16.msra.mxu0 %v7580
    %8480 = vmatprep.subr.bf16.mxu0 %v7585
    %8481 = vmatpush1.bf16.msra.mxu0 %v7584
    %8482 = vmatprep.subr.bf16.mxu0 %v7589
    %8483 = vmatpush1.bf16.msra.mxu0 %v7588
    %8484 = vmatprep.subr.bf16.mxu0 %v7593
    %8485 = vmatpush1.bf16.msra.mxu0 %v7592
    %8486 = vmatprep.subr.bf16.mxu0 %v7597
    %8487 = vmatpush1.bf16.msra.mxu0 %v7596
    %8488 = vmatprep.mubr.bf16.mxu0 %v2931
    %8489 = vmatmul.mubr.bf16.gmra.mrb[0].mxu0 %v2930
    %v8490 = vpop.f32.mrb[0].mxu0
    %v8491 = vadd.f32 %v8450, %v8490
    %v8492 = vpop.f32.mrb[0].mxu0
    %v8493 = vadd.f32 %v8452, %v8492
    %v8494 = vpop.f32.mrb[0].mxu0
    %v8495 = vpop.f32.mrb[0].mxu0
    %8496 = vdwg.mxu0
    %8497 = vmatprep.subr.bf16.mxu0 %v7601
    %8498 = vmatpush1.bf16.msra.mxu0 %v7600
    %8499 = vmatprep.subr.bf16.mxu0 %v7605
    %8500 = vmatpush1.bf16.msra.mxu0 %v7604
    %8501 = vmatprep.subr.bf16.mxu0 %v7609
    %8502 = vmatpush1.bf16.msra.mxu0 %v7608
    %8503 = vmatprep.subr.bf16.mxu0 %v7613
    %8504 = vmatpush1.bf16.msra.mxu0 %v7612
    %8505 = vmatprep.subr.bf16.mxu0 %v7617
    %8506 = vmatpush1.bf16.msra.mxu0 %v7616
    %8507 = vmatprep.subr.bf16.mxu0 %v7621
    %8508 = vmatpush1.bf16.msra.mxu0 %v7620
    %8509 = vmatprep.subr.bf16.mxu0 %v7625
    %8510 = vmatpush1.bf16.msra.mxu0 %v7624
    %8511 = vmatprep.subr.bf16.mxu0 %v7629
    %8512 = vmatpush1.bf16.msra.mxu0 %v7628
    %8513 = vmatprep.subr.bf16.mxu0 %v7633
    %8514 = vmatpush1.bf16.msra.mxu0 %v7632
    %8515 = vmatprep.subr.bf16.mxu0 %v7637
    %8516 = vmatpush1.bf16.msra.mxu0 %v7636
    %8517 = vmatprep.subr.bf16.mxu0 %v7641
    %8518 = vmatpush1.bf16.msra.mxu0 %v7640
    %8519 = vmatprep.subr.bf16.mxu0 %v7645
    %8520 = vmatpush1.bf16.msra.mxu0 %v7644
    %8521 = vmatprep.subr.bf16.mxu0 %v7649
    %8522 = vmatpush1.bf16.msra.mxu0 %v7648
    %8523 = vmatprep.subr.bf16.mxu0 %v7653
    %8524 = vmatpush1.bf16.msra.mxu0 %v7652
    %8525 = vmatprep.subr.bf16.mxu0 %v7657
    %8526 = vmatpush1.bf16.msra.mxu0 %v7656
    %8527 = vmatprep.subr.bf16.mxu0 %v7661
    %8528 = vmatpush1.bf16.msra.mxu0 %v7660
    %8529 = vmatprep.mubr.bf16.mxu0 %v2933
    %8530 = vmatmul.mubr.bf16.gmra.mrb[0].mxu0 %v2932
    %v8531 = vpop.f32.mrb[0].mxu0
    %v8532 = vadd.f32 %v8491, %v8531
    %v8533 = vpop.f32.mrb[0].mxu0
    %v8534 = vadd.f32 %v8493, %v8533
    %v8535 = vpop.f32.mrb[0].mxu0
    %v8536 = vpop.f32.mrb[0].mxu0
    %8537 = vdwg.mxu0
    %v8538 = vld [vmem:[%s12] sm:$0xf]
    %v8540 = vlaneseq
    %v8541 = vshrl.u32 %v8540, 7
    %v8542 = vsub.s32 0, %v8541
    %v8543 = vrot.slane %v8538, %v8542
    %v8544 = vlaneseq
    %v8545 = vshrl.u32 %v8544, 7
    %v8546 = vsub.s32 1, %v8545
    %v8547 = vrot.slane %v8538, %v8546
    %v8548 = vlaneseq
    %v8549 = vshrl.u32 %v8548, 7
    %v8550 = vsub.s32 2, %v8549
    %v8551 = vrot.slane %v8538, %v8550
    %v8552 = vlaneseq
    %v8553 = vshrl.u32 %v8552, 7
    %v8554 = vsub.s32 3, %v8553
    %v8555 = vrot.slane %v8538, %v8554
    %v8560 = vadd.f32 %v8286, %v8543
    %v8561 = vadd.f32 %v8288, %v8547
    %v8562 = vadd.f32 %v8532, %v8551
    %v8563 = vadd.f32 %v8534, %v8555
    %v8564 = vmax.f32 %v8560, 0.0
    %v8565 = vmax.f32 %v8561, 0.0
    %v8566 = vmax.f32 %v8562, 0.0
    %v8567 = vmax.f32 %v8563, 0.0
    %v8568 = vpack.c.bf16 %v8564, %v8564
    %v8569 = vpack.c.bf16 %v8565, %v8565
    %v8570 = vpack.c.bf16 %v8566, %v8566
    %v8571 = vpack.c.bf16 %v8567, %v8567
    %v8572 = vld [vmem:[%s13] sm:$0xf]
    %v8573 = vld [vmem:[%s13 + $0x4] sm:$0xf]
    %v8574 = vld [vmem:[%s13 + $0x8] sm:$0xf]
    %v8575 = vld [vmem:[%s13 + $0xc] sm:$0xf]
    %v8576 = vld [vmem:[%s13 + $0x10] sm:$0xf]
    %v8577 = vld [vmem:[%s13 + $0x14] sm:$0xf]
    %v8578 = vld [vmem:[%s13 + $0x18] sm:$0xf]
    %v8579 = vld [vmem:[%s13 + $0x1c] sm:$0xf]
    %v8580 = vld [vmem:[%s13 + $0x20] sm:$0xf]
    %v8581 = vld [vmem:[%s13 + $0x24] sm:$0xf]
    %v8582 = vld [vmem:[%s13 + $0x28] sm:$0xf]
    %v8583 = vld [vmem:[%s13 + $0x2c] sm:$0xf]
    %v8584 = vld [vmem:[%s13 + $0x30] sm:$0xf]
    %v8585 = vld [vmem:[%s13 + $0x34] sm:$0xf]
    %v8586 = vld [vmem:[%s13 + $0x38] sm:$0xf]
    %v8587 = vld [vmem:[%s13 + $0x3c] sm:$0xf]
    %v8588 = vld [vmem:[%s13 + $0x40] sm:$0xf]
    %v8589 = vld [vmem:[%s13 + $0x44] sm:$0xf]
    %v8590 = vld [vmem:[%s13 + $0x48] sm:$0xf]
    %v8591 = vld [vmem:[%s13 + $0x4c] sm:$0xf]
    %v8592 = vld [vmem:[%s13 + $0x50] sm:$0xf]
    %v8593 = vld [vmem:[%s13 + $0x54] sm:$0xf]
    %v8594 = vld [vmem:[%s13 + $0x58] sm:$0xf]
    %v8595 = vld [vmem:[%s13 + $0x5c] sm:$0xf]
    %v8596 = vld [vmem:[%s13 + $0x60] sm:$0xf]
    %v8597 = vld [vmem:[%s13 + $0x64] sm:$0xf]
    %v8598 = vld [vmem:[%s13 + $0x68] sm:$0xf]
    %v8599 = vld [vmem:[%s13 + $0x6c] sm:$0xf]
    %v8600 = vld [vmem:[%s13 + $0x70] sm:$0xf]
    %v8601 = vld [vmem:[%s13 + $0x74] sm:$0xf]
    %v8602 = vld [vmem:[%s13 + $0x78] sm:$0xf]
    %v8603 = vld [vmem:[%s13 + $0x7c] sm:$0xf]
    %v8604 = vld [vmem:[%s13 + $0x80] sm:$0xf]
    %v8605 = vld [vmem:[%s13 + $0x84] sm:$0xf]
    %v8606 = vld [vmem:[%s13 + $0x88] sm:$0xf]
    %v8607 = vld [vmem:[%s13 + $0x8c] sm:$0xf]
    %v8608 = vld [vmem:[%s13 + $0x90] sm:$0xf]
    %v8609 = vld [vmem:[%s13 + $0x94] sm:$0xf]
    %v8610 = vld [vmem:[%s13 + $0x98] sm:$0xf]
    %v8611 = vld [vmem:[%s13 + $0x9c] sm:$0xf]
    %v8612 = vld [vmem:[%s13 + $0xa0] sm:$0xf]
    %v8613 = vld [vmem:[%s13 + $0xa4] sm:$0xf]
    %v8614 = vld [vmem:[%s13 + $0xa8] sm:$0xf]
    %v8615 = vld [vmem:[%s13 + $0xac] sm:$0xf]
    %v8616 = vld [vmem:[%s13 + $0xb0] sm:$0xf]
    %v8617 = vld [vmem:[%s13 + $0xb4] sm:$0xf]
    %v8618 = vld [vmem:[%s13 + $0xb8] sm:$0xf]
    %v8619 = vld [vmem:[%s13 + $0xbc] sm:$0xf]
    %v8620 = vld [vmem:[%s13 + $0xc0] sm:$0xf]
    %v8621 = vld [vmem:[%s13 + $0xc4] sm:$0xf]
    %v8622 = vld [vmem:[%s13 + $0xc8] sm:$0xf]
    %v8623 = vld [vmem:[%s13 + $0xcc] sm:$0xf]
    %v8624 = vld [vmem:[%s13 + $0xd0] sm:$0xf]
    %v8625 = vld [vmem:[%s13 + $0xd4] sm:$0xf]
    %v8626 = vld [vmem:[%s13 + $0xd8] sm:$0xf]
    %v8627 = vld [vmem:[%s13 + $0xdc] sm:$0xf]
    %v8628 = vld [vmem:[%s13 + $0xe0] sm:$0xf]
    %v8629 = vld [vmem:[%s13 + $0xe4] sm:$0xf]
    %v8630 = vld [vmem:[%s13 + $0xe8] sm:$0xf]
    %v8631 = vld [vmem:[%s13 + $0xec] sm:$0xf]
    %v8632 = vld [vmem:[%s13 + $0xf0] sm:$0xf]
    %v8633 = vld [vmem:[%s13 + $0xf4] sm:$0xf]
    %v8634 = vld [vmem:[%s13 + $0xf8] sm:$0xf]
    %v8635 = vld [vmem:[%s13 + $0xfc] sm:$0xf]
    %v8636 = vld [vmem:[%s14] sm:$0x1]
    %v8638 = vlaneseq
    %v8639 = vshrl.u32 %v8638, 7
    %v8640 = vsub.s32 0, %v8639
    %v8641 = vrot.slane %v8636, %v8640
    %v8707 = vunpack.c.l.b16 %v8572
    %v8708 = vunpack.c.l.b16 %v8573
    %v8709 = vunpack.c.l.b16 %v8574
    %v8710 = vunpack.c.l.b16 %v8575
    %v8711 = vunpack.c.l.b16 %v8576
    %v8712 = vunpack.c.l.b16 %v8577
    %v8713 = vunpack.c.l.b16 %v8578
    %v8714 = vunpack.c.l.b16 %v8579
    %v8715 = vunpack.c.l.b16 %v8580
    %v8716 = vunpack.c.l.b16 %v8581
    %v8717 = vunpack.c.l.b16 %v8582
    %v8718 = vunpack.c.l.b16 %v8583
    %v8719 = vunpack.c.l.b16 %v8584
    %v8720 = vunpack.c.l.b16 %v8585
    %v8721 = vunpack.c.l.b16 %v8586
    %v8722 = vunpack.c.l.b16 %v8587
    %v8723 = vunpack.c.l.b16 %v8588
    %v8724 = vunpack.c.l.b16 %v8589
    %v8725 = vunpack.c.l.b16 %v8590
    %v8726 = vunpack.c.l.b16 %v8591
    %v8727 = vunpack.c.l.b16 %v8592
    %v8728 = vunpack.c.l.b16 %v8593
    %v8729 = vunpack.c.l.b16 %v8594
    %v8730 = vunpack.c.l.b16 %v8595
    %v8731 = vunpack.c.l.b16 %v8596
    %v8732 = vunpack.c.l.b16 %v8597
    %v8733 = vunpack.c.l.b16 %v8598
    %v8734 = vunpack.c.l.b16 %v8599
    %v8735 = vunpack.c.l.b16 %v8600
    %v8736 = vunpack.c.l.b16 %v8601
    %v8737 = vunpack.c.l.b16 %v8602
    %v8738 = vunpack.c.l.b16 %v8603
    %v8739 = vunpack.c.l.b16 %v8604
    %v8740 = vunpack.c.l.b16 %v8605
    %v8741 = vunpack.c.l.b16 %v8606
    %v8742 = vunpack.c.l.b16 %v8607
    %v8743 = vunpack.c.l.b16 %v8608
    %v8744 = vunpack.c.l.b16 %v8609
    %v8745 = vunpack.c.l.b16 %v8610
    %v8746 = vunpack.c.l.b16 %v8611
    %v8747 = vunpack.c.l.b16 %v8612
    %v8748 = vunpack.c.l.b16 %v8613
    %v8749 = vunpack.c.l.b16 %v8614
    %v8750 = vunpack.c.l.b16 %v8615
    %v8751 = vunpack.c.l.b16 %v8616
    %v8752 = vunpack.c.l.b16 %v8617
    %v8753 = vunpack.c.l.b16 %v8618
    %v8754 = vunpack.c.l.b16 %v8619
    %v8755 = vunpack.c.l.b16 %v8620
    %v8756 = vunpack.c.l.b16 %v8621
    %v8757 = vunpack.c.l.b16 %v8622
    %v8758 = vunpack.c.l.b16 %v8623
    %v8759 = vunpack.c.l.b16 %v8624
    %v8760 = vunpack.c.l.b16 %v8625
    %v8761 = vunpack.c.l.b16 %v8626
    %v8762 = vunpack.c.l.b16 %v8627
    %v8763 = vunpack.c.l.b16 %v8628
    %v8764 = vunpack.c.l.b16 %v8629
    %v8765 = vunpack.c.l.b16 %v8630
    %v8766 = vunpack.c.l.b16 %v8631
    %v8767 = vunpack.c.l.b16 %v8632
    %v8768 = vunpack.c.l.b16 %v8633
    %v8769 = vunpack.c.l.b16 %v8634
    %v8770 = vunpack.c.l.b16 %v8635
    %v8771 = vpack.c.b16 %v8708, %v8707
    %v8772 = vpack.c.b16 %v8710, %v8709
    %v8773 = vpack.c.b16 %v8712, %v8711
    %v8774 = vpack.c.b16 %v8714, %v8713
    %v8775 = vpack.c.b16 %v8716, %v8715
    %v8776 = vpack.c.b16 %v8718, %v8717
    %v8777 = vpack.c.b16 %v8720, %v8719
    %v8778 = vpack.c.b16 %v8722, %v8721
    %v8779 = vpack.c.b16 %v8724, %v8723
    %v8780 = vpack.c.b16 %v8726, %v8725
    %v8781 = vpack.c.b16 %v8728, %v8727
    %v8782 = vpack.c.b16 %v8730, %v8729
    %v8783 = vpack.c.b16 %v8732, %v8731
    %v8784 = vpack.c.b16 %v8734, %v8733
    %v8785 = vpack.c.b16 %v8736, %v8735
    %v8786 = vpack.c.b16 %v8738, %v8737
    %v8787 = vpack.c.b16 %v8740, %v8739
    %v8788 = vpack.c.b16 %v8742, %v8741
    %v8789 = vpack.c.b16 %v8744, %v8743
    %v8790 = vpack.c.b16 %v8746, %v8745
    %v8791 = vpack.c.b16 %v8748, %v8747
    %v8792 = vpack.c.b16 %v8750, %v8749
    %v8793 = vpack.c.b16 %v8752, %v8751
    %v8794 = vpack.c.b16 %v8754, %v8753
    %v8795 = vpack.c.b16 %v8756, %v8755
    %v8796 = vpack.c.b16 %v8758, %v8757
    %v8797 = vpack.c.b16 %v8760, %v8759
    %v8798 = vpack.c.b16 %v8762, %v8761
    %v8799 = vpack.c.b16 %v8764, %v8763
    %v8800 = vpack.c.b16 %v8766, %v8765
    %v8801 = vpack.c.b16 %v8768, %v8767
    %v8802 = vpack.c.b16 %v8770, %v8769
    %8835 = vmatprep.subr.bf16.mxu0 0
    %8836 = vmatpush1.bf16.msra.mxu0 %v8771
    %8837 = vmatprep.subr.bf16.mxu0 0
    %8838 = vmatpush1.bf16.msra.mxu0 %v8772
    %8839 = vmatprep.subr.bf16.mxu0 0
    %8840 = vmatpush1.bf16.msra.mxu0 %v8773
    %8841 = vmatprep.subr.bf16.mxu0 0
    %8842 = vmatpush1.bf16.msra.mxu0 %v8774
    %8843 = vmatprep.subr.bf16.mxu0 0
    %8844 = vmatpush1.bf16.msra.mxu0 %v8775
    %8845 = vmatprep.subr.bf16.mxu0 0
    %8846 = vmatpush1.bf16.msra.mxu0 %v8776
    %8847 = vmatprep.subr.bf16.mxu0 0
    %8848 = vmatpush1.bf16.msra.mxu0 %v8777
    %8849 = vmatprep.subr.bf16.mxu0 0
    %8850 = vmatpush1.bf16.msra.mxu0 %v8778
    %8851 = vmatprep.subr.bf16.mxu0 0
    %8852 = vmatpush1.bf16.msra.mxu0 %v8779
    %8853 = vmatprep.subr.bf16.mxu0 0
    %8854 = vmatpush1.bf16.msra.mxu0 %v8780
    %8855 = vmatprep.subr.bf16.mxu0 0
    %8856 = vmatpush1.bf16.msra.mxu0 %v8781
    %8857 = vmatprep.subr.bf16.mxu0 0
    %8858 = vmatpush1.bf16.msra.mxu0 %v8782
    %8859 = vmatprep.subr.bf16.mxu0 0
    %8860 = vmatpush1.bf16.msra.mxu0 %v8783
    %8861 = vmatprep.subr.bf16.mxu0 0
    %8862 = vmatpush1.bf16.msra.mxu0 %v8784
    %8863 = vmatprep.subr.bf16.mxu0 0
    %8864 = vmatpush1.bf16.msra.mxu0 %v8785
    %8865 = vmatprep.subr.bf16.mxu0 0
    %8866 = vmatpush1.bf16.msra.mxu0 %v8786
    %8867 = vmatprep.mubr.bf16.mxu0 %v8569
    %8868 = vmatmul.mubr.bf16.gmra.mrb[0].mxu0 %v8568
    %v8869 = vpop.f32.mrb[0].mxu0
    %v8870 = vadd.f32 %v8641, %v8869
    %v8871 = vpop.f32.mrb[0].mxu0
    %v8872 = vpop.f32.mrb[0].mxu0
    %v8873 = vpop.f32.mrb[0].mxu0
    %8874 = vdwg.mxu0
    %8875 = vmatprep.subr.bf16.mxu0 0
    %8876 = vmatpush1.bf16.msra.mxu0 %v8787
    %8877 = vmatprep.subr.bf16.mxu0 0
    %8878 = vmatpush1.bf16.msra.mxu0 %v8788
    %8879 = vmatprep.subr.bf16.mxu0 0
    %8880 = vmatpush1.bf16.msra.mxu0 %v8789
    %8881 = vmatprep.subr.bf16.mxu0 0
    %8882 = vmatpush1.bf16.msra.mxu0 %v8790
    %8883 = vmatprep.subr.bf16.mxu0 0
    %8884 = vmatpush1.bf16.msra.mxu0 %v8791
    %8885 = vmatprep.subr.bf16.mxu0 0
    %8886 = vmatpush1.bf16.msra.mxu0 %v8792
    %8887 = vmatprep.subr.bf16.mxu0 0
    %8888 = vmatpush1.bf16.msra.mxu0 %v8793
    %8889 = vmatprep.subr.bf16.mxu0 0
    %8890 = vmatpush1.bf16.msra.mxu0 %v8794
    %8891 = vmatprep.subr.bf16.mxu0 0
    %8892 = vmatpush1.bf16.msra.mxu0 %v8795
    %8893 = vmatprep.subr.bf16.mxu0 0
    %8894 = vmatpush1.bf16.msra.mxu0 %v8796
    %8895 = vmatprep.subr.bf16.mxu0 0
    %8896 = vmatpush1.bf16.msra.mxu0 %v8797
    %8897 = vmatprep.subr.bf16.mxu0 0
    %8898 = vmatpush1.bf16.msra.mxu0 %v8798
    %8899 = vmatprep.subr.bf16.mxu0 0
    %8900 = vmatpush1.bf16.msra.mxu0 %v8799
    %8901 = vmatprep.subr.bf16.mxu0 0
    %8902 = vmatpush1.bf16.msra.mxu0 %v8800
    %8903 = vmatprep.subr.bf16.mxu0 0
    %8904 = vmatpush1.bf16.msra.mxu0 %v8801
    %8905 = vmatprep.subr.bf16.mxu0 0
    %8906 = vmatpush1.bf16.msra.mxu0 %v8802
    %8907 = vmatprep.mubr.bf16.mxu0 %v8571
    %8908 = vmatmul.mubr.bf16.gmra.mrb[0].mxu0 %v8570
    %v8909 = vpop.f32.mrb[0].mxu0
    %v8910 = vadd.f32 %v8870, %v8909
    %v8911 = vpop.f32.mrb[0].mxu0
    %v8912 = vpop.f32.mrb[0].mxu0
    %v8913 = vpop.f32.mrb[0].mxu0
    %8914 = vdwg.mxu0
    %8915 = vst [vmem:[#allocation6] sm:$0x3] %v8910
    // Predicated region
    $region62: #{_lambda_.1} parent=1 // pred_check
      _
    $region63: #{_lambda_.1} parent=1 // pred_check_branch
      %8917 = sbr.rel (0) target = $region65
    $region64: #{_lambda_.1} parent=1 // pred_region
      %s8919 = ssub.s32 384, 384
      %8920 = vsyncadd [#allocation3], %s8919
      %s8922 = sshll.u32 [#allocation2], 4
      %s8923 = int_to_ptr.vmem [resolvable:$true] %s8922
      %8925 = dma.vmem_to_hbm [thread:$0]  %s8923, 384, %s15, [#allocation3]
    $region65: #{_lambda_.1} parent=1 // pred_fallthru
      _
    // Predicated region
    $region66: #{_lambda_.1} parent=1 // pred_check
      _
    $region67: #{_lambda_.1} parent=1 // pred_check_branch
      %8927 = sbr.rel (0) target = $region69
    $region68: #{_lambda_.1} parent=1 // pred_region
      %s8929 = ssub.s32 384, 384
      %8930 = vsyncadd [#allocation5], %s8929
      %s8932 = sshll.u32 [#allocation4], 4
      %s8933 = int_to_ptr.vmem [resolvable:$true] %s8932
      %8935 = dma.vmem_to_hbm [thread:$0]  %s8933, 384, %s16, [#allocation5]
    $region69: #{_lambda_.1} parent=1 // pred_fallthru
      _
    // Predicated region
    $region70: #{_lambda_.1} parent=1 // pred_check
      _
    $region71: #{_lambda_.1} parent=1 // pred_check_branch
      %8937 = sbr.rel (0) target = $region73
    $region72: #{_lambda_.1} parent=1 // pred_region
      %s8939 = ssub.s32 32, 32
      %8940 = vsyncadd [#allocation5], %s8939
      %s8942 = sshll.u32 [#allocation6], 4
      %s8943 = int_to_ptr.vmem [resolvable:$true] %s8942
      %8945 = dma.vmem_to_hbm [thread:$0]  %s8943, 32, %s17, [#allocation5]
    $region73: #{_lambda_.1} parent=1 // pred_fallthru
      _
    // Predicated region
    $region74: #{_lambda_.1} parent=1 // pred_check
      _
    $region75: #{_lambda_.1} parent=1 // pred_check_branch
      %8947 = sbr.rel (0) target = $region77
    $region76: #{_lambda_.1} parent=1 // pred_region
      %8948 = dma.done [#allocation3], 384
    $region77: #{_lambda_.1} parent=1 // pred_fallthru
      _
    // Predicated region
    $region78: #{_lambda_.1} parent=1 // pred_check
      _
    $region79: #{_lambda_.1} parent=1 // pred_check_branch
      %8950 = sbr.rel (0) target = $region81
    $region80: #{_lambda_.1} parent=1 // pred_region
      %8951 = dma.done [#allocation5], 384
    $region81: #{_lambda_.1} parent=1 // pred_fallthru
      _
    // Predicated region
    $region82: #{_lambda_.1} parent=1 // pred_check
      _
    $region83: #{_lambda_.1} parent=1 // pred_check_branch
      %8953 = sbr.rel (0) target = $region85
    $region84: #{_lambda_.1} parent=1 // pred_region
      %8954 = dma.done [#allocation5], 32
    $region85: #{_lambda_.1} parent=1 // pred_fallthru
      _
    %8955 = vsyncpa [#allocation3], 1
    %8956 = vsyncpa [#allocation5], 1

</llo_original>
